<compile_context>
chip_gen: v6e
topology: v6e:2x2x1
jax: 0.10.0
libtpu: 0.0.40
codegen_flags: <defaults>
</compile_context>

<pallas_src>
import jax
import jax.numpy as jnp
from jax.experimental import pallas as pl
from jax.experimental.pallas import tpu as pltpu


def rdvc_kernel(x_ref, avg_ref, g0_ref, b0_ref, t0_ref, cb0_ref,
                g1_ref, b1_ref, t1_ref, cb1_ref, o_ref, pad_ref):
    B, D, H, WC = x_ref.shape          # WC = W * C (lane-dense channel axis)
    M = B * D * H
    eps = 1e-6
    f32 = jnp.float32

    # Zero ONLY the D/H halo faces of the padded scratch.  The W halo is folded into the
    # banded Toeplitz weights and the interior is fully overwritten before each conv.
    # (Every grid step re-zeroes its own halo: correct under a "parallel" batch grid.)
    pad_ref[:, 0:1, :, :] = jnp.zeros((B, 1, H + 2, WC), f32)
    pad_ref[:, D + 1:D + 2, :, :] = jnp.zeros((B, 1, H + 2, WC), f32)
    pad_ref[:, 1:D + 1, 0:1, :] = jnp.zeros((B, D, 1, WC), f32)
    pad_ref[:, 1:D + 1, H + 1:H + 2, :] = jnp.zeros((B, D, 1, WC), f32)

    # Hoisted parameter reads (all lane-dense (1, W*C) tiles / the (W*C, W*C) mean matrix).
    avg = avg_ref[...]
    g0, b0, cb0 = g0_ref[...], b0_ref[...], cb0_ref[...]
    g1, b1, cb1 = g1_ref[...], b1_ref[...], cb1_ref[...]

    x = x_ref[...].astype(f32).reshape(M, WC)

    def layernorm_cf(v, g, b):
        # channels_first LayerNorm over C computed in the lane-dense (M, W*C) layout:
        # `avg` is block-diagonal with ones(C,C)/C blocks, so v @ avg puts each C-group's
        # mean on every lane of that group — no (W, C) <-> W*C relayout needed.
        u = jnp.dot(v, avg, preferred_element_type=f32)
        d = v - u
        s = jnp.dot(d * d, avg, preferred_element_type=f32)   # biased variance per location
        return d * jax.lax.rsqrt(s + eps) * g + b

    def conv3x3x3(v, t_ref, cb):
        # 3x3x3 conv (stride 1, pad 1) as 9 block-Toeplitz matmuls: the W axis and its
        # padding live inside the banded (W*C, W*C) weights, so every store/load/matmul
        # here is 256-lane dense and there is no im2col buffer at all.
        pad_ref[:, 1:D + 1, 1:H + 1, :] = v.reshape(B, D, H, WC)
        acc = jnp.zeros((M, WC), f32)
        for kd in range(3):
            for kh in range(3):
                plane = pad_ref[:, kd:kd + D, kh:kh + H, :]          # (B, D, H, W*C) f32
                acc = acc + jnp.dot(
                    plane.reshape(M, WC).astype(jnp.bfloat16),       # one cast per plane
                    t_ref[kd * 3 + kh],                              # (W*C, W*C) bf16
                    preferred_element_type=f32)
        return acc + cb

    # dcn0: LayerNorm -> conv -> LeakyReLU(0.1)
    y = conv3x3x3(layernorm_cf(x, g0, b0), t0_ref, cb0)
    y = jnp.where(y >= 0.0, y, 0.1 * y)
    # dcn1: LayerNorm -> conv
    y = conv3x3x3(layernorm_cf(y, g1, b1), t1_ref, cb1)

    # Residual add; output block is (B, D, H, W*C): 256-lane unmasked stores.
    o_ref[...] = (y + x).reshape(B, D, H, WC).astype(o_ref.dtype)


def _num_tensorcores():
    """Best-effort TensorCores-per-device count (>1 on v7x / megacore). Perf-only."""
    try:
        info = pltpu.get_tpu_info()
        for name in ("num_cores", "core_count", "num_tensorcores", "tensorcore_count",
                     "cores_per_chip", "num_cores_per_chip"):
            v = getattr(info, name, None)
            if isinstance(v, int) and v > 0:
                return v
    except Exception:
        pass
    try:
        v = getattr(jax.devices()[0], "num_cores", None)
        if isinstance(v, int) and v > 0:
            return v
    except Exception:
        pass
    return 1


def pack_rdvc_params(params, spatial_dhw):
    """One-time parameter packing — hoist this out of the hot path (do once per step).

    Returns (avg, g0, b0, T0, cb0, g1, b1, T1, cb1):
      avg : (W*C, W*C) f32 block-diagonal group-mean matrix (ones(C,C)/C blocks)
      g/b/cb : (1, W*C) f32 lane-tiled LayerNorm / conv-bias params
      T  : (9, W*C, W*C) bf16 banded block-Toeplitz weights, one per (kd, kh) tap
    """
    D, H, W = spatial_dhw
    g0, b0, w0, cb0, g1, b1, w1, cb1 = params
    C = int(g0.shape[0])
    WC = W * C
    f32 = jnp.float32

    def toeplitz(w):
        # (Cout, Cin, kd, kh, kw) -> 9 banded (W*C, W*C) matrices (kw/W-padding folded in).
        wt = jnp.transpose(w.astype(f32), (2, 3, 4, 1, 0))        # (kd, kh, kw, Cin, Cout)
        t = jnp.zeros((9, W, C, W, C), f32)
        for kd in range(3):
            for kh in range(3):
                for kw in range(3):
                    for wo in range(W):
                        wi = wo + kw - 1                          # pad=1 along W
                        if 0 <= wi < W:
                            t = t.at[kd * 3 + kh, wi, :, wo, :].set(wt[kd, kh, kw])
        return t.reshape(9, WC, WC).astype(jnp.bfloat16)

    def tile_c(p):
        # lane layout w*C + c -> p[c]
        return jnp.tile(p.reshape(1, C).astype(f32), (1, W))

    avg = jnp.kron(jnp.eye(W, dtype=f32), jnp.ones((C, C), f32) / C)   # (W*C, W*C)
    return (avg,
            tile_c(g0), tile_c(b0), toeplitz(w0), tile_c(cb0),
            tile_c(g1), tile_c(b1), toeplitz(w1), tile_c(cb1))


def rdvc_pallas_ndhwc(x_ndhwc, packed_params, *, batch_grid=None):
    """RDVC forward on channels-last input (N, D, H, W, C); returns the same layout.

    Preferred entry point: the (N, D, H, W*C) kernel layout is a free reshape from NDHWC,
    so no boundary transposes are needed end-to-end.
    """
    N, D, H, W, C = x_ndhwc.shape
    avg, g0, b0, t0, cb0, g1, b1, t1, cb1 = packed_params
    WC = W * C

    if batch_grid is None:
        batch_grid = _num_tensorcores() > 1     # v7x: shard the batch across TensorCores
    B = 1 if (batch_grid and N > 1) else N      # v5e/v6e: fold the batch into one block

    x3 = x_ndhwc.reshape(N, D, H, WC)           # contiguous minor-dim merge: free

    def full(shape):
        return pl.BlockSpec(shape, lambda n: (0,) * len(shape))

    # Advisory cost for XLA's scheduler around this small custom call.
    conv_flops = 2 * 9 * 2 * N * D * H * WC * WC
    ln_flops = 2 * 2 * 2 * N * D * H * WC * WC
    cost = pl.CostEstimate(
        flops=int(conv_flops + ln_flops),
        transcendentals=int(2 * N * D * H * WC),
        bytes_accessed=int(2 * N * D * H * WC * x3.dtype.itemsize
                           + 2 * 9 * WC * WC * 2 + WC * WC * 4 + 6 * WC * 4))

    out = pl.pallas_call(
        rdvc_kernel,
        out_shape=jax.ShapeDtypeStruct((N, D, H, WC), x_ndhwc.dtype),
        grid=(N // B,),
        in_specs=[
            pl.BlockSpec((B, D, H, WC), lambda n: (n, 0, 0, 0)),
            full((WC, WC)),
            full((1, WC)), full((1, WC)), full((9, WC, WC)), full((1, WC)),
            full((1, WC)), full((1, WC)), full((9, WC, WC)), full((1, WC)),
        ],
        out_specs=pl.BlockSpec((B, D, H, WC), lambda n: (n, 0, 0, 0)),
        scratch_shapes=[
            pltpu.VMEM((B, D + 2, H + 2, WC), jnp.float32),   # D/H zero-padded activations
        ],
        compiler_params=pltpu.CompilerParams(
            dimension_semantics=(("parallel",) if B < N else ("arbitrary",)),
            vmem_limit_bytes=32 * 1024 * 1024),
        cost_estimate=cost,
    )(x3, avg, g0, b0, t0, cb0, g1, b1, t1, cb1)

    return out.reshape(N, D, H, W, C)


def rdvc_pallas(x_ncdhw, params, *, batch_grid=None):
    """NCDHW interface matching the PyTorch module.

    Prefer rdvc_pallas_ndhwc + pack_rdvc_params (packed once) in a real graph: the two
    NCDHW<->NDHWC boundary transposes here cost as much HBM traffic as the kernel itself.
    """
    N, C, D, H, W = x_ncdhw.shape
    packed = pack_rdvc_params(params, (D, H, W))
    x = jnp.transpose(x_ncdhw, (0, 2, 3, 4, 1))                  # (N, D, H, W, C)
    y = rdvc_pallas_ndhwc(x, packed, batch_grid=batch_grid)
    return jnp.transpose(y, (0, 4, 1, 2, 3))                     # back to NCDHW


def rdvc_ref(x, params):
    """Pure-JAX f32 reference mirroring the PyTorch forward (NCDHW)."""
    g0, b0, w0, cb0, g1, b1, w1, cb1 = params
    eps = 1e-6

    def ln_cf(v, g, b):
        u = v.mean(axis=1, keepdims=True)
        s = ((v - u) ** 2).mean(axis=1, keepdims=True)
        vn = (v - u) / jnp.sqrt(s + eps)
        return g[None, :, None, None, None] * vn + b[None, :, None, None, None]

    def conv3(v, w, cb):
        out = jax.lax.conv_general_dilated(
            v, w, window_strides=(1, 1, 1),
            padding=((1, 1), (1, 1), (1, 1)),
            dimension_numbers=('NCDHW', 'OIDHW', 'NCDHW'))
        return out + cb[None, :, None, None, None]

    y = conv3(ln_cf(x, g0, b0), w0, cb0)
    y = jnp.where(y >= 0, y, 0.1 * y)
    y = conv3(ln_cf(y, g1, b1), w1, cb1)
    return y + x


if __name__ == "__main__":
    N, C, D, H, W = 2, 32, 4, 8, 8          # nf = 32

    key = jax.random.PRNGKey(0)
    kx, k0, k1, k2, k3 = jax.random.split(key, 5)
    x = jax.random.normal(kx, (N, C, D, H, W), jnp.float32)

    # deterministic parameter init (LayerNorm: ones/zeros, conv: scaled normal)
    fan_in = 27 * C
    g0 = jnp.ones((C,), jnp.float32); b0 = jnp.zeros((C,), jnp.float32)
    g1 = jnp.ones((C,), jnp.float32); b1 = jnp.zeros((C,), jnp.float32)
    w0 = jax.random.normal(k0, (C, C, 3, 3, 3), jnp.float32) / jnp.sqrt(fan_in)
    w1 = jax.random.normal(k1, (C, C, 3, 3, 3), jnp.float32) / jnp.sqrt(fan_in)
    cb0 = jax.random.normal(k2, (C,), jnp.float32) * 0.01
    cb1 = jax.random.normal(k3, (C,), jnp.float32) * 0.01
    params = (g0, b0, w0, cb0, g1, b1, w1, cb1)

    out = jax.block_until_ready(rdvc_pallas(x, params))
    assert out.shape == x.shape and out.dtype == x.dtype

    ref = rdvc_ref(x, params)
    diff = out - ref
    max_err = float(jnp.max(jnp.abs(diff)))
    rel_rms = float(jnp.sqrt(jnp.mean(diff * diff)) / (jnp.sqrt(jnp.mean(ref * ref)) + 1e-12))
    # Tolerance accounts for bf16 MXU conv operands (f32 accumulation) across two stacked convs.
    if max_err > 3e-2 or rel_rms > 1e-2:
        raise AssertionError(
            f"kernel/reference mismatch: max abs err {max_err}, rel rms {rel_rms}")

    print("KERNEL_OK")
</pallas_src>

<mosaic_0001>
module attributes {stable_mosaic.version = 11 : i64} {
  func.func @rdvc_kernel(%arg0: i32, %arg1: memref<2x4x8x256xf32, #tpu.memory_space<vmem>>, %arg2: memref<256x256xf32, #tpu.memory_space<vmem>>, %arg3: memref<1x256xf32, #tpu.memory_space<vmem>>, %arg4: memref<1x256xf32, #tpu.memory_space<vmem>>, %arg5: memref<9x256x256xbf16, #tpu.memory_space<vmem>>, %arg6: memref<1x256xf32, #tpu.memory_space<vmem>>, %arg7: memref<1x256xf32, #tpu.memory_space<vmem>>, %arg8: memref<1x256xf32, #tpu.memory_space<vmem>>, %arg9: memref<9x256x256xbf16, #tpu.memory_space<vmem>>, %arg10: memref<1x256xf32, #tpu.memory_space<vmem>>, %arg11: memref<2x4x8x256xf32, #tpu.memory_space<vmem>>, %arg12: memref<2x6x10x256xf32, #tpu.memory_space<vmem>>) attributes {dimension_semantics = [#tpu.dimension_semantics<arbitrary>], iteration_bounds = array<i64: 1>, scalar_prefetch = 0 : i64, scratch_operands = 1 : i64, tpu.core_type = #tpu.core_type<tc>, window_params = [{transform_indices = @transform_0, window_bounds = array<i64: 2, 4, 8, 256>}, {pipeline_mode = #tpu.pipeline_mode<synchronous>, transform_indices = @transform_1, window_bounds = array<i64: 256, 256>}, {pipeline_mode = #tpu.pipeline_mode<synchronous>, transform_indices = @transform_2, window_bounds = array<i64: 1, 256>}, {pipeline_mode = #tpu.pipeline_mode<synchronous>, transform_indices = @transform_3, window_bounds = array<i64: 1, 256>}, {pipeline_mode = #tpu.pipeline_mode<synchronous>, transform_indices = @transform_4, window_bounds = array<i64: 9, 256, 256>}, {pipeline_mode = #tpu.pipeline_mode<synchronous>, transform_indices = @transform_5, window_bounds = array<i64: 1, 256>}, {pipeline_mode = #tpu.pipeline_mode<synchronous>, transform_indices = @transform_6, window_bounds = array<i64: 1, 256>}, {pipeline_mode = #tpu.pipeline_mode<synchronous>, transform_indices = @transform_7, window_bounds = array<i64: 1, 256>}, {pipeline_mode = #tpu.pipeline_mode<synchronous>, transform_indices = @transform_8, window_bounds = array<i64: 9, 256, 256>}, {pipeline_mode = #tpu.pipeline_mode<synchronous>, transform_indices = @transform_9, window_bounds = array<i64: 1, 256>}, {transform_indices = @transform_10, window_bounds = array<i64: 2, 4, 8, 256>}]} {
    %cst = arith.constant 0.000000e+00 : f32
    %0 = vector.broadcast %cst : f32 to vector<2x1x10x256xf32>
    %c0 = arith.constant 0 : index
    %c0_0 = arith.constant 0 : index
    %c0_1 = arith.constant 0 : index
    %c0_2 = arith.constant 0 : index
    %1 = vector.load %arg12[%c0, %c0_0, %c0_1, %c0_2] : memref<2x6x10x256xf32, #tpu.memory_space<vmem>>, vector<2x1x10x256xf32>
    tpu.vector_store %arg12[%c0, %c0_0, %c0_1, %c0_2], %0 {strides = array<i32>} : memref<2x6x10x256xf32, #tpu.memory_space<vmem>>, vector<2x1x10x256xf32>,
    %cst_3 = arith.constant 0.000000e+00 : f32
    %2 = vector.broadcast %cst_3 : f32 to vector<2x1x10x256xf32>
    %c0_4 = arith.constant 0 : index
    %c5 = arith.constant 5 : index
    %c0_5 = arith.constant 0 : index
    %c0_6 = arith.constant 0 : index
    %3 = vector.load %arg12[%c0_4, %c5, %c0_5, %c0_6] : memref<2x6x10x256xf32, #tpu.memory_space<vmem>>, vector<2x1x10x256xf32>
    tpu.vector_store %arg12[%c0_4, %c5, %c0_5, %c0_6], %2 {strides = array<i32>} : memref<2x6x10x256xf32, #tpu.memory_space<vmem>>, vector<2x1x10x256xf32>,
    %cst_7 = arith.constant 0.000000e+00 : f32
    %4 = vector.broadcast %cst_7 : f32 to vector<2x4x1x256xf32>
    %c0_8 = arith.constant 0 : index
    %c1 = arith.constant 1 : index
    %c0_9 = arith.constant 0 : index
    %c0_10 = arith.constant 0 : index
    %5 = vector.load %arg12[%c0_8, %c1, %c0_9, %c0_10] : memref<2x6x10x256xf32, #tpu.memory_space<vmem>>, vector<2x4x1x256xf32>
    tpu.vector_store %arg12[%c0_8, %c1, %c0_9, %c0_10], %4 {strides = array<i32>} : memref<2x6x10x256xf32, #tpu.memory_space<vmem>>, vector<2x4x1x256xf32>,
    %cst_11 = arith.constant 0.000000e+00 : f32
    %6 = vector.broadcast %cst_11 : f32 to vector<2x4x1x256xf32>
    %c0_12 = arith.constant 0 : index
    %c1_13 = arith.constant 1 : index
    %c9 = arith.constant 9 : index
    %c0_14 = arith.constant 0 : index
    %7 = vector.load %arg12[%c0_12, %c1_13, %c9, %c0_14] : memref<2x6x10x256xf32, #tpu.memory_space<vmem>>, vector<2x4x1x256xf32>
    tpu.vector_store %arg12[%c0_12, %c1_13, %c9, %c0_14], %6 {strides = array<i32>} : memref<2x6x10x256xf32, #tpu.memory_space<vmem>>, vector<2x4x1x256xf32>,
    %c0_15 = arith.constant 0 : index
    %c0_16 = arith.constant 0 : index
    %8 = vector.load %arg2[%c0_15, %c0_16] : memref<256x256xf32, #tpu.memory_space<vmem>>, vector<256x256xf32>
    %c0_17 = arith.constant 0 : index
    %c0_18 = arith.constant 0 : index
    %9 = vector.load %arg3[%c0_17, %c0_18] : memref<1x256xf32, #tpu.memory_space<vmem>>, vector<1x256xf32>
    %c0_19 = arith.constant 0 : index
    %c0_20 = arith.constant 0 : index
    %10 = vector.load %arg4[%c0_19, %c0_20] : memref<1x256xf32, #tpu.memory_space<vmem>>, vector<1x256xf32>
    %c0_21 = arith.constant 0 : index
    %c0_22 = arith.constant 0 : index
    %11 = vector.load %arg6[%c0_21, %c0_22] : memref<1x256xf32, #tpu.memory_space<vmem>>, vector<1x256xf32>
    %c0_23 = arith.constant 0 : index
    %c0_24 = arith.constant 0 : index
    %12 = vector.load %arg7[%c0_23, %c0_24] : memref<1x256xf32, #tpu.memory_space<vmem>>, vector<1x256xf32>
    %c0_25 = arith.constant 0 : index
    %c0_26 = arith.constant 0 : index
    %13 = vector.load %arg8[%c0_25, %c0_26] : memref<1x256xf32, #tpu.memory_space<vmem>>, vector<1x256xf32>
    %c0_27 = arith.constant 0 : index
    %c0_28 = arith.constant 0 : index
    %14 = vector.load %arg10[%c0_27, %c0_28] : memref<1x256xf32, #tpu.memory_space<vmem>>, vector<1x256xf32>
    %c0_29 = arith.constant 0 : index
    %c0_30 = arith.constant 0 : index
    %c0_31 = arith.constant 0 : index
    %c0_32 = arith.constant 0 : index
    %15 = vector.load %arg1[%c0_29, %c0_30, %c0_31, %c0_32] : memref<2x4x8x256xf32, #tpu.memory_space<vmem>>, vector<2x4x8x256xf32>
    %16 = vector.shape_cast %15 : vector<2x4x8x256xf32> to vector<64x256xf32>
    %cst_33 = arith.constant dense<0.000000e+00> : vector<64x256xf32>
    %17 = tpu.matmul %16, %8, %cst_33 {dimension_numbers = #tpu.dot_dimension_numbers<[1], [0], [0], [1], [0, 0, 1, 1], [], []>} : vector<64x256xf32>, vector<256x256xf32>, vector<64x256xf32> -> vector<64x256xf32>
    %18 = arith.subf %16, %17 : vector<64x256xf32>
    %19 = arith.mulf %18, %18 : vector<64x256xf32>
    %cst_34 = arith.constant dense<0.000000e+00> : vector<64x256xf32>
    %20 = tpu.matmul %19, %8, %cst_34 {dimension_numbers = #tpu.dot_dimension_numbers<[1], [0], [0], [1], [0, 0, 1, 1], [], []>} : vector<64x256xf32>, vector<256x256xf32>, vector<64x256xf32> -> vector<64x256xf32>
    %cst_35 = arith.constant 9.99999997E-7 : f32
    %21 = vector.broadcast %cst_35 : f32 to vector<64x256xf32>
    %22 = arith.addf %20, %21 : vector<64x256xf32>
    %23 = math.rsqrt %22 : vector<64x256xf32>
    %24 = arith.mulf %18, %23 : vector<64x256xf32>
    %25 = vector.broadcast %9 : vector<1x256xf32> to vector<64x256xf32>
    %26 = arith.mulf %24, %25 : vector<64x256xf32>
    %27 = vector.broadcast %10 : vector<1x256xf32> to vector<64x256xf32>
    %28 = arith.addf %26, %27 : vector<64x256xf32>
    %29 = vector.shape_cast %28 : vector<64x256xf32> to vector<2x4x8x256xf32>
    %c0_36 = arith.constant 0 : index
    %c1_37 = arith.constant 1 : index
    %c1_38 = arith.constant 1 : index
    %c0_39 = arith.constant 0 : index
    %30 = vector.load %arg12[%c0_36, %c1_37, %c1_38, %c0_39] : memref<2x6x10x256xf32, #tpu.memory_space<vmem>>, vector<2x4x8x256xf32>
    tpu.vector_store %arg12[%c0_36, %c1_37, %c1_38, %c0_39], %29 {strides = array<i32>} : memref<2x6x10x256xf32, #tpu.memory_space<vmem>>, vector<2x4x8x256xf32>,
    %cst_40 = arith.constant 0.000000e+00 : f32
    %31 = vector.broadcast %cst_40 : f32 to vector<64x256xf32>
    %c0_41 = arith.constant 0 : index
    %c0_42 = arith.constant 0 : index
    %c0_43 = arith.constant 0 : index
    %c0_44 = arith.constant 0 : index
    %32 = vector.load %arg12[%c0_41, %c0_42, %c0_43, %c0_44] : memref<2x6x10x256xf32, #tpu.memory_space<vmem>>, vector<2x4x8x256xf32>
    %33 = vector.shape_cast %32 : vector<2x4x8x256xf32> to vector<64x256xf32>
    %34 = arith.truncf %33 : vector<64x256xf32> to vector<64x256xbf16>
    %c0_45 = arith.constant 0 : index
    %c0_46 = arith.constant 0 : index
    %c0_47 = arith.constant 0 : index
    %35 = vector.load %arg5[%c0_45, %c0_46, %c0_47] : memref<9x256x256xbf16, #tpu.memory_space<vmem>>, vector<1x256x256xbf16>
    %36 = vector.shape_cast %35 : vector<1x256x256xbf16> to vector<256x256xbf16>
    %cst_48 = arith.constant dense<0.000000e+00> : vector<64x256xf32>
    %37 = tpu.matmul %34, %36, %cst_48 {dimension_numbers = #tpu.dot_dimension_numbers<[1], [0], [0], [1], [0, 0, 1, 1], [], []>} : vector<64x256xbf16>, vector<256x256xbf16>, vector<64x256xf32> -> vector<64x256xf32>
    %38 = arith.addf %31, %37 : vector<64x256xf32>
    %c0_49 = arith.constant 0 : index
    %c0_50 = arith.constant 0 : index
    %c1_51 = arith.constant 1 : index
    %c0_52 = arith.constant 0 : index
    %39 = vector.load %arg12[%c0_49, %c0_50, %c1_51, %c0_52] : memref<2x6x10x256xf32, #tpu.memory_space<vmem>>, vector<2x4x8x256xf32>
    %40 = vector.shape_cast %39 : vector<2x4x8x256xf32> to vector<64x256xf32>
    %41 = arith.truncf %40 : vector<64x256xf32> to vector<64x256xbf16>
    %c1_53 = arith.constant 1 : index
    %c0_54 = arith.constant 0 : index
    %c0_55 = arith.constant 0 : index
    %42 = vector.load %arg5[%c1_53, %c0_54, %c0_55] : memref<9x256x256xbf16, #tpu.memory_space<vmem>>, vector<1x256x256xbf16>
    %43 = vector.shape_cast %42 : vector<1x256x256xbf16> to vector<256x256xbf16>
    %cst_56 = arith.constant dense<0.000000e+00> : vector<64x256xf32>
    %44 = tpu.matmul %41, %43, %cst_56 {dimension_numbers = #tpu.dot_dimension_numbers<[1], [0], [0], [1], [0, 0, 1, 1], [], []>} : vector<64x256xbf16>, vector<256x256xbf16>, vector<64x256xf32> -> vector<64x256xf32>
    %45 = arith.addf %38, %44 : vector<64x256xf32>
    %c0_57 = arith.constant 0 : index
    %c0_58 = arith.constant 0 : index
    %c2 = arith.constant 2 : index
    %c0_59 = arith.constant 0 : index
    %46 = vector.load %arg12[%c0_57, %c0_58, %c2, %c0_59] : memref<2x6x10x256xf32, #tpu.memory_space<vmem>>, vector<2x4x8x256xf32>
    %47 = vector.shape_cast %46 : vector<2x4x8x256xf32> to vector<64x256xf32>
    %48 = arith.truncf %47 : vector<64x256xf32> to vector<64x256xbf16>
    %c2_60 = arith.constant 2 : index
    %c0_61 = arith.constant 0 : index
    %c0_62 = arith.constant 0 : index
    %49 = vector.load %arg5[%c2_60, %c0_61, %c0_62] : memref<9x256x256xbf16, #tpu.memory_space<vmem>>, vector<1x256x256xbf16>
    %50 = vector.shape_cast %49 : vector<1x256x256xbf16> to vector<256x256xbf16>
    %cst_63 = arith.constant dense<0.000000e+00> : vector<64x256xf32>
    %51 = tpu.matmul %48, %50, %cst_63 {dimension_numbers = #tpu.dot_dimension_numbers<[1], [0], [0], [1], [0, 0, 1, 1], [], []>} : vector<64x256xbf16>, vector<256x256xbf16>, vector<64x256xf32> -> vector<64x256xf32>
    %52 = arith.addf %45, %51 : vector<64x256xf32>
    %c0_64 = arith.constant 0 : index
    %c1_65 = arith.constant 1 : index
    %c0_66 = arith.constant 0 : index
    %c0_67 = arith.constant 0 : index
    %53 = vector.load %arg12[%c0_64, %c1_65, %c0_66, %c0_67] : memref<2x6x10x256xf32, #tpu.memory_space<vmem>>, vector<2x4x8x256xf32>
    %54 = vector.shape_cast %53 : vector<2x4x8x256xf32> to vector<64x256xf32>
    %55 = arith.truncf %54 : vector<64x256xf32> to vector<64x256xbf16>
    %c3 = arith.constant 3 : index
    %c0_68 = arith.constant 0 : index
    %c0_69 = arith.constant 0 : index
    %56 = vector.load %arg5[%c3, %c0_68, %c0_69] : memref<9x256x256xbf16, #tpu.memory_space<vmem>>, vector<1x256x256xbf16>
    %57 = vector.shape_cast %56 : vector<1x256x256xbf16> to vector<256x256xbf16>
    %cst_70 = arith.constant dense<0.000000e+00> : vector<64x256xf32>
    %58 = tpu.matmul %55, %57, %cst_70 {dimension_numbers = #tpu.dot_dimension_numbers<[1], [0], [0], [1], [0, 0, 1, 1], [], []>} : vector<64x256xbf16>, vector<256x256xbf16>, vector<64x256xf32> -> vector<64x256xf32>
    %59 = arith.addf %52, %58 : vector<64x256xf32>
    %c0_71 = arith.constant 0 : index
    %c1_72 = arith.constant 1 : index
    %c1_73 = arith.constant 1 : index
    %c0_74 = arith.constant 0 : index
    %60 = vector.load %arg12[%c0_71, %c1_72, %c1_73, %c0_74] : memref<2x6x10x256xf32, #tpu.memory_space<vmem>>, vector<2x4x8x256xf32>
    %61 = vector.shape_cast %60 : vector<2x4x8x256xf32> to vector<64x256xf32>
    %62 = arith.truncf %61 : vector<64x256xf32> to vector<64x256xbf16>
    %c4 = arith.constant 4 : index
    %c0_75 = arith.constant 0 : index
    %c0_76 = arith.constant 0 : index
    %63 = vector.load %arg5[%c4, %c0_75, %c0_76] : memref<9x256x256xbf16, #tpu.memory_space<vmem>>, vector<1x256x256xbf16>
    %64 = vector.shape_cast %63 : vector<1x256x256xbf16> to vector<256x256xbf16>
    %cst_77 = arith.constant dense<0.000000e+00> : vector<64x256xf32>
    %65 = tpu.matmul %62, %64, %cst_77 {dimension_numbers = #tpu.dot_dimension_numbers<[1], [0], [0], [1], [0, 0, 1, 1], [], []>} : vector<64x256xbf16>, vector<256x256xbf16>, vector<64x256xf32> -> vector<64x256xf32>
    %66 = arith.addf %59, %65 : vector<64x256xf32>
    %c0_78 = arith.constant 0 : index
    %c1_79 = arith.constant 1 : index
    %c2_80 = arith.constant 2 : index
    %c0_81 = arith.constant 0 : index
    %67 = vector.load %arg12[%c0_78, %c1_79, %c2_80, %c0_81] : memref<2x6x10x256xf32, #tpu.memory_space<vmem>>, vector<2x4x8x256xf32>
    %68 = vector.shape_cast %67 : vector<2x4x8x256xf32> to vector<64x256xf32>
    %69 = arith.truncf %68 : vector<64x256xf32> to vector<64x256xbf16>
    %c5_82 = arith.constant 5 : index
    %c0_83 = arith.constant 0 : index
    %c0_84 = arith.constant 0 : index
    %70 = vector.load %arg5[%c5_82, %c0_83, %c0_84] : memref<9x256x256xbf16, #tpu.memory_space<vmem>>, vector<1x256x256xbf16>
    %71 = vector.shape_cast %70 : vector<1x256x256xbf16> to vector<256x256xbf16>
    %cst_85 = arith.constant dense<0.000000e+00> : vector<64x256xf32>
    %72 = tpu.matmul %69, %71, %cst_85 {dimension_numbers = #tpu.dot_dimension_numbers<[1], [0], [0], [1], [0, 0, 1, 1], [], []>} : vector<64x256xbf16>, vector<256x256xbf16>, vector<64x256xf32> -> vector<64x256xf32>
    %73 = arith.addf %66, %72 : vector<64x256xf32>
    %c0_86 = arith.constant 0 : index
    %c2_87 = arith.constant 2 : index
    %c0_88 = arith.constant 0 : index
    %c0_89 = arith.constant 0 : index
    %74 = vector.load %arg12[%c0_86, %c2_87, %c0_88, %c0_89] : memref<2x6x10x256xf32, #tpu.memory_space<vmem>>, vector<2x4x8x256xf32>
    %75 = vector.shape_cast %74 : vector<2x4x8x256xf32> to vector<64x256xf32>
    %76 = arith.truncf %75 : vector<64x256xf32> to vector<64x256xbf16>
    %c6 = arith.constant 6 : index
    %c0_90 = arith.constant 0 : index
    %c0_91 = arith.constant 0 : index
    %77 = vector.load %arg5[%c6, %c0_90, %c0_91] : memref<9x256x256xbf16, #tpu.memory_space<vmem>>, vector<1x256x256xbf16>
    %78 = vector.shape_cast %77 : vector<1x256x256xbf16> to vector<256x256xbf16>
    %cst_92 = arith.constant dense<0.000000e+00> : vector<64x256xf32>
    %79 = tpu.matmul %76, %78, %cst_92 {dimension_numbers = #tpu.dot_dimension_numbers<[1], [0], [0], [1], [0, 0, 1, 1], [], []>} : vector<64x256xbf16>, vector<256x256xbf16>, vector<64x256xf32> -> vector<64x256xf32>
    %80 = arith.addf %73, %79 : vector<64x256xf32>
    %c0_93 = arith.constant 0 : index
    %c2_94 = arith.constant 2 : index
    %c1_95 = arith.constant 1 : index
    %c0_96 = arith.constant 0 : index
    %81 = vector.load %arg12[%c0_93, %c2_94, %c1_95, %c0_96] : memref<2x6x10x256xf32, #tpu.memory_space<vmem>>, vector<2x4x8x256xf32>
    %82 = vector.shape_cast %81 : vector<2x4x8x256xf32> to vector<64x256xf32>
    %83 = arith.truncf %82 : vector<64x256xf32> to vector<64x256xbf16>
    %c7 = arith.constant 7 : index
    %c0_97 = arith.constant 0 : index
    %c0_98 = arith.constant 0 : index
    %84 = vector.load %arg5[%c7, %c0_97, %c0_98] : memref<9x256x256xbf16, #tpu.memory_space<vmem>>, vector<1x256x256xbf16>
    %85 = vector.shape_cast %84 : vector<1x256x256xbf16> to vector<256x256xbf16>
    %cst_99 = arith.constant dense<0.000000e+00> : vector<64x256xf32>
    %86 = tpu.matmul %83, %85, %cst_99 {dimension_numbers = #tpu.dot_dimension_numbers<[1], [0], [0], [1], [0, 0, 1, 1], [], []>} : vector<64x256xbf16>, vector<256x256xbf16>, vector<64x256xf32> -> vector<64x256xf32>
    %87 = arith.addf %80, %86 : vector<64x256xf32>
    %c0_100 = arith.constant 0 : index
    %c2_101 = arith.constant 2 : index
    %c2_102 = arith.constant 2 : index
    %c0_103 = arith.constant 0 : index
    %88 = vector.load %arg12[%c0_100, %c2_101, %c2_102, %c0_103] : memref<2x6x10x256xf32, #tpu.memory_space<vmem>>, vector<2x4x8x256xf32>
    %89 = vector.shape_cast %88 : vector<2x4x8x256xf32> to vector<64x256xf32>
    %90 = arith.truncf %89 : vector<64x256xf32> to vector<64x256xbf16>
    %c8 = arith.constant 8 : index
    %c0_104 = arith.constant 0 : index
    %c0_105 = arith.constant 0 : index
    %91 = vector.load %arg5[%c8, %c0_104, %c0_105] : memref<9x256x256xbf16, #tpu.memory_space<vmem>>, vector<1x256x256xbf16>
    %92 = vector.shape_cast %91 : vector<1x256x256xbf16> to vector<256x256xbf16>
    %cst_106 = arith.constant dense<0.000000e+00> : vector<64x256xf32>
    %93 = tpu.matmul %90, %92, %cst_106 {dimension_numbers = #tpu.dot_dimension_numbers<[1], [0], [0], [1], [0, 0, 1, 1], [], []>} : vector<64x256xbf16>, vector<256x256xbf16>, vector<64x256xf32> -> vector<64x256xf32>
    %94 = arith.addf %87, %93 : vector<64x256xf32>
    %95 = vector.broadcast %11 : vector<1x256xf32> to vector<64x256xf32>
    %96 = arith.addf %94, %95 : vector<64x256xf32>
    %cst_107 = arith.constant 0.000000e+00 : f32
    %97 = vector.broadcast %cst_107 : f32 to vector<64x256xf32>
    %98 = arith.cmpf oge, %96, %97 : vector<64x256xf32>
    %cst_108 = arith.constant 1.000000e-01 : f32
    %99 = vector.broadcast %cst_108 : f32 to vector<64x256xf32>
    %100 = arith.mulf %99, %96 : vector<64x256xf32>
    %101 = arith.select %98, %96, %100 : vector<64x256xi1>, vector<64x256xf32>
    %cst_109 = arith.constant dense<0.000000e+00> : vector<64x256xf32>
    %102 = tpu.matmul %101, %8, %cst_109 {dimension_numbers = #tpu.dot_dimension_numbers<[1], [0], [0], [1], [0, 0, 1, 1], [], []>} : vector<64x256xf32>, vector<256x256xf32>, vector<64x256xf32> -> vector<64x256xf32>
    %103 = arith.subf %101, %102 : vector<64x256xf32>
    %104 = arith.mulf %103, %103 : vector<64x256xf32>
    %cst_110 = arith.constant dense<0.000000e+00> : vector<64x256xf32>
    %105 = tpu.matmul %104, %8, %cst_110 {dimension_numbers = #tpu.dot_dimension_numbers<[1], [0], [0], [1], [0, 0, 1, 1], [], []>} : vector<64x256xf32>, vector<256x256xf32>, vector<64x256xf32> -> vector<64x256xf32>
    %cst_111 = arith.constant 9.99999997E-7 : f32
    %106 = vector.broadcast %cst_111 : f32 to vector<64x256xf32>
    %107 = arith.addf %105, %106 : vector<64x256xf32>
    %108 = math.rsqrt %107 : vector<64x256xf32>
    %109 = arith.mulf %103, %108 : vector<64x256xf32>
    %110 = vector.broadcast %12 : vector<1x256xf32> to vector<64x256xf32>
    %111 = arith.mulf %109, %110 : vector<64x256xf32>
    %112 = vector.broadcast %13 : vector<1x256xf32> to vector<64x256xf32>
    %113 = arith.addf %111, %112 : vector<64x256xf32>
    %114 = vector.shape_cast %113 : vector<64x256xf32> to vector<2x4x8x256xf32>
    %c0_112 = arith.constant 0 : index
    %c1_113 = arith.constant 1 : index
    %c1_114 = arith.constant 1 : index
    %c0_115 = arith.constant 0 : index
    %115 = vector.load %arg12[%c0_112, %c1_113, %c1_114, %c0_115] : memref<2x6x10x256xf32, #tpu.memory_space<vmem>>, vector<2x4x8x256xf32>
    tpu.vector_store %arg12[%c0_112, %c1_113, %c1_114, %c0_115], %114 {strides = array<i32>} : memref<2x6x10x256xf32, #tpu.memory_space<vmem>>, vector<2x4x8x256xf32>,
    %cst_116 = arith.constant 0.000000e+00 : f32
    %116 = vector.broadcast %cst_116 : f32 to vector<64x256xf32>
    %c0_117 = arith.constant 0 : index
    %c0_118 = arith.constant 0 : index
    %c0_119 = arith.constant 0 : index
    %c0_120 = arith.constant 0 : index
    %117 = vector.load %arg12[%c0_117, %c0_118, %c0_119, %c0_120] : memref<2x6x10x256xf32, #tpu.memory_space<vmem>>, vector<2x4x8x256xf32>
    %118 = vector.shape_cast %117 : vector<2x4x8x256xf32> to vector<64x256xf32>
    %119 = arith.truncf %118 : vector<64x256xf32> to vector<64x256xbf16>
    %c0_121 = arith.constant 0 : index
    %c0_122 = arith.constant 0 : index
    %c0_123 = arith.constant 0 : index
    %120 = vector.load %arg9[%c0_121, %c0_122, %c0_123] : memref<9x256x256xbf16, #tpu.memory_space<vmem>>, vector<1x256x256xbf16>
    %121 = vector.shape_cast %120 : vector<1x256x256xbf16> to vector<256x256xbf16>
    %cst_124 = arith.constant dense<0.000000e+00> : vector<64x256xf32>
    %122 = tpu.matmul %119, %121, %cst_124 {dimension_numbers = #tpu.dot_dimension_numbers<[1], [0], [0], [1], [0, 0, 1, 1], [], []>} : vector<64x256xbf16>, vector<256x256xbf16>, vector<64x256xf32> -> vector<64x256xf32>
    %123 = arith.addf %116, %122 : vector<64x256xf32>
    %c0_125 = arith.constant 0 : index
    %c0_126 = arith.constant 0 : index
    %c1_127 = arith.constant 1 : index
    %c0_128 = arith.constant 0 : index
    %124 = vector.load %arg12[%c0_125, %c0_126, %c1_127, %c0_128] : memref<2x6x10x256xf32, #tpu.memory_space<vmem>>, vector<2x4x8x256xf32>
    %125 = vector.shape_cast %124 : vector<2x4x8x256xf32> to vector<64x256xf32>
    %126 = arith.truncf %125 : vector<64x256xf32> to vector<64x256xbf16>
    %c1_129 = arith.constant 1 : index
    %c0_130 = arith.constant 0 : index
    %c0_131 = arith.constant 0 : index
    %127 = vector.load %arg9[%c1_129, %c0_130, %c0_131] : memref<9x256x256xbf16, #tpu.memory_space<vmem>>, vector<1x256x256xbf16>
    %128 = vector.shape_cast %127 : vector<1x256x256xbf16> to vector<256x256xbf16>
    %cst_132 = arith.constant dense<0.000000e+00> : vector<64x256xf32>
    %129 = tpu.matmul %126, %128, %cst_132 {dimension_numbers = #tpu.dot_dimension_numbers<[1], [0], [0], [1], [0, 0, 1, 1], [], []>} : vector<64x256xbf16>, vector<256x256xbf16>, vector<64x256xf32> -> vector<64x256xf32>
    %130 = arith.addf %123, %129 : vector<64x256xf32>
    %c0_133 = arith.constant 0 : index
    %c0_134 = arith.constant 0 : index
    %c2_135 = arith.constant 2 : index
    %c0_136 = arith.constant 0 : index
    %131 = vector.load %arg12[%c0_133, %c0_134, %c2_135, %c0_136] : memref<2x6x10x256xf32, #tpu.memory_space<vmem>>, vector<2x4x8x256xf32>
    %132 = vector.shape_cast %131 : vector<2x4x8x256xf32> to vector<64x256xf32>
    %133 = arith.truncf %132 : vector<64x256xf32> to vector<64x256xbf16>
    %c2_137 = arith.constant 2 : index
    %c0_138 = arith.constant 0 : index
    %c0_139 = arith.constant 0 : index
    %134 = vector.load %arg9[%c2_137, %c0_138, %c0_139] : memref<9x256x256xbf16, #tpu.memory_space<vmem>>, vector<1x256x256xbf16>
    %135 = vector.shape_cast %134 : vector<1x256x256xbf16> to vector<256x256xbf16>
    %cst_140 = arith.constant dense<0.000000e+00> : vector<64x256xf32>
    %136 = tpu.matmul %133, %135, %cst_140 {dimension_numbers = #tpu.dot_dimension_numbers<[1], [0], [0], [1], [0, 0, 1, 1], [], []>} : vector<64x256xbf16>, vector<256x256xbf16>, vector<64x256xf32> -> vector<64x256xf32>
    %137 = arith.addf %130, %136 : vector<64x256xf32>
    %c0_141 = arith.constant 0 : index
    %c1_142 = arith.constant 1 : index
    %c0_143 = arith.constant 0 : index
    %c0_144 = arith.constant 0 : index
    %138 = vector.load %arg12[%c0_141, %c1_142, %c0_143, %c0_144] : memref<2x6x10x256xf32, #tpu.memory_space<vmem>>, vector<2x4x8x256xf32>
    %139 = vector.shape_cast %138 : vector<2x4x8x256xf32> to vector<64x256xf32>
    %140 = arith.truncf %139 : vector<64x256xf32> to vector<64x256xbf16>
    %c3_145 = arith.constant 3 : index
    %c0_146 = arith.constant 0 : index
    %c0_147 = arith.constant 0 : index
    %141 = vector.load %arg9[%c3_145, %c0_146, %c0_147] : memref<9x256x256xbf16, #tpu.memory_space<vmem>>, vector<1x256x256xbf16>
    %142 = vector.shape_cast %141 : vector<1x256x256xbf16> to vector<256x256xbf16>
    %cst_148 = arith.constant dense<0.000000e+00> : vector<64x256xf32>
    %143 = tpu.matmul %140, %142, %cst_148 {dimension_numbers = #tpu.dot_dimension_numbers<[1], [0], [0], [1], [0, 0, 1, 1], [], []>} : vector<64x256xbf16>, vector<256x256xbf16>, vector<64x256xf32> -> vector<64x256xf32>
    %144 = arith.addf %137, %143 : vector<64x256xf32>
    %c0_149 = arith.constant 0 : index
    %c1_150 = arith.constant 1 : index
    %c1_151 = arith.constant 1 : index
    %c0_152 = arith.constant 0 : index
    %145 = vector.load %arg12[%c0_149, %c1_150, %c1_151, %c0_152] : memref<2x6x10x256xf32, #tpu.memory_space<vmem>>, vector<2x4x8x256xf32>
    %146 = vector.shape_cast %145 : vector<2x4x8x256xf32> to vector<64x256xf32>
    %147 = arith.truncf %146 : vector<64x256xf32> to vector<64x256xbf16>
    %c4_153 = arith.constant 4 : index
    %c0_154 = arith.constant 0 : index
    %c0_155 = arith.constant 0 : index
    %148 = vector.load %arg9[%c4_153, %c0_154, %c0_155] : memref<9x256x256xbf16, #tpu.memory_space<vmem>>, vector<1x256x256xbf16>
    %149 = vector.shape_cast %148 : vector<1x256x256xbf16> to vector<256x256xbf16>
    %cst_156 = arith.constant dense<0.000000e+00> : vector<64x256xf32>
    %150 = tpu.matmul %147, %149, %cst_156 {dimension_numbers = #tpu.dot_dimension_numbers<[1], [0], [0], [1], [0, 0, 1, 1], [], []>} : vector<64x256xbf16>, vector<256x256xbf16>, vector<64x256xf32> -> vector<64x256xf32>
    %151 = arith.addf %144, %150 : vector<64x256xf32>
    %c0_157 = arith.constant 0 : index
    %c1_158 = arith.constant 1 : index
    %c2_159 = arith.constant 2 : index
    %c0_160 = arith.constant 0 : index
    %152 = vector.load %arg12[%c0_157, %c1_158, %c2_159, %c0_160] : memref<2x6x10x256xf32, #tpu.memory_space<vmem>>, vector<2x4x8x256xf32>
    %153 = vector.shape_cast %152 : vector<2x4x8x256xf32> to vector<64x256xf32>
    %154 = arith.truncf %153 : vector<64x256xf32> to vector<64x256xbf16>
    %c5_161 = arith.constant 5 : index
    %c0_162 = arith.constant 0 : index
    %c0_163 = arith.constant 0 : index
    %155 = vector.load %arg9[%c5_161, %c0_162, %c0_163] : memref<9x256x256xbf16, #tpu.memory_space<vmem>>, vector<1x256x256xbf16>
    %156 = vector.shape_cast %155 : vector<1x256x256xbf16> to vector<256x256xbf16>
    %cst_164 = arith.constant dense<0.000000e+00> : vector<64x256xf32>
    %157 = tpu.matmul %154, %156, %cst_164 {dimension_numbers = #tpu.dot_dimension_numbers<[1], [0], [0], [1], [0, 0, 1, 1], [], []>} : vector<64x256xbf16>, vector<256x256xbf16>, vector<64x256xf32> -> vector<64x256xf32>
    %158 = arith.addf %151, %157 : vector<64x256xf32>
    %c0_165 = arith.constant 0 : index
    %c2_166 = arith.constant 2 : index
    %c0_167 = arith.constant 0 : index
    %c0_168 = arith.constant 0 : index
    %159 = vector.load %arg12[%c0_165, %c2_166, %c0_167, %c0_168] : memref<2x6x10x256xf32, #tpu.memory_space<vmem>>, vector<2x4x8x256xf32>
    %160 = vector.shape_cast %159 : vector<2x4x8x256xf32> to vector<64x256xf32>
    %161 = arith.truncf %160 : vector<64x256xf32> to vector<64x256xbf16>
    %c6_169 = arith.constant 6 : index
    %c0_170 = arith.constant 0 : index
    %c0_171 = arith.constant 0 : index
    %162 = vector.load %arg9[%c6_169, %c0_170, %c0_171] : memref<9x256x256xbf16, #tpu.memory_space<vmem>>, vector<1x256x256xbf16>
    %163 = vector.shape_cast %162 : vector<1x256x256xbf16> to vector<256x256xbf16>
    %cst_172 = arith.constant dense<0.000000e+00> : vector<64x256xf32>
    %164 = tpu.matmul %161, %163, %cst_172 {dimension_numbers = #tpu.dot_dimension_numbers<[1], [0], [0], [1], [0, 0, 1, 1], [], []>} : vector<64x256xbf16>, vector<256x256xbf16>, vector<64x256xf32> -> vector<64x256xf32>
    %165 = arith.addf %158, %164 : vector<64x256xf32>
    %c0_173 = arith.constant 0 : index
    %c2_174 = arith.constant 2 : index
    %c1_175 = arith.constant 1 : index
    %c0_176 = arith.constant 0 : index
    %166 = vector.load %arg12[%c0_173, %c2_174, %c1_175, %c0_176] : memref<2x6x10x256xf32, #tpu.memory_space<vmem>>, vector<2x4x8x256xf32>
    %167 = vector.shape_cast %166 : vector<2x4x8x256xf32> to vector<64x256xf32>
    %168 = arith.truncf %167 : vector<64x256xf32> to vector<64x256xbf16>
    %c7_177 = arith.constant 7 : index
    %c0_178 = arith.constant 0 : index
    %c0_179 = arith.constant 0 : index
    %169 = vector.load %arg9[%c7_177, %c0_178, %c0_179] : memref<9x256x256xbf16, #tpu.memory_space<vmem>>, vector<1x256x256xbf16>
    %170 = vector.shape_cast %169 : vector<1x256x256xbf16> to vector<256x256xbf16>
    %cst_180 = arith.constant dense<0.000000e+00> : vector<64x256xf32>
    %171 = tpu.matmul %168, %170, %cst_180 {dimension_numbers = #tpu.dot_dimension_numbers<[1], [0], [0], [1], [0, 0, 1, 1], [], []>} : vector<64x256xbf16>, vector<256x256xbf16>, vector<64x256xf32> -> vector<64x256xf32>
    %172 = arith.addf %165, %171 : vector<64x256xf32>
    %c0_181 = arith.constant 0 : index
    %c2_182 = arith.constant 2 : index
    %c2_183 = arith.constant 2 : index
    %c0_184 = arith.constant 0 : index
    %173 = vector.load %arg12[%c0_181, %c2_182, %c2_183, %c0_184] : memref<2x6x10x256xf32, #tpu.memory_space<vmem>>, vector<2x4x8x256xf32>
    %174 = vector.shape_cast %173 : vector<2x4x8x256xf32> to vector<64x256xf32>
    %175 = arith.truncf %174 : vector<64x256xf32> to vector<64x256xbf16>
    %c8_185 = arith.constant 8 : index
    %c0_186 = arith.constant 0 : index
    %c0_187 = arith.constant 0 : index
    %176 = vector.load %arg9[%c8_185, %c0_186, %c0_187] : memref<9x256x256xbf16, #tpu.memory_space<vmem>>, vector<1x256x256xbf16>
    %177 = vector.shape_cast %176 : vector<1x256x256xbf16> to vector<256x256xbf16>
    %cst_188 = arith.constant dense<0.000000e+00> : vector<64x256xf32>
    %178 = tpu.matmul %175, %177, %cst_188 {dimension_numbers = #tpu.dot_dimension_numbers<[1], [0], [0], [1], [0, 0, 1, 1], [], []>} : vector<64x256xbf16>, vector<256x256xbf16>, vector<64x256xf32> -> vector<64x256xf32>
    %179 = arith.addf %172, %178 : vector<64x256xf32>
    %180 = vector.broadcast %14 : vector<1x256xf32> to vector<64x256xf32>
    %181 = arith.addf %179, %180 : vector<64x256xf32>
    %182 = arith.addf %181, %16 : vector<64x256xf32>
    %183 = vector.shape_cast %182 : vector<64x256xf32> to vector<2x4x8x256xf32>
    %c0_189 = arith.constant 0 : index
    %c0_190 = arith.constant 0 : index
    %c0_191 = arith.constant 0 : index
    %c0_192 = arith.constant 0 : index
    %184 = vector.load %arg11[%c0_189, %c0_190, %c0_191, %c0_192] : memref<2x4x8x256xf32, #tpu.memory_space<vmem>>, vector<2x4x8x256xf32>
    tpu.vector_store %arg11[%c0_189, %c0_190, %c0_191, %c0_192], %183 {strides = array<i32>} : memref<2x4x8x256xf32, #tpu.memory_space<vmem>>, vector<2x4x8x256xf32>,
    return
  }
  func.func @transform_0(%arg0: i32) -> (i32, i32, i32, i32) {
    %c0_i32 = arith.constant 0 : i32
    %c0_i32_0 = arith.constant 0 : i32
    %c0_i32_1 = arith.constant 0 : i32
    %c0_i32_2 = arith.constant 0 : i32
    return %arg0, %c0_i32, %c0_i32_0, %c0_i32_1 : i32, i32, i32, i32
  }
  func.func @transform_1(%arg0: i32) -> (i32, i32) {
    %c0_i32 = arith.constant 0 : i32
    %c0_i32_0 = arith.constant 0 : i32
    %c0_i32_1 = arith.constant 0 : i32
    return %c0_i32, %c0_i32_0 : i32, i32
  }
  func.func @transform_2(%arg0: i32) -> (i32, i32) {
    %c0_i32 = arith.constant 0 : i32
    %c0_i32_0 = arith.constant 0 : i32
    %c0_i32_1 = arith.constant 0 : i32
    return %c0_i32, %c0_i32_0 : i32, i32
  }
  func.func @transform_3(%arg0: i32) -> (i32, i32) {
    %c0_i32 = arith.constant 0 : i32
    %c0_i32_0 = arith.constant 0 : i32
    %c0_i32_1 = arith.constant 0 : i32
    return %c0_i32, %c0_i32_0 : i32, i32
  }
  func.func @transform_4(%arg0: i32) -> (i32, i32, i32) {
    %c0_i32 = arith.constant 0 : i32
    %c0_i32_0 = arith.constant 0 : i32
    %c0_i32_1 = arith.constant 0 : i32
    %c0_i32_2 = arith.constant 0 : i32
    return %c0_i32, %c0_i32_0, %c0_i32_1 : i32, i32, i32
  }
  func.func @transform_5(%arg0: i32) -> (i32, i32) {
    %c0_i32 = arith.constant 0 : i32
    %c0_i32_0 = arith.constant 0 : i32
    %c0_i32_1 = arith.constant 0 : i32
    return %c0_i32, %c0_i32_0 : i32, i32
  }
  func.func @transform_6(%arg0: i32) -> (i32, i32) {
    %c0_i32 = arith.constant 0 : i32
    %c0_i32_0 = arith.constant 0 : i32
    %c0_i32_1 = arith.constant 0 : i32
    return %c0_i32, %c0_i32_0 : i32, i32
  }
  func.func @transform_7(%arg0: i32) -> (i32, i32) {
    %c0_i32 = arith.constant 0 : i32
    %c0_i32_0 = arith.constant 0 : i32
    %c0_i32_1 = arith.constant 0 : i32
    return %c0_i32, %c0_i32_0 : i32, i32
  }
  func.func @transform_8(%arg0: i32) -> (i32, i32, i32) {
    %c0_i32 = arith.constant 0 : i32
    %c0_i32_0 = arith.constant 0 : i32
    %c0_i32_1 = arith.constant 0 : i32
    %c0_i32_2 = arith.constant 0 : i32
    return %c0_i32, %c0_i32_0, %c0_i32_1 : i32, i32, i32
  }
  func.func @transform_9(%arg0: i32) -> (i32, i32) {
    %c0_i32 = arith.constant 0 : i32
    %c0_i32_0 = arith.constant 0 : i32
    %c0_i32_1 = arith.constant 0 : i32
    return %c0_i32, %c0_i32_0 : i32, i32
  }
  func.func @transform_10(%arg0: i32) -> (i32, i32, i32, i32) {
    %c0_i32 = arith.constant 0 : i32
    %c0_i32_0 = arith.constant 0 : i32
    %c0_i32_1 = arith.constant 0 : i32
    %c0_i32_2 = arith.constant 0 : i32
    return %arg0, %c0_i32, %c0_i32_0, %c0_i32_1 : i32, i32, i32, i32
  }
}

</mosaic_0001>

<llo_original>
// kernel: tpu_custom_call.1
$region0: #{tpu_custom_call.1}
  #allocation0 [shape = 'u32[]', space=smem, size = 0x4, offset = 0x4, fixed_abs, tag = 'smem constant byte address 0x4 - core index']
  #allocation1 [shape = 'u32[144,128]{1,0:T(1,128)}', space=vmem, size = 0x12000, scoped, tag = 'internal scratch']
  #allocation2 [shape = 'f32[2,6,10,256]{3,2,1,0:T(8,128)}', space=vmem, size = 0x30000, scoped, tag = 'scratch operand']
  %s0 = inlined_call_operand.hbm [shape: f32[2,4,8,256], index: 0, kind: input, shape index: {}]
  %s1 = inlined_call_operand.hbm [shape: f32[256,256], index: 1, kind: input, shape index: {}]
  %s2 = inlined_call_operand.hbm [shape: f32[1,256], index: 2, kind: input, shape index: {}]
  %s3 = inlined_call_operand.hbm [shape: f32[1,256], index: 3, kind: input, shape index: {}]
  %s4 = inlined_call_operand.hbm [shape: bf16[9,256,256], index: 4, kind: input, shape index: {}]
  %s5 = inlined_call_operand.hbm [shape: f32[1,256], index: 5, kind: input, shape index: {}]
  %s6 = inlined_call_operand.hbm [shape: f32[1,256], index: 6, kind: input, shape index: {}]
  %s7 = inlined_call_operand.hbm [shape: f32[1,256], index: 7, kind: input, shape index: {}]
  %s8 = inlined_call_operand.hbm [shape: bf16[9,256,256], index: 8, kind: input, shape index: {}]
  %s9 = inlined_call_operand.hbm [shape: f32[1,256], index: 9, kind: input, shape index: {}]
  %s10 = inlined_call_operand.hbm [shape: f32[2,4,8,256], index: 10, kind: output, shape index: {}]
  %s11 = sld [smem:[#allocation0]]
  $region90: #{tpu_custom_call.1} parent=0
    _
  %s13 = ssub.s32 1, %s11
  %s14 = scalar_select 0, %s13, %s11
  $region1: #{tpu_custom_call.1} parent=0
    #allocation3 [shape = 'u8[65536]{0}', space=vmem, size = 0x10000, scoped, tag = 'input window, operand 0, single buffered']
    #allocation4 [shape = 's32[1]{0}', space=sflag, size = 0x4, scoped, tag = 'scoped memory for tpu_custom_call.1']
    #allocation5 [shape = 's32[1]{0}', space=sflag, size = 0x4, scoped, tag = 'scoped memory for tpu_custom_call.1']
    #allocation6 [shape = 'u8[262144]{0}', space=vmem, size = 0x40000, scoped, tag = 'input window, operand 1, single buffered']
    #allocation7 [shape = 's32[1]{0}', space=sflag, size = 0x4, scoped, tag = 'scoped memory for tpu_custom_call.1']
    #allocation8 [shape = 'u8[1024]{0}', space=vmem, size = 0x400, scoped, tag = 'input window, operand 2, single buffered']
    #allocation9 [shape = 'u8[1024]{0}', space=vmem, size = 0x400, scoped, tag = 'input window, operand 3, single buffered']
    #allocation10 [shape = 's32[1]{0}', space=sflag, size = 0x4, scoped, tag = 'scoped memory for tpu_custom_call.1']
    #allocation11 [shape = 'u8[1179648]{0}', space=vmem, size = 0x120000, scoped, tag = 'input window, operand 4, single buffered']
    #allocation12 [shape = 'u8[1024]{0}', space=vmem, size = 0x400, scoped, tag = 'input window, operand 5, single buffered']
    #allocation13 [shape = 's32[1]{0}', space=sflag, size = 0x4, scoped, tag = 'scoped memory for tpu_custom_call.1']
    #allocation14 [shape = 'u8[1024]{0}', space=vmem, size = 0x400, scoped, tag = 'input window, operand 6, single buffered']
    #allocation15 [shape = 'u8[1024]{0}', space=vmem, size = 0x400, scoped, tag = 'input window, operand 7, single buffered']
    #allocation16 [shape = 's32[1]{0}', space=sflag, size = 0x4, scoped, tag = 'scoped memory for tpu_custom_call.1']
    #allocation17 [shape = 'u8[1179648]{0}', space=vmem, size = 0x120000, scoped, tag = 'input window, operand 8, single buffered']
    #allocation18 [shape = 'u8[1024]{0}', space=vmem, size = 0x400, scoped, tag = 'input window, operand 9, single buffered']
    #allocation19 [shape = 's32[1]{0}', space=sflag, size = 0x4, scoped, tag = 'scoped memory for tpu_custom_call.1']
    #allocation20 [shape = 'u8[65536]{0}', space=vmem, size = 0x10000, scoped, tag = 'output window, operand 0, single buffered']
    %15 = vsyncpa [#allocation4], 0
    %16 = vsyncpa [#allocation7], 0
    %17 = vsyncpa [#allocation10], 0
    %18 = vsyncpa [#allocation13], 0
    %19 = vsyncpa [#allocation16], 0
    %20 = vsyncpa [#allocation19], 0
    %21 = vsyncpa [#allocation5], 0
    // Predicated region
    $region2: #{tpu_custom_call.1} parent=1 // pred_check
      _
    $region3: #{tpu_custom_call.1} parent=1 // pred_check_branch
      %23 = sbr.rel (0) target = $region5
    $region4: #{tpu_custom_call.1} parent=1 // pred_region
      %s25 = ssub.s32 2048, 2048
      %26 = vsyncadd [#allocation4], %s25
      %s27 = sshll.u32 [#allocation3], 4
      %s28 = int_to_ptr.vmem [resolvable:$true] %s27
      %33 = dma.hbm_to_vmem [thread:$0]  %s0, 2048, %s28, [#allocation4], 256, 256, 16
    $region5: #{tpu_custom_call.1} parent=1 // pred_fallthru
      _
    // Predicated region
    $region6: #{tpu_custom_call.1} parent=1 // pred_check
      _
    $region7: #{tpu_custom_call.1} parent=1 // pred_check_branch
      %35 = sbr.rel (0) target = $region9
    $region8: #{tpu_custom_call.1} parent=1 // pred_region
      %s37 = ssub.s32 8192, 8192
      %38 = vsyncadd [#allocation7], %s37
      %s39 = sshll.u32 [#allocation6], 4
      %s40 = int_to_ptr.vmem [resolvable:$true] %s39
      %45 = dma.hbm_to_vmem [thread:$0]  %s1, 8192, %s40, [#allocation7], 256, 256, 16
    $region9: #{tpu_custom_call.1} parent=1 // pred_fallthru
      _
    // Predicated region
    $region10: #{tpu_custom_call.1} parent=1 // pred_check
      _
    $region11: #{tpu_custom_call.1} parent=1 // pred_check_branch
      %47 = sbr.rel (0) target = $region13
    $region12: #{tpu_custom_call.1} parent=1 // pred_region
      %s49 = ssub.s32 32, 32
      %50 = vsyncadd [#allocation7], %s49
      %s52 = sshll.u32 [#allocation8], 4
      %s53 = int_to_ptr.vmem [resolvable:$true] %s52
      %55 = dma.hbm_to_vmem [thread:$0]  %s2, 32, %s53, [#allocation7]
    $region13: #{tpu_custom_call.1} parent=1 // pred_fallthru
      _
    // Predicated region
    $region14: #{tpu_custom_call.1} parent=1 // pred_check
      _
    $region15: #{tpu_custom_call.1} parent=1 // pred_check_branch
      %57 = sbr.rel (0) target = $region17
    $region16: #{tpu_custom_call.1} parent=1 // pred_region
      %s59 = ssub.s32 32, 32
      %60 = vsyncadd [#allocation10], %s59
      %s62 = sshll.u32 [#allocation9], 4
      %s63 = int_to_ptr.vmem [resolvable:$true] %s62
      %65 = dma.hbm_to_vmem [thread:$0]  %s3, 32, %s63, [#allocation10]
    $region17: #{tpu_custom_call.1} parent=1 // pred_fallthru
      _
    // Predicated region
    $region18: #{tpu_custom_call.1} parent=1 // pred_check
      _
    $region19: #{tpu_custom_call.1} parent=1 // pred_check_branch
      %67 = sbr.rel (0) target = $region21
    $region20: #{tpu_custom_call.1} parent=1 // pred_region
      %s69 = ssub.s32 36864, 36864
      %70 = vsyncadd [#allocation10], %s69
      %s71 = sshll.u32 [#allocation11], 4
      %s72 = int_to_ptr.vmem [resolvable:$true] %s71
      %77 = dma.hbm_to_vmem [thread:$0]  %s4, 36864, %s72, [#allocation10], 128, 128, 8
    $region21: #{tpu_custom_call.1} parent=1 // pred_fallthru
      _
    // Predicated region
    $region22: #{tpu_custom_call.1} parent=1 // pred_check
      _
    $region23: #{tpu_custom_call.1} parent=1 // pred_check_branch
      %79 = sbr.rel (0) target = $region25
    $region24: #{tpu_custom_call.1} parent=1 // pred_region
      %s81 = ssub.s32 32, 32
      %82 = vsyncadd [#allocation13], %s81
      %s84 = sshll.u32 [#allocation12], 4
      %s85 = int_to_ptr.vmem [resolvable:$true] %s84
      %87 = dma.hbm_to_vmem [thread:$0]  %s5, 32, %s85, [#allocation13]
    $region25: #{tpu_custom_call.1} parent=1 // pred_fallthru
      _
    // Predicated region
    $region26: #{tpu_custom_call.1} parent=1 // pred_check
      _
    $region27: #{tpu_custom_call.1} parent=1 // pred_check_branch
      %89 = sbr.rel (0) target = $region29
    $region28: #{tpu_custom_call.1} parent=1 // pred_region
      %s91 = ssub.s32 32, 32
      %92 = vsyncadd [#allocation13], %s91
      %s94 = sshll.u32 [#allocation14], 4
      %s95 = int_to_ptr.vmem [resolvable:$true] %s94
      %97 = dma.hbm_to_vmem [thread:$0]  %s6, 32, %s95, [#allocation13]
    $region29: #{tpu_custom_call.1} parent=1 // pred_fallthru
      _
    // Predicated region
    $region30: #{tpu_custom_call.1} parent=1 // pred_check
      _
    $region31: #{tpu_custom_call.1} parent=1 // pred_check_branch
      %99 = sbr.rel (0) target = $region33
    $region32: #{tpu_custom_call.1} parent=1 // pred_region
      %s101 = ssub.s32 32, 32
      %102 = vsyncadd [#allocation16], %s101
      %s104 = sshll.u32 [#allocation15], 4
      %s105 = int_to_ptr.vmem [resolvable:$true] %s104
      %107 = dma.hbm_to_vmem [thread:$0]  %s7, 32, %s105, [#allocation16]
    $region33: #{tpu_custom_call.1} parent=1 // pred_fallthru
      _
    // Predicated region
    $region34: #{tpu_custom_call.1} parent=1 // pred_check
      _
    $region35: #{tpu_custom_call.1} parent=1 // pred_check_branch
      %109 = sbr.rel (0) target = $region37
    $region36: #{tpu_custom_call.1} parent=1 // pred_region
      %s111 = ssub.s32 36864, 36864
      %112 = vsyncadd [#allocation16], %s111
      %s113 = sshll.u32 [#allocation17], 4
      %s114 = int_to_ptr.vmem [resolvable:$true] %s113
      %119 = dma.hbm_to_vmem [thread:$0]  %s8, 36864, %s114, [#allocation16], 128, 128, 8
    $region37: #{tpu_custom_call.1} parent=1 // pred_fallthru
      _
    // Predicated region
    $region38: #{tpu_custom_call.1} parent=1 // pred_check
      _
    $region39: #{tpu_custom_call.1} parent=1 // pred_check_branch
      %121 = sbr.rel (0) target = $region41
    $region40: #{tpu_custom_call.1} parent=1 // pred_region
      %s123 = ssub.s32 32, 32
      %124 = vsyncadd [#allocation19], %s123
      %s126 = sshll.u32 [#allocation18], 4
      %s127 = int_to_ptr.vmem [resolvable:$true] %s126
      %129 = dma.hbm_to_vmem [thread:$0]  %s9, 32, %s127, [#allocation19]
    $region41: #{tpu_custom_call.1} parent=1 // pred_fallthru
      _
    // Predicated region
    $region42: #{tpu_custom_call.1} parent=1 // pred_check
      _
    $region43: #{tpu_custom_call.1} parent=1 // pred_check_branch
      %131 = sbr.rel (0) target = $region45
    $region44: #{tpu_custom_call.1} parent=1 // pred_region
      %132 = dma.done [#allocation4], 2048
    $region45: #{tpu_custom_call.1} parent=1 // pred_fallthru
      _
    // Predicated region
    $region46: #{tpu_custom_call.1} parent=1 // pred_check
      _
    $region47: #{tpu_custom_call.1} parent=1 // pred_check_branch
      %134 = sbr.rel (0) target = $region49
    $region48: #{tpu_custom_call.1} parent=1 // pred_region
      %135 = dma.done [#allocation7], 8192
    $region49: #{tpu_custom_call.1} parent=1 // pred_fallthru
      _
    // Predicated region
    $region50: #{tpu_custom_call.1} parent=1 // pred_check
      _
    $region51: #{tpu_custom_call.1} parent=1 // pred_check_branch
      %137 = sbr.rel (0) target = $region53
    $region52: #{tpu_custom_call.1} parent=1 // pred_region
      %138 = dma.done [#allocation7], 32
    $region53: #{tpu_custom_call.1} parent=1 // pred_fallthru
      _
    // Predicated region
    $region54: #{tpu_custom_call.1} parent=1 // pred_check
      _
    $region55: #{tpu_custom_call.1} parent=1 // pred_check_branch
      %140 = sbr.rel (0) target = $region57
    $region56: #{tpu_custom_call.1} parent=1 // pred_region
      %141 = dma.done [#allocation10], 32
    $region57: #{tpu_custom_call.1} parent=1 // pred_fallthru
      _
    // Predicated region
    $region58: #{tpu_custom_call.1} parent=1 // pred_check
      _
    $region59: #{tpu_custom_call.1} parent=1 // pred_check_branch
      %143 = sbr.rel (0) target = $region61
    $region60: #{tpu_custom_call.1} parent=1 // pred_region
      %144 = dma.done [#allocation10], 36864
    $region61: #{tpu_custom_call.1} parent=1 // pred_fallthru
      _
    // Predicated region
    $region62: #{tpu_custom_call.1} parent=1 // pred_check
      _
    $region63: #{tpu_custom_call.1} parent=1 // pred_check_branch
      %146 = sbr.rel (0) target = $region65
    $region64: #{tpu_custom_call.1} parent=1 // pred_region
      %147 = dma.done [#allocation13], 32
    $region65: #{tpu_custom_call.1} parent=1 // pred_fallthru
      _
    // Predicated region
    $region66: #{tpu_custom_call.1} parent=1 // pred_check
      _
    $region67: #{tpu_custom_call.1} parent=1 // pred_check_branch
      %149 = sbr.rel (0) target = $region69
    $region68: #{tpu_custom_call.1} parent=1 // pred_region
      %150 = dma.done [#allocation13], 32
    $region69: #{tpu_custom_call.1} parent=1 // pred_fallthru
      _
    // Predicated region
    $region70: #{tpu_custom_call.1} parent=1 // pred_check
      _
    $region71: #{tpu_custom_call.1} parent=1 // pred_check_branch
      %152 = sbr.rel (0) target = $region73
    $region72: #{tpu_custom_call.1} parent=1 // pred_region
      %153 = dma.done [#allocation16], 32
    $region73: #{tpu_custom_call.1} parent=1 // pred_fallthru
      _
    // Predicated region
    $region74: #{tpu_custom_call.1} parent=1 // pred_check
      _
    $region75: #{tpu_custom_call.1} parent=1 // pred_check_branch
      %155 = sbr.rel (0) target = $region77
    $region76: #{tpu_custom_call.1} parent=1 // pred_region
      %156 = dma.done [#allocation16], 36864
    $region77: #{tpu_custom_call.1} parent=1 // pred_fallthru
      _
    // Predicated region
    $region78: #{tpu_custom_call.1} parent=1 // pred_check
      _
    $region79: #{tpu_custom_call.1} parent=1 // pred_check_branch
      %158 = sbr.rel (0) target = $region81
    $region80: #{tpu_custom_call.1} parent=1 // pred_region
      %159 = dma.done [#allocation19], 32
    $region81: #{tpu_custom_call.1} parent=1 // pred_fallthru
      _
    %160 = vst [vmem:[#allocation2] sm:$0xff] 0.0
    %161 = vst [vmem:[#allocation2 + $0x8] sm:$0xff] 0.0
    %162 = vst [vmem:[#allocation2 + $0x10] sm:$0x3] 0.0
    %163 = vst [vmem:[#allocation2 + $0x18] sm:$0x3] 0.0
    %164 = vst [vmem:[#allocation2 + $0xc0] sm:$0xff] 0.0
    %165 = vst [vmem:[#allocation2 + $0xc8] sm:$0xff] 0.0
    %166 = vst [vmem:[#allocation2 + $0xd0] sm:$0x3] 0.0
    %167 = vst [vmem:[#allocation2 + $0xd8] sm:$0x3] 0.0
    %s168 = scalar_lea.vmem [#allocation2], 160
    %169 = vst [vmem:[%s168] sm:$0xff] 0.0
    %170 = vst [vmem:[%s168 + $0x8] sm:$0xff] 0.0
    %171 = vst [vmem:[%s168 + $0x10] sm:$0x3] 0.0
    %172 = vst [vmem:[%s168 + $0x18] sm:$0x3] 0.0
    %173 = vst [vmem:[%s168 + $0xc0] sm:$0xff] 0.0
    %174 = vst [vmem:[%s168 + $0xc8] sm:$0xff] 0.0
    %175 = vst [vmem:[%s168 + $0xd0] sm:$0x3] 0.0
    %176 = vst [vmem:[%s168 + $0xd8] sm:$0x3] 0.0
    %s177 = scalar_lea.vmem [#allocation2], 32
    %v178 = vlaneseq
    %vm179 = vcmp.ge.s32.totalorder %v178, 0
    %vm180 = vcmp.lt.s32.totalorder %v178, 256
    %vm181 = vmand %vm179, %vm180
    %182 = vst.msk [vmem:[%s177] ss:$8 sm:$0x3] %vm181, 0.0
    %183 = vst.msk [vmem:[%s177] ss:$8 sm:$0x0] %vm181, 0.0
    %s184 = scalar_lea.vmem %s177, 32 [#allocation2]
    %185 = vst.msk [vmem:[%s184] ss:$8 sm:$0x3] %vm181, 0.0
    %186 = vst.msk [vmem:[%s184] ss:$8 sm:$0x0] %vm181, 0.0
    %s187 = scalar_lea.vmem %s177, 64 [#allocation2]
    %188 = vst.msk [vmem:[%s187] ss:$8 sm:$0x3] %vm181, 0.0
    %189 = vst.msk [vmem:[%s187] ss:$8 sm:$0x0] %vm181, 0.0
    %s190 = scalar_lea.vmem %s177, 96 [#allocation2]
    %191 = vst.msk [vmem:[%s190] ss:$8 sm:$0x3] %vm181, 0.0
    %192 = vst.msk [vmem:[%s190] ss:$8 sm:$0x0] %vm181, 0.0
    %s193 = scalar_lea.vmem %s177, 192 [#allocation2]
    %194 = vst.msk [vmem:[%s193] ss:$8 sm:$0x3] %vm181, 0.0
    %195 = vst.msk [vmem:[%s193] ss:$8 sm:$0x0] %vm181, 0.0
    %s196 = scalar_lea.vmem %s177, 224 [#allocation2]
    %197 = vst.msk [vmem:[%s196] ss:$8 sm:$0x3] %vm181, 0.0
    %198 = vst.msk [vmem:[%s196] ss:$8 sm:$0x0] %vm181, 0.0
    %s199 = scalar_lea.vmem %s177, 256 [#allocation2]
    %200 = vst.msk [vmem:[%s199] ss:$8 sm:$0x3] %vm181, 0.0
    %201 = vst.msk [vmem:[%s199] ss:$8 sm:$0x0] %vm181, 0.0
    %s202 = scalar_lea.vmem %s177, 288 [#allocation2]
    %203 = vst.msk [vmem:[%s202] ss:$8 sm:$0x3] %vm181, 0.0
    %204 = vst.msk [vmem:[%s202] ss:$8 sm:$0x0] %vm181, 0.0
    %s205 = scalar_lea.vmem %s177, 17 [#allocation2]
    %206 = vst.msk [vmem:[%s205] ss:$8 sm:$0x3] %vm181, 0.0
    %207 = vst.msk [vmem:[%s205] ss:$8 sm:$0x0] %vm181, 0.0
    %s208 = scalar_lea.vmem %s177, 49 [#allocation2]
    %209 = vst.msk [vmem:[%s208] ss:$8 sm:$0x3] %vm181, 0.0
    %210 = vst.msk [vmem:[%s208] ss:$8 sm:$0x0] %vm181, 0.0
    %s211 = scalar_lea.vmem %s177, 81 [#allocation2]
    %212 = vst.msk [vmem:[%s211] ss:$8 sm:$0x3] %vm181, 0.0
    %213 = vst.msk [vmem:[%s211] ss:$8 sm:$0x0] %vm181, 0.0
    %s214 = scalar_lea.vmem %s177, 113 [#allocation2]
    %215 = vst.msk [vmem:[%s214] ss:$8 sm:$0x3] %vm181, 0.0
    %216 = vst.msk [vmem:[%s214] ss:$8 sm:$0x0] %vm181, 0.0
    %s217 = scalar_lea.vmem %s177, 209 [#allocation2]
    %218 = vst.msk [vmem:[%s217] ss:$8 sm:$0x3] %vm181, 0.0
    %219 = vst.msk [vmem:[%s217] ss:$8 sm:$0x0] %vm181, 0.0
    %s220 = scalar_lea.vmem %s177, 241 [#allocation2]
    %221 = vst.msk [vmem:[%s220] ss:$8 sm:$0x3] %vm181, 0.0
    %222 = vst.msk [vmem:[%s220] ss:$8 sm:$0x0] %vm181, 0.0
    %s223 = scalar_lea.vmem %s177, 273 [#allocation2]
    %224 = vst.msk [vmem:[%s223] ss:$8 sm:$0x3] %vm181, 0.0
    %225 = vst.msk [vmem:[%s223] ss:$8 sm:$0x0] %vm181, 0.0
    %s226 = scalar_lea.vmem %s177, 305 [#allocation2]
    %227 = vst.msk [vmem:[%s226] ss:$8 sm:$0x3] %vm181, 0.0
    %228 = vst.msk [vmem:[%s226] ss:$8 sm:$0x0] %vm181, 0.0
    %v229 = vld [vmem:[#allocation6] sm:$0xff]
    %v230 = vld [vmem:[#allocation6 + $0x8] sm:$0xff]
    %v231 = vld [vmem:[#allocation6 + $0x10] sm:$0xff]
    %v232 = vld [vmem:[#allocation6 + $0x18] sm:$0xff]
    %v233 = vld [vmem:[#allocation6 + $0x20] sm:$0xff]
    %v234 = vld [vmem:[#allocation6 + $0x28] sm:$0xff]
    %v235 = vld [vmem:[#allocation6 + $0x30] sm:$0xff]
    %v236 = vld [vmem:[#allocation6 + $0x38] sm:$0xff]
    %v237 = vld [vmem:[#allocation6 + $0x40] sm:$0xff]
    %v238 = vld [vmem:[#allocation6 + $0x48] sm:$0xff]
    %v239 = vld [vmem:[#allocation6 + $0x50] sm:$0xff]
    %v240 = vld [vmem:[#allocation6 + $0x58] sm:$0xff]
    %v241 = vld [vmem:[#allocation6 + $0x60] sm:$0xff]
    %v242 = vld [vmem:[#allocation6 + $0x68] sm:$0xff]
    %v243 = vld [vmem:[#allocation6 + $0x70] sm:$0xff]
    %v244 = vld [vmem:[#allocation6 + $0x78] sm:$0xff]
    %v245 = vld [vmem:[#allocation6 + $0x80] sm:$0xff]
    %v246 = vld [vmem:[#allocation6 + $0x88] sm:$0xff]
    %v247 = vld [vmem:[#allocation6 + $0x90] sm:$0xff]
    %v248 = vld [vmem:[#allocation6 + $0x98] sm:$0xff]
    %v249 = vld [vmem:[#allocation6 + $0xa0] sm:$0xff]
    %v250 = vld [vmem:[#allocation6 + $0xa8] sm:$0xff]
    %v251 = vld [vmem:[#allocation6 + $0xb0] sm:$0xff]
    %v252 = vld [vmem:[#allocation6 + $0xb8] sm:$0xff]
    %v253 = vld [vmem:[#allocation6 + $0xc0] sm:$0xff]
    %v254 = vld [vmem:[#allocation6 + $0xc8] sm:$0xff]
    %v255 = vld [vmem:[#allocation6 + $0xd0] sm:$0xff]
    %v256 = vld [vmem:[#allocation6 + $0xd8] sm:$0xff]
    %v257 = vld [vmem:[#allocation6 + $0xe0] sm:$0xff]
    %v258 = vld [vmem:[#allocation6 + $0xe8] sm:$0xff]
    %v259 = vld [vmem:[#allocation6 + $0xf0] sm:$0xff]
    %v260 = vld [vmem:[#allocation6 + $0xf8] sm:$0xff]
    %v261 = vld [vmem:[#allocation6 + $0x100] sm:$0xff]
    %v262 = vld [vmem:[#allocation6 + $0x108] sm:$0xff]
    %v263 = vld [vmem:[#allocation6 + $0x110] sm:$0xff]
    %v264 = vld [vmem:[#allocation6 + $0x118] sm:$0xff]
    %v265 = vld [vmem:[#allocation6 + $0x120] sm:$0xff]
    %v266 = vld [vmem:[#allocation6 + $0x128] sm:$0xff]
    %v267 = vld [vmem:[#allocation6 + $0x130] sm:$0xff]
    %v268 = vld [vmem:[#allocation6 + $0x138] sm:$0xff]
    %v269 = vld [vmem:[#allocation6 + $0x140] sm:$0xff]
    %v270 = vld [vmem:[#allocation6 + $0x148] sm:$0xff]
    %v271 = vld [vmem:[#allocation6 + $0x150] sm:$0xff]
    %v272 = vld [vmem:[#allocation6 + $0x158] sm:$0xff]
    %v273 = vld [vmem:[#allocation6 + $0x160] sm:$0xff]
    %v274 = vld [vmem:[#allocation6 + $0x168] sm:$0xff]
    %v275 = vld [vmem:[#allocation6 + $0x170] sm:$0xff]
    %v276 = vld [vmem:[#allocation6 + $0x178] sm:$0xff]
    %v277 = vld [vmem:[#allocation6 + $0x180] sm:$0xff]
    %v278 = vld [vmem:[#allocation6 + $0x188] sm:$0xff]
    %v279 = vld [vmem:[#allocation6 + $0x190] sm:$0xff]
    %v280 = vld [vmem:[#allocation6 + $0x198] sm:$0xff]
    %v281 = vld [vmem:[#allocation6 + $0x1a0] sm:$0xff]
    %v282 = vld [vmem:[#allocation6 + $0x1a8] sm:$0xff]
    %v283 = vld [vmem:[#allocation6 + $0x1b0] sm:$0xff]
    %v284 = vld [vmem:[#allocation6 + $0x1b8] sm:$0xff]
    %v285 = vld [vmem:[#allocation6 + $0x1c0] sm:$0xff]
    %v286 = vld [vmem:[#allocation6 + $0x1c8] sm:$0xff]
    %v287 = vld [vmem:[#allocation6 + $0x1d0] sm:$0xff]
    %v288 = vld [vmem:[#allocation6 + $0x1d8] sm:$0xff]
    %v289 = vld [vmem:[#allocation6 + $0x1e0] sm:$0xff]
    %v290 = vld [vmem:[#allocation6 + $0x1e8] sm:$0xff]
    %v291 = vld [vmem:[#allocation6 + $0x1f0] sm:$0xff]
    %v292 = vld [vmem:[#allocation6 + $0x1f8] sm:$0xff]
    %v293 = vld [vmem:[#allocation8] sm:$0x3]
    %v294 = vld [vmem:[#allocation9] sm:$0x3]
    %v295 = vld [vmem:[#allocation12] sm:$0x3]
    %v296 = vld [vmem:[#allocation14] sm:$0x3]
    %v297 = vld [vmem:[#allocation15] sm:$0x3]
    %v298 = vld [vmem:[#allocation18] sm:$0x3]
    %v299 = vld [vmem:[#allocation3] sm:$0xff]
    %v300 = vld [vmem:[#allocation3 + $0x8] sm:$0xff]
    %v301 = vld [vmem:[#allocation3 + $0x10] sm:$0xff]
    %v302 = vld [vmem:[#allocation3 + $0x18] sm:$0xff]
    %v303 = vld [vmem:[#allocation3 + $0x20] sm:$0xff]
    %v304 = vld [vmem:[#allocation3 + $0x28] sm:$0xff]
    %v305 = vld [vmem:[#allocation3 + $0x30] sm:$0xff]
    %v306 = vld [vmem:[#allocation3 + $0x38] sm:$0xff]
    %v307 = vld [vmem:[#allocation3 + $0x40] sm:$0xff]
    %v308 = vld [vmem:[#allocation3 + $0x48] sm:$0xff]
    %v309 = vld [vmem:[#allocation3 + $0x50] sm:$0xff]
    %v310 = vld [vmem:[#allocation3 + $0x58] sm:$0xff]
    %v311 = vld [vmem:[#allocation3 + $0x60] sm:$0xff]
    %v312 = vld [vmem:[#allocation3 + $0x68] sm:$0xff]
    %v313 = vld [vmem:[#allocation3 + $0x70] sm:$0xff]
    %v314 = vld [vmem:[#allocation3 + $0x78] sm:$0xff]
    %315 = vmatprep.subr.mxu0 %v260
    %316 = vmatpush1.msra.mxu0 %v259
    %317 = vmatprep.subr.mxu0 %v258
    %318 = vmatpush1.msra.mxu0 %v257
    %319 = vmatprep.subr.mxu0 %v256
    %320 = vmatpush1.msra.mxu0 %v255
    %321 = vmatprep.subr.mxu0 %v254
    %322 = vmatpush1.msra.mxu0 %v253
    %323 = vmatprep.subr.mxu0 %v252
    %324 = vmatpush1.msra.mxu0 %v251
    %325 = vmatprep.subr.mxu0 %v250
    %326 = vmatpush1.msra.mxu0 %v249
    %327 = vmatprep.subr.mxu0 %v248
    %328 = vmatpush1.msra.mxu0 %v247
    %329 = vmatprep.subr.mxu0 %v246
    %330 = vmatpush1.msra.mxu0 %v245
    %331 = vmatprep.subr.mxu0 %v244
    %332 = vmatpush1.msra.mxu0 %v243
    %333 = vmatprep.subr.mxu0 %v242
    %334 = vmatpush1.msra.mxu0 %v241
    %335 = vmatprep.subr.mxu0 %v240
    %336 = vmatpush1.msra.mxu0 %v239
    %337 = vmatprep.subr.mxu0 %v238
    %338 = vmatpush1.msra.mxu0 %v237
    %339 = vmatprep.subr.mxu0 %v236
    %340 = vmatpush1.msra.mxu0 %v235
    %341 = vmatprep.subr.mxu0 %v234
    %342 = vmatpush1.msra.mxu0 %v233
    %343 = vmatprep.subr.mxu0 %v232
    %344 = vmatpush1.msra.mxu0 %v231
    %345 = vmatprep.subr.mxu0 %v230
    %346 = vmatpush1.msra.mxu0 %v229
    %347 = vmatprep.subr.mxu0 %v292
    %348 = vmatpush2.msra.mxu0 %v291
    %349 = vmatprep.subr.mxu0 %v290
    %350 = vmatpush2.msra.mxu0 %v289
    %351 = vmatprep.subr.mxu0 %v288
    %352 = vmatpush2.msra.mxu0 %v287
    %353 = vmatprep.subr.mxu0 %v286
    %354 = vmatpush2.msra.mxu0 %v285
    %355 = vmatprep.subr.mxu0 %v284
    %356 = vmatpush2.msra.mxu0 %v283
    %357 = vmatprep.subr.mxu0 %v282
    %358 = vmatpush2.msra.mxu0 %v281
    %359 = vmatprep.subr.mxu0 %v280
    %360 = vmatpush2.msra.mxu0 %v279
    %361 = vmatprep.subr.mxu0 %v278
    %362 = vmatpush2.msra.mxu0 %v277
    %363 = vmatprep.subr.mxu0 %v276
    %364 = vmatpush2.msra.mxu0 %v275
    %365 = vmatprep.subr.mxu0 %v274
    %366 = vmatpush2.msra.mxu0 %v273
    %367 = vmatprep.subr.mxu0 %v272
    %368 = vmatpush2.msra.mxu0 %v271
    %369 = vmatprep.subr.mxu0 %v270
    %370 = vmatpush2.msra.mxu0 %v269
    %371 = vmatprep.subr.mxu0 %v268
    %372 = vmatpush2.msra.mxu0 %v267
    %373 = vmatprep.subr.mxu0 %v266
    %374 = vmatpush2.msra.mxu0 %v265
    %375 = vmatprep.subr.mxu0 %v264
    %376 = vmatpush2.msra.mxu0 %v263
    %377 = vmatprep.subr.mxu0 %v262
    %378 = vmatpush2.msra.mxu0 %v261
    %379 = vmatprep.mubr.f32.mxu0 %v300
    %380 = vmatmul.mubr.f32.gmra.mxu0 %v299
    %v381 = vpop.f32.mrf.mxu0
    %v382 = vadd.f32 0.0, %v381
    %v383 = vpop.f32.mrf.mxu0
    %v384 = vadd.f32 0.0, %v383
    %385 = vmatprep.mubr.f32.mxu0 %v302
    %386 = vmatmul.mubr.f32.gmra.mxu0 %v301
    %v387 = vpop.f32.mrf.mxu0
    %v388 = vadd.f32 0.0, %v387
    %v389 = vpop.f32.mrf.mxu0
    %v390 = vadd.f32 0.0, %v389
    %391 = vmatprep.mubr.f32.mxu0 %v304
    %392 = vmatmul.mubr.f32.gmra.mxu0 %v303
    %v393 = vpop.f32.mrf.mxu0
    %v394 = vadd.f32 0.0, %v393
    %v395 = vpop.f32.mrf.mxu0
    %v396 = vadd.f32 0.0, %v395
    %397 = vmatprep.mubr.f32.mxu0 %v306
    %398 = vmatmul.mubr.f32.gmra.mxu0 %v305
    %v399 = vpop.f32.mrf.mxu0
    %v400 = vadd.f32 0.0, %v399
    %v401 = vpop.f32.mrf.mxu0
    %v402 = vadd.f32 0.0, %v401
    %403 = vmatprep.mubr.f32.mxu0 %v308
    %404 = vmatmul.mubr.f32.gmra.mxu0 %v307
    %v405 = vpop.f32.mrf.mxu0
    %v406 = vadd.f32 0.0, %v405
    %v407 = vpop.f32.mrf.mxu0
    %v408 = vadd.f32 0.0, %v407
    %409 = vmatprep.mubr.f32.mxu0 %v310
    %410 = vmatmul.mubr.f32.gmra.mxu0 %v309
    %v411 = vpop.f32.mrf.mxu0
    %v412 = vadd.f32 0.0, %v411
    %v413 = vpop.f32.mrf.mxu0
    %v414 = vadd.f32 0.0, %v413
    %415 = vmatprep.mubr.f32.mxu0 %v312
    %416 = vmatmul.mubr.f32.gmra.mxu0 %v311
    %v417 = vpop.f32.mrf.mxu0
    %v418 = vadd.f32 0.0, %v417
    %v419 = vpop.f32.mrf.mxu0
    %v420 = vadd.f32 0.0, %v419
    %421 = vmatprep.mubr.f32.mxu0 %v314
    %422 = vmatmul.mubr.f32.gmra.mxu0 %v313
    %v423 = vpop.f32.mrf.mxu0
    %v424 = vadd.f32 0.0, %v423
    %v425 = vpop.f32.mrf.mxu0
    %v426 = vadd.f32 0.0, %v425
    %427 = vdwg.mxu0
    %v428 = vsub.f32 %v299, %v382
    %v429 = vsub.f32 %v300, %v384
    %v430 = vsub.f32 %v301, %v388
    %v431 = vsub.f32 %v302, %v390
    %v432 = vsub.f32 %v303, %v394
    %v433 = vsub.f32 %v304, %v396
    %v434 = vsub.f32 %v305, %v400
    %v435 = vsub.f32 %v306, %v402
    %v436 = vsub.f32 %v307, %v406
    %v437 = vsub.f32 %v308, %v408
    %v438 = vsub.f32 %v309, %v412
    %v439 = vsub.f32 %v310, %v414
    %v440 = vsub.f32 %v311, %v418
    %v441 = vsub.f32 %v312, %v420
    %v442 = vsub.f32 %v313, %v424
    %v443 = vsub.f32 %v314, %v426
    %v444 = vmul.f32 %v428, %v428
    %v445 = vmul.f32 %v429, %v429
    %v446 = vmul.f32 %v430, %v430
    %v447 = vmul.f32 %v431, %v431
    %v448 = vmul.f32 %v432, %v432
    %v449 = vmul.f32 %v433, %v433
    %v450 = vmul.f32 %v434, %v434
    %v451 = vmul.f32 %v435, %v435
    %v452 = vmul.f32 %v436, %v436
    %v453 = vmul.f32 %v437, %v437
    %v454 = vmul.f32 %v438, %v438
    %v455 = vmul.f32 %v439, %v439
    %v456 = vmul.f32 %v440, %v440
    %v457 = vmul.f32 %v441, %v441
    %v458 = vmul.f32 %v442, %v442
    %v459 = vmul.f32 %v443, %v443
    %460 = vmatprep.subr.mxu0 %v260
    %461 = vmatpush1.msra.mxu0 %v259
    %462 = vmatprep.subr.mxu0 %v258
    %463 = vmatpush1.msra.mxu0 %v257
    %464 = vmatprep.subr.mxu0 %v256
    %465 = vmatpush1.msra.mxu0 %v255
    %466 = vmatprep.subr.mxu0 %v254
    %467 = vmatpush1.msra.mxu0 %v253
    %468 = vmatprep.subr.mxu0 %v252
    %469 = vmatpush1.msra.mxu0 %v251
    %470 = vmatprep.subr.mxu0 %v250
    %471 = vmatpush1.msra.mxu0 %v249
    %472 = vmatprep.subr.mxu0 %v248
    %473 = vmatpush1.msra.mxu0 %v247
    %474 = vmatprep.subr.mxu0 %v246
    %475 = vmatpush1.msra.mxu0 %v245
    %476 = vmatprep.subr.mxu0 %v244
    %477 = vmatpush1.msra.mxu0 %v243
    %478 = vmatprep.subr.mxu0 %v242
    %479 = vmatpush1.msra.mxu0 %v241
    %480 = vmatprep.subr.mxu0 %v240
    %481 = vmatpush1.msra.mxu0 %v239
    %482 = vmatprep.subr.mxu0 %v238
    %483 = vmatpush1.msra.mxu0 %v237
    %484 = vmatprep.subr.mxu0 %v236
    %485 = vmatpush1.msra.mxu0 %v235
    %486 = vmatprep.subr.mxu0 %v234
    %487 = vmatpush1.msra.mxu0 %v233
    %488 = vmatprep.subr.mxu0 %v232
    %489 = vmatpush1.msra.mxu0 %v231
    %490 = vmatprep.subr.mxu0 %v230
    %491 = vmatpush1.msra.mxu0 %v229
    %492 = vmatprep.subr.mxu0 %v292
    %493 = vmatpush2.msra.mxu0 %v291
    %494 = vmatprep.subr.mxu0 %v290
    %495 = vmatpush2.msra.mxu0 %v289
    %496 = vmatprep.subr.mxu0 %v288
    %497 = vmatpush2.msra.mxu0 %v287
    %498 = vmatprep.subr.mxu0 %v286
    %499 = vmatpush2.msra.mxu0 %v285
    %500 = vmatprep.subr.mxu0 %v284
    %501 = vmatpush2.msra.mxu0 %v283
    %502 = vmatprep.subr.mxu0 %v282
    %503 = vmatpush2.msra.mxu0 %v281
    %504 = vmatprep.subr.mxu0 %v280
    %505 = vmatpush2.msra.mxu0 %v279
    %506 = vmatprep.subr.mxu0 %v278
    %507 = vmatpush2.msra.mxu0 %v277
    %508 = vmatprep.subr.mxu0 %v276
    %509 = vmatpush2.msra.mxu0 %v275
    %510 = vmatprep.subr.mxu0 %v274
    %511 = vmatpush2.msra.mxu0 %v273
    %512 = vmatprep.subr.mxu0 %v272
    %513 = vmatpush2.msra.mxu0 %v271
    %514 = vmatprep.subr.mxu0 %v270
    %515 = vmatpush2.msra.mxu0 %v269
    %516 = vmatprep.subr.mxu0 %v268
    %517 = vmatpush2.msra.mxu0 %v267
    %518 = vmatprep.subr.mxu0 %v266
    %519 = vmatpush2.msra.mxu0 %v265
    %520 = vmatprep.subr.mxu0 %v264
    %521 = vmatpush2.msra.mxu0 %v263
    %522 = vmatprep.subr.mxu0 %v262
    %523 = vmatpush2.msra.mxu0 %v261
    %524 = vmatprep.mubr.f32.mxu0 %v445
    %525 = vmatmul.mubr.f32.gmra.mxu0 %v444
    %v526 = vpop.f32.mrf.mxu0
    %v527 = vadd.f32 1e-06, %v526
    %v528 = vpop.f32.mrf.mxu0
    %v529 = vadd.f32 1e-06, %v528
    %530 = vmatprep.mubr.f32.mxu0 %v447
    %531 = vmatmul.mubr.f32.gmra.mxu0 %v446
    %v532 = vpop.f32.mrf.mxu0
    %v533 = vadd.f32 1e-06, %v532
    %v534 = vpop.f32.mrf.mxu0
    %v535 = vadd.f32 1e-06, %v534
    %536 = vmatprep.mubr.f32.mxu0 %v449
    %537 = vmatmul.mubr.f32.gmra.mxu0 %v448
    %v538 = vpop.f32.mrf.mxu0
    %v539 = vadd.f32 1e-06, %v538
    %v540 = vpop.f32.mrf.mxu0
    %v541 = vadd.f32 1e-06, %v540
    %542 = vmatprep.mubr.f32.mxu0 %v451
    %543 = vmatmul.mubr.f32.gmra.mxu0 %v450
    %v544 = vpop.f32.mrf.mxu0
    %v545 = vadd.f32 1e-06, %v544
    %v546 = vpop.f32.mrf.mxu0
    %v547 = vadd.f32 1e-06, %v546
    %548 = vmatprep.mubr.f32.mxu0 %v453
    %549 = vmatmul.mubr.f32.gmra.mxu0 %v452
    %v550 = vpop.f32.mrf.mxu0
    %v551 = vadd.f32 1e-06, %v550
    %v552 = vpop.f32.mrf.mxu0
    %v553 = vadd.f32 1e-06, %v552
    %554 = vmatprep.mubr.f32.mxu0 %v455
    %555 = vmatmul.mubr.f32.gmra.mxu0 %v454
    %v556 = vpop.f32.mrf.mxu0
    %v557 = vadd.f32 1e-06, %v556
    %v558 = vpop.f32.mrf.mxu0
    %v559 = vadd.f32 1e-06, %v558
    %560 = vmatprep.mubr.f32.mxu0 %v457
    %561 = vmatmul.mubr.f32.gmra.mxu0 %v456
    %v562 = vpop.f32.mrf.mxu0
    %v563 = vadd.f32 1e-06, %v562
    %v564 = vpop.f32.mrf.mxu0
    %v565 = vadd.f32 1e-06, %v564
    %566 = vmatprep.mubr.f32.mxu0 %v459
    %567 = vmatmul.mubr.f32.gmra.mxu0 %v458
    %v568 = vpop.f32.mrf.mxu0
    %v569 = vadd.f32 1e-06, %v568
    %v570 = vpop.f32.mrf.mxu0
    %v571 = vadd.f32 1e-06, %v570
    %572 = vdwg.mxu0
    %v573 = vrsqrt.pop %v527
    %v574 = vrsqrt.pop %v529
    %v575 = vrsqrt.pop %v533
    %v576 = vrsqrt.pop %v535
    %v577 = vrsqrt.pop %v539
    %v578 = vrsqrt.pop %v541
    %v579 = vrsqrt.pop %v545
    %v580 = vrsqrt.pop %v547
    %v581 = vrsqrt.pop %v551
    %v582 = vrsqrt.pop %v553
    %v583 = vrsqrt.pop %v557
    %v584 = vrsqrt.pop %v559
    %v585 = vrsqrt.pop %v563
    %v586 = vrsqrt.pop %v565
    %v587 = vrsqrt.pop %v569
    %v588 = vrsqrt.pop %v571
    %v589 = vmul.f32 %v428, %v573
    %v590 = vmul.f32 %v429, %v574
    %v591 = vmul.f32 %v430, %v575
    %v592 = vmul.f32 %v431, %v576
    %v593 = vmul.f32 %v432, %v577
    %v594 = vmul.f32 %v433, %v578
    %v595 = vmul.f32 %v434, %v579
    %v596 = vmul.f32 %v435, %v580
    %v597 = vmul.f32 %v436, %v581
    %v598 = vmul.f32 %v437, %v582
    %v599 = vmul.f32 %v438, %v583
    %v600 = vmul.f32 %v439, %v584
    %v601 = vmul.f32 %v440, %v585
    %v602 = vmul.f32 %v441, %v586
    %v603 = vmul.f32 %v442, %v587
    %v604 = vmul.f32 %v443, %v588
    %v606 = vlaneseq
    %v607 = vshrl.u32 %v606, 7
    %v608 = vsub.s32 0, %v607
    %v609 = vrot.slane %v293, %v608
    %v610 = vlaneseq
    %v611 = vshrl.u32 %v610, 7
    %v612 = vsub.s32 1, %v611
    %v613 = vrot.slane %v293, %v612
    %v616 = vmul.f32 %v589, %v609
    %v617 = vmul.f32 %v590, %v613
    %v618 = vmul.f32 %v591, %v609
    %v619 = vmul.f32 %v592, %v613
    %v620 = vmul.f32 %v593, %v609
    %v621 = vmul.f32 %v594, %v613
    %v622 = vmul.f32 %v595, %v609
    %v623 = vmul.f32 %v596, %v613
    %v624 = vmul.f32 %v597, %v609
    %v625 = vmul.f32 %v598, %v613
    %v626 = vmul.f32 %v599, %v609
    %v627 = vmul.f32 %v600, %v613
    %v628 = vmul.f32 %v601, %v609
    %v629 = vmul.f32 %v602, %v613
    %v630 = vmul.f32 %v603, %v609
    %v631 = vmul.f32 %v604, %v613
    %v633 = vlaneseq
    %v634 = vshrl.u32 %v633, 7
    %v635 = vsub.s32 0, %v634
    %v636 = vrot.slane %v294, %v635
    %v637 = vlaneseq
    %v638 = vshrl.u32 %v637, 7
    %v639 = vsub.s32 1, %v638
    %v640 = vrot.slane %v294, %v639
    %v643 = vadd.f32 %v616, %v636
    %v644 = vadd.f32 %v617, %v640
    %v645 = vadd.f32 %v618, %v636
    %v646 = vadd.f32 %v619, %v640
    %v647 = vadd.f32 %v620, %v636
    %v648 = vadd.f32 %v621, %v640
    %v649 = vadd.f32 %v622, %v636
    %v650 = vadd.f32 %v623, %v640
    %v651 = vadd.f32 %v624, %v636
    %v652 = vadd.f32 %v625, %v640
    %v653 = vadd.f32 %v626, %v636
    %v654 = vadd.f32 %v627, %v640
    %v655 = vadd.f32 %v628, %v636
    %v656 = vadd.f32 %v629, %v640
    %v657 = vadd.f32 %v630, %v636
    %v658 = vadd.f32 %v631, %v640
    %v675 = vrot.slane %v643, 7
    %v676 = vrot.slane %v644, 7
    %v677 = vrot.slane %v645, 7
    %v678 = vrot.slane %v646, 7
    %v679 = vrot.slane %v647, 7
    %v680 = vrot.slane %v648, 7
    %v681 = vrot.slane %v649, 7
    %v682 = vrot.slane %v650, 7
    %v683 = vrot.slane %v651, 7
    %v684 = vrot.slane %v652, 7
    %v685 = vrot.slane %v653, 7
    %v686 = vrot.slane %v654, 7
    %v687 = vrot.slane %v655, 7
    %v688 = vrot.slane %v656, 7
    %v689 = vrot.slane %v657, 7
    %v690 = vrot.slane %v658, 7
    %707 = vst [vmem:[%s177] sm:$0xfe] %v675
    %708 = vst [vmem:[%s177 + $0x8] sm:$0xfe] %v676
    %709 = vst [vmem:[%s177 + $0x10] sm:$0x1] %v675
    %710 = vst [vmem:[%s177 + $0x18] sm:$0x1] %v676
    %711 = vst [vmem:[%s177 + $0x20] sm:$0xfe] %v677
    %712 = vst [vmem:[%s177 + $0x28] sm:$0xfe] %v678
    %713 = vst [vmem:[%s177 + $0x30] sm:$0x1] %v677
    %714 = vst [vmem:[%s177 + $0x38] sm:$0x1] %v678
    %715 = vst [vmem:[%s177 + $0x40] sm:$0xfe] %v679
    %716 = vst [vmem:[%s177 + $0x48] sm:$0xfe] %v680
    %717 = vst [vmem:[%s177 + $0x50] sm:$0x1] %v679
    %718 = vst [vmem:[%s177 + $0x58] sm:$0x1] %v680
    %719 = vst [vmem:[%s177 + $0x60] sm:$0xfe] %v681
    %720 = vst [vmem:[%s177 + $0x68] sm:$0xfe] %v682
    %721 = vst [vmem:[%s177 + $0x70] sm:$0x1] %v681
    %722 = vst [vmem:[%s177 + $0x78] sm:$0x1] %v682
    %723 = vst [vmem:[%s177 + $0xc0] sm:$0xfe] %v683
    %724 = vst [vmem:[%s177 + $0xc8] sm:$0xfe] %v684
    %725 = vst [vmem:[%s177 + $0xd0] sm:$0x1] %v683
    %726 = vst [vmem:[%s177 + $0xd8] sm:$0x1] %v684
    %727 = vst [vmem:[%s177 + $0xe0] sm:$0xfe] %v685
    %728 = vst [vmem:[%s177 + $0xe8] sm:$0xfe] %v686
    %729 = vst [vmem:[%s177 + $0xf0] sm:$0x1] %v685
    %730 = vst [vmem:[%s177 + $0xf8] sm:$0x1] %v686
    %731 = vst [vmem:[%s177 + $0x100] sm:$0xfe] %v687
    %732 = vst [vmem:[%s177 + $0x108] sm:$0xfe] %v688
    %733 = vst [vmem:[%s177 + $0x110] sm:$0x1] %v687
    %734 = vst [vmem:[%s177 + $0x118] sm:$0x1] %v688
    %735 = vst [vmem:[%s177 + $0x120] sm:$0xfe] %v689
    %736 = vst [vmem:[%s177 + $0x128] sm:$0xfe] %v690
    %737 = vst [vmem:[%s177 + $0x130] sm:$0x1] %v689
    %738 = vst [vmem:[%s177 + $0x138] sm:$0x1] %v690
    %v739 = vld [vmem:[#allocation2] sm:$0xff]
    %v740 = vld [vmem:[#allocation2 + $0x8] sm:$0xff]
    %v741 = vld [vmem:[#allocation2 + $0x20] sm:$0xff]
    %v742 = vld [vmem:[#allocation2 + $0x28] sm:$0xff]
    %v743 = vld [vmem:[#allocation2 + $0x40] sm:$0xff]
    %v744 = vld [vmem:[#allocation2 + $0x48] sm:$0xff]
    %v745 = vld [vmem:[#allocation2 + $0x60] sm:$0xff]
    %v746 = vld [vmem:[#allocation2 + $0x68] sm:$0xff]
    %v747 = vld [vmem:[#allocation2 + $0xc0] sm:$0xff]
    %v748 = vld [vmem:[#allocation2 + $0xc8] sm:$0xff]
    %v749 = vld [vmem:[#allocation2 + $0xe0] sm:$0xff]
    %v750 = vld [vmem:[#allocation2 + $0xe8] sm:$0xff]
    %v751 = vld [vmem:[#allocation2 + $0x100] sm:$0xff]
    %v752 = vld [vmem:[#allocation2 + $0x108] sm:$0xff]
    %v753 = vld [vmem:[#allocation2 + $0x120] sm:$0xff]
    %v754 = vld [vmem:[#allocation2 + $0x128] sm:$0xff]
    %v755 = vpack.c.bf16 %v741, %v739
    %v756 = vpack.c.bf16 %v742, %v740
    %v757 = vpack.c.bf16 %v745, %v743
    %v758 = vpack.c.bf16 %v746, %v744
    %v759 = vpack.c.bf16 %v749, %v747
    %v760 = vpack.c.bf16 %v750, %v748
    %v761 = vpack.c.bf16 %v753, %v751
    %v762 = vpack.c.bf16 %v754, %v752
    %v763 = vld [vmem:[#allocation11] sm:$0xff]
    %v764 = vld [vmem:[#allocation11 + $0x8] sm:$0xff]
    %v765 = vld [vmem:[#allocation11 + $0x10] sm:$0xff]
    %v766 = vld [vmem:[#allocation11 + $0x18] sm:$0xff]
    %v767 = vld [vmem:[#allocation11 + $0x20] sm:$0xff]
    %v768 = vld [vmem:[#allocation11 + $0x28] sm:$0xff]
    %v769 = vld [vmem:[#allocation11 + $0x30] sm:$0xff]
    %v770 = vld [vmem:[#allocation11 + $0x38] sm:$0xff]
    %v771 = vld [vmem:[#allocation11 + $0x40] sm:$0xff]
    %v772 = vld [vmem:[#allocation11 + $0x48] sm:$0xff]
    %v773 = vld [vmem:[#allocation11 + $0x50] sm:$0xff]
    %v774 = vld [vmem:[#allocation11 + $0x58] sm:$0xff]
    %v775 = vld [vmem:[#allocation11 + $0x60] sm:$0xff]
    %v776 = vld [vmem:[#allocation11 + $0x68] sm:$0xff]
    %v777 = vld [vmem:[#allocation11 + $0x70] sm:$0xff]
    %v778 = vld [vmem:[#allocation11 + $0x78] sm:$0xff]
    %v779 = vld [vmem:[#allocation11 + $0x80] sm:$0xff]
    %v780 = vld [vmem:[#allocation11 + $0x88] sm:$0xff]
    %v781 = vld [vmem:[#allocation11 + $0x90] sm:$0xff]
    %v782 = vld [vmem:[#allocation11 + $0x98] sm:$0xff]
    %v783 = vld [vmem:[#allocation11 + $0xa0] sm:$0xff]
    %v784 = vld [vmem:[#allocation11 + $0xa8] sm:$0xff]
    %v785 = vld [vmem:[#allocation11 + $0xb0] sm:$0xff]
    %v786 = vld [vmem:[#allocation11 + $0xb8] sm:$0xff]
    %v787 = vld [vmem:[#allocation11 + $0xc0] sm:$0xff]
    %v788 = vld [vmem:[#allocation11 + $0xc8] sm:$0xff]
    %v789 = vld [vmem:[#allocation11 + $0xd0] sm:$0xff]
    %v790 = vld [vmem:[#allocation11 + $0xd8] sm:$0xff]
    %v791 = vld [vmem:[#allocation11 + $0xe0] sm:$0xff]
    %v792 = vld [vmem:[#allocation11 + $0xe8] sm:$0xff]
    %v793 = vld [vmem:[#allocation11 + $0xf0] sm:$0xff]
    %v794 = vld [vmem:[#allocation11 + $0xf8] sm:$0xff]
    %v795 = vld [vmem:[#allocation2] sm:$0xfe]
    %v796 = vld [vmem:[#allocation2 + $0x8] sm:$0xfe]
    %v797 = vld [vmem:[#allocation2 + $0x10] sm:$0x1]
    %v798 = vld [vmem:[#allocation2 + $0x18] sm:$0x1]
    %v799 = vld [vmem:[#allocation2 + $0x20] sm:$0xfe]
    %v800 = vld [vmem:[#allocation2 + $0x28] sm:$0xfe]
    %v801 = vld [vmem:[#allocation2 + $0x30] sm:$0x1]
    %v802 = vld [vmem:[#allocation2 + $0x38] sm:$0x1]
    %v803 = vld [vmem:[#allocation2 + $0x40] sm:$0xfe]
    %v804 = vld [vmem:[#allocation2 + $0x48] sm:$0xfe]
    %v805 = vld [vmem:[#allocation2 + $0x50] sm:$0x1]
    %v806 = vld [vmem:[#allocation2 + $0x58] sm:$0x1]
    %v807 = vld [vmem:[#allocation2 + $0x60] sm:$0xfe]
    %v808 = vld [vmem:[#allocation2 + $0x68] sm:$0xfe]
    %v809 = vld [vmem:[#allocation2 + $0x70] sm:$0x1]
    %v810 = vld [vmem:[#allocation2 + $0x78] sm:$0x1]
    %v811 = vld [vmem:[#allocation2 + $0xc0] sm:$0xfe]
    %v812 = vld [vmem:[#allocation2 + $0xc8] sm:$0xfe]
    %v813 = vld [vmem:[#allocation2 + $0xd0] sm:$0x1]
    %v814 = vld [vmem:[#allocation2 + $0xd8] sm:$0x1]
    %v815 = vld [vmem:[#allocation2 + $0xe0] sm:$0xfe]
    %v816 = vld [vmem:[#allocation2 + $0xe8] sm:$0xfe]
    %v817 = vld [vmem:[#allocation2 + $0xf0] sm:$0x1]
    %v818 = vld [vmem:[#allocation2 + $0xf8] sm:$0x1]
    %v819 = vld [vmem:[#allocation2 + $0x100] sm:$0xfe]
    %v820 = vld [vmem:[#allocation2 + $0x108] sm:$0xfe]
    %v821 = vld [vmem:[#allocation2 + $0x110] sm:$0x1]
    %v822 = vld [vmem:[#allocation2 + $0x118] sm:$0x1]
    %v823 = vld [vmem:[#allocation2 + $0x120] sm:$0xfe]
    %v824 = vld [vmem:[#allocation2 + $0x128] sm:$0xfe]
    %v825 = vld [vmem:[#allocation2 + $0x130] sm:$0x1]
    %v826 = vld [vmem:[#allocation2 + $0x138] sm:$0x1]
    %vm859 = vcmask 1046528
    %v860 = vrot.slane %v795, 1
    %v861 = vrot.slane %v797, 1
    %v862 = vsel %vm859, %v860, %v861
    %v863 = vrot.slane %v796, 1
    %v864 = vrot.slane %v798, 1
    %v865 = vsel %vm859, %v863, %v864
    %v866 = vrot.slane %v799, 1
    %v867 = vrot.slane %v801, 1
    %v868 = vsel %vm859, %v866, %v867
    %v869 = vrot.slane %v800, 1
    %v870 = vrot.slane %v802, 1
    %v871 = vsel %vm859, %v869, %v870
    %v872 = vrot.slane %v803, 1
    %v873 = vrot.slane %v805, 1
    %v874 = vsel %vm859, %v872, %v873
    %v875 = vrot.slane %v804, 1
    %v876 = vrot.slane %v806, 1
    %v877 = vsel %vm859, %v875, %v876
    %v878 = vrot.slane %v807, 1
    %v879 = vrot.slane %v809, 1
    %v880 = vsel %vm859, %v878, %v879
    %v881 = vrot.slane %v808, 1
    %v882 = vrot.slane %v810, 1
    %v883 = vsel %vm859, %v881, %v882
    %v884 = vrot.slane %v811, 1
    %v885 = vrot.slane %v813, 1
    %v886 = vsel %vm859, %v884, %v885
    %v887 = vrot.slane %v812, 1
    %v888 = vrot.slane %v814, 1
    %v889 = vsel %vm859, %v887, %v888
    %v890 = vrot.slane %v815, 1
    %v891 = vrot.slane %v817, 1
    %v892 = vsel %vm859, %v890, %v891
    %v893 = vrot.slane %v816, 1
    %v894 = vrot.slane %v818, 1
    %v895 = vsel %vm859, %v893, %v894
    %v896 = vrot.slane %v819, 1
    %v897 = vrot.slane %v821, 1
    %v898 = vsel %vm859, %v896, %v897
    %v899 = vrot.slane %v820, 1
    %v900 = vrot.slane %v822, 1
    %v901 = vsel %vm859, %v899, %v900
    %v902 = vrot.slane %v823, 1
    %v903 = vrot.slane %v825, 1
    %v904 = vsel %vm859, %v902, %v903
    %v905 = vrot.slane %v824, 1
    %v906 = vrot.slane %v826, 1
    %v907 = vsel %vm859, %v905, %v906
    %v924 = vpack.c.bf16 %v868, %v862
    %v925 = vpack.c.bf16 %v871, %v865
    %v926 = vpack.c.bf16 %v880, %v874
    %v927 = vpack.c.bf16 %v883, %v877
    %v928 = vpack.c.bf16 %v892, %v886
    %v929 = vpack.c.bf16 %v895, %v889
    %v930 = vpack.c.bf16 %v904, %v898
    %v931 = vpack.c.bf16 %v907, %v901
    %s932 = scalar_lea.vmem [#allocation11], 256
    %v933 = vld [vmem:[%s932] sm:$0xff]
    %v934 = vld [vmem:[%s932 + $0x8] sm:$0xff]
    %v935 = vld [vmem:[%s932 + $0x10] sm:$0xff]
    %v936 = vld [vmem:[%s932 + $0x18] sm:$0xff]
    %v937 = vld [vmem:[%s932 + $0x20] sm:$0xff]
    %v938 = vld [vmem:[%s932 + $0x28] sm:$0xff]
    %v939 = vld [vmem:[%s932 + $0x30] sm:$0xff]
    %v940 = vld [vmem:[%s932 + $0x38] sm:$0xff]
    %v941 = vld [vmem:[%s932 + $0x40] sm:$0xff]
    %v942 = vld [vmem:[%s932 + $0x48] sm:$0xff]
    %v943 = vld [vmem:[%s932 + $0x50] sm:$0xff]
    %v944 = vld [vmem:[%s932 + $0x58] sm:$0xff]
    %v945 = vld [vmem:[%s932 + $0x60] sm:$0xff]
    %v946 = vld [vmem:[%s932 + $0x68] sm:$0xff]
    %v947 = vld [vmem:[%s932 + $0x70] sm:$0xff]
    %v948 = vld [vmem:[%s932 + $0x78] sm:$0xff]
    %v949 = vld [vmem:[%s932 + $0x80] sm:$0xff]
    %v950 = vld [vmem:[%s932 + $0x88] sm:$0xff]
    %v951 = vld [vmem:[%s932 + $0x90] sm:$0xff]
    %v952 = vld [vmem:[%s932 + $0x98] sm:$0xff]
    %v953 = vld [vmem:[%s932 + $0xa0] sm:$0xff]
    %v954 = vld [vmem:[%s932 + $0xa8] sm:$0xff]
    %v955 = vld [vmem:[%s932 + $0xb0] sm:$0xff]
    %v956 = vld [vmem:[%s932 + $0xb8] sm:$0xff]
    %v957 = vld [vmem:[%s932 + $0xc0] sm:$0xff]
    %v958 = vld [vmem:[%s932 + $0xc8] sm:$0xff]
    %v959 = vld [vmem:[%s932 + $0xd0] sm:$0xff]
    %v960 = vld [vmem:[%s932 + $0xd8] sm:$0xff]
    %v961 = vld [vmem:[%s932 + $0xe0] sm:$0xff]
    %v962 = vld [vmem:[%s932 + $0xe8] sm:$0xff]
    %v963 = vld [vmem:[%s932 + $0xf0] sm:$0xff]
    %v964 = vld [vmem:[%s932 + $0xf8] sm:$0xff]
    %v997 = vunpack.c.l.b16 %v933
    %v998 = vunpack.c.h.b16 %v933
    %v999 = vunpack.c.l.b16 %v934
    %v1000 = vunpack.c.h.b16 %v934
    %v1001 = vunpack.c.l.b16 %v935
    %v1002 = vunpack.c.h.b16 %v935
    %v1003 = vunpack.c.l.b16 %v936
    %v1004 = vunpack.c.h.b16 %v936
    %v1005 = vunpack.c.l.b16 %v937
    %v1006 = vunpack.c.h.b16 %v937
    %v1007 = vunpack.c.l.b16 %v938
    %v1008 = vunpack.c.h.b16 %v938
    %v1009 = vunpack.c.l.b16 %v939
    %v1010 = vunpack.c.h.b16 %v939
    %v1011 = vunpack.c.l.b16 %v940
    %v1012 = vunpack.c.h.b16 %v940
    %v1013 = vunpack.c.l.b16 %v941
    %v1014 = vunpack.c.h.b16 %v941
    %v1015 = vunpack.c.l.b16 %v942
    %v1016 = vunpack.c.h.b16 %v942
    %v1017 = vunpack.c.l.b16 %v943
    %v1018 = vunpack.c.h.b16 %v943
    %v1019 = vunpack.c.l.b16 %v944
    %v1020 = vunpack.c.h.b16 %v944
    %v1021 = vunpack.c.l.b16 %v945
    %v1022 = vunpack.c.h.b16 %v945
    %v1023 = vunpack.c.l.b16 %v946
    %v1024 = vunpack.c.h.b16 %v946
    %v1025 = vunpack.c.l.b16 %v947
    %v1026 = vunpack.c.h.b16 %v947
    %v1027 = vunpack.c.l.b16 %v948
    %v1028 = vunpack.c.h.b16 %v948
    %v1029 = vunpack.c.l.b16 %v949
    %v1030 = vunpack.c.h.b16 %v949
    %v1031 = vunpack.c.l.b16 %v950
    %v1032 = vunpack.c.h.b16 %v950
    %v1033 = vunpack.c.l.b16 %v951
    %v1034 = vunpack.c.h.b16 %v951
    %v1035 = vunpack.c.l.b16 %v952
    %v1036 = vunpack.c.h.b16 %v952
    %v1037 = vunpack.c.l.b16 %v953
    %v1038 = vunpack.c.h.b16 %v953
    %v1039 = vunpack.c.l.b16 %v954
    %v1040 = vunpack.c.h.b16 %v954
    %v1041 = vunpack.c.l.b16 %v955
    %v1042 = vunpack.c.h.b16 %v955
    %v1043 = vunpack.c.l.b16 %v956
    %v1044 = vunpack.c.h.b16 %v956
    %v1045 = vunpack.c.l.b16 %v957
    %v1046 = vunpack.c.h.b16 %v957
    %v1047 = vunpack.c.l.b16 %v958
    %v1048 = vunpack.c.h.b16 %v958
    %v1049 = vunpack.c.l.b16 %v959
    %v1050 = vunpack.c.h.b16 %v959
    %v1051 = vunpack.c.l.b16 %v960
    %v1052 = vunpack.c.h.b16 %v960
    %v1053 = vunpack.c.l.b16 %v961
    %v1054 = vunpack.c.h.b16 %v961
    %v1055 = vunpack.c.l.b16 %v962
    %v1056 = vunpack.c.h.b16 %v962
    %v1057 = vunpack.c.l.b16 %v963
    %v1058 = vunpack.c.h.b16 %v963
    %v1059 = vunpack.c.l.b16 %v964
    %v1060 = vunpack.c.h.b16 %v964
    %v1061 = vpack.c.b16 %v999, %v997
    %v1062 = vpack.c.b16 %v1000, %v998
    %v1063 = vpack.c.b16 %v1003, %v1001
    %v1064 = vpack.c.b16 %v1004, %v1002
    %v1065 = vpack.c.b16 %v1007, %v1005
    %v1066 = vpack.c.b16 %v1008, %v1006
    %v1067 = vpack.c.b16 %v1011, %v1009
    %v1068 = vpack.c.b16 %v1012, %v1010
    %v1069 = vpack.c.b16 %v1015, %v1013
    %v1070 = vpack.c.b16 %v1016, %v1014
    %v1071 = vpack.c.b16 %v1019, %v1017
    %v1072 = vpack.c.b16 %v1020, %v1018
    %v1073 = vpack.c.b16 %v1023, %v1021
    %v1074 = vpack.c.b16 %v1024, %v1022
    %v1075 = vpack.c.b16 %v1027, %v1025
    %v1076 = vpack.c.b16 %v1028, %v1026
    %v1077 = vpack.c.b16 %v1031, %v1029
    %v1078 = vpack.c.b16 %v1032, %v1030
    %v1079 = vpack.c.b16 %v1035, %v1033
    %v1080 = vpack.c.b16 %v1036, %v1034
    %v1081 = vpack.c.b16 %v1039, %v1037
    %v1082 = vpack.c.b16 %v1040, %v1038
    %v1083 = vpack.c.b16 %v1043, %v1041
    %v1084 = vpack.c.b16 %v1044, %v1042
    %v1085 = vpack.c.b16 %v1047, %v1045
    %v1086 = vpack.c.b16 %v1048, %v1046
    %v1087 = vpack.c.b16 %v1051, %v1049
    %v1088 = vpack.c.b16 %v1052, %v1050
    %v1089 = vpack.c.b16 %v1055, %v1053
    %v1090 = vpack.c.b16 %v1056, %v1054
    %v1091 = vpack.c.b16 %v1059, %v1057
    %v1092 = vpack.c.b16 %v1060, %v1058
    %1125 = vmatprep.subr.bf16.mxu0 %v1076
    %1126 = vmatpush1.bf16.msra.mxu0 %v1075
    %1127 = vmatprep.subr.bf16.mxu0 %v1074
    %1128 = vmatpush1.bf16.msra.mxu0 %v1073
    %1129 = vmatprep.subr.bf16.mxu0 %v1072
    %1130 = vmatpush1.bf16.msra.mxu0 %v1071
    %1131 = vmatprep.subr.bf16.mxu0 %v1070
    %1132 = vmatpush1.bf16.msra.mxu0 %v1069
    %1133 = vmatprep.subr.bf16.mxu0 %v1068
    %1134 = vmatpush1.bf16.msra.mxu0 %v1067
    %1135 = vmatprep.subr.bf16.mxu0 %v1066
    %1136 = vmatpush1.bf16.msra.mxu0 %v1065
    %1137 = vmatprep.subr.bf16.mxu0 %v1064
    %1138 = vmatpush1.bf16.msra.mxu0 %v1063
    %1139 = vmatprep.subr.bf16.mxu0 %v1062
    %1140 = vmatpush1.bf16.msra.mxu0 %v1061
    %1141 = vmatprep.subr.bf16.mxu0 %v1092
    %1142 = vmatpush2.bf16.msra.mxu0 %v1091
    %1143 = vmatprep.subr.bf16.mxu0 %v1090
    %1144 = vmatpush2.bf16.msra.mxu0 %v1089
    %1145 = vmatprep.subr.bf16.mxu0 %v1088
    %1146 = vmatpush2.bf16.msra.mxu0 %v1087
    %1147 = vmatprep.subr.bf16.mxu0 %v1086
    %1148 = vmatpush2.bf16.msra.mxu0 %v1085
    %1149 = vmatprep.subr.bf16.mxu0 %v1084
    %1150 = vmatpush2.bf16.msra.mxu0 %v1083
    %1151 = vmatprep.subr.bf16.mxu0 %v1082
    %1152 = vmatpush2.bf16.msra.mxu0 %v1081
    %1153 = vmatprep.subr.bf16.mxu0 %v1080
    %1154 = vmatpush2.bf16.msra.mxu0 %v1079
    %1155 = vmatprep.subr.bf16.mxu0 %v1078
    %1156 = vmatpush2.bf16.msra.mxu0 %v1077
    %1157 = vmatprep.mubr.bf16.mxu0 %v925
    %1158 = vmatmul.mubr.bf16.gmra.mxu0 %v924
    %v1159 = vpop.f32.mrf.mxu0
    %v1160 = vadd.f32 0.0, %v1159
    %v1161 = vpop.f32.mrf.mxu0
    %v1162 = vadd.f32 0.0, %v1161
    %v1163 = vpop.f32.mrf.mxu0
    %v1164 = vadd.f32 0.0, %v1163
    %v1165 = vpop.f32.mrf.mxu0
    %v1166 = vadd.f32 0.0, %v1165
    %1167 = vmatprep.mubr.bf16.mxu0 %v927
    %1168 = vmatmul.mubr.bf16.gmra.mxu0 %v926
    %v1169 = vpop.f32.mrf.mxu0
    %v1170 = vadd.f32 0.0, %v1169
    %v1171 = vpop.f32.mrf.mxu0
    %v1172 = vadd.f32 0.0, %v1171
    %v1173 = vpop.f32.mrf.mxu0
    %v1174 = vadd.f32 0.0, %v1173
    %v1175 = vpop.f32.mrf.mxu0
    %v1176 = vadd.f32 0.0, %v1175
    %1177 = vmatprep.mubr.bf16.mxu0 %v929
    %1178 = vmatmul.mubr.bf16.gmra.mxu0 %v928
    %v1179 = vpop.f32.mrf.mxu0
    %v1180 = vadd.f32 0.0, %v1179
    %v1181 = vpop.f32.mrf.mxu0
    %v1182 = vadd.f32 0.0, %v1181
    %v1183 = vpop.f32.mrf.mxu0
    %v1184 = vadd.f32 0.0, %v1183
    %v1185 = vpop.f32.mrf.mxu0
    %v1186 = vadd.f32 0.0, %v1185
    %1187 = vmatprep.mubr.bf16.mxu0 %v931
    %1188 = vmatmul.mubr.bf16.gmra.mxu0 %v930
    %v1189 = vpop.f32.mrf.mxu0
    %v1190 = vadd.f32 0.0, %v1189
    %v1191 = vpop.f32.mrf.mxu0
    %v1192 = vadd.f32 0.0, %v1191
    %v1193 = vpop.f32.mrf.mxu0
    %v1194 = vadd.f32 0.0, %v1193
    %v1195 = vpop.f32.mrf.mxu0
    %v1196 = vadd.f32 0.0, %v1195
    %1197 = vdwg.mxu0
    %v1230 = vunpack.c.l.b16 %v763
    %v1231 = vunpack.c.h.b16 %v763
    %v1232 = vunpack.c.l.b16 %v764
    %v1233 = vunpack.c.h.b16 %v764
    %v1234 = vunpack.c.l.b16 %v765
    %v1235 = vunpack.c.h.b16 %v765
    %v1236 = vunpack.c.l.b16 %v766
    %v1237 = vunpack.c.h.b16 %v766
    %v1238 = vunpack.c.l.b16 %v767
    %v1239 = vunpack.c.h.b16 %v767
    %v1240 = vunpack.c.l.b16 %v768
    %v1241 = vunpack.c.h.b16 %v768
    %v1242 = vunpack.c.l.b16 %v769
    %v1243 = vunpack.c.h.b16 %v769
    %v1244 = vunpack.c.l.b16 %v770
    %v1245 = vunpack.c.h.b16 %v770
    %v1246 = vunpack.c.l.b16 %v771
    %v1247 = vunpack.c.h.b16 %v771
    %v1248 = vunpack.c.l.b16 %v772
    %v1249 = vunpack.c.h.b16 %v772
    %v1250 = vunpack.c.l.b16 %v773
    %v1251 = vunpack.c.h.b16 %v773
    %v1252 = vunpack.c.l.b16 %v774
    %v1253 = vunpack.c.h.b16 %v774
    %v1254 = vunpack.c.l.b16 %v775
    %v1255 = vunpack.c.h.b16 %v775
    %v1256 = vunpack.c.l.b16 %v776
    %v1257 = vunpack.c.h.b16 %v776
    %v1258 = vunpack.c.l.b16 %v777
    %v1259 = vunpack.c.h.b16 %v777
    %v1260 = vunpack.c.l.b16 %v778
    %v1261 = vunpack.c.h.b16 %v778
    %v1262 = vunpack.c.l.b16 %v779
    %v1263 = vunpack.c.h.b16 %v779
    %v1264 = vunpack.c.l.b16 %v780
    %v1265 = vunpack.c.h.b16 %v780
    %v1266 = vunpack.c.l.b16 %v781
    %v1267 = vunpack.c.h.b16 %v781
    %v1268 = vunpack.c.l.b16 %v782
    %v1269 = vunpack.c.h.b16 %v782
    %v1270 = vunpack.c.l.b16 %v783
    %v1271 = vunpack.c.h.b16 %v783
    %v1272 = vunpack.c.l.b16 %v784
    %v1273 = vunpack.c.h.b16 %v784
    %v1274 = vunpack.c.l.b16 %v785
    %v1275 = vunpack.c.h.b16 %v785
    %v1276 = vunpack.c.l.b16 %v786
    %v1277 = vunpack.c.h.b16 %v786
    %v1278 = vunpack.c.l.b16 %v787
    %v1279 = vunpack.c.h.b16 %v787
    %v1280 = vunpack.c.l.b16 %v788
    %v1281 = vunpack.c.h.b16 %v788
    %v1282 = vunpack.c.l.b16 %v789
    %v1283 = vunpack.c.h.b16 %v789
    %v1284 = vunpack.c.l.b16 %v790
    %v1285 = vunpack.c.h.b16 %v790
    %v1286 = vunpack.c.l.b16 %v791
    %v1287 = vunpack.c.h.b16 %v791
    %v1288 = vunpack.c.l.b16 %v792
    %v1289 = vunpack.c.h.b16 %v792
    %v1290 = vunpack.c.l.b16 %v793
    %v1291 = vunpack.c.h.b16 %v793
    %v1292 = vunpack.c.l.b16 %v794
    %v1293 = vunpack.c.h.b16 %v794
    %v1294 = vpack.c.b16 %v1232, %v1230
    %v1295 = vpack.c.b16 %v1233, %v1231
    %v1296 = vpack.c.b16 %v1236, %v1234
    %v1297 = vpack.c.b16 %v1237, %v1235
    %v1298 = vpack.c.b16 %v1240, %v1238
    %v1299 = vpack.c.b16 %v1241, %v1239
    %v1300 = vpack.c.b16 %v1244, %v1242
    %v1301 = vpack.c.b16 %v1245, %v1243
    %v1302 = vpack.c.b16 %v1248, %v1246
    %v1303 = vpack.c.b16 %v1249, %v1247
    %v1304 = vpack.c.b16 %v1252, %v1250
    %v1305 = vpack.c.b16 %v1253, %v1251
    %v1306 = vpack.c.b16 %v1256, %v1254
    %v1307 = vpack.c.b16 %v1257, %v1255
    %v1308 = vpack.c.b16 %v1260, %v1258
    %v1309 = vpack.c.b16 %v1261, %v1259
    %v1310 = vpack.c.b16 %v1264, %v1262
    %v1311 = vpack.c.b16 %v1265, %v1263
    %v1312 = vpack.c.b16 %v1268, %v1266
    %v1313 = vpack.c.b16 %v1269, %v1267
    %v1314 = vpack.c.b16 %v1272, %v1270
    %v1315 = vpack.c.b16 %v1273, %v1271
    %v1316 = vpack.c.b16 %v1276, %v1274
    %v1317 = vpack.c.b16 %v1277, %v1275
    %v1318 = vpack.c.b16 %v1280, %v1278
    %v1319 = vpack.c.b16 %v1281, %v1279
    %v1320 = vpack.c.b16 %v1284, %v1282
    %v1321 = vpack.c.b16 %v1285, %v1283
    %v1322 = vpack.c.b16 %v1288, %v1286
    %v1323 = vpack.c.b16 %v1289, %v1287
    %v1324 = vpack.c.b16 %v1292, %v1290
    %v1325 = vpack.c.b16 %v1293, %v1291
    %1358 = vmatprep.subr.bf16.mxu0 %v1309
    %1359 = vmatpush1.bf16.msra.mxu0 %v1308
    %1360 = vmatprep.subr.bf16.mxu0 %v1307
    %1361 = vmatpush1.bf16.msra.mxu0 %v1306
    %1362 = vmatprep.subr.bf16.mxu0 %v1305
    %1363 = vmatpush1.bf16.msra.mxu0 %v1304
    %1364 = vmatprep.subr.bf16.mxu0 %v1303
    %1365 = vmatpush1.bf16.msra.mxu0 %v1302
    %1366 = vmatprep.subr.bf16.mxu0 %v1301
    %1367 = vmatpush1.bf16.msra.mxu0 %v1300
    %1368 = vmatprep.subr.bf16.mxu0 %v1299
    %1369 = vmatpush1.bf16.msra.mxu0 %v1298
    %1370 = vmatprep.subr.bf16.mxu0 %v1297
    %1371 = vmatpush1.bf16.msra.mxu0 %v1296
    %1372 = vmatprep.subr.bf16.mxu0 %v1295
    %1373 = vmatpush1.bf16.msra.mxu0 %v1294
    %1374 = vmatprep.subr.bf16.mxu0 %v1325
    %1375 = vmatpush2.bf16.msra.mxu0 %v1324
    %1376 = vmatprep.subr.bf16.mxu0 %v1323
    %1377 = vmatpush2.bf16.msra.mxu0 %v1322
    %1378 = vmatprep.subr.bf16.mxu0 %v1321
    %1379 = vmatpush2.bf16.msra.mxu0 %v1320
    %1380 = vmatprep.subr.bf16.mxu0 %v1319
    %1381 = vmatpush2.bf16.msra.mxu0 %v1318
    %1382 = vmatprep.subr.bf16.mxu0 %v1317
    %1383 = vmatpush2.bf16.msra.mxu0 %v1316
    %1384 = vmatprep.subr.bf16.mxu0 %v1315
    %1385 = vmatpush2.bf16.msra.mxu0 %v1314
    %1386 = vmatprep.subr.bf16.mxu0 %v1313
    %1387 = vmatpush2.bf16.msra.mxu0 %v1312
    %1388 = vmatprep.subr.bf16.mxu0 %v1311
    %1389 = vmatpush2.bf16.msra.mxu0 %v1310
    %1390 = vmatprep.mubr.bf16.mxu0 %v756
    %1391 = vmatmul.mubr.bf16.gmra.mxu0 %v755
    %v1392 = vpop.f32.mrf.mxu0
    %v1393 = vadd.f32 %v1160, %v1392
    %v1394 = vpop.f32.mrf.mxu0
    %v1395 = vadd.f32 %v1162, %v1394
    %v1396 = vpop.f32.mrf.mxu0
    %v1397 = vadd.f32 %v1164, %v1396
    %v1398 = vpop.f32.mrf.mxu0
    %v1399 = vadd.f32 %v1166, %v1398
    %1400 = vmatprep.mubr.bf16.mxu0 %v758
    %1401 = vmatmul.mubr.bf16.gmra.mxu0 %v757
    %v1402 = vpop.f32.mrf.mxu0
    %v1403 = vadd.f32 %v1170, %v1402
    %v1404 = vpop.f32.mrf.mxu0
    %v1405 = vadd.f32 %v1172, %v1404
    %v1406 = vpop.f32.mrf.mxu0
    %v1407 = vadd.f32 %v1174, %v1406
    %v1408 = vpop.f32.mrf.mxu0
    %v1409 = vadd.f32 %v1176, %v1408
    %1410 = vmatprep.mubr.bf16.mxu0 %v760
    %1411 = vmatmul.mubr.bf16.gmra.mxu0 %v759
    %v1412 = vpop.f32.mrf.mxu0
    %v1413 = vadd.f32 %v1180, %v1412
    %v1414 = vpop.f32.mrf.mxu0
    %v1415 = vadd.f32 %v1182, %v1414
    %v1416 = vpop.f32.mrf.mxu0
    %v1417 = vadd.f32 %v1184, %v1416
    %v1418 = vpop.f32.mrf.mxu0
    %v1419 = vadd.f32 %v1186, %v1418
    %1420 = vmatprep.mubr.bf16.mxu0 %v762
    %1421 = vmatmul.mubr.bf16.gmra.mxu0 %v761
    %v1422 = vpop.f32.mrf.mxu0
    %v1423 = vadd.f32 %v1190, %v1422
    %v1424 = vpop.f32.mrf.mxu0
    %v1425 = vadd.f32 %v1192, %v1424
    %v1426 = vpop.f32.mrf.mxu0
    %v1427 = vadd.f32 %v1194, %v1426
    %v1428 = vpop.f32.mrf.mxu0
    %v1429 = vadd.f32 %v1196, %v1428
    %1430 = vdwg.mxu0
    %v1431 = vld [vmem:[#allocation2] sm:$0xfc]
    %v1432 = vld [vmem:[#allocation2 + $0x8] sm:$0xfc]
    %v1433 = vld [vmem:[#allocation2 + $0x10] sm:$0x3]
    %v1434 = vld [vmem:[#allocation2 + $0x18] sm:$0x3]
    %v1435 = vld [vmem:[#allocation2 + $0x20] sm:$0xfc]
    %v1436 = vld [vmem:[#allocation2 + $0x28] sm:$0xfc]
    %v1437 = vld [vmem:[#allocation2 + $0x30] sm:$0x3]
    %v1438 = vld [vmem:[#allocation2 + $0x38] sm:$0x3]
    %v1439 = vld [vmem:[#allocation2 + $0x40] sm:$0xfc]
    %v1440 = vld [vmem:[#allocation2 + $0x48] sm:$0xfc]
    %v1441 = vld [vmem:[#allocation2 + $0x50] sm:$0x3]
    %v1442 = vld [vmem:[#allocation2 + $0x58] sm:$0x3]
    %v1443 = vld [vmem:[#allocation2 + $0x60] sm:$0xfc]
    %v1444 = vld [vmem:[#allocation2 + $0x68] sm:$0xfc]
    %v1445 = vld [vmem:[#allocation2 + $0x70] sm:$0x3]
    %v1446 = vld [vmem:[#allocation2 + $0x78] sm:$0x3]
    %v1447 = vld [vmem:[#allocation2 + $0xc0] sm:$0xfc]
    %v1448 = vld [vmem:[#allocation2 + $0xc8] sm:$0xfc]
    %v1449 = vld [vmem:[#allocation2 + $0xd0] sm:$0x3]
    %v1450 = vld [vmem:[#allocation2 + $0xd8] sm:$0x3]
    %v1451 = vld [vmem:[#allocation2 + $0xe0] sm:$0xfc]
    %v1452 = vld [vmem:[#allocation2 + $0xe8] sm:$0xfc]
    %v1453 = vld [vmem:[#allocation2 + $0xf0] sm:$0x3]
    %v1454 = vld [vmem:[#allocation2 + $0xf8] sm:$0x3]
    %v1455 = vld [vmem:[#allocation2 + $0x100] sm:$0xfc]
    %v1456 = vld [vmem:[#allocation2 + $0x108] sm:$0xfc]
    %v1457 = vld [vmem:[#allocation2 + $0x110] sm:$0x3]
    %v1458 = vld [vmem:[#allocation2 + $0x118] sm:$0x3]
    %v1459 = vld [vmem:[#allocation2 + $0x120] sm:$0xfc]
    %v1460 = vld [vmem:[#allocation2 + $0x128] sm:$0xfc]
    %v1461 = vld [vmem:[#allocation2 + $0x130] sm:$0x3]
    %v1462 = vld [vmem:[#allocation2 + $0x138] sm:$0x3]
    %vm1495 = vcmask 1045504
    %v1496 = vrot.slane %v1431, 2
    %v1497 = vrot.slane %v1433, 2
    %v1498 = vsel %vm1495, %v1496, %v1497
    %v1499 = vrot.slane %v1432, 2
    %v1500 = vrot.slane %v1434, 2
    %v1501 = vsel %vm1495, %v1499, %v1500
    %v1502 = vrot.slane %v1435, 2
    %v1503 = vrot.slane %v1437, 2
    %v1504 = vsel %vm1495, %v1502, %v1503
    %v1505 = vrot.slane %v1436, 2
    %v1506 = vrot.slane %v1438, 2
    %v1507 = vsel %vm1495, %v1505, %v1506
    %v1508 = vrot.slane %v1439, 2
    %v1509 = vrot.slane %v1441, 2
    %v1510 = vsel %vm1495, %v1508, %v1509
    %v1511 = vrot.slane %v1440, 2
    %v1512 = vrot.slane %v1442, 2
    %v1513 = vsel %vm1495, %v1511, %v1512
    %v1514 = vrot.slane %v1443, 2
    %v1515 = vrot.slane %v1445, 2
    %v1516 = vsel %vm1495, %v1514, %v1515
    %v1517 = vrot.slane %v1444, 2
    %v1518 = vrot.slane %v1446, 2
    %v1519 = vsel %vm1495, %v1517, %v1518
    %v1520 = vrot.slane %v1447, 2
    %v1521 = vrot.slane %v1449, 2
    %v1522 = vsel %vm1495, %v1520, %v1521
    %v1523 = vrot.slane %v1448, 2
    %v1524 = vrot.slane %v1450, 2
    %v1525 = vsel %vm1495, %v1523, %v1524
    %v1526 = vrot.slane %v1451, 2
    %v1527 = vrot.slane %v1453, 2
    %v1528 = vsel %vm1495, %v1526, %v1527
    %v1529 = vrot.slane %v1452, 2
    %v1530 = vrot.slane %v1454, 2
    %v1531 = vsel %vm1495, %v1529, %v1530
    %v1532 = vrot.slane %v1455, 2
    %v1533 = vrot.slane %v1457, 2
    %v1534 = vsel %vm1495, %v1532, %v1533
    %v1535 = vrot.slane %v1456, 2
    %v1536 = vrot.slane %v1458, 2
    %v1537 = vsel %vm1495, %v1535, %v1536
    %v1538 = vrot.slane %v1459, 2
    %v1539 = vrot.slane %v1461, 2
    %v1540 = vsel %vm1495, %v1538, %v1539
    %v1541 = vrot.slane %v1460, 2
    %v1542 = vrot.slane %v1462, 2
    %v1543 = vsel %vm1495, %v1541, %v1542
    %v1560 = vpack.c.bf16 %v1504, %v1498
    %v1561 = vpack.c.bf16 %v1507, %v1501
    %v1562 = vpack.c.bf16 %v1516, %v1510
    %v1563 = vpack.c.bf16 %v1519, %v1513
    %v1564 = vpack.c.bf16 %v1528, %v1522
    %v1565 = vpack.c.bf16 %v1531, %v1525
    %v1566 = vpack.c.bf16 %v1540, %v1534
    %v1567 = vpack.c.bf16 %v1543, %v1537
    %s1568 = scalar_lea.vmem [#allocation11], 512
    %v1569 = vld [vmem:[%s1568] sm:$0xff]
    %v1570 = vld [vmem:[%s1568 + $0x8] sm:$0xff]
    %v1571 = vld [vmem:[%s1568 + $0x10] sm:$0xff]
    %v1572 = vld [vmem:[%s1568 + $0x18] sm:$0xff]
    %v1573 = vld [vmem:[%s1568 + $0x20] sm:$0xff]
    %v1574 = vld [vmem:[%s1568 + $0x28] sm:$0xff]
    %v1575 = vld [vmem:[%s1568 + $0x30] sm:$0xff]
    %v1576 = vld [vmem:[%s1568 + $0x38] sm:$0xff]
    %v1577 = vld [vmem:[%s1568 + $0x40] sm:$0xff]
    %v1578 = vld [vmem:[%s1568 + $0x48] sm:$0xff]
    %v1579 = vld [vmem:[%s1568 + $0x50] sm:$0xff]
    %v1580 = vld [vmem:[%s1568 + $0x58] sm:$0xff]
    %v1581 = vld [vmem:[%s1568 + $0x60] sm:$0xff]
    %v1582 = vld [vmem:[%s1568 + $0x68] sm:$0xff]
    %v1583 = vld [vmem:[%s1568 + $0x70] sm:$0xff]
    %v1584 = vld [vmem:[%s1568 + $0x78] sm:$0xff]
    %v1585 = vld [vmem:[%s1568 + $0x80] sm:$0xff]
    %v1586 = vld [vmem:[%s1568 + $0x88] sm:$0xff]
    %v1587 = vld [vmem:[%s1568 + $0x90] sm:$0xff]
    %v1588 = vld [vmem:[%s1568 + $0x98] sm:$0xff]
    %v1589 = vld [vmem:[%s1568 + $0xa0] sm:$0xff]
    %v1590 = vld [vmem:[%s1568 + $0xa8] sm:$0xff]
    %v1591 = vld [vmem:[%s1568 + $0xb0] sm:$0xff]
    %v1592 = vld [vmem:[%s1568 + $0xb8] sm:$0xff]
    %v1593 = vld [vmem:[%s1568 + $0xc0] sm:$0xff]
    %v1594 = vld [vmem:[%s1568 + $0xc8] sm:$0xff]
    %v1595 = vld [vmem:[%s1568 + $0xd0] sm:$0xff]
    %v1596 = vld [vmem:[%s1568 + $0xd8] sm:$0xff]
    %v1597 = vld [vmem:[%s1568 + $0xe0] sm:$0xff]
    %v1598 = vld [vmem:[%s1568 + $0xe8] sm:$0xff]
    %v1599 = vld [vmem:[%s1568 + $0xf0] sm:$0xff]
    %v1600 = vld [vmem:[%s1568 + $0xf8] sm:$0xff]
    %v1633 = vunpack.c.l.b16 %v1569
    %v1634 = vunpack.c.h.b16 %v1569
    %v1635 = vunpack.c.l.b16 %v1570
    %v1636 = vunpack.c.h.b16 %v1570
    %v1637 = vunpack.c.l.b16 %v1571
    %v1638 = vunpack.c.h.b16 %v1571
    %v1639 = vunpack.c.l.b16 %v1572
    %v1640 = vunpack.c.h.b16 %v1572
    %v1641 = vunpack.c.l.b16 %v1573
    %v1642 = vunpack.c.h.b16 %v1573
    %v1643 = vunpack.c.l.b16 %v1574
    %v1644 = vunpack.c.h.b16 %v1574
    %v1645 = vunpack.c.l.b16 %v1575
    %v1646 = vunpack.c.h.b16 %v1575
    %v1647 = vunpack.c.l.b16 %v1576
    %v1648 = vunpack.c.h.b16 %v1576
    %v1649 = vunpack.c.l.b16 %v1577
    %v1650 = vunpack.c.h.b16 %v1577
    %v1651 = vunpack.c.l.b16 %v1578
    %v1652 = vunpack.c.h.b16 %v1578
    %v1653 = vunpack.c.l.b16 %v1579
    %v1654 = vunpack.c.h.b16 %v1579
    %v1655 = vunpack.c.l.b16 %v1580
    %v1656 = vunpack.c.h.b16 %v1580
    %v1657 = vunpack.c.l.b16 %v1581
    %v1658 = vunpack.c.h.b16 %v1581
    %v1659 = vunpack.c.l.b16 %v1582
    %v1660 = vunpack.c.h.b16 %v1582
    %v1661 = vunpack.c.l.b16 %v1583
    %v1662 = vunpack.c.h.b16 %v1583
    %v1663 = vunpack.c.l.b16 %v1584
    %v1664 = vunpack.c.h.b16 %v1584
    %v1665 = vunpack.c.l.b16 %v1585
    %v1666 = vunpack.c.h.b16 %v1585
    %v1667 = vunpack.c.l.b16 %v1586
    %v1668 = vunpack.c.h.b16 %v1586
    %v1669 = vunpack.c.l.b16 %v1587
    %v1670 = vunpack.c.h.b16 %v1587
    %v1671 = vunpack.c.l.b16 %v1588
    %v1672 = vunpack.c.h.b16 %v1588
    %v1673 = vunpack.c.l.b16 %v1589
    %v1674 = vunpack.c.h.b16 %v1589
    %v1675 = vunpack.c.l.b16 %v1590
    %v1676 = vunpack.c.h.b16 %v1590
    %v1677 = vunpack.c.l.b16 %v1591
    %v1678 = vunpack.c.h.b16 %v1591
    %v1679 = vunpack.c.l.b16 %v1592
    %v1680 = vunpack.c.h.b16 %v1592
    %v1681 = vunpack.c.l.b16 %v1593
    %v1682 = vunpack.c.h.b16 %v1593
    %v1683 = vunpack.c.l.b16 %v1594
    %v1684 = vunpack.c.h.b16 %v1594
    %v1685 = vunpack.c.l.b16 %v1595
    %v1686 = vunpack.c.h.b16 %v1595
    %v1687 = vunpack.c.l.b16 %v1596
    %v1688 = vunpack.c.h.b16 %v1596
    %v1689 = vunpack.c.l.b16 %v1597
    %v1690 = vunpack.c.h.b16 %v1597
    %v1691 = vunpack.c.l.b16 %v1598
    %v1692 = vunpack.c.h.b16 %v1598
    %v1693 = vunpack.c.l.b16 %v1599
    %v1694 = vunpack.c.h.b16 %v1599
    %v1695 = vunpack.c.l.b16 %v1600
    %v1696 = vunpack.c.h.b16 %v1600
    %v1697 = vpack.c.b16 %v1635, %v1633
    %v1698 = vpack.c.b16 %v1636, %v1634
    %v1699 = vpack.c.b16 %v1639, %v1637
    %v1700 = vpack.c.b16 %v1640, %v1638
    %v1701 = vpack.c.b16 %v1643, %v1641
    %v1702 = vpack.c.b16 %v1644, %v1642
    %v1703 = vpack.c.b16 %v1647, %v1645
    %v1704 = vpack.c.b16 %v1648, %v1646
    %v1705 = vpack.c.b16 %v1651, %v1649
    %v1706 = vpack.c.b16 %v1652, %v1650
    %v1707 = vpack.c.b16 %v1655, %v1653
    %v1708 = vpack.c.b16 %v1656, %v1654
    %v1709 = vpack.c.b16 %v1659, %v1657
    %v1710 = vpack.c.b16 %v1660, %v1658
    %v1711 = vpack.c.b16 %v1663, %v1661
    %v1712 = vpack.c.b16 %v1664, %v1662
    %v1713 = vpack.c.b16 %v1667, %v1665
    %v1714 = vpack.c.b16 %v1668, %v1666
    %v1715 = vpack.c.b16 %v1671, %v1669
    %v1716 = vpack.c.b16 %v1672, %v1670
    %v1717 = vpack.c.b16 %v1675, %v1673
    %v1718 = vpack.c.b16 %v1676, %v1674
    %v1719 = vpack.c.b16 %v1679, %v1677
    %v1720 = vpack.c.b16 %v1680, %v1678
    %v1721 = vpack.c.b16 %v1683, %v1681
    %v1722 = vpack.c.b16 %v1684, %v1682
    %v1723 = vpack.c.b16 %v1687, %v1685
    %v1724 = vpack.c.b16 %v1688, %v1686
    %v1725 = vpack.c.b16 %v1691, %v1689
    %v1726 = vpack.c.b16 %v1692, %v1690
    %v1727 = vpack.c.b16 %v1695, %v1693
    %v1728 = vpack.c.b16 %v1696, %v1694
    %1761 = vmatprep.subr.bf16.mxu0 %v1712
    %1762 = vmatpush1.bf16.msra.mxu0 %v1711
    %1763 = vmatprep.subr.bf16.mxu0 %v1710
    %1764 = vmatpush1.bf16.msra.mxu0 %v1709
    %1765 = vmatprep.subr.bf16.mxu0 %v1708
    %1766 = vmatpush1.bf16.msra.mxu0 %v1707
    %1767 = vmatprep.subr.bf16.mxu0 %v1706
    %1768 = vmatpush1.bf16.msra.mxu0 %v1705
    %1769 = vmatprep.subr.bf16.mxu0 %v1704
    %1770 = vmatpush1.bf16.msra.mxu0 %v1703
    %1771 = vmatprep.subr.bf16.mxu0 %v1702
    %1772 = vmatpush1.bf16.msra.mxu0 %v1701
    %1773 = vmatprep.subr.bf16.mxu0 %v1700
    %1774 = vmatpush1.bf16.msra.mxu0 %v1699
    %1775 = vmatprep.subr.bf16.mxu0 %v1698
    %1776 = vmatpush1.bf16.msra.mxu0 %v1697
    %1777 = vmatprep.subr.bf16.mxu0 %v1728
    %1778 = vmatpush2.bf16.msra.mxu0 %v1727
    %1779 = vmatprep.subr.bf16.mxu0 %v1726
    %1780 = vmatpush2.bf16.msra.mxu0 %v1725
    %1781 = vmatprep.subr.bf16.mxu0 %v1724
    %1782 = vmatpush2.bf16.msra.mxu0 %v1723
    %1783 = vmatprep.subr.bf16.mxu0 %v1722
    %1784 = vmatpush2.bf16.msra.mxu0 %v1721
    %1785 = vmatprep.subr.bf16.mxu0 %v1720
    %1786 = vmatpush2.bf16.msra.mxu0 %v1719
    %1787 = vmatprep.subr.bf16.mxu0 %v1718
    %1788 = vmatpush2.bf16.msra.mxu0 %v1717
    %1789 = vmatprep.subr.bf16.mxu0 %v1716
    %1790 = vmatpush2.bf16.msra.mxu0 %v1715
    %1791 = vmatprep.subr.bf16.mxu0 %v1714
    %1792 = vmatpush2.bf16.msra.mxu0 %v1713
    %1793 = vmatprep.mubr.bf16.mxu0 %v1561
    %1794 = vmatmul.mubr.bf16.gmra.mxu0 %v1560
    %v1795 = vpop.f32.mrf.mxu0
    %v1796 = vadd.f32 0.0, %v1795
    %v1797 = vpop.f32.mrf.mxu0
    %v1798 = vadd.f32 0.0, %v1797
    %v1799 = vpop.f32.mrf.mxu0
    %v1800 = vadd.f32 0.0, %v1799
    %v1801 = vpop.f32.mrf.mxu0
    %v1802 = vadd.f32 0.0, %v1801
    %1803 = vmatprep.mubr.bf16.mxu0 %v1563
    %1804 = vmatmul.mubr.bf16.gmra.mxu0 %v1562
    %v1805 = vpop.f32.mrf.mxu0
    %v1806 = vadd.f32 0.0, %v1805
    %v1807 = vpop.f32.mrf.mxu0
    %v1808 = vadd.f32 0.0, %v1807
    %v1809 = vpop.f32.mrf.mxu0
    %v1810 = vadd.f32 0.0, %v1809
    %v1811 = vpop.f32.mrf.mxu0
    %v1812 = vadd.f32 0.0, %v1811
    %1813 = vmatprep.mubr.bf16.mxu0 %v1565
    %1814 = vmatmul.mubr.bf16.gmra.mxu0 %v1564
    %v1815 = vpop.f32.mrf.mxu0
    %v1816 = vadd.f32 0.0, %v1815
    %v1817 = vpop.f32.mrf.mxu0
    %v1818 = vadd.f32 0.0, %v1817
    %v1819 = vpop.f32.mrf.mxu0
    %v1820 = vadd.f32 0.0, %v1819
    %v1821 = vpop.f32.mrf.mxu0
    %v1822 = vadd.f32 0.0, %v1821
    %1823 = vmatprep.mubr.bf16.mxu0 %v1567
    %1824 = vmatmul.mubr.bf16.gmra.mxu0 %v1566
    %v1825 = vpop.f32.mrf.mxu0
    %v1826 = vadd.f32 0.0, %v1825
    %v1827 = vpop.f32.mrf.mxu0
    %v1828 = vadd.f32 0.0, %v1827
    %v1829 = vpop.f32.mrf.mxu0
    %v1830 = vadd.f32 0.0, %v1829
    %v1831 = vpop.f32.mrf.mxu0
    %v1832 = vadd.f32 0.0, %v1831
    %1833 = vdwg.mxu0
    %v1834 = vadd.f32 %v1393, %v1796
    %v1835 = vadd.f32 %v1395, %v1798
    %v1836 = vadd.f32 %v1397, %v1800
    %v1837 = vadd.f32 %v1399, %v1802
    %v1838 = vadd.f32 %v1403, %v1806
    %v1839 = vadd.f32 %v1405, %v1808
    %v1840 = vadd.f32 %v1407, %v1810
    %v1841 = vadd.f32 %v1409, %v1812
    %v1842 = vadd.f32 %v1413, %v1816
    %v1843 = vadd.f32 %v1415, %v1818
    %v1844 = vadd.f32 %v1417, %v1820
    %v1845 = vadd.f32 %v1419, %v1822
    %v1846 = vadd.f32 %v1423, %v1826
    %v1847 = vadd.f32 %v1425, %v1828
    %v1848 = vadd.f32 %v1427, %v1830
    %v1849 = vadd.f32 %v1429, %v1832
    %v1850 = vld [vmem:[%s177] sm:$0xff]
    %v1851 = vld [vmem:[%s177 + $0x8] sm:$0xff]
    %v1852 = vld [vmem:[%s177 + $0x20] sm:$0xff]
    %v1853 = vld [vmem:[%s177 + $0x28] sm:$0xff]
    %v1854 = vld [vmem:[%s177 + $0x40] sm:$0xff]
    %v1855 = vld [vmem:[%s177 + $0x48] sm:$0xff]
    %v1856 = vld [vmem:[%s177 + $0x60] sm:$0xff]
    %v1857 = vld [vmem:[%s177 + $0x68] sm:$0xff]
    %v1858 = vld [vmem:[%s177 + $0xc0] sm:$0xff]
    %v1859 = vld [vmem:[%s177 + $0xc8] sm:$0xff]
    %v1860 = vld [vmem:[%s177 + $0xe0] sm:$0xff]
    %v1861 = vld [vmem:[%s177 + $0xe8] sm:$0xff]
    %v1862 = vld [vmem:[%s177 + $0x100] sm:$0xff]
    %v1863 = vld [vmem:[%s177 + $0x108] sm:$0xff]
    %v1864 = vld [vmem:[%s177 + $0x120] sm:$0xff]
    %v1865 = vld [vmem:[%s177 + $0x128] sm:$0xff]
    %v1866 = vpack.c.bf16 %v1852, %v1850
    %v1867 = vpack.c.bf16 %v1853, %v1851
    %v1868 = vpack.c.bf16 %v1856, %v1854
    %v1869 = vpack.c.bf16 %v1857, %v1855
    %v1870 = vpack.c.bf16 %v1860, %v1858
    %v1871 = vpack.c.bf16 %v1861, %v1859
    %v1872 = vpack.c.bf16 %v1864, %v1862
    %v1873 = vpack.c.bf16 %v1865, %v1863
    %s1874 = scalar_lea.vmem [#allocation11], 768
    %v1875 = vld [vmem:[%s1874] sm:$0xff]
    %v1876 = vld [vmem:[%s1874 + $0x8] sm:$0xff]
    %v1877 = vld [vmem:[%s1874 + $0x10] sm:$0xff]
    %v1878 = vld [vmem:[%s1874 + $0x18] sm:$0xff]
    %v1879 = vld [vmem:[%s1874 + $0x20] sm:$0xff]
    %v1880 = vld [vmem:[%s1874 + $0x28] sm:$0xff]
    %v1881 = vld [vmem:[%s1874 + $0x30] sm:$0xff]
    %v1882 = vld [vmem:[%s1874 + $0x38] sm:$0xff]
    %v1883 = vld [vmem:[%s1874 + $0x40] sm:$0xff]
    %v1884 = vld [vmem:[%s1874 + $0x48] sm:$0xff]
    %v1885 = vld [vmem:[%s1874 + $0x50] sm:$0xff]
    %v1886 = vld [vmem:[%s1874 + $0x58] sm:$0xff]
    %v1887 = vld [vmem:[%s1874 + $0x60] sm:$0xff]
    %v1888 = vld [vmem:[%s1874 + $0x68] sm:$0xff]
    %v1889 = vld [vmem:[%s1874 + $0x70] sm:$0xff]
    %v1890 = vld [vmem:[%s1874 + $0x78] sm:$0xff]
    %v1891 = vld [vmem:[%s1874 + $0x80] sm:$0xff]
    %v1892 = vld [vmem:[%s1874 + $0x88] sm:$0xff]
    %v1893 = vld [vmem:[%s1874 + $0x90] sm:$0xff]
    %v1894 = vld [vmem:[%s1874 + $0x98] sm:$0xff]
    %v1895 = vld [vmem:[%s1874 + $0xa0] sm:$0xff]
    %v1896 = vld [vmem:[%s1874 + $0xa8] sm:$0xff]
    %v1897 = vld [vmem:[%s1874 + $0xb0] sm:$0xff]
    %v1898 = vld [vmem:[%s1874 + $0xb8] sm:$0xff]
    %v1899 = vld [vmem:[%s1874 + $0xc0] sm:$0xff]
    %v1900 = vld [vmem:[%s1874 + $0xc8] sm:$0xff]
    %v1901 = vld [vmem:[%s1874 + $0xd0] sm:$0xff]
    %v1902 = vld [vmem:[%s1874 + $0xd8] sm:$0xff]
    %v1903 = vld [vmem:[%s1874 + $0xe0] sm:$0xff]
    %v1904 = vld [vmem:[%s1874 + $0xe8] sm:$0xff]
    %v1905 = vld [vmem:[%s1874 + $0xf0] sm:$0xff]
    %v1906 = vld [vmem:[%s1874 + $0xf8] sm:$0xff]
    %v1939 = vunpack.c.l.b16 %v1875
    %v1940 = vunpack.c.h.b16 %v1875
    %v1941 = vunpack.c.l.b16 %v1876
    %v1942 = vunpack.c.h.b16 %v1876
    %v1943 = vunpack.c.l.b16 %v1877
    %v1944 = vunpack.c.h.b16 %v1877
    %v1945 = vunpack.c.l.b16 %v1878
    %v1946 = vunpack.c.h.b16 %v1878
    %v1947 = vunpack.c.l.b16 %v1879
    %v1948 = vunpack.c.h.b16 %v1879
    %v1949 = vunpack.c.l.b16 %v1880
    %v1950 = vunpack.c.h.b16 %v1880
    %v1951 = vunpack.c.l.b16 %v1881
    %v1952 = vunpack.c.h.b16 %v1881
    %v1953 = vunpack.c.l.b16 %v1882
    %v1954 = vunpack.c.h.b16 %v1882
    %v1955 = vunpack.c.l.b16 %v1883
    %v1956 = vunpack.c.h.b16 %v1883
    %v1957 = vunpack.c.l.b16 %v1884
    %v1958 = vunpack.c.h.b16 %v1884
    %v1959 = vunpack.c.l.b16 %v1885
    %v1960 = vunpack.c.h.b16 %v1885
    %v1961 = vunpack.c.l.b16 %v1886
    %v1962 = vunpack.c.h.b16 %v1886
    %v1963 = vunpack.c.l.b16 %v1887
    %v1964 = vunpack.c.h.b16 %v1887
    %v1965 = vunpack.c.l.b16 %v1888
    %v1966 = vunpack.c.h.b16 %v1888
    %v1967 = vunpack.c.l.b16 %v1889
    %v1968 = vunpack.c.h.b16 %v1889
    %v1969 = vunpack.c.l.b16 %v1890
    %v1970 = vunpack.c.h.b16 %v1890
    %v1971 = vunpack.c.l.b16 %v1891
    %v1972 = vunpack.c.h.b16 %v1891
    %v1973 = vunpack.c.l.b16 %v1892
    %v1974 = vunpack.c.h.b16 %v1892
    %v1975 = vunpack.c.l.b16 %v1893
    %v1976 = vunpack.c.h.b16 %v1893
    %v1977 = vunpack.c.l.b16 %v1894
    %v1978 = vunpack.c.h.b16 %v1894
    %v1979 = vunpack.c.l.b16 %v1895
    %v1980 = vunpack.c.h.b16 %v1895
    %v1981 = vunpack.c.l.b16 %v1896
    %v1982 = vunpack.c.h.b16 %v1896
    %v1983 = vunpack.c.l.b16 %v1897
    %v1984 = vunpack.c.h.b16 %v1897
    %v1985 = vunpack.c.l.b16 %v1898
    %v1986 = vunpack.c.h.b16 %v1898
    %v1987 = vunpack.c.l.b16 %v1899
    %v1988 = vunpack.c.h.b16 %v1899
    %v1989 = vunpack.c.l.b16 %v1900
    %v1990 = vunpack.c.h.b16 %v1900
    %v1991 = vunpack.c.l.b16 %v1901
    %v1992 = vunpack.c.h.b16 %v1901
    %v1993 = vunpack.c.l.b16 %v1902
    %v1994 = vunpack.c.h.b16 %v1902
    %v1995 = vunpack.c.l.b16 %v1903
    %v1996 = vunpack.c.h.b16 %v1903
    %v1997 = vunpack.c.l.b16 %v1904
    %v1998 = vunpack.c.h.b16 %v1904
    %v1999 = vunpack.c.l.b16 %v1905
    %v2000 = vunpack.c.h.b16 %v1905
    %v2001 = vunpack.c.l.b16 %v1906
    %v2002 = vunpack.c.h.b16 %v1906
    %v2003 = vpack.c.b16 %v1941, %v1939
    %v2004 = vpack.c.b16 %v1942, %v1940
    %v2005 = vpack.c.b16 %v1945, %v1943
    %v2006 = vpack.c.b16 %v1946, %v1944
    %v2007 = vpack.c.b16 %v1949, %v1947
    %v2008 = vpack.c.b16 %v1950, %v1948
    %v2009 = vpack.c.b16 %v1953, %v1951
    %v2010 = vpack.c.b16 %v1954, %v1952
    %v2011 = vpack.c.b16 %v1957, %v1955
    %v2012 = vpack.c.b16 %v1958, %v1956
    %v2013 = vpack.c.b16 %v1961, %v1959
    %v2014 = vpack.c.b16 %v1962, %v1960
    %v2015 = vpack.c.b16 %v1965, %v1963
    %v2016 = vpack.c.b16 %v1966, %v1964
    %v2017 = vpack.c.b16 %v1969, %v1967
    %v2018 = vpack.c.b16 %v1970, %v1968
    %v2019 = vpack.c.b16 %v1973, %v1971
    %v2020 = vpack.c.b16 %v1974, %v1972
    %v2021 = vpack.c.b16 %v1977, %v1975
    %v2022 = vpack.c.b16 %v1978, %v1976
    %v2023 = vpack.c.b16 %v1981, %v1979
    %v2024 = vpack.c.b16 %v1982, %v1980
    %v2025 = vpack.c.b16 %v1985, %v1983
    %v2026 = vpack.c.b16 %v1986, %v1984
    %v2027 = vpack.c.b16 %v1989, %v1987
    %v2028 = vpack.c.b16 %v1990, %v1988
    %v2029 = vpack.c.b16 %v1993, %v1991
    %v2030 = vpack.c.b16 %v1994, %v1992
    %v2031 = vpack.c.b16 %v1997, %v1995
    %v2032 = vpack.c.b16 %v1998, %v1996
    %v2033 = vpack.c.b16 %v2001, %v1999
    %v2034 = vpack.c.b16 %v2002, %v2000
    %2067 = vmatprep.subr.bf16.mxu0 %v2018
    %2068 = vmatpush1.bf16.msra.mxu0 %v2017
    %2069 = vmatprep.subr.bf16.mxu0 %v2016
    %2070 = vmatpush1.bf16.msra.mxu0 %v2015
    %2071 = vmatprep.subr.bf16.mxu0 %v2014
    %2072 = vmatpush1.bf16.msra.mxu0 %v2013
    %2073 = vmatprep.subr.bf16.mxu0 %v2012
    %2074 = vmatpush1.bf16.msra.mxu0 %v2011
    %2075 = vmatprep.subr.bf16.mxu0 %v2010
    %2076 = vmatpush1.bf16.msra.mxu0 %v2009
    %2077 = vmatprep.subr.bf16.mxu0 %v2008
    %2078 = vmatpush1.bf16.msra.mxu0 %v2007
    %2079 = vmatprep.subr.bf16.mxu0 %v2006
    %2080 = vmatpush1.bf16.msra.mxu0 %v2005
    %2081 = vmatprep.subr.bf16.mxu0 %v2004
    %2082 = vmatpush1.bf16.msra.mxu0 %v2003
    %2083 = vmatprep.subr.bf16.mxu0 %v2034
    %2084 = vmatpush2.bf16.msra.mxu0 %v2033
    %2085 = vmatprep.subr.bf16.mxu0 %v2032
    %2086 = vmatpush2.bf16.msra.mxu0 %v2031
    %2087 = vmatprep.subr.bf16.mxu0 %v2030
    %2088 = vmatpush2.bf16.msra.mxu0 %v2029
    %2089 = vmatprep.subr.bf16.mxu0 %v2028
    %2090 = vmatpush2.bf16.msra.mxu0 %v2027
    %2091 = vmatprep.subr.bf16.mxu0 %v2026
    %2092 = vmatpush2.bf16.msra.mxu0 %v2025
    %2093 = vmatprep.subr.bf16.mxu0 %v2024
    %2094 = vmatpush2.bf16.msra.mxu0 %v2023
    %2095 = vmatprep.subr.bf16.mxu0 %v2022
    %2096 = vmatpush2.bf16.msra.mxu0 %v2021
    %2097 = vmatprep.subr.bf16.mxu0 %v2020
    %2098 = vmatpush2.bf16.msra.mxu0 %v2019
    %2099 = vmatprep.mubr.bf16.mxu0 %v1867
    %2100 = vmatmul.mubr.bf16.gmra.mxu0 %v1866
    %v2101 = vpop.f32.mrf.mxu0
    %v2102 = vadd.f32 0.0, %v2101
    %v2103 = vpop.f32.mrf.mxu0
    %v2104 = vadd.f32 0.0, %v2103
    %v2105 = vpop.f32.mrf.mxu0
    %v2106 = vadd.f32 0.0, %v2105
    %v2107 = vpop.f32.mrf.mxu0
    %v2108 = vadd.f32 0.0, %v2107
    %2109 = vmatprep.mubr.bf16.mxu0 %v1869
    %2110 = vmatmul.mubr.bf16.gmra.mxu0 %v1868
    %v2111 = vpop.f32.mrf.mxu0
    %v2112 = vadd.f32 0.0, %v2111
    %v2113 = vpop.f32.mrf.mxu0
    %v2114 = vadd.f32 0.0, %v2113
    %v2115 = vpop.f32.mrf.mxu0
    %v2116 = vadd.f32 0.0, %v2115
    %v2117 = vpop.f32.mrf.mxu0
    %v2118 = vadd.f32 0.0, %v2117
    %2119 = vmatprep.mubr.bf16.mxu0 %v1871
    %2120 = vmatmul.mubr.bf16.gmra.mxu0 %v1870
    %v2121 = vpop.f32.mrf.mxu0
    %v2122 = vadd.f32 0.0, %v2121
    %v2123 = vpop.f32.mrf.mxu0
    %v2124 = vadd.f32 0.0, %v2123
    %v2125 = vpop.f32.mrf.mxu0
    %v2126 = vadd.f32 0.0, %v2125
    %v2127 = vpop.f32.mrf.mxu0
    %v2128 = vadd.f32 0.0, %v2127
    %2129 = vmatprep.mubr.bf16.mxu0 %v1873
    %2130 = vmatmul.mubr.bf16.gmra.mxu0 %v1872
    %v2131 = vpop.f32.mrf.mxu0
    %v2132 = vadd.f32 0.0, %v2131
    %v2133 = vpop.f32.mrf.mxu0
    %v2134 = vadd.f32 0.0, %v2133
    %v2135 = vpop.f32.mrf.mxu0
    %v2136 = vadd.f32 0.0, %v2135
    %v2137 = vpop.f32.mrf.mxu0
    %v2138 = vadd.f32 0.0, %v2137
    %2139 = vdwg.mxu0
    %v2140 = vadd.f32 %v1834, %v2102
    %v2141 = vadd.f32 %v1835, %v2104
    %v2142 = vadd.f32 %v1836, %v2106
    %v2143 = vadd.f32 %v1837, %v2108
    %v2144 = vadd.f32 %v1838, %v2112
    %v2145 = vadd.f32 %v1839, %v2114
    %v2146 = vadd.f32 %v1840, %v2116
    %v2147 = vadd.f32 %v1841, %v2118
    %v2148 = vadd.f32 %v1842, %v2122
    %v2149 = vadd.f32 %v1843, %v2124
    %v2150 = vadd.f32 %v1844, %v2126
    %v2151 = vadd.f32 %v1845, %v2128
    %v2152 = vadd.f32 %v1846, %v2132
    %v2153 = vadd.f32 %v1847, %v2134
    %v2154 = vadd.f32 %v1848, %v2136
    %v2155 = vadd.f32 %v1849, %v2138
    %v2156 = vld [vmem:[%s177] sm:$0xfe]
    %v2157 = vld [vmem:[%s177 + $0x8] sm:$0xfe]
    %v2158 = vld [vmem:[%s177 + $0x10] sm:$0x1]
    %v2159 = vld [vmem:[%s177 + $0x18] sm:$0x1]
    %v2160 = vld [vmem:[%s177 + $0x20] sm:$0xfe]
    %v2161 = vld [vmem:[%s177 + $0x28] sm:$0xfe]
    %v2162 = vld [vmem:[%s177 + $0x30] sm:$0x1]
    %v2163 = vld [vmem:[%s177 + $0x38] sm:$0x1]
    %v2164 = vld [vmem:[%s177 + $0x40] sm:$0xfe]
    %v2165 = vld [vmem:[%s177 + $0x48] sm:$0xfe]
    %v2166 = vld [vmem:[%s177 + $0x50] sm:$0x1]
    %v2167 = vld [vmem:[%s177 + $0x58] sm:$0x1]
    %v2168 = vld [vmem:[%s177 + $0x60] sm:$0xfe]
    %v2169 = vld [vmem:[%s177 + $0x68] sm:$0xfe]
    %v2170 = vld [vmem:[%s177 + $0x70] sm:$0x1]
    %v2171 = vld [vmem:[%s177 + $0x78] sm:$0x1]
    %v2172 = vld [vmem:[%s177 + $0xc0] sm:$0xfe]
    %v2173 = vld [vmem:[%s177 + $0xc8] sm:$0xfe]
    %v2174 = vld [vmem:[%s177 + $0xd0] sm:$0x1]
    %v2175 = vld [vmem:[%s177 + $0xd8] sm:$0x1]
    %v2176 = vld [vmem:[%s177 + $0xe0] sm:$0xfe]
    %v2177 = vld [vmem:[%s177 + $0xe8] sm:$0xfe]
    %v2178 = vld [vmem:[%s177 + $0xf0] sm:$0x1]
    %v2179 = vld [vmem:[%s177 + $0xf8] sm:$0x1]
    %v2180 = vld [vmem:[%s177 + $0x100] sm:$0xfe]
    %v2181 = vld [vmem:[%s177 + $0x108] sm:$0xfe]
    %v2182 = vld [vmem:[%s177 + $0x110] sm:$0x1]
    %v2183 = vld [vmem:[%s177 + $0x118] sm:$0x1]
    %v2184 = vld [vmem:[%s177 + $0x120] sm:$0xfe]
    %v2185 = vld [vmem:[%s177 + $0x128] sm:$0xfe]
    %v2186 = vld [vmem:[%s177 + $0x130] sm:$0x1]
    %v2187 = vld [vmem:[%s177 + $0x138] sm:$0x1]
    %v2220 = vrot.slane %v2156, 1
    %v2221 = vrot.slane %v2158, 1
    %v2222 = vsel %vm859, %v2220, %v2221
    %v2223 = vrot.slane %v2157, 1
    %v2224 = vrot.slane %v2159, 1
    %v2225 = vsel %vm859, %v2223, %v2224
    %v2226 = vrot.slane %v2160, 1
    %v2227 = vrot.slane %v2162, 1
    %v2228 = vsel %vm859, %v2226, %v2227
    %v2229 = vrot.slane %v2161, 1
    %v2230 = vrot.slane %v2163, 1
    %v2231 = vsel %vm859, %v2229, %v2230
    %v2232 = vrot.slane %v2164, 1
    %v2233 = vrot.slane %v2166, 1
    %v2234 = vsel %vm859, %v2232, %v2233
    %v2235 = vrot.slane %v2165, 1
    %v2236 = vrot.slane %v2167, 1
    %v2237 = vsel %vm859, %v2235, %v2236
    %v2238 = vrot.slane %v2168, 1
    %v2239 = vrot.slane %v2170, 1
    %v2240 = vsel %vm859, %v2238, %v2239
    %v2241 = vrot.slane %v2169, 1
    %v2242 = vrot.slane %v2171, 1
    %v2243 = vsel %vm859, %v2241, %v2242
    %v2244 = vrot.slane %v2172, 1
    %v2245 = vrot.slane %v2174, 1
    %v2246 = vsel %vm859, %v2244, %v2245
    %v2247 = vrot.slane %v2173, 1
    %v2248 = vrot.slane %v2175, 1
    %v2249 = vsel %vm859, %v2247, %v2248
    %v2250 = vrot.slane %v2176, 1
    %v2251 = vrot.slane %v2178, 1
    %v2252 = vsel %vm859, %v2250, %v2251
    %v2253 = vrot.slane %v2177, 1
    %v2254 = vrot.slane %v2179, 1
    %v2255 = vsel %vm859, %v2253, %v2254
    %v2256 = vrot.slane %v2180, 1
    %v2257 = vrot.slane %v2182, 1
    %v2258 = vsel %vm859, %v2256, %v2257
    %v2259 = vrot.slane %v2181, 1
    %v2260 = vrot.slane %v2183, 1
    %v2261 = vsel %vm859, %v2259, %v2260
    %v2262 = vrot.slane %v2184, 1
    %v2263 = vrot.slane %v2186, 1
    %v2264 = vsel %vm859, %v2262, %v2263
    %v2265 = vrot.slane %v2185, 1
    %v2266 = vrot.slane %v2187, 1
    %v2267 = vsel %vm859, %v2265, %v2266
    %v2284 = vpack.c.bf16 %v2228, %v2222
    %v2285 = vpack.c.bf16 %v2231, %v2225
    %v2286 = vpack.c.bf16 %v2240, %v2234
    %v2287 = vpack.c.bf16 %v2243, %v2237
    %v2288 = vpack.c.bf16 %v2252, %v2246
    %v2289 = vpack.c.bf16 %v2255, %v2249
    %v2290 = vpack.c.bf16 %v2264, %v2258
    %v2291 = vpack.c.bf16 %v2267, %v2261
    %s2292 = scalar_lea.vmem [#allocation11], 1024
    %v2293 = vld [vmem:[%s2292] sm:$0xff]
    %v2294 = vld [vmem:[%s2292 + $0x8] sm:$0xff]
    %v2295 = vld [vmem:[%s2292 + $0x10] sm:$0xff]
    %v2296 = vld [vmem:[%s2292 + $0x18] sm:$0xff]
    %v2297 = vld [vmem:[%s2292 + $0x20] sm:$0xff]
    %v2298 = vld [vmem:[%s2292 + $0x28] sm:$0xff]
    %v2299 = vld [vmem:[%s2292 + $0x30] sm:$0xff]
    %v2300 = vld [vmem:[%s2292 + $0x38] sm:$0xff]
    %v2301 = vld [vmem:[%s2292 + $0x40] sm:$0xff]
    %v2302 = vld [vmem:[%s2292 + $0x48] sm:$0xff]
    %v2303 = vld [vmem:[%s2292 + $0x50] sm:$0xff]
    %v2304 = vld [vmem:[%s2292 + $0x58] sm:$0xff]
    %v2305 = vld [vmem:[%s2292 + $0x60] sm:$0xff]
    %v2306 = vld [vmem:[%s2292 + $0x68] sm:$0xff]
    %v2307 = vld [vmem:[%s2292 + $0x70] sm:$0xff]
    %v2308 = vld [vmem:[%s2292 + $0x78] sm:$0xff]
    %v2309 = vld [vmem:[%s2292 + $0x80] sm:$0xff]
    %v2310 = vld [vmem:[%s2292 + $0x88] sm:$0xff]
    %v2311 = vld [vmem:[%s2292 + $0x90] sm:$0xff]
    %v2312 = vld [vmem:[%s2292 + $0x98] sm:$0xff]
    %v2313 = vld [vmem:[%s2292 + $0xa0] sm:$0xff]
    %v2314 = vld [vmem:[%s2292 + $0xa8] sm:$0xff]
    %v2315 = vld [vmem:[%s2292 + $0xb0] sm:$0xff]
    %v2316 = vld [vmem:[%s2292 + $0xb8] sm:$0xff]
    %v2317 = vld [vmem:[%s2292 + $0xc0] sm:$0xff]
    %v2318 = vld [vmem:[%s2292 + $0xc8] sm:$0xff]
    %v2319 = vld [vmem:[%s2292 + $0xd0] sm:$0xff]
    %v2320 = vld [vmem:[%s2292 + $0xd8] sm:$0xff]
    %v2321 = vld [vmem:[%s2292 + $0xe0] sm:$0xff]
    %v2322 = vld [vmem:[%s2292 + $0xe8] sm:$0xff]
    %v2323 = vld [vmem:[%s2292 + $0xf0] sm:$0xff]
    %v2324 = vld [vmem:[%s2292 + $0xf8] sm:$0xff]
    %v2357 = vunpack.c.l.b16 %v2293
    %v2358 = vunpack.c.h.b16 %v2293
    %v2359 = vunpack.c.l.b16 %v2294
    %v2360 = vunpack.c.h.b16 %v2294
    %v2361 = vunpack.c.l.b16 %v2295
    %v2362 = vunpack.c.h.b16 %v2295
    %v2363 = vunpack.c.l.b16 %v2296
    %v2364 = vunpack.c.h.b16 %v2296
    %v2365 = vunpack.c.l.b16 %v2297
    %v2366 = vunpack.c.h.b16 %v2297
    %v2367 = vunpack.c.l.b16 %v2298
    %v2368 = vunpack.c.h.b16 %v2298
    %v2369 = vunpack.c.l.b16 %v2299
    %v2370 = vunpack.c.h.b16 %v2299
    %v2371 = vunpack.c.l.b16 %v2300
    %v2372 = vunpack.c.h.b16 %v2300
    %v2373 = vunpack.c.l.b16 %v2301
    %v2374 = vunpack.c.h.b16 %v2301
    %v2375 = vunpack.c.l.b16 %v2302
    %v2376 = vunpack.c.h.b16 %v2302
    %v2377 = vunpack.c.l.b16 %v2303
    %v2378 = vunpack.c.h.b16 %v2303
    %v2379 = vunpack.c.l.b16 %v2304
    %v2380 = vunpack.c.h.b16 %v2304
    %v2381 = vunpack.c.l.b16 %v2305
    %v2382 = vunpack.c.h.b16 %v2305
    %v2383 = vunpack.c.l.b16 %v2306
    %v2384 = vunpack.c.h.b16 %v2306
    %v2385 = vunpack.c.l.b16 %v2307
    %v2386 = vunpack.c.h.b16 %v2307
    %v2387 = vunpack.c.l.b16 %v2308
    %v2388 = vunpack.c.h.b16 %v2308
    %v2389 = vunpack.c.l.b16 %v2309
    %v2390 = vunpack.c.h.b16 %v2309
    %v2391 = vunpack.c.l.b16 %v2310
    %v2392 = vunpack.c.h.b16 %v2310
    %v2393 = vunpack.c.l.b16 %v2311
    %v2394 = vunpack.c.h.b16 %v2311
    %v2395 = vunpack.c.l.b16 %v2312
    %v2396 = vunpack.c.h.b16 %v2312
    %v2397 = vunpack.c.l.b16 %v2313
    %v2398 = vunpack.c.h.b16 %v2313
    %v2399 = vunpack.c.l.b16 %v2314
    %v2400 = vunpack.c.h.b16 %v2314
    %v2401 = vunpack.c.l.b16 %v2315
    %v2402 = vunpack.c.h.b16 %v2315
    %v2403 = vunpack.c.l.b16 %v2316
    %v2404 = vunpack.c.h.b16 %v2316
    %v2405 = vunpack.c.l.b16 %v2317
    %v2406 = vunpack.c.h.b16 %v2317
    %v2407 = vunpack.c.l.b16 %v2318
    %v2408 = vunpack.c.h.b16 %v2318
    %v2409 = vunpack.c.l.b16 %v2319
    %v2410 = vunpack.c.h.b16 %v2319
    %v2411 = vunpack.c.l.b16 %v2320
    %v2412 = vunpack.c.h.b16 %v2320
    %v2413 = vunpack.c.l.b16 %v2321
    %v2414 = vunpack.c.h.b16 %v2321
    %v2415 = vunpack.c.l.b16 %v2322
    %v2416 = vunpack.c.h.b16 %v2322
    %v2417 = vunpack.c.l.b16 %v2323
    %v2418 = vunpack.c.h.b16 %v2323
    %v2419 = vunpack.c.l.b16 %v2324
    %v2420 = vunpack.c.h.b16 %v2324
    %v2421 = vpack.c.b16 %v2359, %v2357
    %v2422 = vpack.c.b16 %v2360, %v2358
    %v2423 = vpack.c.b16 %v2363, %v2361
    %v2424 = vpack.c.b16 %v2364, %v2362
    %v2425 = vpack.c.b16 %v2367, %v2365
    %v2426 = vpack.c.b16 %v2368, %v2366
    %v2427 = vpack.c.b16 %v2371, %v2369
    %v2428 = vpack.c.b16 %v2372, %v2370
    %v2429 = vpack.c.b16 %v2375, %v2373
    %v2430 = vpack.c.b16 %v2376, %v2374
    %v2431 = vpack.c.b16 %v2379, %v2377
    %v2432 = vpack.c.b16 %v2380, %v2378
    %v2433 = vpack.c.b16 %v2383, %v2381
    %v2434 = vpack.c.b16 %v2384, %v2382
    %v2435 = vpack.c.b16 %v2387, %v2385
    %v2436 = vpack.c.b16 %v2388, %v2386
    %v2437 = vpack.c.b16 %v2391, %v2389
    %v2438 = vpack.c.b16 %v2392, %v2390
    %v2439 = vpack.c.b16 %v2395, %v2393
    %v2440 = vpack.c.b16 %v2396, %v2394
    %v2441 = vpack.c.b16 %v2399, %v2397
    %v2442 = vpack.c.b16 %v2400, %v2398
    %v2443 = vpack.c.b16 %v2403, %v2401
    %v2444 = vpack.c.b16 %v2404, %v2402
    %v2445 = vpack.c.b16 %v2407, %v2405
    %v2446 = vpack.c.b16 %v2408, %v2406
    %v2447 = vpack.c.b16 %v2411, %v2409
    %v2448 = vpack.c.b16 %v2412, %v2410
    %v2449 = vpack.c.b16 %v2415, %v2413
    %v2450 = vpack.c.b16 %v2416, %v2414
    %v2451 = vpack.c.b16 %v2419, %v2417
    %v2452 = vpack.c.b16 %v2420, %v2418
    %2485 = vmatprep.subr.bf16.mxu0 %v2436
    %2486 = vmatpush1.bf16.msra.mxu0 %v2435
    %2487 = vmatprep.subr.bf16.mxu0 %v2434
    %2488 = vmatpush1.bf16.msra.mxu0 %v2433
    %2489 = vmatprep.subr.bf16.mxu0 %v2432
    %2490 = vmatpush1.bf16.msra.mxu0 %v2431
    %2491 = vmatprep.subr.bf16.mxu0 %v2430
    %2492 = vmatpush1.bf16.msra.mxu0 %v2429
    %2493 = vmatprep.subr.bf16.mxu0 %v2428
    %2494 = vmatpush1.bf16.msra.mxu0 %v2427
    %2495 = vmatprep.subr.bf16.mxu0 %v2426
    %2496 = vmatpush1.bf16.msra.mxu0 %v2425
    %2497 = vmatprep.subr.bf16.mxu0 %v2424
    %2498 = vmatpush1.bf16.msra.mxu0 %v2423
    %2499 = vmatprep.subr.bf16.mxu0 %v2422
    %2500 = vmatpush1.bf16.msra.mxu0 %v2421
    %2501 = vmatprep.subr.bf16.mxu0 %v2452
    %2502 = vmatpush2.bf16.msra.mxu0 %v2451
    %2503 = vmatprep.subr.bf16.mxu0 %v2450
    %2504 = vmatpush2.bf16.msra.mxu0 %v2449
    %2505 = vmatprep.subr.bf16.mxu0 %v2448
    %2506 = vmatpush2.bf16.msra.mxu0 %v2447
    %2507 = vmatprep.subr.bf16.mxu0 %v2446
    %2508 = vmatpush2.bf16.msra.mxu0 %v2445
    %2509 = vmatprep.subr.bf16.mxu0 %v2444
    %2510 = vmatpush2.bf16.msra.mxu0 %v2443
    %2511 = vmatprep.subr.bf16.mxu0 %v2442
    %2512 = vmatpush2.bf16.msra.mxu0 %v2441
    %2513 = vmatprep.subr.bf16.mxu0 %v2440
    %2514 = vmatpush2.bf16.msra.mxu0 %v2439
    %2515 = vmatprep.subr.bf16.mxu0 %v2438
    %2516 = vmatpush2.bf16.msra.mxu0 %v2437
    %2517 = vmatprep.mubr.bf16.mxu0 %v2285
    %2518 = vmatmul.mubr.bf16.gmra.mxu0 %v2284
    %v2519 = vpop.f32.mrf.mxu0
    %v2520 = vadd.f32 0.0, %v2519
    %v2521 = vpop.f32.mrf.mxu0
    %v2522 = vadd.f32 0.0, %v2521
    %v2523 = vpop.f32.mrf.mxu0
    %v2524 = vadd.f32 0.0, %v2523
    %v2525 = vpop.f32.mrf.mxu0
    %v2526 = vadd.f32 0.0, %v2525
    %2527 = vmatprep.mubr.bf16.mxu0 %v2287
    %2528 = vmatmul.mubr.bf16.gmra.mxu0 %v2286
    %v2529 = vpop.f32.mrf.mxu0
    %v2530 = vadd.f32 0.0, %v2529
    %v2531 = vpop.f32.mrf.mxu0
    %v2532 = vadd.f32 0.0, %v2531
    %v2533 = vpop.f32.mrf.mxu0
    %v2534 = vadd.f32 0.0, %v2533
    %v2535 = vpop.f32.mrf.mxu0
    %v2536 = vadd.f32 0.0, %v2535
    %2537 = vmatprep.mubr.bf16.mxu0 %v2289
    %2538 = vmatmul.mubr.bf16.gmra.mxu0 %v2288
    %v2539 = vpop.f32.mrf.mxu0
    %v2540 = vadd.f32 0.0, %v2539
    %v2541 = vpop.f32.mrf.mxu0
    %v2542 = vadd.f32 0.0, %v2541
    %v2543 = vpop.f32.mrf.mxu0
    %v2544 = vadd.f32 0.0, %v2543
    %v2545 = vpop.f32.mrf.mxu0
    %v2546 = vadd.f32 0.0, %v2545
    %2547 = vmatprep.mubr.bf16.mxu0 %v2291
    %2548 = vmatmul.mubr.bf16.gmra.mxu0 %v2290
    %v2549 = vpop.f32.mrf.mxu0
    %v2550 = vadd.f32 0.0, %v2549
    %v2551 = vpop.f32.mrf.mxu0
    %v2552 = vadd.f32 0.0, %v2551
    %v2553 = vpop.f32.mrf.mxu0
    %v2554 = vadd.f32 0.0, %v2553
    %v2555 = vpop.f32.mrf.mxu0
    %v2556 = vadd.f32 0.0, %v2555
    %2557 = vdwg.mxu0
    %v2558 = vadd.f32 %v2140, %v2520
    %v2559 = vadd.f32 %v2141, %v2522
    %v2560 = vadd.f32 %v2142, %v2524
    %v2561 = vadd.f32 %v2143, %v2526
    %v2562 = vadd.f32 %v2144, %v2530
    %v2563 = vadd.f32 %v2145, %v2532
    %v2564 = vadd.f32 %v2146, %v2534
    %v2565 = vadd.f32 %v2147, %v2536
    %v2566 = vadd.f32 %v2148, %v2540
    %v2567 = vadd.f32 %v2149, %v2542
    %v2568 = vadd.f32 %v2150, %v2544
    %v2569 = vadd.f32 %v2151, %v2546
    %v2570 = vadd.f32 %v2152, %v2550
    %v2571 = vadd.f32 %v2153, %v2552
    %v2572 = vadd.f32 %v2154, %v2554
    %v2573 = vadd.f32 %v2155, %v2556
    %v2574 = vld [vmem:[%s177] sm:$0xfc]
    %v2575 = vld [vmem:[%s177 + $0x8] sm:$0xfc]
    %v2576 = vld [vmem:[%s177 + $0x10] sm:$0x3]
    %v2577 = vld [vmem:[%s177 + $0x18] sm:$0x3]
    %v2578 = vld [vmem:[%s177 + $0x20] sm:$0xfc]
    %v2579 = vld [vmem:[%s177 + $0x28] sm:$0xfc]
    %v2580 = vld [vmem:[%s177 + $0x30] sm:$0x3]
    %v2581 = vld [vmem:[%s177 + $0x38] sm:$0x3]
    %v2582 = vld [vmem:[%s177 + $0x40] sm:$0xfc]
    %v2583 = vld [vmem:[%s177 + $0x48] sm:$0xfc]
    %v2584 = vld [vmem:[%s177 + $0x50] sm:$0x3]
    %v2585 = vld [vmem:[%s177 + $0x58] sm:$0x3]
    %v2586 = vld [vmem:[%s177 + $0x60] sm:$0xfc]
    %v2587 = vld [vmem:[%s177 + $0x68] sm:$0xfc]
    %v2588 = vld [vmem:[%s177 + $0x70] sm:$0x3]
    %v2589 = vld [vmem:[%s177 + $0x78] sm:$0x3]
    %v2590 = vld [vmem:[%s177 + $0xc0] sm:$0xfc]
    %v2591 = vld [vmem:[%s177 + $0xc8] sm:$0xfc]
    %v2592 = vld [vmem:[%s177 + $0xd0] sm:$0x3]
    %v2593 = vld [vmem:[%s177 + $0xd8] sm:$0x3]
    %v2594 = vld [vmem:[%s177 + $0xe0] sm:$0xfc]
    %v2595 = vld [vmem:[%s177 + $0xe8] sm:$0xfc]
    %v2596 = vld [vmem:[%s177 + $0xf0] sm:$0x3]
    %v2597 = vld [vmem:[%s177 + $0xf8] sm:$0x3]
    %v2598 = vld [vmem:[%s177 + $0x100] sm:$0xfc]
    %v2599 = vld [vmem:[%s177 + $0x108] sm:$0xfc]
    %v2600 = vld [vmem:[%s177 + $0x110] sm:$0x3]
    %v2601 = vld [vmem:[%s177 + $0x118] sm:$0x3]
    %v2602 = vld [vmem:[%s177 + $0x120] sm:$0xfc]
    %v2603 = vld [vmem:[%s177 + $0x128] sm:$0xfc]
    %v2604 = vld [vmem:[%s177 + $0x130] sm:$0x3]
    %v2605 = vld [vmem:[%s177 + $0x138] sm:$0x3]
    %v2638 = vrot.slane %v2574, 2
    %v2639 = vrot.slane %v2576, 2
    %v2640 = vsel %vm1495, %v2638, %v2639
    %v2641 = vrot.slane %v2575, 2
    %v2642 = vrot.slane %v2577, 2
    %v2643 = vsel %vm1495, %v2641, %v2642
    %v2644 = vrot.slane %v2578, 2
    %v2645 = vrot.slane %v2580, 2
    %v2646 = vsel %vm1495, %v2644, %v2645
    %v2647 = vrot.slane %v2579, 2
    %v2648 = vrot.slane %v2581, 2
    %v2649 = vsel %vm1495, %v2647, %v2648
    %v2650 = vrot.slane %v2582, 2
    %v2651 = vrot.slane %v2584, 2
    %v2652 = vsel %vm1495, %v2650, %v2651
    %v2653 = vrot.slane %v2583, 2
    %v2654 = vrot.slane %v2585, 2
    %v2655 = vsel %vm1495, %v2653, %v2654
    %v2656 = vrot.slane %v2586, 2
    %v2657 = vrot.slane %v2588, 2
    %v2658 = vsel %vm1495, %v2656, %v2657
    %v2659 = vrot.slane %v2587, 2
    %v2660 = vrot.slane %v2589, 2
    %v2661 = vsel %vm1495, %v2659, %v2660
    %v2662 = vrot.slane %v2590, 2
    %v2663 = vrot.slane %v2592, 2
    %v2664 = vsel %vm1495, %v2662, %v2663
    %v2665 = vrot.slane %v2591, 2
    %v2666 = vrot.slane %v2593, 2
    %v2667 = vsel %vm1495, %v2665, %v2666
    %v2668 = vrot.slane %v2594, 2
    %v2669 = vrot.slane %v2596, 2
    %v2670 = vsel %vm1495, %v2668, %v2669
    %v2671 = vrot.slane %v2595, 2
    %v2672 = vrot.slane %v2597, 2
    %v2673 = vsel %vm1495, %v2671, %v2672
    %v2674 = vrot.slane %v2598, 2
    %v2675 = vrot.slane %v2600, 2
    %v2676 = vsel %vm1495, %v2674, %v2675
    %v2677 = vrot.slane %v2599, 2
    %v2678 = vrot.slane %v2601, 2
    %v2679 = vsel %vm1495, %v2677, %v2678
    %v2680 = vrot.slane %v2602, 2
    %v2681 = vrot.slane %v2604, 2
    %v2682 = vsel %vm1495, %v2680, %v2681
    %v2683 = vrot.slane %v2603, 2
    %v2684 = vrot.slane %v2605, 2
    %v2685 = vsel %vm1495, %v2683, %v2684
    %v2702 = vpack.c.bf16 %v2646, %v2640
    %v2703 = vpack.c.bf16 %v2649, %v2643
    %v2704 = vpack.c.bf16 %v2658, %v2652
    %v2705 = vpack.c.bf16 %v2661, %v2655
    %v2706 = vpack.c.bf16 %v2670, %v2664
    %v2707 = vpack.c.bf16 %v2673, %v2667
    %v2708 = vpack.c.bf16 %v2682, %v2676
    %v2709 = vpack.c.bf16 %v2685, %v2679
    %s2710 = scalar_lea.vmem [#allocation11], 1280
    %v2711 = vld [vmem:[%s2710] sm:$0xff]
    %v2712 = vld [vmem:[%s2710 + $0x8] sm:$0xff]
    %v2713 = vld [vmem:[%s2710 + $0x10] sm:$0xff]
    %v2714 = vld [vmem:[%s2710 + $0x18] sm:$0xff]
    %v2715 = vld [vmem:[%s2710 + $0x20] sm:$0xff]
    %v2716 = vld [vmem:[%s2710 + $0x28] sm:$0xff]
    %v2717 = vld [vmem:[%s2710 + $0x30] sm:$0xff]
    %v2718 = vld [vmem:[%s2710 + $0x38] sm:$0xff]
    %v2719 = vld [vmem:[%s2710 + $0x40] sm:$0xff]
    %v2720 = vld [vmem:[%s2710 + $0x48] sm:$0xff]
    %v2721 = vld [vmem:[%s2710 + $0x50] sm:$0xff]
    %v2722 = vld [vmem:[%s2710 + $0x58] sm:$0xff]
    %v2723 = vld [vmem:[%s2710 + $0x60] sm:$0xff]
    %v2724 = vld [vmem:[%s2710 + $0x68] sm:$0xff]
    %v2725 = vld [vmem:[%s2710 + $0x70] sm:$0xff]
    %v2726 = vld [vmem:[%s2710 + $0x78] sm:$0xff]
    %v2727 = vld [vmem:[%s2710 + $0x80] sm:$0xff]
    %v2728 = vld [vmem:[%s2710 + $0x88] sm:$0xff]
    %v2729 = vld [vmem:[%s2710 + $0x90] sm:$0xff]
    %v2730 = vld [vmem:[%s2710 + $0x98] sm:$0xff]
    %v2731 = vld [vmem:[%s2710 + $0xa0] sm:$0xff]
    %v2732 = vld [vmem:[%s2710 + $0xa8] sm:$0xff]
    %v2733 = vld [vmem:[%s2710 + $0xb0] sm:$0xff]
    %v2734 = vld [vmem:[%s2710 + $0xb8] sm:$0xff]
    %v2735 = vld [vmem:[%s2710 + $0xc0] sm:$0xff]
    %v2736 = vld [vmem:[%s2710 + $0xc8] sm:$0xff]
    %v2737 = vld [vmem:[%s2710 + $0xd0] sm:$0xff]
    %v2738 = vld [vmem:[%s2710 + $0xd8] sm:$0xff]
    %v2739 = vld [vmem:[%s2710 + $0xe0] sm:$0xff]
    %v2740 = vld [vmem:[%s2710 + $0xe8] sm:$0xff]
    %v2741 = vld [vmem:[%s2710 + $0xf0] sm:$0xff]
    %v2742 = vld [vmem:[%s2710 + $0xf8] sm:$0xff]
    %v2775 = vunpack.c.l.b16 %v2711
    %v2776 = vunpack.c.h.b16 %v2711
    %v2777 = vunpack.c.l.b16 %v2712
    %v2778 = vunpack.c.h.b16 %v2712
    %v2779 = vunpack.c.l.b16 %v2713
    %v2780 = vunpack.c.h.b16 %v2713
    %v2781 = vunpack.c.l.b16 %v2714
    %v2782 = vunpack.c.h.b16 %v2714
    %v2783 = vunpack.c.l.b16 %v2715
    %v2784 = vunpack.c.h.b16 %v2715
    %v2785 = vunpack.c.l.b16 %v2716
    %v2786 = vunpack.c.h.b16 %v2716
    %v2787 = vunpack.c.l.b16 %v2717
    %v2788 = vunpack.c.h.b16 %v2717
    %v2789 = vunpack.c.l.b16 %v2718
    %v2790 = vunpack.c.h.b16 %v2718
    %v2791 = vunpack.c.l.b16 %v2719
    %v2792 = vunpack.c.h.b16 %v2719
    %v2793 = vunpack.c.l.b16 %v2720
    %v2794 = vunpack.c.h.b16 %v2720
    %v2795 = vunpack.c.l.b16 %v2721
    %v2796 = vunpack.c.h.b16 %v2721
    %v2797 = vunpack.c.l.b16 %v2722
    %v2798 = vunpack.c.h.b16 %v2722
    %v2799 = vunpack.c.l.b16 %v2723
    %v2800 = vunpack.c.h.b16 %v2723
    %v2801 = vunpack.c.l.b16 %v2724
    %v2802 = vunpack.c.h.b16 %v2724
    %v2803 = vunpack.c.l.b16 %v2725
    %v2804 = vunpack.c.h.b16 %v2725
    %v2805 = vunpack.c.l.b16 %v2726
    %v2806 = vunpack.c.h.b16 %v2726
    %v2807 = vunpack.c.l.b16 %v2727
    %v2808 = vunpack.c.h.b16 %v2727
    %v2809 = vunpack.c.l.b16 %v2728
    %v2810 = vunpack.c.h.b16 %v2728
    %v2811 = vunpack.c.l.b16 %v2729
    %v2812 = vunpack.c.h.b16 %v2729
    %v2813 = vunpack.c.l.b16 %v2730
    %v2814 = vunpack.c.h.b16 %v2730
    %v2815 = vunpack.c.l.b16 %v2731
    %v2816 = vunpack.c.h.b16 %v2731
    %v2817 = vunpack.c.l.b16 %v2732
    %v2818 = vunpack.c.h.b16 %v2732
    %v2819 = vunpack.c.l.b16 %v2733
    %v2820 = vunpack.c.h.b16 %v2733
    %v2821 = vunpack.c.l.b16 %v2734
    %v2822 = vunpack.c.h.b16 %v2734
    %v2823 = vunpack.c.l.b16 %v2735
    %v2824 = vunpack.c.h.b16 %v2735
    %v2825 = vunpack.c.l.b16 %v2736
    %v2826 = vunpack.c.h.b16 %v2736
    %v2827 = vunpack.c.l.b16 %v2737
    %v2828 = vunpack.c.h.b16 %v2737
    %v2829 = vunpack.c.l.b16 %v2738
    %v2830 = vunpack.c.h.b16 %v2738
    %v2831 = vunpack.c.l.b16 %v2739
    %v2832 = vunpack.c.h.b16 %v2739
    %v2833 = vunpack.c.l.b16 %v2740
    %v2834 = vunpack.c.h.b16 %v2740
    %v2835 = vunpack.c.l.b16 %v2741
    %v2836 = vunpack.c.h.b16 %v2741
    %v2837 = vunpack.c.l.b16 %v2742
    %v2838 = vunpack.c.h.b16 %v2742
    %v2839 = vpack.c.b16 %v2777, %v2775
    %v2840 = vpack.c.b16 %v2778, %v2776
    %v2841 = vpack.c.b16 %v2781, %v2779
    %v2842 = vpack.c.b16 %v2782, %v2780
    %v2843 = vpack.c.b16 %v2785, %v2783
    %v2844 = vpack.c.b16 %v2786, %v2784
    %v2845 = vpack.c.b16 %v2789, %v2787
    %v2846 = vpack.c.b16 %v2790, %v2788
    %v2847 = vpack.c.b16 %v2793, %v2791
    %v2848 = vpack.c.b16 %v2794, %v2792
    %v2849 = vpack.c.b16 %v2797, %v2795
    %v2850 = vpack.c.b16 %v2798, %v2796
    %v2851 = vpack.c.b16 %v2801, %v2799
    %v2852 = vpack.c.b16 %v2802, %v2800
    %v2853 = vpack.c.b16 %v2805, %v2803
    %v2854 = vpack.c.b16 %v2806, %v2804
    %v2855 = vpack.c.b16 %v2809, %v2807
    %v2856 = vpack.c.b16 %v2810, %v2808
    %v2857 = vpack.c.b16 %v2813, %v2811
    %v2858 = vpack.c.b16 %v2814, %v2812
    %v2859 = vpack.c.b16 %v2817, %v2815
    %v2860 = vpack.c.b16 %v2818, %v2816
    %v2861 = vpack.c.b16 %v2821, %v2819
    %v2862 = vpack.c.b16 %v2822, %v2820
    %v2863 = vpack.c.b16 %v2825, %v2823
    %v2864 = vpack.c.b16 %v2826, %v2824
    %v2865 = vpack.c.b16 %v2829, %v2827
    %v2866 = vpack.c.b16 %v2830, %v2828
    %v2867 = vpack.c.b16 %v2833, %v2831
    %v2868 = vpack.c.b16 %v2834, %v2832
    %v2869 = vpack.c.b16 %v2837, %v2835
    %v2870 = vpack.c.b16 %v2838, %v2836
    %2903 = vmatprep.subr.bf16.mxu0 %v2854
    %2904 = vmatpush1.bf16.msra.mxu0 %v2853
    %2905 = vmatprep.subr.bf16.mxu0 %v2852
    %2906 = vmatpush1.bf16.msra.mxu0 %v2851
    %2907 = vmatprep.subr.bf16.mxu0 %v2850
    %2908 = vmatpush1.bf16.msra.mxu0 %v2849
    %2909 = vmatprep.subr.bf16.mxu0 %v2848
    %2910 = vmatpush1.bf16.msra.mxu0 %v2847
    %2911 = vmatprep.subr.bf16.mxu0 %v2846
    %2912 = vmatpush1.bf16.msra.mxu0 %v2845
    %2913 = vmatprep.subr.bf16.mxu0 %v2844
    %2914 = vmatpush1.bf16.msra.mxu0 %v2843
    %2915 = vmatprep.subr.bf16.mxu0 %v2842
    %2916 = vmatpush1.bf16.msra.mxu0 %v2841
    %2917 = vmatprep.subr.bf16.mxu0 %v2840
    %2918 = vmatpush1.bf16.msra.mxu0 %v2839
    %2919 = vmatprep.subr.bf16.mxu0 %v2870
    %2920 = vmatpush2.bf16.msra.mxu0 %v2869
    %2921 = vmatprep.subr.bf16.mxu0 %v2868
    %2922 = vmatpush2.bf16.msra.mxu0 %v2867
    %2923 = vmatprep.subr.bf16.mxu0 %v2866
    %2924 = vmatpush2.bf16.msra.mxu0 %v2865
    %2925 = vmatprep.subr.bf16.mxu0 %v2864
    %2926 = vmatpush2.bf16.msra.mxu0 %v2863
    %2927 = vmatprep.subr.bf16.mxu0 %v2862
    %2928 = vmatpush2.bf16.msra.mxu0 %v2861
    %2929 = vmatprep.subr.bf16.mxu0 %v2860
    %2930 = vmatpush2.bf16.msra.mxu0 %v2859
    %2931 = vmatprep.subr.bf16.mxu0 %v2858
    %2932 = vmatpush2.bf16.msra.mxu0 %v2857
    %2933 = vmatprep.subr.bf16.mxu0 %v2856
    %2934 = vmatpush2.bf16.msra.mxu0 %v2855
    %2935 = vmatprep.mubr.bf16.mxu0 %v2703
    %2936 = vmatmul.mubr.bf16.gmra.mxu0 %v2702
    %v2937 = vpop.f32.mrf.mxu0
    %v2938 = vadd.f32 0.0, %v2937
    %v2939 = vpop.f32.mrf.mxu0
    %v2940 = vadd.f32 0.0, %v2939
    %v2941 = vpop.f32.mrf.mxu0
    %v2942 = vadd.f32 0.0, %v2941
    %v2943 = vpop.f32.mrf.mxu0
    %v2944 = vadd.f32 0.0, %v2943
    %2945 = vmatprep.mubr.bf16.mxu0 %v2705
    %2946 = vmatmul.mubr.bf16.gmra.mxu0 %v2704
    %v2947 = vpop.f32.mrf.mxu0
    %v2948 = vadd.f32 0.0, %v2947
    %v2949 = vpop.f32.mrf.mxu0
    %v2950 = vadd.f32 0.0, %v2949
    %v2951 = vpop.f32.mrf.mxu0
    %v2952 = vadd.f32 0.0, %v2951
    %v2953 = vpop.f32.mrf.mxu0
    %v2954 = vadd.f32 0.0, %v2953
    %2955 = vmatprep.mubr.bf16.mxu0 %v2707
    %2956 = vmatmul.mubr.bf16.gmra.mxu0 %v2706
    %v2957 = vpop.f32.mrf.mxu0
    %v2958 = vadd.f32 0.0, %v2957
    %v2959 = vpop.f32.mrf.mxu0
    %v2960 = vadd.f32 0.0, %v2959
    %v2961 = vpop.f32.mrf.mxu0
    %v2962 = vadd.f32 0.0, %v2961
    %v2963 = vpop.f32.mrf.mxu0
    %v2964 = vadd.f32 0.0, %v2963
    %2965 = vmatprep.mubr.bf16.mxu0 %v2709
    %2966 = vmatmul.mubr.bf16.gmra.mxu0 %v2708
    %v2967 = vpop.f32.mrf.mxu0
    %v2968 = vadd.f32 0.0, %v2967
    %v2969 = vpop.f32.mrf.mxu0
    %v2970 = vadd.f32 0.0, %v2969
    %v2971 = vpop.f32.mrf.mxu0
    %v2972 = vadd.f32 0.0, %v2971
    %v2973 = vpop.f32.mrf.mxu0
    %v2974 = vadd.f32 0.0, %v2973
    %2975 = vdwg.mxu0
    %v2976 = vadd.f32 %v2558, %v2938
    %v2977 = vadd.f32 %v2559, %v2940
    %v2978 = vadd.f32 %v2560, %v2942
    %v2979 = vadd.f32 %v2561, %v2944
    %v2980 = vadd.f32 %v2562, %v2948
    %v2981 = vadd.f32 %v2563, %v2950
    %v2982 = vadd.f32 %v2564, %v2952
    %v2983 = vadd.f32 %v2565, %v2954
    %v2984 = vadd.f32 %v2566, %v2958
    %v2985 = vadd.f32 %v2567, %v2960
    %v2986 = vadd.f32 %v2568, %v2962
    %v2987 = vadd.f32 %v2569, %v2964
    %v2988 = vadd.f32 %v2570, %v2968
    %v2989 = vadd.f32 %v2571, %v2970
    %v2990 = vadd.f32 %v2572, %v2972
    %v2991 = vadd.f32 %v2573, %v2974
    %s2992 = scalar_lea.vmem [#allocation2], 64
    %v2993 = vld [vmem:[%s2992] sm:$0xff]
    %v2994 = vld [vmem:[%s2992 + $0x8] sm:$0xff]
    %v2995 = vld [vmem:[%s2992 + $0x20] sm:$0xff]
    %v2996 = vld [vmem:[%s2992 + $0x28] sm:$0xff]
    %v2997 = vld [vmem:[%s2992 + $0x40] sm:$0xff]
    %v2998 = vld [vmem:[%s2992 + $0x48] sm:$0xff]
    %v2999 = vld [vmem:[%s2992 + $0x60] sm:$0xff]
    %v3000 = vld [vmem:[%s2992 + $0x68] sm:$0xff]
    %v3001 = vld [vmem:[%s2992 + $0xc0] sm:$0xff]
    %v3002 = vld [vmem:[%s2992 + $0xc8] sm:$0xff]
    %v3003 = vld [vmem:[%s2992 + $0xe0] sm:$0xff]
    %v3004 = vld [vmem:[%s2992 + $0xe8] sm:$0xff]
    %v3005 = vld [vmem:[%s2992 + $0x100] sm:$0xff]
    %v3006 = vld [vmem:[%s2992 + $0x108] sm:$0xff]
    %v3007 = vld [vmem:[%s2992 + $0x120] sm:$0xff]
    %v3008 = vld [vmem:[%s2992 + $0x128] sm:$0xff]
    %v3009 = vpack.c.bf16 %v2995, %v2993
    %v3010 = vpack.c.bf16 %v2996, %v2994
    %v3011 = vpack.c.bf16 %v2999, %v2997
    %v3012 = vpack.c.bf16 %v3000, %v2998
    %v3013 = vpack.c.bf16 %v3003, %v3001
    %v3014 = vpack.c.bf16 %v3004, %v3002
    %v3015 = vpack.c.bf16 %v3007, %v3005
    %v3016 = vpack.c.bf16 %v3008, %v3006
    %s3017 = scalar_lea.vmem [#allocation11], 1536
    %v3018 = vld [vmem:[%s3017] sm:$0xff]
    %v3019 = vld [vmem:[%s3017 + $0x8] sm:$0xff]
    %v3020 = vld [vmem:[%s3017 + $0x10] sm:$0xff]
    %v3021 = vld [vmem:[%s3017 + $0x18] sm:$0xff]
    %v3022 = vld [vmem:[%s3017 + $0x20] sm:$0xff]
    %v3023 = vld [vmem:[%s3017 + $0x28] sm:$0xff]
    %v3024 = vld [vmem:[%s3017 + $0x30] sm:$0xff]
    %v3025 = vld [vmem:[%s3017 + $0x38] sm:$0xff]
    %v3026 = vld [vmem:[%s3017 + $0x40] sm:$0xff]
    %v3027 = vld [vmem:[%s3017 + $0x48] sm:$0xff]
    %v3028 = vld [vmem:[%s3017 + $0x50] sm:$0xff]
    %v3029 = vld [vmem:[%s3017 + $0x58] sm:$0xff]
    %v3030 = vld [vmem:[%s3017 + $0x60] sm:$0xff]
    %v3031 = vld [vmem:[%s3017 + $0x68] sm:$0xff]
    %v3032 = vld [vmem:[%s3017 + $0x70] sm:$0xff]
    %v3033 = vld [vmem:[%s3017 + $0x78] sm:$0xff]
    %v3034 = vld [vmem:[%s3017 + $0x80] sm:$0xff]
    %v3035 = vld [vmem:[%s3017 + $0x88] sm:$0xff]
    %v3036 = vld [vmem:[%s3017 + $0x90] sm:$0xff]
    %v3037 = vld [vmem:[%s3017 + $0x98] sm:$0xff]
    %v3038 = vld [vmem:[%s3017 + $0xa0] sm:$0xff]
    %v3039 = vld [vmem:[%s3017 + $0xa8] sm:$0xff]
    %v3040 = vld [vmem:[%s3017 + $0xb0] sm:$0xff]
    %v3041 = vld [vmem:[%s3017 + $0xb8] sm:$0xff]
    %v3042 = vld [vmem:[%s3017 + $0xc0] sm:$0xff]
    %v3043 = vld [vmem:[%s3017 + $0xc8] sm:$0xff]
    %v3044 = vld [vmem:[%s3017 + $0xd0] sm:$0xff]
    %v3045 = vld [vmem:[%s3017 + $0xd8] sm:$0xff]
    %v3046 = vld [vmem:[%s3017 + $0xe0] sm:$0xff]
    %v3047 = vld [vmem:[%s3017 + $0xe8] sm:$0xff]
    %v3048 = vld [vmem:[%s3017 + $0xf0] sm:$0xff]
    %v3049 = vld [vmem:[%s3017 + $0xf8] sm:$0xff]
    %v3082 = vunpack.c.l.b16 %v3018
    %v3083 = vunpack.c.h.b16 %v3018
    %v3084 = vunpack.c.l.b16 %v3019
    %v3085 = vunpack.c.h.b16 %v3019
    %v3086 = vunpack.c.l.b16 %v3020
    %v3087 = vunpack.c.h.b16 %v3020
    %v3088 = vunpack.c.l.b16 %v3021
    %v3089 = vunpack.c.h.b16 %v3021
    %v3090 = vunpack.c.l.b16 %v3022
    %v3091 = vunpack.c.h.b16 %v3022
    %v3092 = vunpack.c.l.b16 %v3023
    %v3093 = vunpack.c.h.b16 %v3023
    %v3094 = vunpack.c.l.b16 %v3024
    %v3095 = vunpack.c.h.b16 %v3024
    %v3096 = vunpack.c.l.b16 %v3025
    %v3097 = vunpack.c.h.b16 %v3025
    %v3098 = vunpack.c.l.b16 %v3026
    %v3099 = vunpack.c.h.b16 %v3026
    %v3100 = vunpack.c.l.b16 %v3027
    %v3101 = vunpack.c.h.b16 %v3027
    %v3102 = vunpack.c.l.b16 %v3028
    %v3103 = vunpack.c.h.b16 %v3028
    %v3104 = vunpack.c.l.b16 %v3029
    %v3105 = vunpack.c.h.b16 %v3029
    %v3106 = vunpack.c.l.b16 %v3030
    %v3107 = vunpack.c.h.b16 %v3030
    %v3108 = vunpack.c.l.b16 %v3031
    %v3109 = vunpack.c.h.b16 %v3031
    %v3110 = vunpack.c.l.b16 %v3032
    %v3111 = vunpack.c.h.b16 %v3032
    %v3112 = vunpack.c.l.b16 %v3033
    %v3113 = vunpack.c.h.b16 %v3033
    %v3114 = vunpack.c.l.b16 %v3034
    %v3115 = vunpack.c.h.b16 %v3034
    %v3116 = vunpack.c.l.b16 %v3035
    %v3117 = vunpack.c.h.b16 %v3035
    %v3118 = vunpack.c.l.b16 %v3036
    %v3119 = vunpack.c.h.b16 %v3036
    %v3120 = vunpack.c.l.b16 %v3037
    %v3121 = vunpack.c.h.b16 %v3037
    %v3122 = vunpack.c.l.b16 %v3038
    %v3123 = vunpack.c.h.b16 %v3038
    %v3124 = vunpack.c.l.b16 %v3039
    %v3125 = vunpack.c.h.b16 %v3039
    %v3126 = vunpack.c.l.b16 %v3040
    %v3127 = vunpack.c.h.b16 %v3040
    %v3128 = vunpack.c.l.b16 %v3041
    %v3129 = vunpack.c.h.b16 %v3041
    %v3130 = vunpack.c.l.b16 %v3042
    %v3131 = vunpack.c.h.b16 %v3042
    %v3132 = vunpack.c.l.b16 %v3043
    %v3133 = vunpack.c.h.b16 %v3043
    %v3134 = vunpack.c.l.b16 %v3044
    %v3135 = vunpack.c.h.b16 %v3044
    %v3136 = vunpack.c.l.b16 %v3045
    %v3137 = vunpack.c.h.b16 %v3045
    %v3138 = vunpack.c.l.b16 %v3046
    %v3139 = vunpack.c.h.b16 %v3046
    %v3140 = vunpack.c.l.b16 %v3047
    %v3141 = vunpack.c.h.b16 %v3047
    %v3142 = vunpack.c.l.b16 %v3048
    %v3143 = vunpack.c.h.b16 %v3048
    %v3144 = vunpack.c.l.b16 %v3049
    %v3145 = vunpack.c.h.b16 %v3049
    %v3146 = vpack.c.b16 %v3084, %v3082
    %v3147 = vpack.c.b16 %v3085, %v3083
    %v3148 = vpack.c.b16 %v3088, %v3086
    %v3149 = vpack.c.b16 %v3089, %v3087
    %v3150 = vpack.c.b16 %v3092, %v3090
    %v3151 = vpack.c.b16 %v3093, %v3091
    %v3152 = vpack.c.b16 %v3096, %v3094
    %v3153 = vpack.c.b16 %v3097, %v3095
    %v3154 = vpack.c.b16 %v3100, %v3098
    %v3155 = vpack.c.b16 %v3101, %v3099
    %v3156 = vpack.c.b16 %v3104, %v3102
    %v3157 = vpack.c.b16 %v3105, %v3103
    %v3158 = vpack.c.b16 %v3108, %v3106
    %v3159 = vpack.c.b16 %v3109, %v3107
    %v3160 = vpack.c.b16 %v3112, %v3110
    %v3161 = vpack.c.b16 %v3113, %v3111
    %v3162 = vpack.c.b16 %v3116, %v3114
    %v3163 = vpack.c.b16 %v3117, %v3115
    %v3164 = vpack.c.b16 %v3120, %v3118
    %v3165 = vpack.c.b16 %v3121, %v3119
    %v3166 = vpack.c.b16 %v3124, %v3122
    %v3167 = vpack.c.b16 %v3125, %v3123
    %v3168 = vpack.c.b16 %v3128, %v3126
    %v3169 = vpack.c.b16 %v3129, %v3127
    %v3170 = vpack.c.b16 %v3132, %v3130
    %v3171 = vpack.c.b16 %v3133, %v3131
    %v3172 = vpack.c.b16 %v3136, %v3134
    %v3173 = vpack.c.b16 %v3137, %v3135
    %v3174 = vpack.c.b16 %v3140, %v3138
    %v3175 = vpack.c.b16 %v3141, %v3139
    %v3176 = vpack.c.b16 %v3144, %v3142
    %v3177 = vpack.c.b16 %v3145, %v3143
    %3210 = vmatprep.subr.bf16.mxu0 %v3161
    %3211 = vmatpush1.bf16.msra.mxu0 %v3160
    %3212 = vmatprep.subr.bf16.mxu0 %v3159
    %3213 = vmatpush1.bf16.msra.mxu0 %v3158
    %3214 = vmatprep.subr.bf16.mxu0 %v3157
    %3215 = vmatpush1.bf16.msra.mxu0 %v3156
    %3216 = vmatprep.subr.bf16.mxu0 %v3155
    %3217 = vmatpush1.bf16.msra.mxu0 %v3154
    %3218 = vmatprep.subr.bf16.mxu0 %v3153
    %3219 = vmatpush1.bf16.msra.mxu0 %v3152
    %3220 = vmatprep.subr.bf16.mxu0 %v3151
    %3221 = vmatpush1.bf16.msra.mxu0 %v3150
    %3222 = vmatprep.subr.bf16.mxu0 %v3149
    %3223 = vmatpush1.bf16.msra.mxu0 %v3148
    %3224 = vmatprep.subr.bf16.mxu0 %v3147
    %3225 = vmatpush1.bf16.msra.mxu0 %v3146
    %3226 = vmatprep.subr.bf16.mxu0 %v3177
    %3227 = vmatpush2.bf16.msra.mxu0 %v3176
    %3228 = vmatprep.subr.bf16.mxu0 %v3175
    %3229 = vmatpush2.bf16.msra.mxu0 %v3174
    %3230 = vmatprep.subr.bf16.mxu0 %v3173
    %3231 = vmatpush2.bf16.msra.mxu0 %v3172
    %3232 = vmatprep.subr.bf16.mxu0 %v3171
    %3233 = vmatpush2.bf16.msra.mxu0 %v3170
    %3234 = vmatprep.subr.bf16.mxu0 %v3169
    %3235 = vmatpush2.bf16.msra.mxu0 %v3168
    %3236 = vmatprep.subr.bf16.mxu0 %v3167
    %3237 = vmatpush2.bf16.msra.mxu0 %v3166
    %3238 = vmatprep.subr.bf16.mxu0 %v3165
    %3239 = vmatpush2.bf16.msra.mxu0 %v3164
    %3240 = vmatprep.subr.bf16.mxu0 %v3163
    %3241 = vmatpush2.bf16.msra.mxu0 %v3162
    %3242 = vmatprep.mubr.bf16.mxu0 %v3010
    %3243 = vmatmul.mubr.bf16.gmra.mxu0 %v3009
    %v3244 = vpop.f32.mrf.mxu0
    %v3245 = vadd.f32 0.0, %v3244
    %v3246 = vpop.f32.mrf.mxu0
    %v3247 = vadd.f32 0.0, %v3246
    %v3248 = vpop.f32.mrf.mxu0
    %v3249 = vadd.f32 0.0, %v3248
    %v3250 = vpop.f32.mrf.mxu0
    %v3251 = vadd.f32 0.0, %v3250
    %3252 = vmatprep.mubr.bf16.mxu0 %v3012
    %3253 = vmatmul.mubr.bf16.gmra.mxu0 %v3011
    %v3254 = vpop.f32.mrf.mxu0
    %v3255 = vadd.f32 0.0, %v3254
    %v3256 = vpop.f32.mrf.mxu0
    %v3257 = vadd.f32 0.0, %v3256
    %v3258 = vpop.f32.mrf.mxu0
    %v3259 = vadd.f32 0.0, %v3258
    %v3260 = vpop.f32.mrf.mxu0
    %v3261 = vadd.f32 0.0, %v3260
    %3262 = vmatprep.mubr.bf16.mxu0 %v3014
    %3263 = vmatmul.mubr.bf16.gmra.mxu0 %v3013
    %v3264 = vpop.f32.mrf.mxu0
    %v3265 = vadd.f32 0.0, %v3264
    %v3266 = vpop.f32.mrf.mxu0
    %v3267 = vadd.f32 0.0, %v3266
    %v3268 = vpop.f32.mrf.mxu0
    %v3269 = vadd.f32 0.0, %v3268
    %v3270 = vpop.f32.mrf.mxu0
    %v3271 = vadd.f32 0.0, %v3270
    %3272 = vmatprep.mubr.bf16.mxu0 %v3016
    %3273 = vmatmul.mubr.bf16.gmra.mxu0 %v3015
    %v3274 = vpop.f32.mrf.mxu0
    %v3275 = vadd.f32 0.0, %v3274
    %v3276 = vpop.f32.mrf.mxu0
    %v3277 = vadd.f32 0.0, %v3276
    %v3278 = vpop.f32.mrf.mxu0
    %v3279 = vadd.f32 0.0, %v3278
    %v3280 = vpop.f32.mrf.mxu0
    %v3281 = vadd.f32 0.0, %v3280
    %3282 = vdwg.mxu0
    %v3283 = vadd.f32 %v2976, %v3245
    %v3284 = vadd.f32 %v2977, %v3247
    %v3285 = vadd.f32 %v2978, %v3249
    %v3286 = vadd.f32 %v2979, %v3251
    %v3287 = vadd.f32 %v2980, %v3255
    %v3288 = vadd.f32 %v2981, %v3257
    %v3289 = vadd.f32 %v2982, %v3259
    %v3290 = vadd.f32 %v2983, %v3261
    %v3291 = vadd.f32 %v2984, %v3265
    %v3292 = vadd.f32 %v2985, %v3267
    %v3293 = vadd.f32 %v2986, %v3269
    %v3294 = vadd.f32 %v2987, %v3271
    %v3295 = vadd.f32 %v2988, %v3275
    %v3296 = vadd.f32 %v2989, %v3277
    %v3297 = vadd.f32 %v2990, %v3279
    %v3298 = vadd.f32 %v2991, %v3281
    %v3299 = vld [vmem:[%s2992] sm:$0xfe]
    %v3300 = vld [vmem:[%s2992 + $0x8] sm:$0xfe]
    %v3301 = vld [vmem:[%s2992 + $0x10] sm:$0x1]
    %v3302 = vld [vmem:[%s2992 + $0x18] sm:$0x1]
    %v3303 = vld [vmem:[%s2992 + $0x20] sm:$0xfe]
    %v3304 = vld [vmem:[%s2992 + $0x28] sm:$0xfe]
    %v3305 = vld [vmem:[%s2992 + $0x30] sm:$0x1]
    %v3306 = vld [vmem:[%s2992 + $0x38] sm:$0x1]
    %v3307 = vld [vmem:[%s2992 + $0x40] sm:$0xfe]
    %v3308 = vld [vmem:[%s2992 + $0x48] sm:$0xfe]
    %v3309 = vld [vmem:[%s2992 + $0x50] sm:$0x1]
    %v3310 = vld [vmem:[%s2992 + $0x58] sm:$0x1]
    %v3311 = vld [vmem:[%s2992 + $0x60] sm:$0xfe]
    %v3312 = vld [vmem:[%s2992 + $0x68] sm:$0xfe]
    %v3313 = vld [vmem:[%s2992 + $0x70] sm:$0x1]
    %v3314 = vld [vmem:[%s2992 + $0x78] sm:$0x1]
    %v3315 = vld [vmem:[%s2992 + $0xc0] sm:$0xfe]
    %v3316 = vld [vmem:[%s2992 + $0xc8] sm:$0xfe]
    %v3317 = vld [vmem:[%s2992 + $0xd0] sm:$0x1]
    %v3318 = vld [vmem:[%s2992 + $0xd8] sm:$0x1]
    %v3319 = vld [vmem:[%s2992 + $0xe0] sm:$0xfe]
    %v3320 = vld [vmem:[%s2992 + $0xe8] sm:$0xfe]
    %v3321 = vld [vmem:[%s2992 + $0xf0] sm:$0x1]
    %v3322 = vld [vmem:[%s2992 + $0xf8] sm:$0x1]
    %v3323 = vld [vmem:[%s2992 + $0x100] sm:$0xfe]
    %v3324 = vld [vmem:[%s2992 + $0x108] sm:$0xfe]
    %v3325 = vld [vmem:[%s2992 + $0x110] sm:$0x1]
    %v3326 = vld [vmem:[%s2992 + $0x118] sm:$0x1]
    %v3327 = vld [vmem:[%s2992 + $0x120] sm:$0xfe]
    %v3328 = vld [vmem:[%s2992 + $0x128] sm:$0xfe]
    %v3329 = vld [vmem:[%s2992 + $0x130] sm:$0x1]
    %v3330 = vld [vmem:[%s2992 + $0x138] sm:$0x1]
    %v3363 = vrot.slane %v3299, 1
    %v3364 = vrot.slane %v3301, 1
    %v3365 = vsel %vm859, %v3363, %v3364
    %v3366 = vrot.slane %v3300, 1
    %v3367 = vrot.slane %v3302, 1
    %v3368 = vsel %vm859, %v3366, %v3367
    %v3369 = vrot.slane %v3303, 1
    %v3370 = vrot.slane %v3305, 1
    %v3371 = vsel %vm859, %v3369, %v3370
    %v3372 = vrot.slane %v3304, 1
    %v3373 = vrot.slane %v3306, 1
    %v3374 = vsel %vm859, %v3372, %v3373
    %v3375 = vrot.slane %v3307, 1
    %v3376 = vrot.slane %v3309, 1
    %v3377 = vsel %vm859, %v3375, %v3376
    %v3378 = vrot.slane %v3308, 1
    %v3379 = vrot.slane %v3310, 1
    %v3380 = vsel %vm859, %v3378, %v3379
    %v3381 = vrot.slane %v3311, 1
    %v3382 = vrot.slane %v3313, 1
    %v3383 = vsel %vm859, %v3381, %v3382
    %v3384 = vrot.slane %v3312, 1
    %v3385 = vrot.slane %v3314, 1
    %v3386 = vsel %vm859, %v3384, %v3385
    %v3387 = vrot.slane %v3315, 1
    %v3388 = vrot.slane %v3317, 1
    %v3389 = vsel %vm859, %v3387, %v3388
    %v3390 = vrot.slane %v3316, 1
    %v3391 = vrot.slane %v3318, 1
    %v3392 = vsel %vm859, %v3390, %v3391
    %v3393 = vrot.slane %v3319, 1
    %v3394 = vrot.slane %v3321, 1
    %v3395 = vsel %vm859, %v3393, %v3394
    %v3396 = vrot.slane %v3320, 1
    %v3397 = vrot.slane %v3322, 1
    %v3398 = vsel %vm859, %v3396, %v3397
    %v3399 = vrot.slane %v3323, 1
    %v3400 = vrot.slane %v3325, 1
    %v3401 = vsel %vm859, %v3399, %v3400
    %v3402 = vrot.slane %v3324, 1
    %v3403 = vrot.slane %v3326, 1
    %v3404 = vsel %vm859, %v3402, %v3403
    %v3405 = vrot.slane %v3327, 1
    %v3406 = vrot.slane %v3329, 1
    %v3407 = vsel %vm859, %v3405, %v3406
    %v3408 = vrot.slane %v3328, 1
    %v3409 = vrot.slane %v3330, 1
    %v3410 = vsel %vm859, %v3408, %v3409
    %v3427 = vpack.c.bf16 %v3371, %v3365
    %v3428 = vpack.c.bf16 %v3374, %v3368
    %v3429 = vpack.c.bf16 %v3383, %v3377
    %v3430 = vpack.c.bf16 %v3386, %v3380
    %v3431 = vpack.c.bf16 %v3395, %v3389
    %v3432 = vpack.c.bf16 %v3398, %v3392
    %v3433 = vpack.c.bf16 %v3407, %v3401
    %v3434 = vpack.c.bf16 %v3410, %v3404
    %s3435 = scalar_lea.vmem [#allocation11], 1792
    %v3436 = vld [vmem:[%s3435] sm:$0xff]
    %v3437 = vld [vmem:[%s3435 + $0x8] sm:$0xff]
    %v3438 = vld [vmem:[%s3435 + $0x10] sm:$0xff]
    %v3439 = vld [vmem:[%s3435 + $0x18] sm:$0xff]
    %v3440 = vld [vmem:[%s3435 + $0x20] sm:$0xff]
    %v3441 = vld [vmem:[%s3435 + $0x28] sm:$0xff]
    %v3442 = vld [vmem:[%s3435 + $0x30] sm:$0xff]
    %v3443 = vld [vmem:[%s3435 + $0x38] sm:$0xff]
    %v3444 = vld [vmem:[%s3435 + $0x40] sm:$0xff]
    %v3445 = vld [vmem:[%s3435 + $0x48] sm:$0xff]
    %v3446 = vld [vmem:[%s3435 + $0x50] sm:$0xff]
    %v3447 = vld [vmem:[%s3435 + $0x58] sm:$0xff]
    %v3448 = vld [vmem:[%s3435 + $0x60] sm:$0xff]
    %v3449 = vld [vmem:[%s3435 + $0x68] sm:$0xff]
    %v3450 = vld [vmem:[%s3435 + $0x70] sm:$0xff]
    %v3451 = vld [vmem:[%s3435 + $0x78] sm:$0xff]
    %v3452 = vld [vmem:[%s3435 + $0x80] sm:$0xff]
    %v3453 = vld [vmem:[%s3435 + $0x88] sm:$0xff]
    %v3454 = vld [vmem:[%s3435 + $0x90] sm:$0xff]
    %v3455 = vld [vmem:[%s3435 + $0x98] sm:$0xff]
    %v3456 = vld [vmem:[%s3435 + $0xa0] sm:$0xff]
    %v3457 = vld [vmem:[%s3435 + $0xa8] sm:$0xff]
    %v3458 = vld [vmem:[%s3435 + $0xb0] sm:$0xff]
    %v3459 = vld [vmem:[%s3435 + $0xb8] sm:$0xff]
    %v3460 = vld [vmem:[%s3435 + $0xc0] sm:$0xff]
    %v3461 = vld [vmem:[%s3435 + $0xc8] sm:$0xff]
    %v3462 = vld [vmem:[%s3435 + $0xd0] sm:$0xff]
    %v3463 = vld [vmem:[%s3435 + $0xd8] sm:$0xff]
    %v3464 = vld [vmem:[%s3435 + $0xe0] sm:$0xff]
    %v3465 = vld [vmem:[%s3435 + $0xe8] sm:$0xff]
    %v3466 = vld [vmem:[%s3435 + $0xf0] sm:$0xff]
    %v3467 = vld [vmem:[%s3435 + $0xf8] sm:$0xff]
    %v3500 = vunpack.c.l.b16 %v3436
    %v3501 = vunpack.c.h.b16 %v3436
    %v3502 = vunpack.c.l.b16 %v3437
    %v3503 = vunpack.c.h.b16 %v3437
    %v3504 = vunpack.c.l.b16 %v3438
    %v3505 = vunpack.c.h.b16 %v3438
    %v3506 = vunpack.c.l.b16 %v3439
    %v3507 = vunpack.c.h.b16 %v3439
    %v3508 = vunpack.c.l.b16 %v3440
    %v3509 = vunpack.c.h.b16 %v3440
    %v3510 = vunpack.c.l.b16 %v3441
    %v3511 = vunpack.c.h.b16 %v3441
    %v3512 = vunpack.c.l.b16 %v3442
    %v3513 = vunpack.c.h.b16 %v3442
    %v3514 = vunpack.c.l.b16 %v3443
    %v3515 = vunpack.c.h.b16 %v3443
    %v3516 = vunpack.c.l.b16 %v3444
    %v3517 = vunpack.c.h.b16 %v3444
    %v3518 = vunpack.c.l.b16 %v3445
    %v3519 = vunpack.c.h.b16 %v3445
    %v3520 = vunpack.c.l.b16 %v3446
    %v3521 = vunpack.c.h.b16 %v3446
    %v3522 = vunpack.c.l.b16 %v3447
    %v3523 = vunpack.c.h.b16 %v3447
    %v3524 = vunpack.c.l.b16 %v3448
    %v3525 = vunpack.c.h.b16 %v3448
    %v3526 = vunpack.c.l.b16 %v3449
    %v3527 = vunpack.c.h.b16 %v3449
    %v3528 = vunpack.c.l.b16 %v3450
    %v3529 = vunpack.c.h.b16 %v3450
    %v3530 = vunpack.c.l.b16 %v3451
    %v3531 = vunpack.c.h.b16 %v3451
    %v3532 = vunpack.c.l.b16 %v3452
    %v3533 = vunpack.c.h.b16 %v3452
    %v3534 = vunpack.c.l.b16 %v3453
    %v3535 = vunpack.c.h.b16 %v3453
    %v3536 = vunpack.c.l.b16 %v3454
    %v3537 = vunpack.c.h.b16 %v3454
    %v3538 = vunpack.c.l.b16 %v3455
    %v3539 = vunpack.c.h.b16 %v3455
    %v3540 = vunpack.c.l.b16 %v3456
    %v3541 = vunpack.c.h.b16 %v3456
    %v3542 = vunpack.c.l.b16 %v3457
    %v3543 = vunpack.c.h.b16 %v3457
    %v3544 = vunpack.c.l.b16 %v3458
    %v3545 = vunpack.c.h.b16 %v3458
    %v3546 = vunpack.c.l.b16 %v3459
    %v3547 = vunpack.c.h.b16 %v3459
    %v3548 = vunpack.c.l.b16 %v3460
    %v3549 = vunpack.c.h.b16 %v3460
    %v3550 = vunpack.c.l.b16 %v3461
    %v3551 = vunpack.c.h.b16 %v3461
    %v3552 = vunpack.c.l.b16 %v3462
    %v3553 = vunpack.c.h.b16 %v3462
    %v3554 = vunpack.c.l.b16 %v3463
    %v3555 = vunpack.c.h.b16 %v3463
    %v3556 = vunpack.c.l.b16 %v3464
    %v3557 = vunpack.c.h.b16 %v3464
    %v3558 = vunpack.c.l.b16 %v3465
    %v3559 = vunpack.c.h.b16 %v3465
    %v3560 = vunpack.c.l.b16 %v3466
    %v3561 = vunpack.c.h.b16 %v3466
    %v3562 = vunpack.c.l.b16 %v3467
    %v3563 = vunpack.c.h.b16 %v3467
    %v3564 = vpack.c.b16 %v3502, %v3500
    %v3565 = vpack.c.b16 %v3503, %v3501
    %v3566 = vpack.c.b16 %v3506, %v3504
    %v3567 = vpack.c.b16 %v3507, %v3505
    %v3568 = vpack.c.b16 %v3510, %v3508
    %v3569 = vpack.c.b16 %v3511, %v3509
    %v3570 = vpack.c.b16 %v3514, %v3512
    %v3571 = vpack.c.b16 %v3515, %v3513
    %v3572 = vpack.c.b16 %v3518, %v3516
    %v3573 = vpack.c.b16 %v3519, %v3517
    %v3574 = vpack.c.b16 %v3522, %v3520
    %v3575 = vpack.c.b16 %v3523, %v3521
    %v3576 = vpack.c.b16 %v3526, %v3524
    %v3577 = vpack.c.b16 %v3527, %v3525
    %v3578 = vpack.c.b16 %v3530, %v3528
    %v3579 = vpack.c.b16 %v3531, %v3529
    %v3580 = vpack.c.b16 %v3534, %v3532
    %v3581 = vpack.c.b16 %v3535, %v3533
    %v3582 = vpack.c.b16 %v3538, %v3536
    %v3583 = vpack.c.b16 %v3539, %v3537
    %v3584 = vpack.c.b16 %v3542, %v3540
    %v3585 = vpack.c.b16 %v3543, %v3541
    %v3586 = vpack.c.b16 %v3546, %v3544
    %v3587 = vpack.c.b16 %v3547, %v3545
    %v3588 = vpack.c.b16 %v3550, %v3548
    %v3589 = vpack.c.b16 %v3551, %v3549
    %v3590 = vpack.c.b16 %v3554, %v3552
    %v3591 = vpack.c.b16 %v3555, %v3553
    %v3592 = vpack.c.b16 %v3558, %v3556
    %v3593 = vpack.c.b16 %v3559, %v3557
    %v3594 = vpack.c.b16 %v3562, %v3560
    %v3595 = vpack.c.b16 %v3563, %v3561
    %3628 = vmatprep.subr.bf16.mxu0 %v3579
    %3629 = vmatpush1.bf16.msra.mxu0 %v3578
    %3630 = vmatprep.subr.bf16.mxu0 %v3577
    %3631 = vmatpush1.bf16.msra.mxu0 %v3576
    %3632 = vmatprep.subr.bf16.mxu0 %v3575
    %3633 = vmatpush1.bf16.msra.mxu0 %v3574
    %3634 = vmatprep.subr.bf16.mxu0 %v3573
    %3635 = vmatpush1.bf16.msra.mxu0 %v3572
    %3636 = vmatprep.subr.bf16.mxu0 %v3571
    %3637 = vmatpush1.bf16.msra.mxu0 %v3570
    %3638 = vmatprep.subr.bf16.mxu0 %v3569
    %3639 = vmatpush1.bf16.msra.mxu0 %v3568
    %3640 = vmatprep.subr.bf16.mxu0 %v3567
    %3641 = vmatpush1.bf16.msra.mxu0 %v3566
    %3642 = vmatprep.subr.bf16.mxu0 %v3565
    %3643 = vmatpush1.bf16.msra.mxu0 %v3564
    %3644 = vmatprep.subr.bf16.mxu0 %v3595
    %3645 = vmatpush2.bf16.msra.mxu0 %v3594
    %3646 = vmatprep.subr.bf16.mxu0 %v3593
    %3647 = vmatpush2.bf16.msra.mxu0 %v3592
    %3648 = vmatprep.subr.bf16.mxu0 %v3591
    %3649 = vmatpush2.bf16.msra.mxu0 %v3590
    %3650 = vmatprep.subr.bf16.mxu0 %v3589
    %3651 = vmatpush2.bf16.msra.mxu0 %v3588
    %3652 = vmatprep.subr.bf16.mxu0 %v3587
    %3653 = vmatpush2.bf16.msra.mxu0 %v3586
    %3654 = vmatprep.subr.bf16.mxu0 %v3585
    %3655 = vmatpush2.bf16.msra.mxu0 %v3584
    %3656 = vmatprep.subr.bf16.mxu0 %v3583
    %3657 = vmatpush2.bf16.msra.mxu0 %v3582
    %3658 = vmatprep.subr.bf16.mxu0 %v3581
    %3659 = vmatpush2.bf16.msra.mxu0 %v3580
    %3660 = vmatprep.mubr.bf16.mxu0 %v3428
    %3661 = vmatmul.mubr.bf16.gmra.mxu0 %v3427
    %v3662 = vpop.f32.mrf.mxu0
    %v3663 = vadd.f32 0.0, %v3662
    %v3664 = vpop.f32.mrf.mxu0
    %v3665 = vadd.f32 0.0, %v3664
    %v3666 = vpop.f32.mrf.mxu0
    %v3667 = vadd.f32 0.0, %v3666
    %v3668 = vpop.f32.mrf.mxu0
    %v3669 = vadd.f32 0.0, %v3668
    %3670 = vmatprep.mubr.bf16.mxu0 %v3430
    %3671 = vmatmul.mubr.bf16.gmra.mxu0 %v3429
    %v3672 = vpop.f32.mrf.mxu0
    %v3673 = vadd.f32 0.0, %v3672
    %v3674 = vpop.f32.mrf.mxu0
    %v3675 = vadd.f32 0.0, %v3674
    %v3676 = vpop.f32.mrf.mxu0
    %v3677 = vadd.f32 0.0, %v3676
    %v3678 = vpop.f32.mrf.mxu0
    %v3679 = vadd.f32 0.0, %v3678
    %3680 = vmatprep.mubr.bf16.mxu0 %v3432
    %3681 = vmatmul.mubr.bf16.gmra.mxu0 %v3431
    %v3682 = vpop.f32.mrf.mxu0
    %v3683 = vadd.f32 0.0, %v3682
    %v3684 = vpop.f32.mrf.mxu0
    %v3685 = vadd.f32 0.0, %v3684
    %v3686 = vpop.f32.mrf.mxu0
    %v3687 = vadd.f32 0.0, %v3686
    %v3688 = vpop.f32.mrf.mxu0
    %v3689 = vadd.f32 0.0, %v3688
    %3690 = vmatprep.mubr.bf16.mxu0 %v3434
    %3691 = vmatmul.mubr.bf16.gmra.mxu0 %v3433
    %v3692 = vpop.f32.mrf.mxu0
    %v3693 = vadd.f32 0.0, %v3692
    %v3694 = vpop.f32.mrf.mxu0
    %v3695 = vadd.f32 0.0, %v3694
    %v3696 = vpop.f32.mrf.mxu0
    %v3697 = vadd.f32 0.0, %v3696
    %v3698 = vpop.f32.mrf.mxu0
    %v3699 = vadd.f32 0.0, %v3698
    %3700 = vdwg.mxu0
    %v3701 = vadd.f32 %v3283, %v3663
    %v3702 = vadd.f32 %v3284, %v3665
    %v3703 = vadd.f32 %v3285, %v3667
    %v3704 = vadd.f32 %v3286, %v3669
    %v3705 = vadd.f32 %v3287, %v3673
    %v3706 = vadd.f32 %v3288, %v3675
    %v3707 = vadd.f32 %v3289, %v3677
    %v3708 = vadd.f32 %v3290, %v3679
    %v3709 = vadd.f32 %v3291, %v3683
    %v3710 = vadd.f32 %v3292, %v3685
    %v3711 = vadd.f32 %v3293, %v3687
    %v3712 = vadd.f32 %v3294, %v3689
    %v3713 = vadd.f32 %v3295, %v3693
    %v3714 = vadd.f32 %v3296, %v3695
    %v3715 = vadd.f32 %v3297, %v3697
    %v3716 = vadd.f32 %v3298, %v3699
    %v3717 = vld [vmem:[%s2992] sm:$0xfc]
    %v3718 = vld [vmem:[%s2992 + $0x8] sm:$0xfc]
    %v3719 = vld [vmem:[%s2992 + $0x10] sm:$0x3]
    %v3720 = vld [vmem:[%s2992 + $0x18] sm:$0x3]
    %v3721 = vld [vmem:[%s2992 + $0x20] sm:$0xfc]
    %v3722 = vld [vmem:[%s2992 + $0x28] sm:$0xfc]
    %v3723 = vld [vmem:[%s2992 + $0x30] sm:$0x3]
    %v3724 = vld [vmem:[%s2992 + $0x38] sm:$0x3]
    %v3725 = vld [vmem:[%s2992 + $0x40] sm:$0xfc]
    %v3726 = vld [vmem:[%s2992 + $0x48] sm:$0xfc]
    %v3727 = vld [vmem:[%s2992 + $0x50] sm:$0x3]
    %v3728 = vld [vmem:[%s2992 + $0x58] sm:$0x3]
    %v3729 = vld [vmem:[%s2992 + $0x60] sm:$0xfc]
    %v3730 = vld [vmem:[%s2992 + $0x68] sm:$0xfc]
    %v3731 = vld [vmem:[%s2992 + $0x70] sm:$0x3]
    %v3732 = vld [vmem:[%s2992 + $0x78] sm:$0x3]
    %v3733 = vld [vmem:[%s2992 + $0xc0] sm:$0xfc]
    %v3734 = vld [vmem:[%s2992 + $0xc8] sm:$0xfc]
    %v3735 = vld [vmem:[%s2992 + $0xd0] sm:$0x3]
    %v3736 = vld [vmem:[%s2992 + $0xd8] sm:$0x3]
    %v3737 = vld [vmem:[%s2992 + $0xe0] sm:$0xfc]
    %v3738 = vld [vmem:[%s2992 + $0xe8] sm:$0xfc]
    %v3739 = vld [vmem:[%s2992 + $0xf0] sm:$0x3]
    %v3740 = vld [vmem:[%s2992 + $0xf8] sm:$0x3]
    %v3741 = vld [vmem:[%s2992 + $0x100] sm:$0xfc]
    %v3742 = vld [vmem:[%s2992 + $0x108] sm:$0xfc]
    %v3743 = vld [vmem:[%s2992 + $0x110] sm:$0x3]
    %v3744 = vld [vmem:[%s2992 + $0x118] sm:$0x3]
    %v3745 = vld [vmem:[%s2992 + $0x120] sm:$0xfc]
    %v3746 = vld [vmem:[%s2992 + $0x128] sm:$0xfc]
    %v3747 = vld [vmem:[%s2992 + $0x130] sm:$0x3]
    %v3748 = vld [vmem:[%s2992 + $0x138] sm:$0x3]
    %v3781 = vrot.slane %v3717, 2
    %v3782 = vrot.slane %v3719, 2
    %v3783 = vsel %vm1495, %v3781, %v3782
    %v3784 = vrot.slane %v3718, 2
    %v3785 = vrot.slane %v3720, 2
    %v3786 = vsel %vm1495, %v3784, %v3785
    %v3787 = vrot.slane %v3721, 2
    %v3788 = vrot.slane %v3723, 2
    %v3789 = vsel %vm1495, %v3787, %v3788
    %v3790 = vrot.slane %v3722, 2
    %v3791 = vrot.slane %v3724, 2
    %v3792 = vsel %vm1495, %v3790, %v3791
    %v3793 = vrot.slane %v3725, 2
    %v3794 = vrot.slane %v3727, 2
    %v3795 = vsel %vm1495, %v3793, %v3794
    %v3796 = vrot.slane %v3726, 2
    %v3797 = vrot.slane %v3728, 2
    %v3798 = vsel %vm1495, %v3796, %v3797
    %v3799 = vrot.slane %v3729, 2
    %v3800 = vrot.slane %v3731, 2
    %v3801 = vsel %vm1495, %v3799, %v3800
    %v3802 = vrot.slane %v3730, 2
    %v3803 = vrot.slane %v3732, 2
    %v3804 = vsel %vm1495, %v3802, %v3803
    %v3805 = vrot.slane %v3733, 2
    %v3806 = vrot.slane %v3735, 2
    %v3807 = vsel %vm1495, %v3805, %v3806
    %v3808 = vrot.slane %v3734, 2
    %v3809 = vrot.slane %v3736, 2
    %v3810 = vsel %vm1495, %v3808, %v3809
    %v3811 = vrot.slane %v3737, 2
    %v3812 = vrot.slane %v3739, 2
    %v3813 = vsel %vm1495, %v3811, %v3812
    %v3814 = vrot.slane %v3738, 2
    %v3815 = vrot.slane %v3740, 2
    %v3816 = vsel %vm1495, %v3814, %v3815
    %v3817 = vrot.slane %v3741, 2
    %v3818 = vrot.slane %v3743, 2
    %v3819 = vsel %vm1495, %v3817, %v3818
    %v3820 = vrot.slane %v3742, 2
    %v3821 = vrot.slane %v3744, 2
    %v3822 = vsel %vm1495, %v3820, %v3821
    %v3823 = vrot.slane %v3745, 2
    %v3824 = vrot.slane %v3747, 2
    %v3825 = vsel %vm1495, %v3823, %v3824
    %v3826 = vrot.slane %v3746, 2
    %v3827 = vrot.slane %v3748, 2
    %v3828 = vsel %vm1495, %v3826, %v3827
    %v3845 = vpack.c.bf16 %v3789, %v3783
    %v3846 = vpack.c.bf16 %v3792, %v3786
    %v3847 = vpack.c.bf16 %v3801, %v3795
    %v3848 = vpack.c.bf16 %v3804, %v3798
    %v3849 = vpack.c.bf16 %v3813, %v3807
    %v3850 = vpack.c.bf16 %v3816, %v3810
    %v3851 = vpack.c.bf16 %v3825, %v3819
    %v3852 = vpack.c.bf16 %v3828, %v3822
    %s3853 = scalar_lea.vmem [#allocation11], 2048
    %v3854 = vld [vmem:[%s3853] sm:$0xff]
    %v3855 = vld [vmem:[%s3853 + $0x8] sm:$0xff]
    %v3856 = vld [vmem:[%s3853 + $0x10] sm:$0xff]
    %v3857 = vld [vmem:[%s3853 + $0x18] sm:$0xff]
    %v3858 = vld [vmem:[%s3853 + $0x20] sm:$0xff]
    %v3859 = vld [vmem:[%s3853 + $0x28] sm:$0xff]
    %v3860 = vld [vmem:[%s3853 + $0x30] sm:$0xff]
    %v3861 = vld [vmem:[%s3853 + $0x38] sm:$0xff]
    %v3862 = vld [vmem:[%s3853 + $0x40] sm:$0xff]
    %v3863 = vld [vmem:[%s3853 + $0x48] sm:$0xff]
    %v3864 = vld [vmem:[%s3853 + $0x50] sm:$0xff]
    %v3865 = vld [vmem:[%s3853 + $0x58] sm:$0xff]
    %v3866 = vld [vmem:[%s3853 + $0x60] sm:$0xff]
    %v3867 = vld [vmem:[%s3853 + $0x68] sm:$0xff]
    %v3868 = vld [vmem:[%s3853 + $0x70] sm:$0xff]
    %v3869 = vld [vmem:[%s3853 + $0x78] sm:$0xff]
    %v3870 = vld [vmem:[%s3853 + $0x80] sm:$0xff]
    %v3871 = vld [vmem:[%s3853 + $0x88] sm:$0xff]
    %v3872 = vld [vmem:[%s3853 + $0x90] sm:$0xff]
    %v3873 = vld [vmem:[%s3853 + $0x98] sm:$0xff]
    %v3874 = vld [vmem:[%s3853 + $0xa0] sm:$0xff]
    %v3875 = vld [vmem:[%s3853 + $0xa8] sm:$0xff]
    %v3876 = vld [vmem:[%s3853 + $0xb0] sm:$0xff]
    %v3877 = vld [vmem:[%s3853 + $0xb8] sm:$0xff]
    %v3878 = vld [vmem:[%s3853 + $0xc0] sm:$0xff]
    %v3879 = vld [vmem:[%s3853 + $0xc8] sm:$0xff]
    %v3880 = vld [vmem:[%s3853 + $0xd0] sm:$0xff]
    %v3881 = vld [vmem:[%s3853 + $0xd8] sm:$0xff]
    %v3882 = vld [vmem:[%s3853 + $0xe0] sm:$0xff]
    %v3883 = vld [vmem:[%s3853 + $0xe8] sm:$0xff]
    %v3884 = vld [vmem:[%s3853 + $0xf0] sm:$0xff]
    %v3885 = vld [vmem:[%s3853 + $0xf8] sm:$0xff]
    %v3918 = vunpack.c.l.b16 %v3854
    %v3919 = vunpack.c.h.b16 %v3854
    %v3920 = vunpack.c.l.b16 %v3855
    %v3921 = vunpack.c.h.b16 %v3855
    %v3922 = vunpack.c.l.b16 %v3856
    %v3923 = vunpack.c.h.b16 %v3856
    %v3924 = vunpack.c.l.b16 %v3857
    %v3925 = vunpack.c.h.b16 %v3857
    %v3926 = vunpack.c.l.b16 %v3858
    %v3927 = vunpack.c.h.b16 %v3858
    %v3928 = vunpack.c.l.b16 %v3859
    %v3929 = vunpack.c.h.b16 %v3859
    %v3930 = vunpack.c.l.b16 %v3860
    %v3931 = vunpack.c.h.b16 %v3860
    %v3932 = vunpack.c.l.b16 %v3861
    %v3933 = vunpack.c.h.b16 %v3861
    %v3934 = vunpack.c.l.b16 %v3862
    %v3935 = vunpack.c.h.b16 %v3862
    %v3936 = vunpack.c.l.b16 %v3863
    %v3937 = vunpack.c.h.b16 %v3863
    %v3938 = vunpack.c.l.b16 %v3864
    %v3939 = vunpack.c.h.b16 %v3864
    %v3940 = vunpack.c.l.b16 %v3865
    %v3941 = vunpack.c.h.b16 %v3865
    %v3942 = vunpack.c.l.b16 %v3866
    %v3943 = vunpack.c.h.b16 %v3866
    %v3944 = vunpack.c.l.b16 %v3867
    %v3945 = vunpack.c.h.b16 %v3867
    %v3946 = vunpack.c.l.b16 %v3868
    %v3947 = vunpack.c.h.b16 %v3868
    %v3948 = vunpack.c.l.b16 %v3869
    %v3949 = vunpack.c.h.b16 %v3869
    %v3950 = vunpack.c.l.b16 %v3870
    %v3951 = vunpack.c.h.b16 %v3870
    %v3952 = vunpack.c.l.b16 %v3871
    %v3953 = vunpack.c.h.b16 %v3871
    %v3954 = vunpack.c.l.b16 %v3872
    %v3955 = vunpack.c.h.b16 %v3872
    %v3956 = vunpack.c.l.b16 %v3873
    %v3957 = vunpack.c.h.b16 %v3873
    %v3958 = vunpack.c.l.b16 %v3874
    %v3959 = vunpack.c.h.b16 %v3874
    %v3960 = vunpack.c.l.b16 %v3875
    %v3961 = vunpack.c.h.b16 %v3875
    %v3962 = vunpack.c.l.b16 %v3876
    %v3963 = vunpack.c.h.b16 %v3876
    %v3964 = vunpack.c.l.b16 %v3877
    %v3965 = vunpack.c.h.b16 %v3877
    %v3966 = vunpack.c.l.b16 %v3878
    %v3967 = vunpack.c.h.b16 %v3878
    %v3968 = vunpack.c.l.b16 %v3879
    %v3969 = vunpack.c.h.b16 %v3879
    %v3970 = vunpack.c.l.b16 %v3880
    %v3971 = vunpack.c.h.b16 %v3880
    %v3972 = vunpack.c.l.b16 %v3881
    %v3973 = vunpack.c.h.b16 %v3881
    %v3974 = vunpack.c.l.b16 %v3882
    %v3975 = vunpack.c.h.b16 %v3882
    %v3976 = vunpack.c.l.b16 %v3883
    %v3977 = vunpack.c.h.b16 %v3883
    %v3978 = vunpack.c.l.b16 %v3884
    %v3979 = vunpack.c.h.b16 %v3884
    %v3980 = vunpack.c.l.b16 %v3885
    %v3981 = vunpack.c.h.b16 %v3885
    %v3982 = vpack.c.b16 %v3920, %v3918
    %v3983 = vpack.c.b16 %v3921, %v3919
    %v3984 = vpack.c.b16 %v3924, %v3922
    %v3985 = vpack.c.b16 %v3925, %v3923
    %v3986 = vpack.c.b16 %v3928, %v3926
    %v3987 = vpack.c.b16 %v3929, %v3927
    %v3988 = vpack.c.b16 %v3932, %v3930
    %v3989 = vpack.c.b16 %v3933, %v3931
    %v3990 = vpack.c.b16 %v3936, %v3934
    %v3991 = vpack.c.b16 %v3937, %v3935
    %v3992 = vpack.c.b16 %v3940, %v3938
    %v3993 = vpack.c.b16 %v3941, %v3939
    %v3994 = vpack.c.b16 %v3944, %v3942
    %v3995 = vpack.c.b16 %v3945, %v3943
    %v3996 = vpack.c.b16 %v3948, %v3946
    %v3997 = vpack.c.b16 %v3949, %v3947
    %v3998 = vpack.c.b16 %v3952, %v3950
    %v3999 = vpack.c.b16 %v3953, %v3951
    %v4000 = vpack.c.b16 %v3956, %v3954
    %v4001 = vpack.c.b16 %v3957, %v3955
    %v4002 = vpack.c.b16 %v3960, %v3958
    %v4003 = vpack.c.b16 %v3961, %v3959
    %v4004 = vpack.c.b16 %v3964, %v3962
    %v4005 = vpack.c.b16 %v3965, %v3963
    %v4006 = vpack.c.b16 %v3968, %v3966
    %v4007 = vpack.c.b16 %v3969, %v3967
    %v4008 = vpack.c.b16 %v3972, %v3970
    %v4009 = vpack.c.b16 %v3973, %v3971
    %v4010 = vpack.c.b16 %v3976, %v3974
    %v4011 = vpack.c.b16 %v3977, %v3975
    %v4012 = vpack.c.b16 %v3980, %v3978
    %v4013 = vpack.c.b16 %v3981, %v3979
    %4046 = vmatprep.subr.bf16.mxu0 %v3997
    %4047 = vmatpush1.bf16.msra.mxu0 %v3996
    %4048 = vmatprep.subr.bf16.mxu0 %v3995
    %4049 = vmatpush1.bf16.msra.mxu0 %v3994
    %4050 = vmatprep.subr.bf16.mxu0 %v3993
    %4051 = vmatpush1.bf16.msra.mxu0 %v3992
    %4052 = vmatprep.subr.bf16.mxu0 %v3991
    %4053 = vmatpush1.bf16.msra.mxu0 %v3990
    %4054 = vmatprep.subr.bf16.mxu0 %v3989
    %4055 = vmatpush1.bf16.msra.mxu0 %v3988
    %4056 = vmatprep.subr.bf16.mxu0 %v3987
    %4057 = vmatpush1.bf16.msra.mxu0 %v3986
    %4058 = vmatprep.subr.bf16.mxu0 %v3985
    %4059 = vmatpush1.bf16.msra.mxu0 %v3984
    %4060 = vmatprep.subr.bf16.mxu0 %v3983
    %4061 = vmatpush1.bf16.msra.mxu0 %v3982
    %4062 = vmatprep.subr.bf16.mxu0 %v4013
    %4063 = vmatpush2.bf16.msra.mxu0 %v4012
    %4064 = vmatprep.subr.bf16.mxu0 %v4011
    %4065 = vmatpush2.bf16.msra.mxu0 %v4010
    %4066 = vmatprep.subr.bf16.mxu0 %v4009
    %4067 = vmatpush2.bf16.msra.mxu0 %v4008
    %4068 = vmatprep.subr.bf16.mxu0 %v4007
    %4069 = vmatpush2.bf16.msra.mxu0 %v4006
    %4070 = vmatprep.subr.bf16.mxu0 %v4005
    %4071 = vmatpush2.bf16.msra.mxu0 %v4004
    %4072 = vmatprep.subr.bf16.mxu0 %v4003
    %4073 = vmatpush2.bf16.msra.mxu0 %v4002
    %4074 = vmatprep.subr.bf16.mxu0 %v4001
    %4075 = vmatpush2.bf16.msra.mxu0 %v4000
    %4076 = vmatprep.subr.bf16.mxu0 %v3999
    %4077 = vmatpush2.bf16.msra.mxu0 %v3998
    %4078 = vmatprep.mubr.bf16.mxu0 %v3846
    %4079 = vmatmul.mubr.bf16.gmra.mxu0 %v3845
    %v4080 = vpop.f32.mrf.mxu0
    %v4081 = vadd.f32 0.0, %v4080
    %v4082 = vpop.f32.mrf.mxu0
    %v4083 = vadd.f32 0.0, %v4082
    %v4084 = vpop.f32.mrf.mxu0
    %v4085 = vadd.f32 0.0, %v4084
    %v4086 = vpop.f32.mrf.mxu0
    %v4087 = vadd.f32 0.0, %v4086
    %4088 = vmatprep.mubr.bf16.mxu0 %v3848
    %4089 = vmatmul.mubr.bf16.gmra.mxu0 %v3847
    %v4090 = vpop.f32.mrf.mxu0
    %v4091 = vadd.f32 0.0, %v4090
    %v4092 = vpop.f32.mrf.mxu0
    %v4093 = vadd.f32 0.0, %v4092
    %v4094 = vpop.f32.mrf.mxu0
    %v4095 = vadd.f32 0.0, %v4094
    %v4096 = vpop.f32.mrf.mxu0
    %v4097 = vadd.f32 0.0, %v4096
    %4098 = vmatprep.mubr.bf16.mxu0 %v3850
    %4099 = vmatmul.mubr.bf16.gmra.mxu0 %v3849
    %v4100 = vpop.f32.mrf.mxu0
    %v4101 = vadd.f32 0.0, %v4100
    %v4102 = vpop.f32.mrf.mxu0
    %v4103 = vadd.f32 0.0, %v4102
    %v4104 = vpop.f32.mrf.mxu0
    %v4105 = vadd.f32 0.0, %v4104
    %v4106 = vpop.f32.mrf.mxu0
    %v4107 = vadd.f32 0.0, %v4106
    %4108 = vmatprep.mubr.bf16.mxu0 %v3852
    %4109 = vmatmul.mubr.bf16.gmra.mxu0 %v3851
    %v4110 = vpop.f32.mrf.mxu0
    %v4111 = vadd.f32 0.0, %v4110
    %v4112 = vpop.f32.mrf.mxu0
    %v4113 = vadd.f32 0.0, %v4112
    %v4114 = vpop.f32.mrf.mxu0
    %v4115 = vadd.f32 0.0, %v4114
    %v4116 = vpop.f32.mrf.mxu0
    %v4117 = vadd.f32 0.0, %v4116
    %4118 = vdwg.mxu0
    %v4119 = vadd.f32 %v3701, %v4081
    %v4120 = vadd.f32 %v3702, %v4083
    %v4121 = vadd.f32 %v3703, %v4085
    %v4122 = vadd.f32 %v3704, %v4087
    %v4123 = vadd.f32 %v3705, %v4091
    %v4124 = vadd.f32 %v3706, %v4093
    %v4125 = vadd.f32 %v3707, %v4095
    %v4126 = vadd.f32 %v3708, %v4097
    %v4127 = vadd.f32 %v3709, %v4101
    %v4128 = vadd.f32 %v3710, %v4103
    %v4129 = vadd.f32 %v3711, %v4105
    %v4130 = vadd.f32 %v3712, %v4107
    %v4131 = vadd.f32 %v3713, %v4111
    %v4132 = vadd.f32 %v3714, %v4113
    %v4133 = vadd.f32 %v3715, %v4115
    %v4134 = vadd.f32 %v3716, %v4117
    %v4136 = vlaneseq
    %v4137 = vshrl.u32 %v4136, 7
    %v4138 = vsub.s32 0, %v4137
    %v4139 = vrot.slane %v295, %v4138
    %v4140 = vlaneseq
    %v4141 = vshrl.u32 %v4140, 7
    %v4142 = vsub.s32 1, %v4141
    %v4143 = vrot.slane %v295, %v4142
    %v4146 = vadd.f32 %v4119, %v4139
    %v4147 = vadd.f32 %v4120, %v4143
    %v4148 = vadd.f32 %v4121, %v4139
    %v4149 = vadd.f32 %v4122, %v4143
    %v4150 = vadd.f32 %v4123, %v4139
    %v4151 = vadd.f32 %v4124, %v4143
    %v4152 = vadd.f32 %v4125, %v4139
    %v4153 = vadd.f32 %v4126, %v4143
    %v4154 = vadd.f32 %v4127, %v4139
    %v4155 = vadd.f32 %v4128, %v4143
    %v4156 = vadd.f32 %v4129, %v4139
    %v4157 = vadd.f32 %v4130, %v4143
    %v4158 = vadd.f32 %v4131, %v4139
    %v4159 = vadd.f32 %v4132, %v4143
    %v4160 = vadd.f32 %v4133, %v4139
    %v4161 = vadd.f32 %v4134, %v4143
    %vm4162 = vcmp.ge.f32.partialorder %v4146, 0.0
    %vm4163 = vcmp.ge.f32.partialorder %v4147, 0.0
    %vm4164 = vcmp.ge.f32.partialorder %v4148, 0.0
    %vm4165 = vcmp.ge.f32.partialorder %v4149, 0.0
    %vm4166 = vcmp.ge.f32.partialorder %v4150, 0.0
    %vm4167 = vcmp.ge.f32.partialorder %v4151, 0.0
    %vm4168 = vcmp.ge.f32.partialorder %v4152, 0.0
    %vm4169 = vcmp.ge.f32.partialorder %v4153, 0.0
    %vm4170 = vcmp.ge.f32.partialorder %v4154, 0.0
    %vm4171 = vcmp.ge.f32.partialorder %v4155, 0.0
    %vm4172 = vcmp.ge.f32.partialorder %v4156, 0.0
    %vm4173 = vcmp.ge.f32.partialorder %v4157, 0.0
    %vm4174 = vcmp.ge.f32.partialorder %v4158, 0.0
    %vm4175 = vcmp.ge.f32.partialorder %v4159, 0.0
    %vm4176 = vcmp.ge.f32.partialorder %v4160, 0.0
    %vm4177 = vcmp.ge.f32.partialorder %v4161, 0.0
    %v4178 = vmul.f32 %v4146, 0.1
    %v4179 = vmul.f32 %v4147, 0.1
    %v4180 = vmul.f32 %v4148, 0.1
    %v4181 = vmul.f32 %v4149, 0.1
    %v4182 = vmul.f32 %v4150, 0.1
    %v4183 = vmul.f32 %v4151, 0.1
    %v4184 = vmul.f32 %v4152, 0.1
    %v4185 = vmul.f32 %v4153, 0.1
    %v4186 = vmul.f32 %v4154, 0.1
    %v4187 = vmul.f32 %v4155, 0.1
    %v4188 = vmul.f32 %v4156, 0.1
    %v4189 = vmul.f32 %v4157, 0.1
    %v4190 = vmul.f32 %v4158, 0.1
    %v4191 = vmul.f32 %v4159, 0.1
    %v4192 = vmul.f32 %v4160, 0.1
    %v4193 = vmul.f32 %v4161, 0.1
    %v4194 = vsel %vm4162, %v4146, %v4178
    %v4195 = vsel %vm4163, %v4147, %v4179
    %v4196 = vsel %vm4164, %v4148, %v4180
    %v4197 = vsel %vm4165, %v4149, %v4181
    %v4198 = vsel %vm4166, %v4150, %v4182
    %v4199 = vsel %vm4167, %v4151, %v4183
    %v4200 = vsel %vm4168, %v4152, %v4184
    %v4201 = vsel %vm4169, %v4153, %v4185
    %v4202 = vsel %vm4170, %v4154, %v4186
    %v4203 = vsel %vm4171, %v4155, %v4187
    %v4204 = vsel %vm4172, %v4156, %v4188
    %v4205 = vsel %vm4173, %v4157, %v4189
    %v4206 = vsel %vm4174, %v4158, %v4190
    %v4207 = vsel %vm4175, %v4159, %v4191
    %v4208 = vsel %vm4176, %v4160, %v4192
    %v4209 = vsel %vm4177, %v4161, %v4193
    %4210 = vmatprep.subr.mxu0 %v260
    %4211 = vmatpush1.msra.mxu0 %v259
    %4212 = vmatprep.subr.mxu0 %v258
    %4213 = vmatpush1.msra.mxu0 %v257
    %4214 = vmatprep.subr.mxu0 %v256
    %4215 = vmatpush1.msra.mxu0 %v255
    %4216 = vmatprep.subr.mxu0 %v254
    %4217 = vmatpush1.msra.mxu0 %v253
    %4218 = vmatprep.subr.mxu0 %v252
    %4219 = vmatpush1.msra.mxu0 %v251
    %4220 = vmatprep.subr.mxu0 %v250
    %4221 = vmatpush1.msra.mxu0 %v249
    %4222 = vmatprep.subr.mxu0 %v248
    %4223 = vmatpush1.msra.mxu0 %v247
    %4224 = vmatprep.subr.mxu0 %v246
    %4225 = vmatpush1.msra.mxu0 %v245
    %4226 = vmatprep.subr.mxu0 %v244
    %4227 = vmatpush1.msra.mxu0 %v243
    %4228 = vmatprep.subr.mxu0 %v242
    %4229 = vmatpush1.msra.mxu0 %v241
    %4230 = vmatprep.subr.mxu0 %v240
    %4231 = vmatpush1.msra.mxu0 %v239
    %4232 = vmatprep.subr.mxu0 %v238
    %4233 = vmatpush1.msra.mxu0 %v237
    %4234 = vmatprep.subr.mxu0 %v236
    %4235 = vmatpush1.msra.mxu0 %v235
    %4236 = vmatprep.subr.mxu0 %v234
    %4237 = vmatpush1.msra.mxu0 %v233
    %4238 = vmatprep.subr.mxu0 %v232
    %4239 = vmatpush1.msra.mxu0 %v231
    %4240 = vmatprep.subr.mxu0 %v230
    %4241 = vmatpush1.msra.mxu0 %v229
    %4242 = vmatprep.subr.mxu0 %v292
    %4243 = vmatpush2.msra.mxu0 %v291
    %4244 = vmatprep.subr.mxu0 %v290
    %4245 = vmatpush2.msra.mxu0 %v289
    %4246 = vmatprep.subr.mxu0 %v288
    %4247 = vmatpush2.msra.mxu0 %v287
    %4248 = vmatprep.subr.mxu0 %v286
    %4249 = vmatpush2.msra.mxu0 %v285
    %4250 = vmatprep.subr.mxu0 %v284
    %4251 = vmatpush2.msra.mxu0 %v283
    %4252 = vmatprep.subr.mxu0 %v282
    %4253 = vmatpush2.msra.mxu0 %v281
    %4254 = vmatprep.subr.mxu0 %v280
    %4255 = vmatpush2.msra.mxu0 %v279
    %4256 = vmatprep.subr.mxu0 %v278
    %4257 = vmatpush2.msra.mxu0 %v277
    %4258 = vmatprep.subr.mxu0 %v276
    %4259 = vmatpush2.msra.mxu0 %v275
    %4260 = vmatprep.subr.mxu0 %v274
    %4261 = vmatpush2.msra.mxu0 %v273
    %4262 = vmatprep.subr.mxu0 %v272
    %4263 = vmatpush2.msra.mxu0 %v271
    %4264 = vmatprep.subr.mxu0 %v270
    %4265 = vmatpush2.msra.mxu0 %v269
    %4266 = vmatprep.subr.mxu0 %v268
    %4267 = vmatpush2.msra.mxu0 %v267
    %4268 = vmatprep.subr.mxu0 %v266
    %4269 = vmatpush2.msra.mxu0 %v265
    %4270 = vmatprep.subr.mxu0 %v264
    %4271 = vmatpush2.msra.mxu0 %v263
    %4272 = vmatprep.subr.mxu0 %v262
    %4273 = vmatpush2.msra.mxu0 %v261
    %4274 = vmatprep.mubr.f32.mxu0 %v4195
    %4275 = vmatmul.mubr.f32.gmra.mxu0 %v4194
    %v4276 = vpop.f32.mrf.mxu0
    %v4277 = vadd.f32 0.0, %v4276
    %v4278 = vpop.f32.mrf.mxu0
    %v4279 = vadd.f32 0.0, %v4278
    %4280 = vmatprep.mubr.f32.mxu0 %v4197
    %4281 = vmatmul.mubr.f32.gmra.mxu0 %v4196
    %v4282 = vpop.f32.mrf.mxu0
    %v4283 = vadd.f32 0.0, %v4282
    %v4284 = vpop.f32.mrf.mxu0
    %v4285 = vadd.f32 0.0, %v4284
    %4286 = vmatprep.mubr.f32.mxu0 %v4199
    %4287 = vmatmul.mubr.f32.gmra.mxu0 %v4198
    %v4288 = vpop.f32.mrf.mxu0
    %v4289 = vadd.f32 0.0, %v4288
    %v4290 = vpop.f32.mrf.mxu0
    %v4291 = vadd.f32 0.0, %v4290
    %4292 = vmatprep.mubr.f32.mxu0 %v4201
    %4293 = vmatmul.mubr.f32.gmra.mxu0 %v4200
    %v4294 = vpop.f32.mrf.mxu0
    %v4295 = vadd.f32 0.0, %v4294
    %v4296 = vpop.f32.mrf.mxu0
    %v4297 = vadd.f32 0.0, %v4296
    %4298 = vmatprep.mubr.f32.mxu0 %v4203
    %4299 = vmatmul.mubr.f32.gmra.mxu0 %v4202
    %v4300 = vpop.f32.mrf.mxu0
    %v4301 = vadd.f32 0.0, %v4300
    %v4302 = vpop.f32.mrf.mxu0
    %v4303 = vadd.f32 0.0, %v4302
    %4304 = vmatprep.mubr.f32.mxu0 %v4205
    %4305 = vmatmul.mubr.f32.gmra.mxu0 %v4204
    %v4306 = vpop.f32.mrf.mxu0
    %v4307 = vadd.f32 0.0, %v4306
    %v4308 = vpop.f32.mrf.mxu0
    %v4309 = vadd.f32 0.0, %v4308
    %4310 = vmatprep.mubr.f32.mxu0 %v4207
    %4311 = vmatmul.mubr.f32.gmra.mxu0 %v4206
    %v4312 = vpop.f32.mrf.mxu0
    %v4313 = vadd.f32 0.0, %v4312
    %v4314 = vpop.f32.mrf.mxu0
    %v4315 = vadd.f32 0.0, %v4314
    %4316 = vmatprep.mubr.f32.mxu0 %v4209
    %4317 = vmatmul.mubr.f32.gmra.mxu0 %v4208
    %v4318 = vpop.f32.mrf.mxu0
    %v4319 = vadd.f32 0.0, %v4318
    %v4320 = vpop.f32.mrf.mxu0
    %v4321 = vadd.f32 0.0, %v4320
    %4322 = vdwg.mxu0
    %v4323 = vsub.f32 %v4194, %v4277
    %v4324 = vsub.f32 %v4195, %v4279
    %v4325 = vsub.f32 %v4196, %v4283
    %v4326 = vsub.f32 %v4197, %v4285
    %v4327 = vsub.f32 %v4198, %v4289
    %v4328 = vsub.f32 %v4199, %v4291
    %v4329 = vsub.f32 %v4200, %v4295
    %v4330 = vsub.f32 %v4201, %v4297
    %v4331 = vsub.f32 %v4202, %v4301
    %v4332 = vsub.f32 %v4203, %v4303
    %v4333 = vsub.f32 %v4204, %v4307
    %v4334 = vsub.f32 %v4205, %v4309
    %v4335 = vsub.f32 %v4206, %v4313
    %v4336 = vsub.f32 %v4207, %v4315
    %v4337 = vsub.f32 %v4208, %v4319
    %v4338 = vsub.f32 %v4209, %v4321
    %v4339 = vmul.f32 %v4323, %v4323
    %v4340 = vmul.f32 %v4324, %v4324
    %v4341 = vmul.f32 %v4325, %v4325
    %v4342 = vmul.f32 %v4326, %v4326
    %v4343 = vmul.f32 %v4327, %v4327
    %v4344 = vmul.f32 %v4328, %v4328
    %v4345 = vmul.f32 %v4329, %v4329
    %v4346 = vmul.f32 %v4330, %v4330
    %v4347 = vmul.f32 %v4331, %v4331
    %v4348 = vmul.f32 %v4332, %v4332
    %v4349 = vmul.f32 %v4333, %v4333
    %v4350 = vmul.f32 %v4334, %v4334
    %v4351 = vmul.f32 %v4335, %v4335
    %v4352 = vmul.f32 %v4336, %v4336
    %v4353 = vmul.f32 %v4337, %v4337
    %v4354 = vmul.f32 %v4338, %v4338
    %4355 = vmatprep.subr.mxu0 %v260
    %4356 = vmatpush1.msra.mxu0 %v259
    %4357 = vmatprep.subr.mxu0 %v258
    %4358 = vmatpush1.msra.mxu0 %v257
    %4359 = vmatprep.subr.mxu0 %v256
    %4360 = vmatpush1.msra.mxu0 %v255
    %4361 = vmatprep.subr.mxu0 %v254
    %4362 = vmatpush1.msra.mxu0 %v253
    %4363 = vmatprep.subr.mxu0 %v252
    %4364 = vmatpush1.msra.mxu0 %v251
    %4365 = vmatprep.subr.mxu0 %v250
    %4366 = vmatpush1.msra.mxu0 %v249
    %4367 = vmatprep.subr.mxu0 %v248
    %4368 = vmatpush1.msra.mxu0 %v247
    %4369 = vmatprep.subr.mxu0 %v246
    %4370 = vmatpush1.msra.mxu0 %v245
    %4371 = vmatprep.subr.mxu0 %v244
    %4372 = vmatpush1.msra.mxu0 %v243
    %4373 = vmatprep.subr.mxu0 %v242
    %4374 = vmatpush1.msra.mxu0 %v241
    %4375 = vmatprep.subr.mxu0 %v240
    %4376 = vmatpush1.msra.mxu0 %v239
    %4377 = vmatprep.subr.mxu0 %v238
    %4378 = vmatpush1.msra.mxu0 %v237
    %4379 = vmatprep.subr.mxu0 %v236
    %4380 = vmatpush1.msra.mxu0 %v235
    %4381 = vmatprep.subr.mxu0 %v234
    %4382 = vmatpush1.msra.mxu0 %v233
    %4383 = vmatprep.subr.mxu0 %v232
    %4384 = vmatpush1.msra.mxu0 %v231
    %4385 = vmatprep.subr.mxu0 %v230
    %4386 = vmatpush1.msra.mxu0 %v229
    %4387 = vmatprep.subr.mxu0 %v292
    %4388 = vmatpush2.msra.mxu0 %v291
    %4389 = vmatprep.subr.mxu0 %v290
    %4390 = vmatpush2.msra.mxu0 %v289
    %4391 = vmatprep.subr.mxu0 %v288
    %4392 = vmatpush2.msra.mxu0 %v287
    %4393 = vmatprep.subr.mxu0 %v286
    %4394 = vmatpush2.msra.mxu0 %v285
    %4395 = vmatprep.subr.mxu0 %v284
    %4396 = vmatpush2.msra.mxu0 %v283
    %4397 = vmatprep.subr.mxu0 %v282
    %4398 = vmatpush2.msra.mxu0 %v281
    %4399 = vmatprep.subr.mxu0 %v280
    %4400 = vmatpush2.msra.mxu0 %v279
    %4401 = vmatprep.subr.mxu0 %v278
    %4402 = vmatpush2.msra.mxu0 %v277
    %4403 = vmatprep.subr.mxu0 %v276
    %4404 = vmatpush2.msra.mxu0 %v275
    %4405 = vmatprep.subr.mxu0 %v274
    %4406 = vmatpush2.msra.mxu0 %v273
    %4407 = vmatprep.subr.mxu0 %v272
    %4408 = vmatpush2.msra.mxu0 %v271
    %4409 = vmatprep.subr.mxu0 %v270
    %4410 = vmatpush2.msra.mxu0 %v269
    %4411 = vmatprep.subr.mxu0 %v268
    %4412 = vmatpush2.msra.mxu0 %v267
    %4413 = vmatprep.subr.mxu0 %v266
    %4414 = vmatpush2.msra.mxu0 %v265
    %4415 = vmatprep.subr.mxu0 %v264
    %4416 = vmatpush2.msra.mxu0 %v263
    %4417 = vmatprep.subr.mxu0 %v262
    %4418 = vmatpush2.msra.mxu0 %v261
    %4419 = vmatprep.mubr.f32.mxu0 %v4340
    %4420 = vmatmul.mubr.f32.gmra.mxu0 %v4339
    %v4421 = vpop.f32.mrf.mxu0
    %v4422 = vadd.f32 1e-06, %v4421
    %v4423 = vpop.f32.mrf.mxu0
    %v4424 = vadd.f32 1e-06, %v4423
    %4425 = vmatprep.mubr.f32.mxu0 %v4342
    %4426 = vmatmul.mubr.f32.gmra.mxu0 %v4341
    %v4427 = vpop.f32.mrf.mxu0
    %v4428 = vadd.f32 1e-06, %v4427
    %v4429 = vpop.f32.mrf.mxu0
    %v4430 = vadd.f32 1e-06, %v4429
    %4431 = vmatprep.mubr.f32.mxu0 %v4344
    %4432 = vmatmul.mubr.f32.gmra.mxu0 %v4343
    %v4433 = vpop.f32.mrf.mxu0
    %v4434 = vadd.f32 1e-06, %v4433
    %v4435 = vpop.f32.mrf.mxu0
    %v4436 = vadd.f32 1e-06, %v4435
    %4437 = vmatprep.mubr.f32.mxu0 %v4346
    %4438 = vmatmul.mubr.f32.gmra.mxu0 %v4345
    %v4439 = vpop.f32.mrf.mxu0
    %v4440 = vadd.f32 1e-06, %v4439
    %v4441 = vpop.f32.mrf.mxu0
    %v4442 = vadd.f32 1e-06, %v4441
    %4443 = vmatprep.mubr.f32.mxu0 %v4348
    %4444 = vmatmul.mubr.f32.gmra.mxu0 %v4347
    %v4445 = vpop.f32.mrf.mxu0
    %v4446 = vadd.f32 1e-06, %v4445
    %v4447 = vpop.f32.mrf.mxu0
    %v4448 = vadd.f32 1e-06, %v4447
    %4449 = vmatprep.mubr.f32.mxu0 %v4350
    %4450 = vmatmul.mubr.f32.gmra.mxu0 %v4349
    %v4451 = vpop.f32.mrf.mxu0
    %v4452 = vadd.f32 1e-06, %v4451
    %v4453 = vpop.f32.mrf.mxu0
    %v4454 = vadd.f32 1e-06, %v4453
    %4455 = vmatprep.mubr.f32.mxu0 %v4352
    %4456 = vmatmul.mubr.f32.gmra.mxu0 %v4351
    %v4457 = vpop.f32.mrf.mxu0
    %v4458 = vadd.f32 1e-06, %v4457
    %v4459 = vpop.f32.mrf.mxu0
    %v4460 = vadd.f32 1e-06, %v4459
    %4461 = vmatprep.mubr.f32.mxu0 %v4354
    %4462 = vmatmul.mubr.f32.gmra.mxu0 %v4353
    %v4463 = vpop.f32.mrf.mxu0
    %v4464 = vadd.f32 1e-06, %v4463
    %v4465 = vpop.f32.mrf.mxu0
    %v4466 = vadd.f32 1e-06, %v4465
    %4467 = vdwg.mxu0
    %v4468 = vrsqrt.pop %v4422
    %v4469 = vrsqrt.pop %v4424
    %v4470 = vrsqrt.pop %v4428
    %v4471 = vrsqrt.pop %v4430
    %v4472 = vrsqrt.pop %v4434
    %v4473 = vrsqrt.pop %v4436
    %v4474 = vrsqrt.pop %v4440
    %v4475 = vrsqrt.pop %v4442
    %v4476 = vrsqrt.pop %v4446
    %v4477 = vrsqrt.pop %v4448
    %v4478 = vrsqrt.pop %v4452
    %v4479 = vrsqrt.pop %v4454
    %v4480 = vrsqrt.pop %v4458
    %v4481 = vrsqrt.pop %v4460
    %v4482 = vrsqrt.pop %v4464
    %v4483 = vrsqrt.pop %v4466
    %v4484 = vmul.f32 %v4323, %v4468
    %v4485 = vmul.f32 %v4324, %v4469
    %v4486 = vmul.f32 %v4325, %v4470
    %v4487 = vmul.f32 %v4326, %v4471
    %v4488 = vmul.f32 %v4327, %v4472
    %v4489 = vmul.f32 %v4328, %v4473
    %v4490 = vmul.f32 %v4329, %v4474
    %v4491 = vmul.f32 %v4330, %v4475
    %v4492 = vmul.f32 %v4331, %v4476
    %v4493 = vmul.f32 %v4332, %v4477
    %v4494 = vmul.f32 %v4333, %v4478
    %v4495 = vmul.f32 %v4334, %v4479
    %v4496 = vmul.f32 %v4335, %v4480
    %v4497 = vmul.f32 %v4336, %v4481
    %v4498 = vmul.f32 %v4337, %v4482
    %v4499 = vmul.f32 %v4338, %v4483
    %v4501 = vlaneseq
    %v4502 = vshrl.u32 %v4501, 7
    %v4503 = vsub.s32 0, %v4502
    %v4504 = vrot.slane %v296, %v4503
    %v4505 = vlaneseq
    %v4506 = vshrl.u32 %v4505, 7
    %v4507 = vsub.s32 1, %v4506
    %v4508 = vrot.slane %v296, %v4507
    %v4511 = vmul.f32 %v4484, %v4504
    %v4512 = vmul.f32 %v4485, %v4508
    %v4513 = vmul.f32 %v4486, %v4504
    %v4514 = vmul.f32 %v4487, %v4508
    %v4515 = vmul.f32 %v4488, %v4504
    %v4516 = vmul.f32 %v4489, %v4508
    %v4517 = vmul.f32 %v4490, %v4504
    %v4518 = vmul.f32 %v4491, %v4508
    %v4519 = vmul.f32 %v4492, %v4504
    %v4520 = vmul.f32 %v4493, %v4508
    %v4521 = vmul.f32 %v4494, %v4504
    %v4522 = vmul.f32 %v4495, %v4508
    %v4523 = vmul.f32 %v4496, %v4504
    %v4524 = vmul.f32 %v4497, %v4508
    %v4525 = vmul.f32 %v4498, %v4504
    %v4526 = vmul.f32 %v4499, %v4508
    %v4528 = vlaneseq
    %v4529 = vshrl.u32 %v4528, 7
    %v4530 = vsub.s32 0, %v4529
    %v4531 = vrot.slane %v297, %v4530
    %v4532 = vlaneseq
    %v4533 = vshrl.u32 %v4532, 7
    %v4534 = vsub.s32 1, %v4533
    %v4535 = vrot.slane %v297, %v4534
    %v4538 = vadd.f32 %v4511, %v4531
    %v4539 = vadd.f32 %v4512, %v4535
    %v4540 = vadd.f32 %v4513, %v4531
    %v4541 = vadd.f32 %v4514, %v4535
    %v4542 = vadd.f32 %v4515, %v4531
    %v4543 = vadd.f32 %v4516, %v4535
    %v4544 = vadd.f32 %v4517, %v4531
    %v4545 = vadd.f32 %v4518, %v4535
    %v4546 = vadd.f32 %v4519, %v4531
    %v4547 = vadd.f32 %v4520, %v4535
    %v4548 = vadd.f32 %v4521, %v4531
    %v4549 = vadd.f32 %v4522, %v4535
    %v4550 = vadd.f32 %v4523, %v4531
    %v4551 = vadd.f32 %v4524, %v4535
    %v4552 = vadd.f32 %v4525, %v4531
    %v4553 = vadd.f32 %v4526, %v4535
    %v4570 = vrot.slane %v4538, 7
    %v4571 = vrot.slane %v4539, 7
    %v4572 = vrot.slane %v4540, 7
    %v4573 = vrot.slane %v4541, 7
    %v4574 = vrot.slane %v4542, 7
    %v4575 = vrot.slane %v4543, 7
    %v4576 = vrot.slane %v4544, 7
    %v4577 = vrot.slane %v4545, 7
    %v4578 = vrot.slane %v4546, 7
    %v4579 = vrot.slane %v4547, 7
    %v4580 = vrot.slane %v4548, 7
    %v4581 = vrot.slane %v4549, 7
    %v4582 = vrot.slane %v4550, 7
    %v4583 = vrot.slane %v4551, 7
    %v4584 = vrot.slane %v4552, 7
    %v4585 = vrot.slane %v4553, 7
    %4602 = vst [vmem:[%s177] sm:$0xfe] %v4570
    %4603 = vst [vmem:[%s177 + $0x8] sm:$0xfe] %v4571
    %4604 = vst [vmem:[%s177 + $0x10] sm:$0x1] %v4570
    %4605 = vst [vmem:[%s177 + $0x18] sm:$0x1] %v4571
    %4606 = vst [vmem:[%s177 + $0x20] sm:$0xfe] %v4572
    %4607 = vst [vmem:[%s177 + $0x28] sm:$0xfe] %v4573
    %4608 = vst [vmem:[%s177 + $0x30] sm:$0x1] %v4572
    %4609 = vst [vmem:[%s177 + $0x38] sm:$0x1] %v4573
    %4610 = vst [vmem:[%s177 + $0x40] sm:$0xfe] %v4574
    %4611 = vst [vmem:[%s177 + $0x48] sm:$0xfe] %v4575
    %4612 = vst [vmem:[%s177 + $0x50] sm:$0x1] %v4574
    %4613 = vst [vmem:[%s177 + $0x58] sm:$0x1] %v4575
    %4614 = vst [vmem:[%s177 + $0x60] sm:$0xfe] %v4576
    %4615 = vst [vmem:[%s177 + $0x68] sm:$0xfe] %v4577
    %4616 = vst [vmem:[%s177 + $0x70] sm:$0x1] %v4576
    %4617 = vst [vmem:[%s177 + $0x78] sm:$0x1] %v4577
    %4618 = vst [vmem:[%s177 + $0xc0] sm:$0xfe] %v4578
    %4619 = vst [vmem:[%s177 + $0xc8] sm:$0xfe] %v4579
    %4620 = vst [vmem:[%s177 + $0xd0] sm:$0x1] %v4578
    %4621 = vst [vmem:[%s177 + $0xd8] sm:$0x1] %v4579
    %4622 = vst [vmem:[%s177 + $0xe0] sm:$0xfe] %v4580
    %4623 = vst [vmem:[%s177 + $0xe8] sm:$0xfe] %v4581
    %4624 = vst [vmem:[%s177 + $0xf0] sm:$0x1] %v4580
    %4625 = vst [vmem:[%s177 + $0xf8] sm:$0x1] %v4581
    %4626 = vst [vmem:[%s177 + $0x100] sm:$0xfe] %v4582
    %4627 = vst [vmem:[%s177 + $0x108] sm:$0xfe] %v4583
    %4628 = vst [vmem:[%s177 + $0x110] sm:$0x1] %v4582
    %4629 = vst [vmem:[%s177 + $0x118] sm:$0x1] %v4583
    %4630 = vst [vmem:[%s177 + $0x120] sm:$0xfe] %v4584
    %4631 = vst [vmem:[%s177 + $0x128] sm:$0xfe] %v4585
    %4632 = vst [vmem:[%s177 + $0x130] sm:$0x1] %v4584
    %4633 = vst [vmem:[%s177 + $0x138] sm:$0x1] %v4585
    %v4634 = vld [vmem:[#allocation2] sm:$0xff]
    %v4635 = vld [vmem:[#allocation2 + $0x8] sm:$0xff]
    %v4636 = vld [vmem:[#allocation2 + $0x20] sm:$0xff]
    %v4637 = vld [vmem:[#allocation2 + $0x28] sm:$0xff]
    %v4638 = vld [vmem:[#allocation2 + $0x40] sm:$0xff]
    %v4639 = vld [vmem:[#allocation2 + $0x48] sm:$0xff]
    %v4640 = vld [vmem:[#allocation2 + $0x60] sm:$0xff]
    %v4641 = vld [vmem:[#allocation2 + $0x68] sm:$0xff]
    %v4642 = vld [vmem:[#allocation2 + $0xc0] sm:$0xff]
    %v4643 = vld [vmem:[#allocation2 + $0xc8] sm:$0xff]
    %v4644 = vld [vmem:[#allocation2 + $0xe0] sm:$0xff]
    %v4645 = vld [vmem:[#allocation2 + $0xe8] sm:$0xff]
    %v4646 = vld [vmem:[#allocation2 + $0x100] sm:$0xff]
    %v4647 = vld [vmem:[#allocation2 + $0x108] sm:$0xff]
    %v4648 = vld [vmem:[#allocation2 + $0x120] sm:$0xff]
    %v4649 = vld [vmem:[#allocation2 + $0x128] sm:$0xff]
    %v4650 = vpack.c.bf16 %v4636, %v4634
    %v4651 = vpack.c.bf16 %v4637, %v4635
    %v4652 = vpack.c.bf16 %v4640, %v4638
    %v4653 = vpack.c.bf16 %v4641, %v4639
    %v4654 = vpack.c.bf16 %v4644, %v4642
    %v4655 = vpack.c.bf16 %v4645, %v4643
    %v4656 = vpack.c.bf16 %v4648, %v4646
    %v4657 = vpack.c.bf16 %v4649, %v4647
    %v4658 = vld [vmem:[#allocation17] sm:$0xff]
    %v4659 = vld [vmem:[#allocation17 + $0x8] sm:$0xff]
    %v4660 = vld [vmem:[#allocation17 + $0x10] sm:$0xff]
    %v4661 = vld [vmem:[#allocation17 + $0x18] sm:$0xff]
    %v4662 = vld [vmem:[#allocation17 + $0x20] sm:$0xff]
    %v4663 = vld [vmem:[#allocation17 + $0x28] sm:$0xff]
    %v4664 = vld [vmem:[#allocation17 + $0x30] sm:$0xff]
    %v4665 = vld [vmem:[#allocation17 + $0x38] sm:$0xff]
    %v4666 = vld [vmem:[#allocation17 + $0x40] sm:$0xff]
    %v4667 = vld [vmem:[#allocation17 + $0x48] sm:$0xff]
    %v4668 = vld [vmem:[#allocation17 + $0x50] sm:$0xff]
    %v4669 = vld [vmem:[#allocation17 + $0x58] sm:$0xff]
    %v4670 = vld [vmem:[#allocation17 + $0x60] sm:$0xff]
    %v4671 = vld [vmem:[#allocation17 + $0x68] sm:$0xff]
    %v4672 = vld [vmem:[#allocation17 + $0x70] sm:$0xff]
    %v4673 = vld [vmem:[#allocation17 + $0x78] sm:$0xff]
    %v4674 = vld [vmem:[#allocation17 + $0x80] sm:$0xff]
    %v4675 = vld [vmem:[#allocation17 + $0x88] sm:$0xff]
    %v4676 = vld [vmem:[#allocation17 + $0x90] sm:$0xff]
    %v4677 = vld [vmem:[#allocation17 + $0x98] sm:$0xff]
    %v4678 = vld [vmem:[#allocation17 + $0xa0] sm:$0xff]
    %v4679 = vld [vmem:[#allocation17 + $0xa8] sm:$0xff]
    %v4680 = vld [vmem:[#allocation17 + $0xb0] sm:$0xff]
    %v4681 = vld [vmem:[#allocation17 + $0xb8] sm:$0xff]
    %v4682 = vld [vmem:[#allocation17 + $0xc0] sm:$0xff]
    %v4683 = vld [vmem:[#allocation17 + $0xc8] sm:$0xff]
    %v4684 = vld [vmem:[#allocation17 + $0xd0] sm:$0xff]
    %v4685 = vld [vmem:[#allocation17 + $0xd8] sm:$0xff]
    %v4686 = vld [vmem:[#allocation17 + $0xe0] sm:$0xff]
    %v4687 = vld [vmem:[#allocation17 + $0xe8] sm:$0xff]
    %v4688 = vld [vmem:[#allocation17 + $0xf0] sm:$0xff]
    %v4689 = vld [vmem:[#allocation17 + $0xf8] sm:$0xff]
    %v4690 = vld [vmem:[#allocation2] sm:$0xfe]
    %v4691 = vld [vmem:[#allocation2 + $0x8] sm:$0xfe]
    %v4692 = vld [vmem:[#allocation2 + $0x10] sm:$0x1]
    %v4693 = vld [vmem:[#allocation2 + $0x18] sm:$0x1]
    %v4694 = vld [vmem:[#allocation2 + $0x20] sm:$0xfe]
    %v4695 = vld [vmem:[#allocation2 + $0x28] sm:$0xfe]
    %v4696 = vld [vmem:[#allocation2 + $0x30] sm:$0x1]
    %v4697 = vld [vmem:[#allocation2 + $0x38] sm:$0x1]
    %v4698 = vld [vmem:[#allocation2 + $0x40] sm:$0xfe]
    %v4699 = vld [vmem:[#allocation2 + $0x48] sm:$0xfe]
    %v4700 = vld [vmem:[#allocation2 + $0x50] sm:$0x1]
    %v4701 = vld [vmem:[#allocation2 + $0x58] sm:$0x1]
    %v4702 = vld [vmem:[#allocation2 + $0x60] sm:$0xfe]
    %v4703 = vld [vmem:[#allocation2 + $0x68] sm:$0xfe]
    %v4704 = vld [vmem:[#allocation2 + $0x70] sm:$0x1]
    %v4705 = vld [vmem:[#allocation2 + $0x78] sm:$0x1]
    %v4706 = vld [vmem:[#allocation2 + $0xc0] sm:$0xfe]
    %v4707 = vld [vmem:[#allocation2 + $0xc8] sm:$0xfe]
    %v4708 = vld [vmem:[#allocation2 + $0xd0] sm:$0x1]
    %v4709 = vld [vmem:[#allocation2 + $0xd8] sm:$0x1]
    %v4710 = vld [vmem:[#allocation2 + $0xe0] sm:$0xfe]
    %v4711 = vld [vmem:[#allocation2 + $0xe8] sm:$0xfe]
    %v4712 = vld [vmem:[#allocation2 + $0xf0] sm:$0x1]
    %v4713 = vld [vmem:[#allocation2 + $0xf8] sm:$0x1]
    %v4714 = vld [vmem:[#allocation2 + $0x100] sm:$0xfe]
    %v4715 = vld [vmem:[#allocation2 + $0x108] sm:$0xfe]
    %v4716 = vld [vmem:[#allocation2 + $0x110] sm:$0x1]
    %v4717 = vld [vmem:[#allocation2 + $0x118] sm:$0x1]
    %v4718 = vld [vmem:[#allocation2 + $0x120] sm:$0xfe]
    %v4719 = vld [vmem:[#allocation2 + $0x128] sm:$0xfe]
    %v4720 = vld [vmem:[#allocation2 + $0x130] sm:$0x1]
    %v4721 = vld [vmem:[#allocation2 + $0x138] sm:$0x1]
    %v4754 = vrot.slane %v4690, 1
    %v4755 = vrot.slane %v4692, 1
    %v4756 = vsel %vm859, %v4754, %v4755
    %v4757 = vrot.slane %v4691, 1
    %v4758 = vrot.slane %v4693, 1
    %v4759 = vsel %vm859, %v4757, %v4758
    %v4760 = vrot.slane %v4694, 1
    %v4761 = vrot.slane %v4696, 1
    %v4762 = vsel %vm859, %v4760, %v4761
    %v4763 = vrot.slane %v4695, 1
    %v4764 = vrot.slane %v4697, 1
    %v4765 = vsel %vm859, %v4763, %v4764
    %v4766 = vrot.slane %v4698, 1
    %v4767 = vrot.slane %v4700, 1
    %v4768 = vsel %vm859, %v4766, %v4767
    %v4769 = vrot.slane %v4699, 1
    %v4770 = vrot.slane %v4701, 1
    %v4771 = vsel %vm859, %v4769, %v4770
    %v4772 = vrot.slane %v4702, 1
    %v4773 = vrot.slane %v4704, 1
    %v4774 = vsel %vm859, %v4772, %v4773
    %v4775 = vrot.slane %v4703, 1
    %v4776 = vrot.slane %v4705, 1
    %v4777 = vsel %vm859, %v4775, %v4776
    %v4778 = vrot.slane %v4706, 1
    %v4779 = vrot.slane %v4708, 1
    %v4780 = vsel %vm859, %v4778, %v4779
    %v4781 = vrot.slane %v4707, 1
    %v4782 = vrot.slane %v4709, 1
    %v4783 = vsel %vm859, %v4781, %v4782
    %v4784 = vrot.slane %v4710, 1
    %v4785 = vrot.slane %v4712, 1
    %v4786 = vsel %vm859, %v4784, %v4785
    %v4787 = vrot.slane %v4711, 1
    %v4788 = vrot.slane %v4713, 1
    %v4789 = vsel %vm859, %v4787, %v4788
    %v4790 = vrot.slane %v4714, 1
    %v4791 = vrot.slane %v4716, 1
    %v4792 = vsel %vm859, %v4790, %v4791
    %v4793 = vrot.slane %v4715, 1
    %v4794 = vrot.slane %v4717, 1
    %v4795 = vsel %vm859, %v4793, %v4794
    %v4796 = vrot.slane %v4718, 1
    %v4797 = vrot.slane %v4720, 1
    %v4798 = vsel %vm859, %v4796, %v4797
    %v4799 = vrot.slane %v4719, 1
    %v4800 = vrot.slane %v4721, 1
    %v4801 = vsel %vm859, %v4799, %v4800
    %v4818 = vpack.c.bf16 %v4762, %v4756
    %v4819 = vpack.c.bf16 %v4765, %v4759
    %v4820 = vpack.c.bf16 %v4774, %v4768
    %v4821 = vpack.c.bf16 %v4777, %v4771
    %v4822 = vpack.c.bf16 %v4786, %v4780
    %v4823 = vpack.c.bf16 %v4789, %v4783
    %v4824 = vpack.c.bf16 %v4798, %v4792
    %v4825 = vpack.c.bf16 %v4801, %v4795
    %s4826 = scalar_lea.vmem [#allocation17], 256
    %v4827 = vld [vmem:[%s4826] sm:$0xff]
    %v4828 = vld [vmem:[%s4826 + $0x8] sm:$0xff]
    %v4829 = vld [vmem:[%s4826 + $0x10] sm:$0xff]
    %v4830 = vld [vmem:[%s4826 + $0x18] sm:$0xff]
    %v4831 = vld [vmem:[%s4826 + $0x20] sm:$0xff]
    %v4832 = vld [vmem:[%s4826 + $0x28] sm:$0xff]
    %v4833 = vld [vmem:[%s4826 + $0x30] sm:$0xff]
    %v4834 = vld [vmem:[%s4826 + $0x38] sm:$0xff]
    %v4835 = vld [vmem:[%s4826 + $0x40] sm:$0xff]
    %v4836 = vld [vmem:[%s4826 + $0x48] sm:$0xff]
    %v4837 = vld [vmem:[%s4826 + $0x50] sm:$0xff]
    %v4838 = vld [vmem:[%s4826 + $0x58] sm:$0xff]
    %v4839 = vld [vmem:[%s4826 + $0x60] sm:$0xff]
    %v4840 = vld [vmem:[%s4826 + $0x68] sm:$0xff]
    %v4841 = vld [vmem:[%s4826 + $0x70] sm:$0xff]
    %v4842 = vld [vmem:[%s4826 + $0x78] sm:$0xff]
    %v4843 = vld [vmem:[%s4826 + $0x80] sm:$0xff]
    %v4844 = vld [vmem:[%s4826 + $0x88] sm:$0xff]
    %v4845 = vld [vmem:[%s4826 + $0x90] sm:$0xff]
    %v4846 = vld [vmem:[%s4826 + $0x98] sm:$0xff]
    %v4847 = vld [vmem:[%s4826 + $0xa0] sm:$0xff]
    %v4848 = vld [vmem:[%s4826 + $0xa8] sm:$0xff]
    %v4849 = vld [vmem:[%s4826 + $0xb0] sm:$0xff]
    %v4850 = vld [vmem:[%s4826 + $0xb8] sm:$0xff]
    %v4851 = vld [vmem:[%s4826 + $0xc0] sm:$0xff]
    %v4852 = vld [vmem:[%s4826 + $0xc8] sm:$0xff]
    %v4853 = vld [vmem:[%s4826 + $0xd0] sm:$0xff]
    %v4854 = vld [vmem:[%s4826 + $0xd8] sm:$0xff]
    %v4855 = vld [vmem:[%s4826 + $0xe0] sm:$0xff]
    %v4856 = vld [vmem:[%s4826 + $0xe8] sm:$0xff]
    %v4857 = vld [vmem:[%s4826 + $0xf0] sm:$0xff]
    %v4858 = vld [vmem:[%s4826 + $0xf8] sm:$0xff]
    %v4891 = vunpack.c.l.b16 %v4827
    %v4892 = vunpack.c.h.b16 %v4827
    %v4893 = vunpack.c.l.b16 %v4828
    %v4894 = vunpack.c.h.b16 %v4828
    %v4895 = vunpack.c.l.b16 %v4829
    %v4896 = vunpack.c.h.b16 %v4829
    %v4897 = vunpack.c.l.b16 %v4830
    %v4898 = vunpack.c.h.b16 %v4830
    %v4899 = vunpack.c.l.b16 %v4831
    %v4900 = vunpack.c.h.b16 %v4831
    %v4901 = vunpack.c.l.b16 %v4832
    %v4902 = vunpack.c.h.b16 %v4832
    %v4903 = vunpack.c.l.b16 %v4833
    %v4904 = vunpack.c.h.b16 %v4833
    %v4905 = vunpack.c.l.b16 %v4834
    %v4906 = vunpack.c.h.b16 %v4834
    %v4907 = vunpack.c.l.b16 %v4835
    %v4908 = vunpack.c.h.b16 %v4835
    %v4909 = vunpack.c.l.b16 %v4836
    %v4910 = vunpack.c.h.b16 %v4836
    %v4911 = vunpack.c.l.b16 %v4837
    %v4912 = vunpack.c.h.b16 %v4837
    %v4913 = vunpack.c.l.b16 %v4838
    %v4914 = vunpack.c.h.b16 %v4838
    %v4915 = vunpack.c.l.b16 %v4839
    %v4916 = vunpack.c.h.b16 %v4839
    %v4917 = vunpack.c.l.b16 %v4840
    %v4918 = vunpack.c.h.b16 %v4840
    %v4919 = vunpack.c.l.b16 %v4841
    %v4920 = vunpack.c.h.b16 %v4841
    %v4921 = vunpack.c.l.b16 %v4842
    %v4922 = vunpack.c.h.b16 %v4842
    %v4923 = vunpack.c.l.b16 %v4843
    %v4924 = vunpack.c.h.b16 %v4843
    %v4925 = vunpack.c.l.b16 %v4844
    %v4926 = vunpack.c.h.b16 %v4844
    %v4927 = vunpack.c.l.b16 %v4845
    %v4928 = vunpack.c.h.b16 %v4845
    %v4929 = vunpack.c.l.b16 %v4846
    %v4930 = vunpack.c.h.b16 %v4846
    %v4931 = vunpack.c.l.b16 %v4847
    %v4932 = vunpack.c.h.b16 %v4847
    %v4933 = vunpack.c.l.b16 %v4848
    %v4934 = vunpack.c.h.b16 %v4848
    %v4935 = vunpack.c.l.b16 %v4849
    %v4936 = vunpack.c.h.b16 %v4849
    %v4937 = vunpack.c.l.b16 %v4850
    %v4938 = vunpack.c.h.b16 %v4850
    %v4939 = vunpack.c.l.b16 %v4851
    %v4940 = vunpack.c.h.b16 %v4851
    %v4941 = vunpack.c.l.b16 %v4852
    %v4942 = vunpack.c.h.b16 %v4852
    %v4943 = vunpack.c.l.b16 %v4853
    %v4944 = vunpack.c.h.b16 %v4853
    %v4945 = vunpack.c.l.b16 %v4854
    %v4946 = vunpack.c.h.b16 %v4854
    %v4947 = vunpack.c.l.b16 %v4855
    %v4948 = vunpack.c.h.b16 %v4855
    %v4949 = vunpack.c.l.b16 %v4856
    %v4950 = vunpack.c.h.b16 %v4856
    %v4951 = vunpack.c.l.b16 %v4857
    %v4952 = vunpack.c.h.b16 %v4857
    %v4953 = vunpack.c.l.b16 %v4858
    %v4954 = vunpack.c.h.b16 %v4858
    %v4955 = vpack.c.b16 %v4893, %v4891
    %v4956 = vpack.c.b16 %v4894, %v4892
    %v4957 = vpack.c.b16 %v4897, %v4895
    %v4958 = vpack.c.b16 %v4898, %v4896
    %v4959 = vpack.c.b16 %v4901, %v4899
    %v4960 = vpack.c.b16 %v4902, %v4900
    %v4961 = vpack.c.b16 %v4905, %v4903
    %v4962 = vpack.c.b16 %v4906, %v4904
    %v4963 = vpack.c.b16 %v4909, %v4907
    %v4964 = vpack.c.b16 %v4910, %v4908
    %v4965 = vpack.c.b16 %v4913, %v4911
    %v4966 = vpack.c.b16 %v4914, %v4912
    %v4967 = vpack.c.b16 %v4917, %v4915
    %v4968 = vpack.c.b16 %v4918, %v4916
    %v4969 = vpack.c.b16 %v4921, %v4919
    %v4970 = vpack.c.b16 %v4922, %v4920
    %v4971 = vpack.c.b16 %v4925, %v4923
    %v4972 = vpack.c.b16 %v4926, %v4924
    %v4973 = vpack.c.b16 %v4929, %v4927
    %v4974 = vpack.c.b16 %v4930, %v4928
    %v4975 = vpack.c.b16 %v4933, %v4931
    %v4976 = vpack.c.b16 %v4934, %v4932
    %v4977 = vpack.c.b16 %v4937, %v4935
    %v4978 = vpack.c.b16 %v4938, %v4936
    %v4979 = vpack.c.b16 %v4941, %v4939
    %v4980 = vpack.c.b16 %v4942, %v4940
    %v4981 = vpack.c.b16 %v4945, %v4943
    %v4982 = vpack.c.b16 %v4946, %v4944
    %v4983 = vpack.c.b16 %v4949, %v4947
    %v4984 = vpack.c.b16 %v4950, %v4948
    %v4985 = vpack.c.b16 %v4953, %v4951
    %v4986 = vpack.c.b16 %v4954, %v4952
    %5019 = vmatprep.subr.bf16.mxu0 %v4970
    %5020 = vmatpush1.bf16.msra.mxu0 %v4969
    %5021 = vmatprep.subr.bf16.mxu0 %v4968
    %5022 = vmatpush1.bf16.msra.mxu0 %v4967
    %5023 = vmatprep.subr.bf16.mxu0 %v4966
    %5024 = vmatpush1.bf16.msra.mxu0 %v4965
    %5025 = vmatprep.subr.bf16.mxu0 %v4964
    %5026 = vmatpush1.bf16.msra.mxu0 %v4963
    %5027 = vmatprep.subr.bf16.mxu0 %v4962
    %5028 = vmatpush1.bf16.msra.mxu0 %v4961
    %5029 = vmatprep.subr.bf16.mxu0 %v4960
    %5030 = vmatpush1.bf16.msra.mxu0 %v4959
    %5031 = vmatprep.subr.bf16.mxu0 %v4958
    %5032 = vmatpush1.bf16.msra.mxu0 %v4957
    %5033 = vmatprep.subr.bf16.mxu0 %v4956
    %5034 = vmatpush1.bf16.msra.mxu0 %v4955
    %5035 = vmatprep.subr.bf16.mxu0 %v4986
    %5036 = vmatpush2.bf16.msra.mxu0 %v4985
    %5037 = vmatprep.subr.bf16.mxu0 %v4984
    %5038 = vmatpush2.bf16.msra.mxu0 %v4983
    %5039 = vmatprep.subr.bf16.mxu0 %v4982
    %5040 = vmatpush2.bf16.msra.mxu0 %v4981
    %5041 = vmatprep.subr.bf16.mxu0 %v4980
    %5042 = vmatpush2.bf16.msra.mxu0 %v4979
    %5043 = vmatprep.subr.bf16.mxu0 %v4978
    %5044 = vmatpush2.bf16.msra.mxu0 %v4977
    %5045 = vmatprep.subr.bf16.mxu0 %v4976
    %5046 = vmatpush2.bf16.msra.mxu0 %v4975
    %5047 = vmatprep.subr.bf16.mxu0 %v4974
    %5048 = vmatpush2.bf16.msra.mxu0 %v4973
    %5049 = vmatprep.subr.bf16.mxu0 %v4972
    %5050 = vmatpush2.bf16.msra.mxu0 %v4971
    %5051 = vmatprep.mubr.bf16.mxu0 %v4819
    %5052 = vmatmul.mubr.bf16.gmra.mxu0 %v4818
    %v5053 = vpop.f32.mrf.mxu0
    %v5054 = vadd.f32 0.0, %v5053
    %v5055 = vpop.f32.mrf.mxu0
    %v5056 = vadd.f32 0.0, %v5055
    %v5057 = vpop.f32.mrf.mxu0
    %v5058 = vadd.f32 0.0, %v5057
    %v5059 = vpop.f32.mrf.mxu0
    %v5060 = vadd.f32 0.0, %v5059
    %5061 = vmatprep.mubr.bf16.mxu0 %v4821
    %5062 = vmatmul.mubr.bf16.gmra.mxu0 %v4820
    %v5063 = vpop.f32.mrf.mxu0
    %v5064 = vadd.f32 0.0, %v5063
    %v5065 = vpop.f32.mrf.mxu0
    %v5066 = vadd.f32 0.0, %v5065
    %v5067 = vpop.f32.mrf.mxu0
    %v5068 = vadd.f32 0.0, %v5067
    %v5069 = vpop.f32.mrf.mxu0
    %v5070 = vadd.f32 0.0, %v5069
    %5071 = vmatprep.mubr.bf16.mxu0 %v4823
    %5072 = vmatmul.mubr.bf16.gmra.mxu0 %v4822
    %v5073 = vpop.f32.mrf.mxu0
    %v5074 = vadd.f32 0.0, %v5073
    %v5075 = vpop.f32.mrf.mxu0
    %v5076 = vadd.f32 0.0, %v5075
    %v5077 = vpop.f32.mrf.mxu0
    %v5078 = vadd.f32 0.0, %v5077
    %v5079 = vpop.f32.mrf.mxu0
    %v5080 = vadd.f32 0.0, %v5079
    %5081 = vmatprep.mubr.bf16.mxu0 %v4825
    %5082 = vmatmul.mubr.bf16.gmra.mxu0 %v4824
    %v5083 = vpop.f32.mrf.mxu0
    %v5084 = vadd.f32 0.0, %v5083
    %v5085 = vpop.f32.mrf.mxu0
    %v5086 = vadd.f32 0.0, %v5085
    %v5087 = vpop.f32.mrf.mxu0
    %v5088 = vadd.f32 0.0, %v5087
    %v5089 = vpop.f32.mrf.mxu0
    %v5090 = vadd.f32 0.0, %v5089
    %5091 = vdwg.mxu0
    %v5124 = vunpack.c.l.b16 %v4658
    %v5125 = vunpack.c.h.b16 %v4658
    %v5126 = vunpack.c.l.b16 %v4659
    %v5127 = vunpack.c.h.b16 %v4659
    %v5128 = vunpack.c.l.b16 %v4660
    %v5129 = vunpack.c.h.b16 %v4660
    %v5130 = vunpack.c.l.b16 %v4661
    %v5131 = vunpack.c.h.b16 %v4661
    %v5132 = vunpack.c.l.b16 %v4662
    %v5133 = vunpack.c.h.b16 %v4662
    %v5134 = vunpack.c.l.b16 %v4663
    %v5135 = vunpack.c.h.b16 %v4663
    %v5136 = vunpack.c.l.b16 %v4664
    %v5137 = vunpack.c.h.b16 %v4664
    %v5138 = vunpack.c.l.b16 %v4665
    %v5139 = vunpack.c.h.b16 %v4665
    %v5140 = vunpack.c.l.b16 %v4666
    %v5141 = vunpack.c.h.b16 %v4666
    %v5142 = vunpack.c.l.b16 %v4667
    %v5143 = vunpack.c.h.b16 %v4667
    %v5144 = vunpack.c.l.b16 %v4668
    %v5145 = vunpack.c.h.b16 %v4668
    %v5146 = vunpack.c.l.b16 %v4669
    %v5147 = vunpack.c.h.b16 %v4669
    %v5148 = vunpack.c.l.b16 %v4670
    %v5149 = vunpack.c.h.b16 %v4670
    %v5150 = vunpack.c.l.b16 %v4671
    %v5151 = vunpack.c.h.b16 %v4671
    %v5152 = vunpack.c.l.b16 %v4672
    %v5153 = vunpack.c.h.b16 %v4672
    %v5154 = vunpack.c.l.b16 %v4673
    %v5155 = vunpack.c.h.b16 %v4673
    %v5156 = vunpack.c.l.b16 %v4674
    %v5157 = vunpack.c.h.b16 %v4674
    %v5158 = vunpack.c.l.b16 %v4675
    %v5159 = vunpack.c.h.b16 %v4675
    %v5160 = vunpack.c.l.b16 %v4676
    %v5161 = vunpack.c.h.b16 %v4676
    %v5162 = vunpack.c.l.b16 %v4677
    %v5163 = vunpack.c.h.b16 %v4677
    %v5164 = vunpack.c.l.b16 %v4678
    %v5165 = vunpack.c.h.b16 %v4678
    %v5166 = vunpack.c.l.b16 %v4679
    %v5167 = vunpack.c.h.b16 %v4679
    %v5168 = vunpack.c.l.b16 %v4680
    %v5169 = vunpack.c.h.b16 %v4680
    %v5170 = vunpack.c.l.b16 %v4681
    %v5171 = vunpack.c.h.b16 %v4681
    %v5172 = vunpack.c.l.b16 %v4682
    %v5173 = vunpack.c.h.b16 %v4682
    %v5174 = vunpack.c.l.b16 %v4683
    %v5175 = vunpack.c.h.b16 %v4683
    %v5176 = vunpack.c.l.b16 %v4684
    %v5177 = vunpack.c.h.b16 %v4684
    %v5178 = vunpack.c.l.b16 %v4685
    %v5179 = vunpack.c.h.b16 %v4685
    %v5180 = vunpack.c.l.b16 %v4686
    %v5181 = vunpack.c.h.b16 %v4686
    %v5182 = vunpack.c.l.b16 %v4687
    %v5183 = vunpack.c.h.b16 %v4687
    %v5184 = vunpack.c.l.b16 %v4688
    %v5185 = vunpack.c.h.b16 %v4688
    %v5186 = vunpack.c.l.b16 %v4689
    %v5187 = vunpack.c.h.b16 %v4689
    %v5188 = vpack.c.b16 %v5126, %v5124
    %v5189 = vpack.c.b16 %v5127, %v5125
    %v5190 = vpack.c.b16 %v5130, %v5128
    %v5191 = vpack.c.b16 %v5131, %v5129
    %v5192 = vpack.c.b16 %v5134, %v5132
    %v5193 = vpack.c.b16 %v5135, %v5133
    %v5194 = vpack.c.b16 %v5138, %v5136
    %v5195 = vpack.c.b16 %v5139, %v5137
    %v5196 = vpack.c.b16 %v5142, %v5140
    %v5197 = vpack.c.b16 %v5143, %v5141
    %v5198 = vpack.c.b16 %v5146, %v5144
    %v5199 = vpack.c.b16 %v5147, %v5145
    %v5200 = vpack.c.b16 %v5150, %v5148
    %v5201 = vpack.c.b16 %v5151, %v5149
    %v5202 = vpack.c.b16 %v5154, %v5152
    %v5203 = vpack.c.b16 %v5155, %v5153
    %v5204 = vpack.c.b16 %v5158, %v5156
    %v5205 = vpack.c.b16 %v5159, %v5157
    %v5206 = vpack.c.b16 %v5162, %v5160
    %v5207 = vpack.c.b16 %v5163, %v5161
    %v5208 = vpack.c.b16 %v5166, %v5164
    %v5209 = vpack.c.b16 %v5167, %v5165
    %v5210 = vpack.c.b16 %v5170, %v5168
    %v5211 = vpack.c.b16 %v5171, %v5169
    %v5212 = vpack.c.b16 %v5174, %v5172
    %v5213 = vpack.c.b16 %v5175, %v5173
    %v5214 = vpack.c.b16 %v5178, %v5176
    %v5215 = vpack.c.b16 %v5179, %v5177
    %v5216 = vpack.c.b16 %v5182, %v5180
    %v5217 = vpack.c.b16 %v5183, %v5181
    %v5218 = vpack.c.b16 %v5186, %v5184
    %v5219 = vpack.c.b16 %v5187, %v5185
    %5252 = vmatprep.subr.bf16.mxu0 %v5203
    %5253 = vmatpush1.bf16.msra.mxu0 %v5202
    %5254 = vmatprep.subr.bf16.mxu0 %v5201
    %5255 = vmatpush1.bf16.msra.mxu0 %v5200
    %5256 = vmatprep.subr.bf16.mxu0 %v5199
    %5257 = vmatpush1.bf16.msra.mxu0 %v5198
    %5258 = vmatprep.subr.bf16.mxu0 %v5197
    %5259 = vmatpush1.bf16.msra.mxu0 %v5196
    %5260 = vmatprep.subr.bf16.mxu0 %v5195
    %5261 = vmatpush1.bf16.msra.mxu0 %v5194
    %5262 = vmatprep.subr.bf16.mxu0 %v5193
    %5263 = vmatpush1.bf16.msra.mxu0 %v5192
    %5264 = vmatprep.subr.bf16.mxu0 %v5191
    %5265 = vmatpush1.bf16.msra.mxu0 %v5190
    %5266 = vmatprep.subr.bf16.mxu0 %v5189
    %5267 = vmatpush1.bf16.msra.mxu0 %v5188
    %5268 = vmatprep.subr.bf16.mxu0 %v5219
    %5269 = vmatpush2.bf16.msra.mxu0 %v5218
    %5270 = vmatprep.subr.bf16.mxu0 %v5217
    %5271 = vmatpush2.bf16.msra.mxu0 %v5216
    %5272 = vmatprep.subr.bf16.mxu0 %v5215
    %5273 = vmatpush2.bf16.msra.mxu0 %v5214
    %5274 = vmatprep.subr.bf16.mxu0 %v5213
    %5275 = vmatpush2.bf16.msra.mxu0 %v5212
    %5276 = vmatprep.subr.bf16.mxu0 %v5211
    %5277 = vmatpush2.bf16.msra.mxu0 %v5210
    %5278 = vmatprep.subr.bf16.mxu0 %v5209
    %5279 = vmatpush2.bf16.msra.mxu0 %v5208
    %5280 = vmatprep.subr.bf16.mxu0 %v5207
    %5281 = vmatpush2.bf16.msra.mxu0 %v5206
    %5282 = vmatprep.subr.bf16.mxu0 %v5205
    %5283 = vmatpush2.bf16.msra.mxu0 %v5204
    %5284 = vmatprep.mubr.bf16.mxu0 %v4651
    %5285 = vmatmul.mubr.bf16.gmra.mxu0 %v4650
    %v5286 = vpop.f32.mrf.mxu0
    %v5287 = vadd.f32 %v5054, %v5286
    %v5288 = vpop.f32.mrf.mxu0
    %v5289 = vadd.f32 %v5056, %v5288
    %v5290 = vpop.f32.mrf.mxu0
    %v5291 = vadd.f32 %v5058, %v5290
    %v5292 = vpop.f32.mrf.mxu0
    %v5293 = vadd.f32 %v5060, %v5292
    %5294 = vmatprep.mubr.bf16.mxu0 %v4653
    %5295 = vmatmul.mubr.bf16.gmra.mxu0 %v4652
    %v5296 = vpop.f32.mrf.mxu0
    %v5297 = vadd.f32 %v5064, %v5296
    %v5298 = vpop.f32.mrf.mxu0
    %v5299 = vadd.f32 %v5066, %v5298
    %v5300 = vpop.f32.mrf.mxu0
    %v5301 = vadd.f32 %v5068, %v5300
    %v5302 = vpop.f32.mrf.mxu0
    %v5303 = vadd.f32 %v5070, %v5302
    %5304 = vmatprep.mubr.bf16.mxu0 %v4655
    %5305 = vmatmul.mubr.bf16.gmra.mxu0 %v4654
    %v5306 = vpop.f32.mrf.mxu0
    %v5307 = vadd.f32 %v5074, %v5306
    %v5308 = vpop.f32.mrf.mxu0
    %v5309 = vadd.f32 %v5076, %v5308
    %v5310 = vpop.f32.mrf.mxu0
    %v5311 = vadd.f32 %v5078, %v5310
    %v5312 = vpop.f32.mrf.mxu0
    %v5313 = vadd.f32 %v5080, %v5312
    %5314 = vmatprep.mubr.bf16.mxu0 %v4657
    %5315 = vmatmul.mubr.bf16.gmra.mxu0 %v4656
    %v5316 = vpop.f32.mrf.mxu0
    %v5317 = vadd.f32 %v5084, %v5316
    %v5318 = vpop.f32.mrf.mxu0
    %v5319 = vadd.f32 %v5086, %v5318
    %v5320 = vpop.f32.mrf.mxu0
    %v5321 = vadd.f32 %v5088, %v5320
    %v5322 = vpop.f32.mrf.mxu0
    %v5323 = vadd.f32 %v5090, %v5322
    %5324 = vdwg.mxu0
    %v5325 = vld [vmem:[#allocation2] sm:$0xfc]
    %v5326 = vld [vmem:[#allocation2 + $0x8] sm:$0xfc]
    %v5327 = vld [vmem:[#allocation2 + $0x10] sm:$0x3]
    %v5328 = vld [vmem:[#allocation2 + $0x18] sm:$0x3]
    %v5329 = vld [vmem:[#allocation2 + $0x20] sm:$0xfc]
    %v5330 = vld [vmem:[#allocation2 + $0x28] sm:$0xfc]
    %v5331 = vld [vmem:[#allocation2 + $0x30] sm:$0x3]
    %v5332 = vld [vmem:[#allocation2 + $0x38] sm:$0x3]
    %v5333 = vld [vmem:[#allocation2 + $0x40] sm:$0xfc]
    %v5334 = vld [vmem:[#allocation2 + $0x48] sm:$0xfc]
    %v5335 = vld [vmem:[#allocation2 + $0x50] sm:$0x3]
    %v5336 = vld [vmem:[#allocation2 + $0x58] sm:$0x3]
    %v5337 = vld [vmem:[#allocation2 + $0x60] sm:$0xfc]
    %v5338 = vld [vmem:[#allocation2 + $0x68] sm:$0xfc]
    %v5339 = vld [vmem:[#allocation2 + $0x70] sm:$0x3]
    %v5340 = vld [vmem:[#allocation2 + $0x78] sm:$0x3]
    %v5341 = vld [vmem:[#allocation2 + $0xc0] sm:$0xfc]
    %v5342 = vld [vmem:[#allocation2 + $0xc8] sm:$0xfc]
    %v5343 = vld [vmem:[#allocation2 + $0xd0] sm:$0x3]
    %v5344 = vld [vmem:[#allocation2 + $0xd8] sm:$0x3]
    %v5345 = vld [vmem:[#allocation2 + $0xe0] sm:$0xfc]
    %v5346 = vld [vmem:[#allocation2 + $0xe8] sm:$0xfc]
    %v5347 = vld [vmem:[#allocation2 + $0xf0] sm:$0x3]
    %v5348 = vld [vmem:[#allocation2 + $0xf8] sm:$0x3]
    %v5349 = vld [vmem:[#allocation2 + $0x100] sm:$0xfc]
    %v5350 = vld [vmem:[#allocation2 + $0x108] sm:$0xfc]
    %v5351 = vld [vmem:[#allocation2 + $0x110] sm:$0x3]
    %v5352 = vld [vmem:[#allocation2 + $0x118] sm:$0x3]
    %v5353 = vld [vmem:[#allocation2 + $0x120] sm:$0xfc]
    %v5354 = vld [vmem:[#allocation2 + $0x128] sm:$0xfc]
    %v5355 = vld [vmem:[#allocation2 + $0x130] sm:$0x3]
    %v5356 = vld [vmem:[#allocation2 + $0x138] sm:$0x3]
    %v5389 = vrot.slane %v5325, 2
    %v5390 = vrot.slane %v5327, 2
    %v5391 = vsel %vm1495, %v5389, %v5390
    %v5392 = vrot.slane %v5326, 2
    %v5393 = vrot.slane %v5328, 2
    %v5394 = vsel %vm1495, %v5392, %v5393
    %v5395 = vrot.slane %v5329, 2
    %v5396 = vrot.slane %v5331, 2
    %v5397 = vsel %vm1495, %v5395, %v5396
    %v5398 = vrot.slane %v5330, 2
    %v5399 = vrot.slane %v5332, 2
    %v5400 = vsel %vm1495, %v5398, %v5399
    %v5401 = vrot.slane %v5333, 2
    %v5402 = vrot.slane %v5335, 2
    %v5403 = vsel %vm1495, %v5401, %v5402
    %v5404 = vrot.slane %v5334, 2
    %v5405 = vrot.slane %v5336, 2
    %v5406 = vsel %vm1495, %v5404, %v5405
    %v5407 = vrot.slane %v5337, 2
    %v5408 = vrot.slane %v5339, 2
    %v5409 = vsel %vm1495, %v5407, %v5408
    %v5410 = vrot.slane %v5338, 2
    %v5411 = vrot.slane %v5340, 2
    %v5412 = vsel %vm1495, %v5410, %v5411
    %v5413 = vrot.slane %v5341, 2
    %v5414 = vrot.slane %v5343, 2
    %v5415 = vsel %vm1495, %v5413, %v5414
    %v5416 = vrot.slane %v5342, 2
    %v5417 = vrot.slane %v5344, 2
    %v5418 = vsel %vm1495, %v5416, %v5417
    %v5419 = vrot.slane %v5345, 2
    %v5420 = vrot.slane %v5347, 2
    %v5421 = vsel %vm1495, %v5419, %v5420
    %v5422 = vrot.slane %v5346, 2
    %v5423 = vrot.slane %v5348, 2
    %v5424 = vsel %vm1495, %v5422, %v5423
    %v5425 = vrot.slane %v5349, 2
    %v5426 = vrot.slane %v5351, 2
    %v5427 = vsel %vm1495, %v5425, %v5426
    %v5428 = vrot.slane %v5350, 2
    %v5429 = vrot.slane %v5352, 2
    %v5430 = vsel %vm1495, %v5428, %v5429
    %v5431 = vrot.slane %v5353, 2
    %v5432 = vrot.slane %v5355, 2
    %v5433 = vsel %vm1495, %v5431, %v5432
    %v5434 = vrot.slane %v5354, 2
    %v5435 = vrot.slane %v5356, 2
    %v5436 = vsel %vm1495, %v5434, %v5435
    %v5453 = vpack.c.bf16 %v5397, %v5391
    %v5454 = vpack.c.bf16 %v5400, %v5394
    %v5455 = vpack.c.bf16 %v5409, %v5403
    %v5456 = vpack.c.bf16 %v5412, %v5406
    %v5457 = vpack.c.bf16 %v5421, %v5415
    %v5458 = vpack.c.bf16 %v5424, %v5418
    %v5459 = vpack.c.bf16 %v5433, %v5427
    %v5460 = vpack.c.bf16 %v5436, %v5430
    %s5461 = scalar_lea.vmem [#allocation17], 512
    %v5462 = vld [vmem:[%s5461] sm:$0xff]
    %v5463 = vld [vmem:[%s5461 + $0x8] sm:$0xff]
    %v5464 = vld [vmem:[%s5461 + $0x10] sm:$0xff]
    %v5465 = vld [vmem:[%s5461 + $0x18] sm:$0xff]
    %v5466 = vld [vmem:[%s5461 + $0x20] sm:$0xff]
    %v5467 = vld [vmem:[%s5461 + $0x28] sm:$0xff]
    %v5468 = vld [vmem:[%s5461 + $0x30] sm:$0xff]
    %v5469 = vld [vmem:[%s5461 + $0x38] sm:$0xff]
    %v5470 = vld [vmem:[%s5461 + $0x40] sm:$0xff]
    %v5471 = vld [vmem:[%s5461 + $0x48] sm:$0xff]
    %v5472 = vld [vmem:[%s5461 + $0x50] sm:$0xff]
    %v5473 = vld [vmem:[%s5461 + $0x58] sm:$0xff]
    %v5474 = vld [vmem:[%s5461 + $0x60] sm:$0xff]
    %v5475 = vld [vmem:[%s5461 + $0x68] sm:$0xff]
    %v5476 = vld [vmem:[%s5461 + $0x70] sm:$0xff]
    %v5477 = vld [vmem:[%s5461 + $0x78] sm:$0xff]
    %v5478 = vld [vmem:[%s5461 + $0x80] sm:$0xff]
    %v5479 = vld [vmem:[%s5461 + $0x88] sm:$0xff]
    %v5480 = vld [vmem:[%s5461 + $0x90] sm:$0xff]
    %v5481 = vld [vmem:[%s5461 + $0x98] sm:$0xff]
    %v5482 = vld [vmem:[%s5461 + $0xa0] sm:$0xff]
    %v5483 = vld [vmem:[%s5461 + $0xa8] sm:$0xff]
    %v5484 = vld [vmem:[%s5461 + $0xb0] sm:$0xff]
    %v5485 = vld [vmem:[%s5461 + $0xb8] sm:$0xff]
    %v5486 = vld [vmem:[%s5461 + $0xc0] sm:$0xff]
    %v5487 = vld [vmem:[%s5461 + $0xc8] sm:$0xff]
    %v5488 = vld [vmem:[%s5461 + $0xd0] sm:$0xff]
    %v5489 = vld [vmem:[%s5461 + $0xd8] sm:$0xff]
    %v5490 = vld [vmem:[%s5461 + $0xe0] sm:$0xff]
    %v5491 = vld [vmem:[%s5461 + $0xe8] sm:$0xff]
    %v5492 = vld [vmem:[%s5461 + $0xf0] sm:$0xff]
    %v5493 = vld [vmem:[%s5461 + $0xf8] sm:$0xff]
    %v5526 = vunpack.c.l.b16 %v5462
    %v5527 = vunpack.c.h.b16 %v5462
    %v5528 = vunpack.c.l.b16 %v5463
    %v5529 = vunpack.c.h.b16 %v5463
    %v5530 = vunpack.c.l.b16 %v5464
    %v5531 = vunpack.c.h.b16 %v5464
    %v5532 = vunpack.c.l.b16 %v5465
    %v5533 = vunpack.c.h.b16 %v5465
    %v5534 = vunpack.c.l.b16 %v5466
    %v5535 = vunpack.c.h.b16 %v5466
    %v5536 = vunpack.c.l.b16 %v5467
    %v5537 = vunpack.c.h.b16 %v5467
    %v5538 = vunpack.c.l.b16 %v5468
    %v5539 = vunpack.c.h.b16 %v5468
    %v5540 = vunpack.c.l.b16 %v5469
    %v5541 = vunpack.c.h.b16 %v5469
    %v5542 = vunpack.c.l.b16 %v5470
    %v5543 = vunpack.c.h.b16 %v5470
    %v5544 = vunpack.c.l.b16 %v5471
    %v5545 = vunpack.c.h.b16 %v5471
    %v5546 = vunpack.c.l.b16 %v5472
    %v5547 = vunpack.c.h.b16 %v5472
    %v5548 = vunpack.c.l.b16 %v5473
    %v5549 = vunpack.c.h.b16 %v5473
    %v5550 = vunpack.c.l.b16 %v5474
    %v5551 = vunpack.c.h.b16 %v5474
    %v5552 = vunpack.c.l.b16 %v5475
    %v5553 = vunpack.c.h.b16 %v5475
    %v5554 = vunpack.c.l.b16 %v5476
    %v5555 = vunpack.c.h.b16 %v5476
    %v5556 = vunpack.c.l.b16 %v5477
    %v5557 = vunpack.c.h.b16 %v5477
    %v5558 = vunpack.c.l.b16 %v5478
    %v5559 = vunpack.c.h.b16 %v5478
    %v5560 = vunpack.c.l.b16 %v5479
    %v5561 = vunpack.c.h.b16 %v5479
    %v5562 = vunpack.c.l.b16 %v5480
    %v5563 = vunpack.c.h.b16 %v5480
    %v5564 = vunpack.c.l.b16 %v5481
    %v5565 = vunpack.c.h.b16 %v5481
    %v5566 = vunpack.c.l.b16 %v5482
    %v5567 = vunpack.c.h.b16 %v5482
    %v5568 = vunpack.c.l.b16 %v5483
    %v5569 = vunpack.c.h.b16 %v5483
    %v5570 = vunpack.c.l.b16 %v5484
    %v5571 = vunpack.c.h.b16 %v5484
    %v5572 = vunpack.c.l.b16 %v5485
    %v5573 = vunpack.c.h.b16 %v5485
    %v5574 = vunpack.c.l.b16 %v5486
    %v5575 = vunpack.c.h.b16 %v5486
    %v5576 = vunpack.c.l.b16 %v5487
    %v5577 = vunpack.c.h.b16 %v5487
    %v5578 = vunpack.c.l.b16 %v5488
    %v5579 = vunpack.c.h.b16 %v5488
    %v5580 = vunpack.c.l.b16 %v5489
    %v5581 = vunpack.c.h.b16 %v5489
    %v5582 = vunpack.c.l.b16 %v5490
    %v5583 = vunpack.c.h.b16 %v5490
    %v5584 = vunpack.c.l.b16 %v5491
    %v5585 = vunpack.c.h.b16 %v5491
    %v5586 = vunpack.c.l.b16 %v5492
    %v5587 = vunpack.c.h.b16 %v5492
    %v5588 = vunpack.c.l.b16 %v5493
    %v5589 = vunpack.c.h.b16 %v5493
    %v5590 = vpack.c.b16 %v5528, %v5526
    %v5591 = vpack.c.b16 %v5529, %v5527
    %v5592 = vpack.c.b16 %v5532, %v5530
    %v5593 = vpack.c.b16 %v5533, %v5531
    %v5594 = vpack.c.b16 %v5536, %v5534
    %v5595 = vpack.c.b16 %v5537, %v5535
    %v5596 = vpack.c.b16 %v5540, %v5538
    %v5597 = vpack.c.b16 %v5541, %v5539
    %v5598 = vpack.c.b16 %v5544, %v5542
    %v5599 = vpack.c.b16 %v5545, %v5543
    %v5600 = vpack.c.b16 %v5548, %v5546
    %v5601 = vpack.c.b16 %v5549, %v5547
    %v5602 = vpack.c.b16 %v5552, %v5550
    %v5603 = vpack.c.b16 %v5553, %v5551
    %v5604 = vpack.c.b16 %v5556, %v5554
    %v5605 = vpack.c.b16 %v5557, %v5555
    %v5606 = vpack.c.b16 %v5560, %v5558
    %v5607 = vpack.c.b16 %v5561, %v5559
    %v5608 = vpack.c.b16 %v5564, %v5562
    %v5609 = vpack.c.b16 %v5565, %v5563
    %v5610 = vpack.c.b16 %v5568, %v5566
    %v5611 = vpack.c.b16 %v5569, %v5567
    %v5612 = vpack.c.b16 %v5572, %v5570
    %v5613 = vpack.c.b16 %v5573, %v5571
    %v5614 = vpack.c.b16 %v5576, %v5574
    %v5615 = vpack.c.b16 %v5577, %v5575
    %v5616 = vpack.c.b16 %v5580, %v5578
    %v5617 = vpack.c.b16 %v5581, %v5579
    %v5618 = vpack.c.b16 %v5584, %v5582
    %v5619 = vpack.c.b16 %v5585, %v5583
    %v5620 = vpack.c.b16 %v5588, %v5586
    %v5621 = vpack.c.b16 %v5589, %v5587
    %5654 = vmatprep.subr.bf16.mxu0 %v5605
    %5655 = vmatpush1.bf16.msra.mxu0 %v5604
    %5656 = vmatprep.subr.bf16.mxu0 %v5603
    %5657 = vmatpush1.bf16.msra.mxu0 %v5602
    %5658 = vmatprep.subr.bf16.mxu0 %v5601
    %5659 = vmatpush1.bf16.msra.mxu0 %v5600
    %5660 = vmatprep.subr.bf16.mxu0 %v5599
    %5661 = vmatpush1.bf16.msra.mxu0 %v5598
    %5662 = vmatprep.subr.bf16.mxu0 %v5597
    %5663 = vmatpush1.bf16.msra.mxu0 %v5596
    %5664 = vmatprep.subr.bf16.mxu0 %v5595
    %5665 = vmatpush1.bf16.msra.mxu0 %v5594
    %5666 = vmatprep.subr.bf16.mxu0 %v5593
    %5667 = vmatpush1.bf16.msra.mxu0 %v5592
    %5668 = vmatprep.subr.bf16.mxu0 %v5591
    %5669 = vmatpush1.bf16.msra.mxu0 %v5590
    %5670 = vmatprep.subr.bf16.mxu0 %v5621
    %5671 = vmatpush2.bf16.msra.mxu0 %v5620
    %5672 = vmatprep.subr.bf16.mxu0 %v5619
    %5673 = vmatpush2.bf16.msra.mxu0 %v5618
    %5674 = vmatprep.subr.bf16.mxu0 %v5617
    %5675 = vmatpush2.bf16.msra.mxu0 %v5616
    %5676 = vmatprep.subr.bf16.mxu0 %v5615
    %5677 = vmatpush2.bf16.msra.mxu0 %v5614
    %5678 = vmatprep.subr.bf16.mxu0 %v5613
    %5679 = vmatpush2.bf16.msra.mxu0 %v5612
    %5680 = vmatprep.subr.bf16.mxu0 %v5611
    %5681 = vmatpush2.bf16.msra.mxu0 %v5610
    %5682 = vmatprep.subr.bf16.mxu0 %v5609
    %5683 = vmatpush2.bf16.msra.mxu0 %v5608
    %5684 = vmatprep.subr.bf16.mxu0 %v5607
    %5685 = vmatpush2.bf16.msra.mxu0 %v5606
    %5686 = vmatprep.mubr.bf16.mxu0 %v5454
    %5687 = vmatmul.mubr.bf16.gmra.mxu0 %v5453
    %v5688 = vpop.f32.mrf.mxu0
    %v5689 = vadd.f32 0.0, %v5688
    %v5690 = vpop.f32.mrf.mxu0
    %v5691 = vadd.f32 0.0, %v5690
    %v5692 = vpop.f32.mrf.mxu0
    %v5693 = vadd.f32 0.0, %v5692
    %v5694 = vpop.f32.mrf.mxu0
    %v5695 = vadd.f32 0.0, %v5694
    %5696 = vmatprep.mubr.bf16.mxu0 %v5456
    %5697 = vmatmul.mubr.bf16.gmra.mxu0 %v5455
    %v5698 = vpop.f32.mrf.mxu0
    %v5699 = vadd.f32 0.0, %v5698
    %v5700 = vpop.f32.mrf.mxu0
    %v5701 = vadd.f32 0.0, %v5700
    %v5702 = vpop.f32.mrf.mxu0
    %v5703 = vadd.f32 0.0, %v5702
    %v5704 = vpop.f32.mrf.mxu0
    %v5705 = vadd.f32 0.0, %v5704
    %5706 = vmatprep.mubr.bf16.mxu0 %v5458
    %5707 = vmatmul.mubr.bf16.gmra.mxu0 %v5457
    %v5708 = vpop.f32.mrf.mxu0
    %v5709 = vadd.f32 0.0, %v5708
    %v5710 = vpop.f32.mrf.mxu0
    %v5711 = vadd.f32 0.0, %v5710
    %v5712 = vpop.f32.mrf.mxu0
    %v5713 = vadd.f32 0.0, %v5712
    %v5714 = vpop.f32.mrf.mxu0
    %v5715 = vadd.f32 0.0, %v5714
    %5716 = vmatprep.mubr.bf16.mxu0 %v5460
    %5717 = vmatmul.mubr.bf16.gmra.mxu0 %v5459
    %v5718 = vpop.f32.mrf.mxu0
    %v5719 = vadd.f32 0.0, %v5718
    %v5720 = vpop.f32.mrf.mxu0
    %v5721 = vadd.f32 0.0, %v5720
    %v5722 = vpop.f32.mrf.mxu0
    %v5723 = vadd.f32 0.0, %v5722
    %v5724 = vpop.f32.mrf.mxu0
    %v5725 = vadd.f32 0.0, %v5724
    %5726 = vdwg.mxu0
    %v5727 = vadd.f32 %v5287, %v5689
    %v5728 = vadd.f32 %v5289, %v5691
    %v5729 = vadd.f32 %v5291, %v5693
    %v5730 = vadd.f32 %v5293, %v5695
    %v5731 = vadd.f32 %v5297, %v5699
    %v5732 = vadd.f32 %v5299, %v5701
    %v5733 = vadd.f32 %v5301, %v5703
    %v5734 = vadd.f32 %v5303, %v5705
    %v5735 = vadd.f32 %v5307, %v5709
    %v5736 = vadd.f32 %v5309, %v5711
    %v5737 = vadd.f32 %v5311, %v5713
    %v5738 = vadd.f32 %v5313, %v5715
    %v5739 = vadd.f32 %v5317, %v5719
    %v5740 = vadd.f32 %v5319, %v5721
    %v5741 = vadd.f32 %v5321, %v5723
    %v5742 = vadd.f32 %v5323, %v5725
    %v5743 = vld [vmem:[%s177] sm:$0xff]
    %v5744 = vld [vmem:[%s177 + $0x8] sm:$0xff]
    %v5745 = vld [vmem:[%s177 + $0x20] sm:$0xff]
    %v5746 = vld [vmem:[%s177 + $0x28] sm:$0xff]
    %v5747 = vld [vmem:[%s177 + $0x40] sm:$0xff]
    %v5748 = vld [vmem:[%s177 + $0x48] sm:$0xff]
    %v5749 = vld [vmem:[%s177 + $0x60] sm:$0xff]
    %v5750 = vld [vmem:[%s177 + $0x68] sm:$0xff]
    %v5751 = vld [vmem:[%s177 + $0xc0] sm:$0xff]
    %v5752 = vld [vmem:[%s177 + $0xc8] sm:$0xff]
    %v5753 = vld [vmem:[%s177 + $0xe0] sm:$0xff]
    %v5754 = vld [vmem:[%s177 + $0xe8] sm:$0xff]
    %v5755 = vld [vmem:[%s177 + $0x100] sm:$0xff]
    %v5756 = vld [vmem:[%s177 + $0x108] sm:$0xff]
    %v5757 = vld [vmem:[%s177 + $0x120] sm:$0xff]
    %v5758 = vld [vmem:[%s177 + $0x128] sm:$0xff]
    %v5759 = vpack.c.bf16 %v5745, %v5743
    %v5760 = vpack.c.bf16 %v5746, %v5744
    %v5761 = vpack.c.bf16 %v5749, %v5747
    %v5762 = vpack.c.bf16 %v5750, %v5748
    %v5763 = vpack.c.bf16 %v5753, %v5751
    %v5764 = vpack.c.bf16 %v5754, %v5752
    %v5765 = vpack.c.bf16 %v5757, %v5755
    %v5766 = vpack.c.bf16 %v5758, %v5756
    %s5767 = scalar_lea.vmem [#allocation17], 768
    %v5768 = vld [vmem:[%s5767] sm:$0xff]
    %v5769 = vld [vmem:[%s5767 + $0x8] sm:$0xff]
    %v5770 = vld [vmem:[%s5767 + $0x10] sm:$0xff]
    %v5771 = vld [vmem:[%s5767 + $0x18] sm:$0xff]
    %v5772 = vld [vmem:[%s5767 + $0x20] sm:$0xff]
    %v5773 = vld [vmem:[%s5767 + $0x28] sm:$0xff]
    %v5774 = vld [vmem:[%s5767 + $0x30] sm:$0xff]
    %v5775 = vld [vmem:[%s5767 + $0x38] sm:$0xff]
    %v5776 = vld [vmem:[%s5767 + $0x40] sm:$0xff]
    %v5777 = vld [vmem:[%s5767 + $0x48] sm:$0xff]
    %v5778 = vld [vmem:[%s5767 + $0x50] sm:$0xff]
    %v5779 = vld [vmem:[%s5767 + $0x58] sm:$0xff]
    %v5780 = vld [vmem:[%s5767 + $0x60] sm:$0xff]
    %v5781 = vld [vmem:[%s5767 + $0x68] sm:$0xff]
    %v5782 = vld [vmem:[%s5767 + $0x70] sm:$0xff]
    %v5783 = vld [vmem:[%s5767 + $0x78] sm:$0xff]
    %v5784 = vld [vmem:[%s5767 + $0x80] sm:$0xff]
    %v5785 = vld [vmem:[%s5767 + $0x88] sm:$0xff]
    %v5786 = vld [vmem:[%s5767 + $0x90] sm:$0xff]
    %v5787 = vld [vmem:[%s5767 + $0x98] sm:$0xff]
    %v5788 = vld [vmem:[%s5767 + $0xa0] sm:$0xff]
    %v5789 = vld [vmem:[%s5767 + $0xa8] sm:$0xff]
    %v5790 = vld [vmem:[%s5767 + $0xb0] sm:$0xff]
    %v5791 = vld [vmem:[%s5767 + $0xb8] sm:$0xff]
    %v5792 = vld [vmem:[%s5767 + $0xc0] sm:$0xff]
    %v5793 = vld [vmem:[%s5767 + $0xc8] sm:$0xff]
    %v5794 = vld [vmem:[%s5767 + $0xd0] sm:$0xff]
    %v5795 = vld [vmem:[%s5767 + $0xd8] sm:$0xff]
    %v5796 = vld [vmem:[%s5767 + $0xe0] sm:$0xff]
    %v5797 = vld [vmem:[%s5767 + $0xe8] sm:$0xff]
    %v5798 = vld [vmem:[%s5767 + $0xf0] sm:$0xff]
    %v5799 = vld [vmem:[%s5767 + $0xf8] sm:$0xff]
    %v5832 = vunpack.c.l.b16 %v5768
    %v5833 = vunpack.c.h.b16 %v5768
    %v5834 = vunpack.c.l.b16 %v5769
    %v5835 = vunpack.c.h.b16 %v5769
    %v5836 = vunpack.c.l.b16 %v5770
    %v5837 = vunpack.c.h.b16 %v5770
    %v5838 = vunpack.c.l.b16 %v5771
    %v5839 = vunpack.c.h.b16 %v5771
    %v5840 = vunpack.c.l.b16 %v5772
    %v5841 = vunpack.c.h.b16 %v5772
    %v5842 = vunpack.c.l.b16 %v5773
    %v5843 = vunpack.c.h.b16 %v5773
    %v5844 = vunpack.c.l.b16 %v5774
    %v5845 = vunpack.c.h.b16 %v5774
    %v5846 = vunpack.c.l.b16 %v5775
    %v5847 = vunpack.c.h.b16 %v5775
    %v5848 = vunpack.c.l.b16 %v5776
    %v5849 = vunpack.c.h.b16 %v5776
    %v5850 = vunpack.c.l.b16 %v5777
    %v5851 = vunpack.c.h.b16 %v5777
    %v5852 = vunpack.c.l.b16 %v5778
    %v5853 = vunpack.c.h.b16 %v5778
    %v5854 = vunpack.c.l.b16 %v5779
    %v5855 = vunpack.c.h.b16 %v5779
    %v5856 = vunpack.c.l.b16 %v5780
    %v5857 = vunpack.c.h.b16 %v5780
    %v5858 = vunpack.c.l.b16 %v5781
    %v5859 = vunpack.c.h.b16 %v5781
    %v5860 = vunpack.c.l.b16 %v5782
    %v5861 = vunpack.c.h.b16 %v5782
    %v5862 = vunpack.c.l.b16 %v5783
    %v5863 = vunpack.c.h.b16 %v5783
    %v5864 = vunpack.c.l.b16 %v5784
    %v5865 = vunpack.c.h.b16 %v5784
    %v5866 = vunpack.c.l.b16 %v5785
    %v5867 = vunpack.c.h.b16 %v5785
    %v5868 = vunpack.c.l.b16 %v5786
    %v5869 = vunpack.c.h.b16 %v5786
    %v5870 = vunpack.c.l.b16 %v5787
    %v5871 = vunpack.c.h.b16 %v5787
    %v5872 = vunpack.c.l.b16 %v5788
    %v5873 = vunpack.c.h.b16 %v5788
    %v5874 = vunpack.c.l.b16 %v5789
    %v5875 = vunpack.c.h.b16 %v5789
    %v5876 = vunpack.c.l.b16 %v5790
    %v5877 = vunpack.c.h.b16 %v5790
    %v5878 = vunpack.c.l.b16 %v5791
    %v5879 = vunpack.c.h.b16 %v5791
    %v5880 = vunpack.c.l.b16 %v5792
    %v5881 = vunpack.c.h.b16 %v5792
    %v5882 = vunpack.c.l.b16 %v5793
    %v5883 = vunpack.c.h.b16 %v5793
    %v5884 = vunpack.c.l.b16 %v5794
    %v5885 = vunpack.c.h.b16 %v5794
    %v5886 = vunpack.c.l.b16 %v5795
    %v5887 = vunpack.c.h.b16 %v5795
    %v5888 = vunpack.c.l.b16 %v5796
    %v5889 = vunpack.c.h.b16 %v5796
    %v5890 = vunpack.c.l.b16 %v5797
    %v5891 = vunpack.c.h.b16 %v5797
    %v5892 = vunpack.c.l.b16 %v5798
    %v5893 = vunpack.c.h.b16 %v5798
    %v5894 = vunpack.c.l.b16 %v5799
    %v5895 = vunpack.c.h.b16 %v5799
    %v5896 = vpack.c.b16 %v5834, %v5832
    %v5897 = vpack.c.b16 %v5835, %v5833
    %v5898 = vpack.c.b16 %v5838, %v5836
    %v5899 = vpack.c.b16 %v5839, %v5837
    %v5900 = vpack.c.b16 %v5842, %v5840
    %v5901 = vpack.c.b16 %v5843, %v5841
    %v5902 = vpack.c.b16 %v5846, %v5844
    %v5903 = vpack.c.b16 %v5847, %v5845
    %v5904 = vpack.c.b16 %v5850, %v5848
    %v5905 = vpack.c.b16 %v5851, %v5849
    %v5906 = vpack.c.b16 %v5854, %v5852
    %v5907 = vpack.c.b16 %v5855, %v5853
    %v5908 = vpack.c.b16 %v5858, %v5856
    %v5909 = vpack.c.b16 %v5859, %v5857
    %v5910 = vpack.c.b16 %v5862, %v5860
    %v5911 = vpack.c.b16 %v5863, %v5861
    %v5912 = vpack.c.b16 %v5866, %v5864
    %v5913 = vpack.c.b16 %v5867, %v5865
    %v5914 = vpack.c.b16 %v5870, %v5868
    %v5915 = vpack.c.b16 %v5871, %v5869
    %v5916 = vpack.c.b16 %v5874, %v5872
    %v5917 = vpack.c.b16 %v5875, %v5873
    %v5918 = vpack.c.b16 %v5878, %v5876
    %v5919 = vpack.c.b16 %v5879, %v5877
    %v5920 = vpack.c.b16 %v5882, %v5880
    %v5921 = vpack.c.b16 %v5883, %v5881
    %v5922 = vpack.c.b16 %v5886, %v5884
    %v5923 = vpack.c.b16 %v5887, %v5885
    %v5924 = vpack.c.b16 %v5890, %v5888
    %v5925 = vpack.c.b16 %v5891, %v5889
    %v5926 = vpack.c.b16 %v5894, %v5892
    %v5927 = vpack.c.b16 %v5895, %v5893
    %5960 = vmatprep.subr.bf16.mxu0 %v5911
    %5961 = vmatpush1.bf16.msra.mxu0 %v5910
    %5962 = vmatprep.subr.bf16.mxu0 %v5909
    %5963 = vmatpush1.bf16.msra.mxu0 %v5908
    %5964 = vmatprep.subr.bf16.mxu0 %v5907
    %5965 = vmatpush1.bf16.msra.mxu0 %v5906
    %5966 = vmatprep.subr.bf16.mxu0 %v5905
    %5967 = vmatpush1.bf16.msra.mxu0 %v5904
    %5968 = vmatprep.subr.bf16.mxu0 %v5903
    %5969 = vmatpush1.bf16.msra.mxu0 %v5902
    %5970 = vmatprep.subr.bf16.mxu0 %v5901
    %5971 = vmatpush1.bf16.msra.mxu0 %v5900
    %5972 = vmatprep.subr.bf16.mxu0 %v5899
    %5973 = vmatpush1.bf16.msra.mxu0 %v5898
    %5974 = vmatprep.subr.bf16.mxu0 %v5897
    %5975 = vmatpush1.bf16.msra.mxu0 %v5896
    %5976 = vmatprep.subr.bf16.mxu0 %v5927
    %5977 = vmatpush2.bf16.msra.mxu0 %v5926
    %5978 = vmatprep.subr.bf16.mxu0 %v5925
    %5979 = vmatpush2.bf16.msra.mxu0 %v5924
    %5980 = vmatprep.subr.bf16.mxu0 %v5923
    %5981 = vmatpush2.bf16.msra.mxu0 %v5922
    %5982 = vmatprep.subr.bf16.mxu0 %v5921
    %5983 = vmatpush2.bf16.msra.mxu0 %v5920
    %5984 = vmatprep.subr.bf16.mxu0 %v5919
    %5985 = vmatpush2.bf16.msra.mxu0 %v5918
    %5986 = vmatprep.subr.bf16.mxu0 %v5917
    %5987 = vmatpush2.bf16.msra.mxu0 %v5916
    %5988 = vmatprep.subr.bf16.mxu0 %v5915
    %5989 = vmatpush2.bf16.msra.mxu0 %v5914
    %5990 = vmatprep.subr.bf16.mxu0 %v5913
    %5991 = vmatpush2.bf16.msra.mxu0 %v5912
    %5992 = vmatprep.mubr.bf16.mxu0 %v5760
    %5993 = vmatmul.mubr.bf16.gmra.mxu0 %v5759
    %v5994 = vpop.f32.mrf.mxu0
    %v5995 = vadd.f32 0.0, %v5994
    %v5996 = vpop.f32.mrf.mxu0
    %v5997 = vadd.f32 0.0, %v5996
    %v5998 = vpop.f32.mrf.mxu0
    %v5999 = vadd.f32 0.0, %v5998
    %v6000 = vpop.f32.mrf.mxu0
    %v6001 = vadd.f32 0.0, %v6000
    %6002 = vmatprep.mubr.bf16.mxu0 %v5762
    %6003 = vmatmul.mubr.bf16.gmra.mxu0 %v5761
    %v6004 = vpop.f32.mrf.mxu0
    %v6005 = vadd.f32 0.0, %v6004
    %v6006 = vpop.f32.mrf.mxu0
    %v6007 = vadd.f32 0.0, %v6006
    %v6008 = vpop.f32.mrf.mxu0
    %v6009 = vadd.f32 0.0, %v6008
    %v6010 = vpop.f32.mrf.mxu0
    %v6011 = vadd.f32 0.0, %v6010
    %6012 = vmatprep.mubr.bf16.mxu0 %v5764
    %6013 = vmatmul.mubr.bf16.gmra.mxu0 %v5763
    %v6014 = vpop.f32.mrf.mxu0
    %v6015 = vadd.f32 0.0, %v6014
    %v6016 = vpop.f32.mrf.mxu0
    %v6017 = vadd.f32 0.0, %v6016
    %v6018 = vpop.f32.mrf.mxu0
    %v6019 = vadd.f32 0.0, %v6018
    %v6020 = vpop.f32.mrf.mxu0
    %v6021 = vadd.f32 0.0, %v6020
    %6022 = vmatprep.mubr.bf16.mxu0 %v5766
    %6023 = vmatmul.mubr.bf16.gmra.mxu0 %v5765
    %v6024 = vpop.f32.mrf.mxu0
    %v6025 = vadd.f32 0.0, %v6024
    %v6026 = vpop.f32.mrf.mxu0
    %v6027 = vadd.f32 0.0, %v6026
    %v6028 = vpop.f32.mrf.mxu0
    %v6029 = vadd.f32 0.0, %v6028
    %v6030 = vpop.f32.mrf.mxu0
    %v6031 = vadd.f32 0.0, %v6030
    %6032 = vdwg.mxu0
    %v6033 = vadd.f32 %v5727, %v5995
    %v6034 = vadd.f32 %v5728, %v5997
    %v6035 = vadd.f32 %v5729, %v5999
    %v6036 = vadd.f32 %v5730, %v6001
    %v6037 = vadd.f32 %v5731, %v6005
    %v6038 = vadd.f32 %v5732, %v6007
    %v6039 = vadd.f32 %v5733, %v6009
    %v6040 = vadd.f32 %v5734, %v6011
    %v6041 = vadd.f32 %v5735, %v6015
    %v6042 = vadd.f32 %v5736, %v6017
    %v6043 = vadd.f32 %v5737, %v6019
    %v6044 = vadd.f32 %v5738, %v6021
    %v6045 = vadd.f32 %v5739, %v6025
    %v6046 = vadd.f32 %v5740, %v6027
    %v6047 = vadd.f32 %v5741, %v6029
    %v6048 = vadd.f32 %v5742, %v6031
    %v6049 = vld [vmem:[%s177] sm:$0xfe]
    %v6050 = vld [vmem:[%s177 + $0x8] sm:$0xfe]
    %v6051 = vld [vmem:[%s177 + $0x10] sm:$0x1]
    %v6052 = vld [vmem:[%s177 + $0x18] sm:$0x1]
    %v6053 = vld [vmem:[%s177 + $0x20] sm:$0xfe]
    %v6054 = vld [vmem:[%s177 + $0x28] sm:$0xfe]
    %v6055 = vld [vmem:[%s177 + $0x30] sm:$0x1]
    %v6056 = vld [vmem:[%s177 + $0x38] sm:$0x1]
    %v6057 = vld [vmem:[%s177 + $0x40] sm:$0xfe]
    %v6058 = vld [vmem:[%s177 + $0x48] sm:$0xfe]
    %v6059 = vld [vmem:[%s177 + $0x50] sm:$0x1]
    %v6060 = vld [vmem:[%s177 + $0x58] sm:$0x1]
    %v6061 = vld [vmem:[%s177 + $0x60] sm:$0xfe]
    %v6062 = vld [vmem:[%s177 + $0x68] sm:$0xfe]
    %v6063 = vld [vmem:[%s177 + $0x70] sm:$0x1]
    %v6064 = vld [vmem:[%s177 + $0x78] sm:$0x1]
    %v6065 = vld [vmem:[%s177 + $0xc0] sm:$0xfe]
    %v6066 = vld [vmem:[%s177 + $0xc8] sm:$0xfe]
    %v6067 = vld [vmem:[%s177 + $0xd0] sm:$0x1]
    %v6068 = vld [vmem:[%s177 + $0xd8] sm:$0x1]
    %v6069 = vld [vmem:[%s177 + $0xe0] sm:$0xfe]
    %v6070 = vld [vmem:[%s177 + $0xe8] sm:$0xfe]
    %v6071 = vld [vmem:[%s177 + $0xf0] sm:$0x1]
    %v6072 = vld [vmem:[%s177 + $0xf8] sm:$0x1]
    %v6073 = vld [vmem:[%s177 + $0x100] sm:$0xfe]
    %v6074 = vld [vmem:[%s177 + $0x108] sm:$0xfe]
    %v6075 = vld [vmem:[%s177 + $0x110] sm:$0x1]
    %v6076 = vld [vmem:[%s177 + $0x118] sm:$0x1]
    %v6077 = vld [vmem:[%s177 + $0x120] sm:$0xfe]
    %v6078 = vld [vmem:[%s177 + $0x128] sm:$0xfe]
    %v6079 = vld [vmem:[%s177 + $0x130] sm:$0x1]
    %v6080 = vld [vmem:[%s177 + $0x138] sm:$0x1]
    %v6113 = vrot.slane %v6049, 1
    %v6114 = vrot.slane %v6051, 1
    %v6115 = vsel %vm859, %v6113, %v6114
    %v6116 = vrot.slane %v6050, 1
    %v6117 = vrot.slane %v6052, 1
    %v6118 = vsel %vm859, %v6116, %v6117
    %v6119 = vrot.slane %v6053, 1
    %v6120 = vrot.slane %v6055, 1
    %v6121 = vsel %vm859, %v6119, %v6120
    %v6122 = vrot.slane %v6054, 1
    %v6123 = vrot.slane %v6056, 1
    %v6124 = vsel %vm859, %v6122, %v6123
    %v6125 = vrot.slane %v6057, 1
    %v6126 = vrot.slane %v6059, 1
    %v6127 = vsel %vm859, %v6125, %v6126
    %v6128 = vrot.slane %v6058, 1
    %v6129 = vrot.slane %v6060, 1
    %v6130 = vsel %vm859, %v6128, %v6129
    %v6131 = vrot.slane %v6061, 1
    %v6132 = vrot.slane %v6063, 1
    %v6133 = vsel %vm859, %v6131, %v6132
    %v6134 = vrot.slane %v6062, 1
    %v6135 = vrot.slane %v6064, 1
    %v6136 = vsel %vm859, %v6134, %v6135
    %v6137 = vrot.slane %v6065, 1
    %v6138 = vrot.slane %v6067, 1
    %v6139 = vsel %vm859, %v6137, %v6138
    %v6140 = vrot.slane %v6066, 1
    %v6141 = vrot.slane %v6068, 1
    %v6142 = vsel %vm859, %v6140, %v6141
    %v6143 = vrot.slane %v6069, 1
    %v6144 = vrot.slane %v6071, 1
    %v6145 = vsel %vm859, %v6143, %v6144
    %v6146 = vrot.slane %v6070, 1
    %v6147 = vrot.slane %v6072, 1
    %v6148 = vsel %vm859, %v6146, %v6147
    %v6149 = vrot.slane %v6073, 1
    %v6150 = vrot.slane %v6075, 1
    %v6151 = vsel %vm859, %v6149, %v6150
    %v6152 = vrot.slane %v6074, 1
    %v6153 = vrot.slane %v6076, 1
    %v6154 = vsel %vm859, %v6152, %v6153
    %v6155 = vrot.slane %v6077, 1
    %v6156 = vrot.slane %v6079, 1
    %v6157 = vsel %vm859, %v6155, %v6156
    %v6158 = vrot.slane %v6078, 1
    %v6159 = vrot.slane %v6080, 1
    %v6160 = vsel %vm859, %v6158, %v6159
    %v6177 = vpack.c.bf16 %v6121, %v6115
    %v6178 = vpack.c.bf16 %v6124, %v6118
    %v6179 = vpack.c.bf16 %v6133, %v6127
    %v6180 = vpack.c.bf16 %v6136, %v6130
    %v6181 = vpack.c.bf16 %v6145, %v6139
    %v6182 = vpack.c.bf16 %v6148, %v6142
    %v6183 = vpack.c.bf16 %v6157, %v6151
    %v6184 = vpack.c.bf16 %v6160, %v6154
    %s6185 = scalar_lea.vmem [#allocation17], 1024
    %v6186 = vld [vmem:[%s6185] sm:$0xff]
    %v6187 = vld [vmem:[%s6185 + $0x8] sm:$0xff]
    %v6188 = vld [vmem:[%s6185 + $0x10] sm:$0xff]
    %v6189 = vld [vmem:[%s6185 + $0x18] sm:$0xff]
    %v6190 = vld [vmem:[%s6185 + $0x20] sm:$0xff]
    %v6191 = vld [vmem:[%s6185 + $0x28] sm:$0xff]
    %v6192 = vld [vmem:[%s6185 + $0x30] sm:$0xff]
    %v6193 = vld [vmem:[%s6185 + $0x38] sm:$0xff]
    %v6194 = vld [vmem:[%s6185 + $0x40] sm:$0xff]
    %v6195 = vld [vmem:[%s6185 + $0x48] sm:$0xff]
    %v6196 = vld [vmem:[%s6185 + $0x50] sm:$0xff]
    %v6197 = vld [vmem:[%s6185 + $0x58] sm:$0xff]
    %v6198 = vld [vmem:[%s6185 + $0x60] sm:$0xff]
    %v6199 = vld [vmem:[%s6185 + $0x68] sm:$0xff]
    %v6200 = vld [vmem:[%s6185 + $0x70] sm:$0xff]
    %v6201 = vld [vmem:[%s6185 + $0x78] sm:$0xff]
    %v6202 = vld [vmem:[%s6185 + $0x80] sm:$0xff]
    %v6203 = vld [vmem:[%s6185 + $0x88] sm:$0xff]
    %v6204 = vld [vmem:[%s6185 + $0x90] sm:$0xff]
    %v6205 = vld [vmem:[%s6185 + $0x98] sm:$0xff]
    %v6206 = vld [vmem:[%s6185 + $0xa0] sm:$0xff]
    %v6207 = vld [vmem:[%s6185 + $0xa8] sm:$0xff]
    %v6208 = vld [vmem:[%s6185 + $0xb0] sm:$0xff]
    %v6209 = vld [vmem:[%s6185 + $0xb8] sm:$0xff]
    %v6210 = vld [vmem:[%s6185 + $0xc0] sm:$0xff]
    %v6211 = vld [vmem:[%s6185 + $0xc8] sm:$0xff]
    %v6212 = vld [vmem:[%s6185 + $0xd0] sm:$0xff]
    %v6213 = vld [vmem:[%s6185 + $0xd8] sm:$0xff]
    %v6214 = vld [vmem:[%s6185 + $0xe0] sm:$0xff]
    %v6215 = vld [vmem:[%s6185 + $0xe8] sm:$0xff]
    %v6216 = vld [vmem:[%s6185 + $0xf0] sm:$0xff]
    %v6217 = vld [vmem:[%s6185 + $0xf8] sm:$0xff]
    %v6250 = vunpack.c.l.b16 %v6186
    %v6251 = vunpack.c.h.b16 %v6186
    %v6252 = vunpack.c.l.b16 %v6187
    %v6253 = vunpack.c.h.b16 %v6187
    %v6254 = vunpack.c.l.b16 %v6188
    %v6255 = vunpack.c.h.b16 %v6188
    %v6256 = vunpack.c.l.b16 %v6189
    %v6257 = vunpack.c.h.b16 %v6189
    %v6258 = vunpack.c.l.b16 %v6190
    %v6259 = vunpack.c.h.b16 %v6190
    %v6260 = vunpack.c.l.b16 %v6191
    %v6261 = vunpack.c.h.b16 %v6191
    %v6262 = vunpack.c.l.b16 %v6192
    %v6263 = vunpack.c.h.b16 %v6192
    %v6264 = vunpack.c.l.b16 %v6193
    %v6265 = vunpack.c.h.b16 %v6193
    %v6266 = vunpack.c.l.b16 %v6194
    %v6267 = vunpack.c.h.b16 %v6194
    %v6268 = vunpack.c.l.b16 %v6195
    %v6269 = vunpack.c.h.b16 %v6195
    %v6270 = vunpack.c.l.b16 %v6196
    %v6271 = vunpack.c.h.b16 %v6196
    %v6272 = vunpack.c.l.b16 %v6197
    %v6273 = vunpack.c.h.b16 %v6197
    %v6274 = vunpack.c.l.b16 %v6198
    %v6275 = vunpack.c.h.b16 %v6198
    %v6276 = vunpack.c.l.b16 %v6199
    %v6277 = vunpack.c.h.b16 %v6199
    %v6278 = vunpack.c.l.b16 %v6200
    %v6279 = vunpack.c.h.b16 %v6200
    %v6280 = vunpack.c.l.b16 %v6201
    %v6281 = vunpack.c.h.b16 %v6201
    %v6282 = vunpack.c.l.b16 %v6202
    %v6283 = vunpack.c.h.b16 %v6202
    %v6284 = vunpack.c.l.b16 %v6203
    %v6285 = vunpack.c.h.b16 %v6203
    %v6286 = vunpack.c.l.b16 %v6204
    %v6287 = vunpack.c.h.b16 %v6204
    %v6288 = vunpack.c.l.b16 %v6205
    %v6289 = vunpack.c.h.b16 %v6205
    %v6290 = vunpack.c.l.b16 %v6206
    %v6291 = vunpack.c.h.b16 %v6206
    %v6292 = vunpack.c.l.b16 %v6207
    %v6293 = vunpack.c.h.b16 %v6207
    %v6294 = vunpack.c.l.b16 %v6208
    %v6295 = vunpack.c.h.b16 %v6208
    %v6296 = vunpack.c.l.b16 %v6209
    %v6297 = vunpack.c.h.b16 %v6209
    %v6298 = vunpack.c.l.b16 %v6210
    %v6299 = vunpack.c.h.b16 %v6210
    %v6300 = vunpack.c.l.b16 %v6211
    %v6301 = vunpack.c.h.b16 %v6211
    %v6302 = vunpack.c.l.b16 %v6212
    %v6303 = vunpack.c.h.b16 %v6212
    %v6304 = vunpack.c.l.b16 %v6213
    %v6305 = vunpack.c.h.b16 %v6213
    %v6306 = vunpack.c.l.b16 %v6214
    %v6307 = vunpack.c.h.b16 %v6214
    %v6308 = vunpack.c.l.b16 %v6215
    %v6309 = vunpack.c.h.b16 %v6215
    %v6310 = vunpack.c.l.b16 %v6216
    %v6311 = vunpack.c.h.b16 %v6216
    %v6312 = vunpack.c.l.b16 %v6217
    %v6313 = vunpack.c.h.b16 %v6217
    %v6314 = vpack.c.b16 %v6252, %v6250
    %v6315 = vpack.c.b16 %v6253, %v6251
    %v6316 = vpack.c.b16 %v6256, %v6254
    %v6317 = vpack.c.b16 %v6257, %v6255
    %v6318 = vpack.c.b16 %v6260, %v6258
    %v6319 = vpack.c.b16 %v6261, %v6259
    %v6320 = vpack.c.b16 %v6264, %v6262
    %v6321 = vpack.c.b16 %v6265, %v6263
    %v6322 = vpack.c.b16 %v6268, %v6266
    %v6323 = vpack.c.b16 %v6269, %v6267
    %v6324 = vpack.c.b16 %v6272, %v6270
    %v6325 = vpack.c.b16 %v6273, %v6271
    %v6326 = vpack.c.b16 %v6276, %v6274
    %v6327 = vpack.c.b16 %v6277, %v6275
    %v6328 = vpack.c.b16 %v6280, %v6278
    %v6329 = vpack.c.b16 %v6281, %v6279
    %v6330 = vpack.c.b16 %v6284, %v6282
    %v6331 = vpack.c.b16 %v6285, %v6283
    %v6332 = vpack.c.b16 %v6288, %v6286
    %v6333 = vpack.c.b16 %v6289, %v6287
    %v6334 = vpack.c.b16 %v6292, %v6290
    %v6335 = vpack.c.b16 %v6293, %v6291
    %v6336 = vpack.c.b16 %v6296, %v6294
    %v6337 = vpack.c.b16 %v6297, %v6295
    %v6338 = vpack.c.b16 %v6300, %v6298
    %v6339 = vpack.c.b16 %v6301, %v6299
    %v6340 = vpack.c.b16 %v6304, %v6302
    %v6341 = vpack.c.b16 %v6305, %v6303
    %v6342 = vpack.c.b16 %v6308, %v6306
    %v6343 = vpack.c.b16 %v6309, %v6307
    %v6344 = vpack.c.b16 %v6312, %v6310
    %v6345 = vpack.c.b16 %v6313, %v6311
    %6378 = vmatprep.subr.bf16.mxu0 %v6329
    %6379 = vmatpush1.bf16.msra.mxu0 %v6328
    %6380 = vmatprep.subr.bf16.mxu0 %v6327
    %6381 = vmatpush1.bf16.msra.mxu0 %v6326
    %6382 = vmatprep.subr.bf16.mxu0 %v6325
    %6383 = vmatpush1.bf16.msra.mxu0 %v6324
    %6384 = vmatprep.subr.bf16.mxu0 %v6323
    %6385 = vmatpush1.bf16.msra.mxu0 %v6322
    %6386 = vmatprep.subr.bf16.mxu0 %v6321
    %6387 = vmatpush1.bf16.msra.mxu0 %v6320
    %6388 = vmatprep.subr.bf16.mxu0 %v6319
    %6389 = vmatpush1.bf16.msra.mxu0 %v6318
    %6390 = vmatprep.subr.bf16.mxu0 %v6317
    %6391 = vmatpush1.bf16.msra.mxu0 %v6316
    %6392 = vmatprep.subr.bf16.mxu0 %v6315
    %6393 = vmatpush1.bf16.msra.mxu0 %v6314
    %6394 = vmatprep.subr.bf16.mxu0 %v6345
    %6395 = vmatpush2.bf16.msra.mxu0 %v6344
    %6396 = vmatprep.subr.bf16.mxu0 %v6343
    %6397 = vmatpush2.bf16.msra.mxu0 %v6342
    %6398 = vmatprep.subr.bf16.mxu0 %v6341
    %6399 = vmatpush2.bf16.msra.mxu0 %v6340
    %6400 = vmatprep.subr.bf16.mxu0 %v6339
    %6401 = vmatpush2.bf16.msra.mxu0 %v6338
    %6402 = vmatprep.subr.bf16.mxu0 %v6337
    %6403 = vmatpush2.bf16.msra.mxu0 %v6336
    %6404 = vmatprep.subr.bf16.mxu0 %v6335
    %6405 = vmatpush2.bf16.msra.mxu0 %v6334
    %6406 = vmatprep.subr.bf16.mxu0 %v6333
    %6407 = vmatpush2.bf16.msra.mxu0 %v6332
    %6408 = vmatprep.subr.bf16.mxu0 %v6331
    %6409 = vmatpush2.bf16.msra.mxu0 %v6330
    %6410 = vmatprep.mubr.bf16.mxu0 %v6178
    %6411 = vmatmul.mubr.bf16.gmra.mxu0 %v6177
    %v6412 = vpop.f32.mrf.mxu0
    %v6413 = vadd.f32 0.0, %v6412
    %v6414 = vpop.f32.mrf.mxu0
    %v6415 = vadd.f32 0.0, %v6414
    %v6416 = vpop.f32.mrf.mxu0
    %v6417 = vadd.f32 0.0, %v6416
    %v6418 = vpop.f32.mrf.mxu0
    %v6419 = vadd.f32 0.0, %v6418
    %6420 = vmatprep.mubr.bf16.mxu0 %v6180
    %6421 = vmatmul.mubr.bf16.gmra.mxu0 %v6179
    %v6422 = vpop.f32.mrf.mxu0
    %v6423 = vadd.f32 0.0, %v6422
    %v6424 = vpop.f32.mrf.mxu0
    %v6425 = vadd.f32 0.0, %v6424
    %v6426 = vpop.f32.mrf.mxu0
    %v6427 = vadd.f32 0.0, %v6426
    %v6428 = vpop.f32.mrf.mxu0
    %v6429 = vadd.f32 0.0, %v6428
    %6430 = vmatprep.mubr.bf16.mxu0 %v6182
    %6431 = vmatmul.mubr.bf16.gmra.mxu0 %v6181
    %v6432 = vpop.f32.mrf.mxu0
    %v6433 = vadd.f32 0.0, %v6432
    %v6434 = vpop.f32.mrf.mxu0
    %v6435 = vadd.f32 0.0, %v6434
    %v6436 = vpop.f32.mrf.mxu0
    %v6437 = vadd.f32 0.0, %v6436
    %v6438 = vpop.f32.mrf.mxu0
    %v6439 = vadd.f32 0.0, %v6438
    %6440 = vmatprep.mubr.bf16.mxu0 %v6184
    %6441 = vmatmul.mubr.bf16.gmra.mxu0 %v6183
    %v6442 = vpop.f32.mrf.mxu0
    %v6443 = vadd.f32 0.0, %v6442
    %v6444 = vpop.f32.mrf.mxu0
    %v6445 = vadd.f32 0.0, %v6444
    %v6446 = vpop.f32.mrf.mxu0
    %v6447 = vadd.f32 0.0, %v6446
    %v6448 = vpop.f32.mrf.mxu0
    %v6449 = vadd.f32 0.0, %v6448
    %6450 = vdwg.mxu0
    %v6451 = vadd.f32 %v6033, %v6413
    %v6452 = vadd.f32 %v6034, %v6415
    %v6453 = vadd.f32 %v6035, %v6417
    %v6454 = vadd.f32 %v6036, %v6419
    %v6455 = vadd.f32 %v6037, %v6423
    %v6456 = vadd.f32 %v6038, %v6425
    %v6457 = vadd.f32 %v6039, %v6427
    %v6458 = vadd.f32 %v6040, %v6429
    %v6459 = vadd.f32 %v6041, %v6433
    %v6460 = vadd.f32 %v6042, %v6435
    %v6461 = vadd.f32 %v6043, %v6437
    %v6462 = vadd.f32 %v6044, %v6439
    %v6463 = vadd.f32 %v6045, %v6443
    %v6464 = vadd.f32 %v6046, %v6445
    %v6465 = vadd.f32 %v6047, %v6447
    %v6466 = vadd.f32 %v6048, %v6449
    %v6467 = vld [vmem:[%s177] sm:$0xfc]
    %v6468 = vld [vmem:[%s177 + $0x8] sm:$0xfc]
    %v6469 = vld [vmem:[%s177 + $0x10] sm:$0x3]
    %v6470 = vld [vmem:[%s177 + $0x18] sm:$0x3]
    %v6471 = vld [vmem:[%s177 + $0x20] sm:$0xfc]
    %v6472 = vld [vmem:[%s177 + $0x28] sm:$0xfc]
    %v6473 = vld [vmem:[%s177 + $0x30] sm:$0x3]
    %v6474 = vld [vmem:[%s177 + $0x38] sm:$0x3]
    %v6475 = vld [vmem:[%s177 + $0x40] sm:$0xfc]
    %v6476 = vld [vmem:[%s177 + $0x48] sm:$0xfc]
    %v6477 = vld [vmem:[%s177 + $0x50] sm:$0x3]
    %v6478 = vld [vmem:[%s177 + $0x58] sm:$0x3]
    %v6479 = vld [vmem:[%s177 + $0x60] sm:$0xfc]
    %v6480 = vld [vmem:[%s177 + $0x68] sm:$0xfc]
    %v6481 = vld [vmem:[%s177 + $0x70] sm:$0x3]
    %v6482 = vld [vmem:[%s177 + $0x78] sm:$0x3]
    %v6483 = vld [vmem:[%s177 + $0xc0] sm:$0xfc]
    %v6484 = vld [vmem:[%s177 + $0xc8] sm:$0xfc]
    %v6485 = vld [vmem:[%s177 + $0xd0] sm:$0x3]
    %v6486 = vld [vmem:[%s177 + $0xd8] sm:$0x3]
    %v6487 = vld [vmem:[%s177 + $0xe0] sm:$0xfc]
    %v6488 = vld [vmem:[%s177 + $0xe8] sm:$0xfc]
    %v6489 = vld [vmem:[%s177 + $0xf0] sm:$0x3]
    %v6490 = vld [vmem:[%s177 + $0xf8] sm:$0x3]
    %v6491 = vld [vmem:[%s177 + $0x100] sm:$0xfc]
    %v6492 = vld [vmem:[%s177 + $0x108] sm:$0xfc]
    %v6493 = vld [vmem:[%s177 + $0x110] sm:$0x3]
    %v6494 = vld [vmem:[%s177 + $0x118] sm:$0x3]
    %v6495 = vld [vmem:[%s177 + $0x120] sm:$0xfc]
    %v6496 = vld [vmem:[%s177 + $0x128] sm:$0xfc]
    %v6497 = vld [vmem:[%s177 + $0x130] sm:$0x3]
    %v6498 = vld [vmem:[%s177 + $0x138] sm:$0x3]
    %v6531 = vrot.slane %v6467, 2
    %v6532 = vrot.slane %v6469, 2
    %v6533 = vsel %vm1495, %v6531, %v6532
    %v6534 = vrot.slane %v6468, 2
    %v6535 = vrot.slane %v6470, 2
    %v6536 = vsel %vm1495, %v6534, %v6535
    %v6537 = vrot.slane %v6471, 2
    %v6538 = vrot.slane %v6473, 2
    %v6539 = vsel %vm1495, %v6537, %v6538
    %v6540 = vrot.slane %v6472, 2
    %v6541 = vrot.slane %v6474, 2
    %v6542 = vsel %vm1495, %v6540, %v6541
    %v6543 = vrot.slane %v6475, 2
    %v6544 = vrot.slane %v6477, 2
    %v6545 = vsel %vm1495, %v6543, %v6544
    %v6546 = vrot.slane %v6476, 2
    %v6547 = vrot.slane %v6478, 2
    %v6548 = vsel %vm1495, %v6546, %v6547
    %v6549 = vrot.slane %v6479, 2
    %v6550 = vrot.slane %v6481, 2
    %v6551 = vsel %vm1495, %v6549, %v6550
    %v6552 = vrot.slane %v6480, 2
    %v6553 = vrot.slane %v6482, 2
    %v6554 = vsel %vm1495, %v6552, %v6553
    %v6555 = vrot.slane %v6483, 2
    %v6556 = vrot.slane %v6485, 2
    %v6557 = vsel %vm1495, %v6555, %v6556
    %v6558 = vrot.slane %v6484, 2
    %v6559 = vrot.slane %v6486, 2
    %v6560 = vsel %vm1495, %v6558, %v6559
    %v6561 = vrot.slane %v6487, 2
    %v6562 = vrot.slane %v6489, 2
    %v6563 = vsel %vm1495, %v6561, %v6562
    %v6564 = vrot.slane %v6488, 2
    %v6565 = vrot.slane %v6490, 2
    %v6566 = vsel %vm1495, %v6564, %v6565
    %v6567 = vrot.slane %v6491, 2
    %v6568 = vrot.slane %v6493, 2
    %v6569 = vsel %vm1495, %v6567, %v6568
    %v6570 = vrot.slane %v6492, 2
    %v6571 = vrot.slane %v6494, 2
    %v6572 = vsel %vm1495, %v6570, %v6571
    %v6573 = vrot.slane %v6495, 2
    %v6574 = vrot.slane %v6497, 2
    %v6575 = vsel %vm1495, %v6573, %v6574
    %v6576 = vrot.slane %v6496, 2
    %v6577 = vrot.slane %v6498, 2
    %v6578 = vsel %vm1495, %v6576, %v6577
    %v6595 = vpack.c.bf16 %v6539, %v6533
    %v6596 = vpack.c.bf16 %v6542, %v6536
    %v6597 = vpack.c.bf16 %v6551, %v6545
    %v6598 = vpack.c.bf16 %v6554, %v6548
    %v6599 = vpack.c.bf16 %v6563, %v6557
    %v6600 = vpack.c.bf16 %v6566, %v6560
    %v6601 = vpack.c.bf16 %v6575, %v6569
    %v6602 = vpack.c.bf16 %v6578, %v6572
    %s6603 = scalar_lea.vmem [#allocation17], 1280
    %v6604 = vld [vmem:[%s6603] sm:$0xff]
    %v6605 = vld [vmem:[%s6603 + $0x8] sm:$0xff]
    %v6606 = vld [vmem:[%s6603 + $0x10] sm:$0xff]
    %v6607 = vld [vmem:[%s6603 + $0x18] sm:$0xff]
    %v6608 = vld [vmem:[%s6603 + $0x20] sm:$0xff]
    %v6609 = vld [vmem:[%s6603 + $0x28] sm:$0xff]
    %v6610 = vld [vmem:[%s6603 + $0x30] sm:$0xff]
    %v6611 = vld [vmem:[%s6603 + $0x38] sm:$0xff]
    %v6612 = vld [vmem:[%s6603 + $0x40] sm:$0xff]
    %v6613 = vld [vmem:[%s6603 + $0x48] sm:$0xff]
    %v6614 = vld [vmem:[%s6603 + $0x50] sm:$0xff]
    %v6615 = vld [vmem:[%s6603 + $0x58] sm:$0xff]
    %v6616 = vld [vmem:[%s6603 + $0x60] sm:$0xff]
    %v6617 = vld [vmem:[%s6603 + $0x68] sm:$0xff]
    %v6618 = vld [vmem:[%s6603 + $0x70] sm:$0xff]
    %v6619 = vld [vmem:[%s6603 + $0x78] sm:$0xff]
    %v6620 = vld [vmem:[%s6603 + $0x80] sm:$0xff]
    %v6621 = vld [vmem:[%s6603 + $0x88] sm:$0xff]
    %v6622 = vld [vmem:[%s6603 + $0x90] sm:$0xff]
    %v6623 = vld [vmem:[%s6603 + $0x98] sm:$0xff]
    %v6624 = vld [vmem:[%s6603 + $0xa0] sm:$0xff]
    %v6625 = vld [vmem:[%s6603 + $0xa8] sm:$0xff]
    %v6626 = vld [vmem:[%s6603 + $0xb0] sm:$0xff]
    %v6627 = vld [vmem:[%s6603 + $0xb8] sm:$0xff]
    %v6628 = vld [vmem:[%s6603 + $0xc0] sm:$0xff]
    %v6629 = vld [vmem:[%s6603 + $0xc8] sm:$0xff]
    %v6630 = vld [vmem:[%s6603 + $0xd0] sm:$0xff]
    %v6631 = vld [vmem:[%s6603 + $0xd8] sm:$0xff]
    %v6632 = vld [vmem:[%s6603 + $0xe0] sm:$0xff]
    %v6633 = vld [vmem:[%s6603 + $0xe8] sm:$0xff]
    %v6634 = vld [vmem:[%s6603 + $0xf0] sm:$0xff]
    %v6635 = vld [vmem:[%s6603 + $0xf8] sm:$0xff]
    %v6668 = vunpack.c.l.b16 %v6604
    %v6669 = vunpack.c.h.b16 %v6604
    %v6670 = vunpack.c.l.b16 %v6605
    %v6671 = vunpack.c.h.b16 %v6605
    %v6672 = vunpack.c.l.b16 %v6606
    %v6673 = vunpack.c.h.b16 %v6606
    %v6674 = vunpack.c.l.b16 %v6607
    %v6675 = vunpack.c.h.b16 %v6607
    %v6676 = vunpack.c.l.b16 %v6608
    %v6677 = vunpack.c.h.b16 %v6608
    %v6678 = vunpack.c.l.b16 %v6609
    %v6679 = vunpack.c.h.b16 %v6609
    %v6680 = vunpack.c.l.b16 %v6610
    %v6681 = vunpack.c.h.b16 %v6610
    %v6682 = vunpack.c.l.b16 %v6611
    %v6683 = vunpack.c.h.b16 %v6611
    %v6684 = vunpack.c.l.b16 %v6612
    %v6685 = vunpack.c.h.b16 %v6612
    %v6686 = vunpack.c.l.b16 %v6613
    %v6687 = vunpack.c.h.b16 %v6613
    %v6688 = vunpack.c.l.b16 %v6614
    %v6689 = vunpack.c.h.b16 %v6614
    %v6690 = vunpack.c.l.b16 %v6615
    %v6691 = vunpack.c.h.b16 %v6615
    %v6692 = vunpack.c.l.b16 %v6616
    %v6693 = vunpack.c.h.b16 %v6616
    %v6694 = vunpack.c.l.b16 %v6617
    %v6695 = vunpack.c.h.b16 %v6617
    %v6696 = vunpack.c.l.b16 %v6618
    %v6697 = vunpack.c.h.b16 %v6618
    %v6698 = vunpack.c.l.b16 %v6619
    %v6699 = vunpack.c.h.b16 %v6619
    %v6700 = vunpack.c.l.b16 %v6620
    %v6701 = vunpack.c.h.b16 %v6620
    %v6702 = vunpack.c.l.b16 %v6621
    %v6703 = vunpack.c.h.b16 %v6621
    %v6704 = vunpack.c.l.b16 %v6622
    %v6705 = vunpack.c.h.b16 %v6622
    %v6706 = vunpack.c.l.b16 %v6623
    %v6707 = vunpack.c.h.b16 %v6623
    %v6708 = vunpack.c.l.b16 %v6624
    %v6709 = vunpack.c.h.b16 %v6624
    %v6710 = vunpack.c.l.b16 %v6625
    %v6711 = vunpack.c.h.b16 %v6625
    %v6712 = vunpack.c.l.b16 %v6626
    %v6713 = vunpack.c.h.b16 %v6626
    %v6714 = vunpack.c.l.b16 %v6627
    %v6715 = vunpack.c.h.b16 %v6627
    %v6716 = vunpack.c.l.b16 %v6628
    %v6717 = vunpack.c.h.b16 %v6628
    %v6718 = vunpack.c.l.b16 %v6629
    %v6719 = vunpack.c.h.b16 %v6629
    %v6720 = vunpack.c.l.b16 %v6630
    %v6721 = vunpack.c.h.b16 %v6630
    %v6722 = vunpack.c.l.b16 %v6631
    %v6723 = vunpack.c.h.b16 %v6631
    %v6724 = vunpack.c.l.b16 %v6632
    %v6725 = vunpack.c.h.b16 %v6632
    %v6726 = vunpack.c.l.b16 %v6633
    %v6727 = vunpack.c.h.b16 %v6633
    %v6728 = vunpack.c.l.b16 %v6634
    %v6729 = vunpack.c.h.b16 %v6634
    %v6730 = vunpack.c.l.b16 %v6635
    %v6731 = vunpack.c.h.b16 %v6635
    %v6732 = vpack.c.b16 %v6670, %v6668
    %v6733 = vpack.c.b16 %v6671, %v6669
    %v6734 = vpack.c.b16 %v6674, %v6672
    %v6735 = vpack.c.b16 %v6675, %v6673
    %v6736 = vpack.c.b16 %v6678, %v6676
    %v6737 = vpack.c.b16 %v6679, %v6677
    %v6738 = vpack.c.b16 %v6682, %v6680
    %v6739 = vpack.c.b16 %v6683, %v6681
    %v6740 = vpack.c.b16 %v6686, %v6684
    %v6741 = vpack.c.b16 %v6687, %v6685
    %v6742 = vpack.c.b16 %v6690, %v6688
    %v6743 = vpack.c.b16 %v6691, %v6689
    %v6744 = vpack.c.b16 %v6694, %v6692
    %v6745 = vpack.c.b16 %v6695, %v6693
    %v6746 = vpack.c.b16 %v6698, %v6696
    %v6747 = vpack.c.b16 %v6699, %v6697
    %v6748 = vpack.c.b16 %v6702, %v6700
    %v6749 = vpack.c.b16 %v6703, %v6701
    %v6750 = vpack.c.b16 %v6706, %v6704
    %v6751 = vpack.c.b16 %v6707, %v6705
    %v6752 = vpack.c.b16 %v6710, %v6708
    %v6753 = vpack.c.b16 %v6711, %v6709
    %v6754 = vpack.c.b16 %v6714, %v6712
    %v6755 = vpack.c.b16 %v6715, %v6713
    %v6756 = vpack.c.b16 %v6718, %v6716
    %v6757 = vpack.c.b16 %v6719, %v6717
    %v6758 = vpack.c.b16 %v6722, %v6720
    %v6759 = vpack.c.b16 %v6723, %v6721
    %v6760 = vpack.c.b16 %v6726, %v6724
    %v6761 = vpack.c.b16 %v6727, %v6725
    %v6762 = vpack.c.b16 %v6730, %v6728
    %v6763 = vpack.c.b16 %v6731, %v6729
    %6796 = vmatprep.subr.bf16.mxu0 %v6747
    %6797 = vmatpush1.bf16.msra.mxu0 %v6746
    %6798 = vmatprep.subr.bf16.mxu0 %v6745
    %6799 = vmatpush1.bf16.msra.mxu0 %v6744
    %6800 = vmatprep.subr.bf16.mxu0 %v6743
    %6801 = vmatpush1.bf16.msra.mxu0 %v6742
    %6802 = vmatprep.subr.bf16.mxu0 %v6741
    %6803 = vmatpush1.bf16.msra.mxu0 %v6740
    %6804 = vmatprep.subr.bf16.mxu0 %v6739
    %6805 = vmatpush1.bf16.msra.mxu0 %v6738
    %6806 = vmatprep.subr.bf16.mxu0 %v6737
    %6807 = vmatpush1.bf16.msra.mxu0 %v6736
    %6808 = vmatprep.subr.bf16.mxu0 %v6735
    %6809 = vmatpush1.bf16.msra.mxu0 %v6734
    %6810 = vmatprep.subr.bf16.mxu0 %v6733
    %6811 = vmatpush1.bf16.msra.mxu0 %v6732
    %6812 = vmatprep.subr.bf16.mxu0 %v6763
    %6813 = vmatpush2.bf16.msra.mxu0 %v6762
    %6814 = vmatprep.subr.bf16.mxu0 %v6761
    %6815 = vmatpush2.bf16.msra.mxu0 %v6760
    %6816 = vmatprep.subr.bf16.mxu0 %v6759
    %6817 = vmatpush2.bf16.msra.mxu0 %v6758
    %6818 = vmatprep.subr.bf16.mxu0 %v6757
    %6819 = vmatpush2.bf16.msra.mxu0 %v6756
    %6820 = vmatprep.subr.bf16.mxu0 %v6755
    %6821 = vmatpush2.bf16.msra.mxu0 %v6754
    %6822 = vmatprep.subr.bf16.mxu0 %v6753
    %6823 = vmatpush2.bf16.msra.mxu0 %v6752
    %6824 = vmatprep.subr.bf16.mxu0 %v6751
    %6825 = vmatpush2.bf16.msra.mxu0 %v6750
    %6826 = vmatprep.subr.bf16.mxu0 %v6749
    %6827 = vmatpush2.bf16.msra.mxu0 %v6748
    %6828 = vmatprep.mubr.bf16.mxu0 %v6596
    %6829 = vmatmul.mubr.bf16.gmra.mxu0 %v6595
    %v6830 = vpop.f32.mrf.mxu0
    %v6831 = vadd.f32 0.0, %v6830
    %v6832 = vpop.f32.mrf.mxu0
    %v6833 = vadd.f32 0.0, %v6832
    %v6834 = vpop.f32.mrf.mxu0
    %v6835 = vadd.f32 0.0, %v6834
    %v6836 = vpop.f32.mrf.mxu0
    %v6837 = vadd.f32 0.0, %v6836
    %6838 = vmatprep.mubr.bf16.mxu0 %v6598
    %6839 = vmatmul.mubr.bf16.gmra.mxu0 %v6597
    %v6840 = vpop.f32.mrf.mxu0
    %v6841 = vadd.f32 0.0, %v6840
    %v6842 = vpop.f32.mrf.mxu0
    %v6843 = vadd.f32 0.0, %v6842
    %v6844 = vpop.f32.mrf.mxu0
    %v6845 = vadd.f32 0.0, %v6844
    %v6846 = vpop.f32.mrf.mxu0
    %v6847 = vadd.f32 0.0, %v6846
    %6848 = vmatprep.mubr.bf16.mxu0 %v6600
    %6849 = vmatmul.mubr.bf16.gmra.mxu0 %v6599
    %v6850 = vpop.f32.mrf.mxu0
    %v6851 = vadd.f32 0.0, %v6850
    %v6852 = vpop.f32.mrf.mxu0
    %v6853 = vadd.f32 0.0, %v6852
    %v6854 = vpop.f32.mrf.mxu0
    %v6855 = vadd.f32 0.0, %v6854
    %v6856 = vpop.f32.mrf.mxu0
    %v6857 = vadd.f32 0.0, %v6856
    %6858 = vmatprep.mubr.bf16.mxu0 %v6602
    %6859 = vmatmul.mubr.bf16.gmra.mxu0 %v6601
    %v6860 = vpop.f32.mrf.mxu0
    %v6861 = vadd.f32 0.0, %v6860
    %v6862 = vpop.f32.mrf.mxu0
    %v6863 = vadd.f32 0.0, %v6862
    %v6864 = vpop.f32.mrf.mxu0
    %v6865 = vadd.f32 0.0, %v6864
    %v6866 = vpop.f32.mrf.mxu0
    %v6867 = vadd.f32 0.0, %v6866
    %6868 = vdwg.mxu0
    %v6869 = vadd.f32 %v6451, %v6831
    %v6870 = vadd.f32 %v6452, %v6833
    %v6871 = vadd.f32 %v6453, %v6835
    %v6872 = vadd.f32 %v6454, %v6837
    %v6873 = vadd.f32 %v6455, %v6841
    %v6874 = vadd.f32 %v6456, %v6843
    %v6875 = vadd.f32 %v6457, %v6845
    %v6876 = vadd.f32 %v6458, %v6847
    %v6877 = vadd.f32 %v6459, %v6851
    %v6878 = vadd.f32 %v6460, %v6853
    %v6879 = vadd.f32 %v6461, %v6855
    %v6880 = vadd.f32 %v6462, %v6857
    %v6881 = vadd.f32 %v6463, %v6861
    %v6882 = vadd.f32 %v6464, %v6863
    %v6883 = vadd.f32 %v6465, %v6865
    %v6884 = vadd.f32 %v6466, %v6867
    %v6885 = vld [vmem:[%s2992] sm:$0xff]
    %v6886 = vld [vmem:[%s2992 + $0x8] sm:$0xff]
    %v6887 = vld [vmem:[%s2992 + $0x20] sm:$0xff]
    %v6888 = vld [vmem:[%s2992 + $0x28] sm:$0xff]
    %v6889 = vld [vmem:[%s2992 + $0x40] sm:$0xff]
    %v6890 = vld [vmem:[%s2992 + $0x48] sm:$0xff]
    %v6891 = vld [vmem:[%s2992 + $0x60] sm:$0xff]
    %v6892 = vld [vmem:[%s2992 + $0x68] sm:$0xff]
    %v6893 = vld [vmem:[%s2992 + $0xc0] sm:$0xff]
    %v6894 = vld [vmem:[%s2992 + $0xc8] sm:$0xff]
    %v6895 = vld [vmem:[%s2992 + $0xe0] sm:$0xff]
    %v6896 = vld [vmem:[%s2992 + $0xe8] sm:$0xff]
    %v6897 = vld [vmem:[%s2992 + $0x100] sm:$0xff]
    %v6898 = vld [vmem:[%s2992 + $0x108] sm:$0xff]
    %v6899 = vld [vmem:[%s2992 + $0x120] sm:$0xff]
    %v6900 = vld [vmem:[%s2992 + $0x128] sm:$0xff]
    %v6901 = vpack.c.bf16 %v6887, %v6885
    %v6902 = vpack.c.bf16 %v6888, %v6886
    %v6903 = vpack.c.bf16 %v6891, %v6889
    %v6904 = vpack.c.bf16 %v6892, %v6890
    %v6905 = vpack.c.bf16 %v6895, %v6893
    %v6906 = vpack.c.bf16 %v6896, %v6894
    %v6907 = vpack.c.bf16 %v6899, %v6897
    %v6908 = vpack.c.bf16 %v6900, %v6898
    %s6909 = scalar_lea.vmem [#allocation17], 1536
    %v6910 = vld [vmem:[%s6909] sm:$0xff]
    %v6911 = vld [vmem:[%s6909 + $0x8] sm:$0xff]
    %v6912 = vld [vmem:[%s6909 + $0x10] sm:$0xff]
    %v6913 = vld [vmem:[%s6909 + $0x18] sm:$0xff]
    %v6914 = vld [vmem:[%s6909 + $0x20] sm:$0xff]
    %v6915 = vld [vmem:[%s6909 + $0x28] sm:$0xff]
    %v6916 = vld [vmem:[%s6909 + $0x30] sm:$0xff]
    %v6917 = vld [vmem:[%s6909 + $0x38] sm:$0xff]
    %v6918 = vld [vmem:[%s6909 + $0x40] sm:$0xff]
    %v6919 = vld [vmem:[%s6909 + $0x48] sm:$0xff]
    %v6920 = vld [vmem:[%s6909 + $0x50] sm:$0xff]
    %v6921 = vld [vmem:[%s6909 + $0x58] sm:$0xff]
    %v6922 = vld [vmem:[%s6909 + $0x60] sm:$0xff]
    %v6923 = vld [vmem:[%s6909 + $0x68] sm:$0xff]
    %v6924 = vld [vmem:[%s6909 + $0x70] sm:$0xff]
    %v6925 = vld [vmem:[%s6909 + $0x78] sm:$0xff]
    %v6926 = vld [vmem:[%s6909 + $0x80] sm:$0xff]
    %v6927 = vld [vmem:[%s6909 + $0x88] sm:$0xff]
    %v6928 = vld [vmem:[%s6909 + $0x90] sm:$0xff]
    %v6929 = vld [vmem:[%s6909 + $0x98] sm:$0xff]
    %v6930 = vld [vmem:[%s6909 + $0xa0] sm:$0xff]
    %v6931 = vld [vmem:[%s6909 + $0xa8] sm:$0xff]
    %v6932 = vld [vmem:[%s6909 + $0xb0] sm:$0xff]
    %v6933 = vld [vmem:[%s6909 + $0xb8] sm:$0xff]
    %v6934 = vld [vmem:[%s6909 + $0xc0] sm:$0xff]
    %v6935 = vld [vmem:[%s6909 + $0xc8] sm:$0xff]
    %v6936 = vld [vmem:[%s6909 + $0xd0] sm:$0xff]
    %v6937 = vld [vmem:[%s6909 + $0xd8] sm:$0xff]
    %v6938 = vld [vmem:[%s6909 + $0xe0] sm:$0xff]
    %v6939 = vld [vmem:[%s6909 + $0xe8] sm:$0xff]
    %v6940 = vld [vmem:[%s6909 + $0xf0] sm:$0xff]
    %v6941 = vld [vmem:[%s6909 + $0xf8] sm:$0xff]
    %v6974 = vunpack.c.l.b16 %v6910
    %v6975 = vunpack.c.h.b16 %v6910
    %v6976 = vunpack.c.l.b16 %v6911
    %v6977 = vunpack.c.h.b16 %v6911
    %v6978 = vunpack.c.l.b16 %v6912
    %v6979 = vunpack.c.h.b16 %v6912
    %v6980 = vunpack.c.l.b16 %v6913
    %v6981 = vunpack.c.h.b16 %v6913
    %v6982 = vunpack.c.l.b16 %v6914
    %v6983 = vunpack.c.h.b16 %v6914
    %v6984 = vunpack.c.l.b16 %v6915
    %v6985 = vunpack.c.h.b16 %v6915
    %v6986 = vunpack.c.l.b16 %v6916
    %v6987 = vunpack.c.h.b16 %v6916
    %v6988 = vunpack.c.l.b16 %v6917
    %v6989 = vunpack.c.h.b16 %v6917
    %v6990 = vunpack.c.l.b16 %v6918
    %v6991 = vunpack.c.h.b16 %v6918
    %v6992 = vunpack.c.l.b16 %v6919
    %v6993 = vunpack.c.h.b16 %v6919
    %v6994 = vunpack.c.l.b16 %v6920
    %v6995 = vunpack.c.h.b16 %v6920
    %v6996 = vunpack.c.l.b16 %v6921
    %v6997 = vunpack.c.h.b16 %v6921
    %v6998 = vunpack.c.l.b16 %v6922
    %v6999 = vunpack.c.h.b16 %v6922
    %v7000 = vunpack.c.l.b16 %v6923
    %v7001 = vunpack.c.h.b16 %v6923
    %v7002 = vunpack.c.l.b16 %v6924
    %v7003 = vunpack.c.h.b16 %v6924
    %v7004 = vunpack.c.l.b16 %v6925
    %v7005 = vunpack.c.h.b16 %v6925
    %v7006 = vunpack.c.l.b16 %v6926
    %v7007 = vunpack.c.h.b16 %v6926
    %v7008 = vunpack.c.l.b16 %v6927
    %v7009 = vunpack.c.h.b16 %v6927
    %v7010 = vunpack.c.l.b16 %v6928
    %v7011 = vunpack.c.h.b16 %v6928
    %v7012 = vunpack.c.l.b16 %v6929
    %v7013 = vunpack.c.h.b16 %v6929
    %v7014 = vunpack.c.l.b16 %v6930
    %v7015 = vunpack.c.h.b16 %v6930
    %v7016 = vunpack.c.l.b16 %v6931
    %v7017 = vunpack.c.h.b16 %v6931
    %v7018 = vunpack.c.l.b16 %v6932
    %v7019 = vunpack.c.h.b16 %v6932
    %v7020 = vunpack.c.l.b16 %v6933
    %v7021 = vunpack.c.h.b16 %v6933
    %v7022 = vunpack.c.l.b16 %v6934
    %v7023 = vunpack.c.h.b16 %v6934
    %v7024 = vunpack.c.l.b16 %v6935
    %v7025 = vunpack.c.h.b16 %v6935
    %v7026 = vunpack.c.l.b16 %v6936
    %v7027 = vunpack.c.h.b16 %v6936
    %v7028 = vunpack.c.l.b16 %v6937
    %v7029 = vunpack.c.h.b16 %v6937
    %v7030 = vunpack.c.l.b16 %v6938
    %v7031 = vunpack.c.h.b16 %v6938
    %v7032 = vunpack.c.l.b16 %v6939
    %v7033 = vunpack.c.h.b16 %v6939
    %v7034 = vunpack.c.l.b16 %v6940
    %v7035 = vunpack.c.h.b16 %v6940
    %v7036 = vunpack.c.l.b16 %v6941
    %v7037 = vunpack.c.h.b16 %v6941
    %v7038 = vpack.c.b16 %v6976, %v6974
    %v7039 = vpack.c.b16 %v6977, %v6975
    %v7040 = vpack.c.b16 %v6980, %v6978
    %v7041 = vpack.c.b16 %v6981, %v6979
    %v7042 = vpack.c.b16 %v6984, %v6982
    %v7043 = vpack.c.b16 %v6985, %v6983
    %v7044 = vpack.c.b16 %v6988, %v6986
    %v7045 = vpack.c.b16 %v6989, %v6987
    %v7046 = vpack.c.b16 %v6992, %v6990
    %v7047 = vpack.c.b16 %v6993, %v6991
    %v7048 = vpack.c.b16 %v6996, %v6994
    %v7049 = vpack.c.b16 %v6997, %v6995
    %v7050 = vpack.c.b16 %v7000, %v6998
    %v7051 = vpack.c.b16 %v7001, %v6999
    %v7052 = vpack.c.b16 %v7004, %v7002
    %v7053 = vpack.c.b16 %v7005, %v7003
    %v7054 = vpack.c.b16 %v7008, %v7006
    %v7055 = vpack.c.b16 %v7009, %v7007
    %v7056 = vpack.c.b16 %v7012, %v7010
    %v7057 = vpack.c.b16 %v7013, %v7011
    %v7058 = vpack.c.b16 %v7016, %v7014
    %v7059 = vpack.c.b16 %v7017, %v7015
    %v7060 = vpack.c.b16 %v7020, %v7018
    %v7061 = vpack.c.b16 %v7021, %v7019
    %v7062 = vpack.c.b16 %v7024, %v7022
    %v7063 = vpack.c.b16 %v7025, %v7023
    %v7064 = vpack.c.b16 %v7028, %v7026
    %v7065 = vpack.c.b16 %v7029, %v7027
    %v7066 = vpack.c.b16 %v7032, %v7030
    %v7067 = vpack.c.b16 %v7033, %v7031
    %v7068 = vpack.c.b16 %v7036, %v7034
    %v7069 = vpack.c.b16 %v7037, %v7035
    %7102 = vmatprep.subr.bf16.mxu0 %v7053
    %7103 = vmatpush1.bf16.msra.mxu0 %v7052
    %7104 = vmatprep.subr.bf16.mxu0 %v7051
    %7105 = vmatpush1.bf16.msra.mxu0 %v7050
    %7106 = vmatprep.subr.bf16.mxu0 %v7049
    %7107 = vmatpush1.bf16.msra.mxu0 %v7048
    %7108 = vmatprep.subr.bf16.mxu0 %v7047
    %7109 = vmatpush1.bf16.msra.mxu0 %v7046
    %7110 = vmatprep.subr.bf16.mxu0 %v7045
    %7111 = vmatpush1.bf16.msra.mxu0 %v7044
    %7112 = vmatprep.subr.bf16.mxu0 %v7043
    %7113 = vmatpush1.bf16.msra.mxu0 %v7042
    %7114 = vmatprep.subr.bf16.mxu0 %v7041
    %7115 = vmatpush1.bf16.msra.mxu0 %v7040
    %7116 = vmatprep.subr.bf16.mxu0 %v7039
    %7117 = vmatpush1.bf16.msra.mxu0 %v7038
    %7118 = vmatprep.subr.bf16.mxu0 %v7069
    %7119 = vmatpush2.bf16.msra.mxu0 %v7068
    %7120 = vmatprep.subr.bf16.mxu0 %v7067
    %7121 = vmatpush2.bf16.msra.mxu0 %v7066
    %7122 = vmatprep.subr.bf16.mxu0 %v7065
    %7123 = vmatpush2.bf16.msra.mxu0 %v7064
    %7124 = vmatprep.subr.bf16.mxu0 %v7063
    %7125 = vmatpush2.bf16.msra.mxu0 %v7062
    %7126 = vmatprep.subr.bf16.mxu0 %v7061
    %7127 = vmatpush2.bf16.msra.mxu0 %v7060
    %7128 = vmatprep.subr.bf16.mxu0 %v7059
    %7129 = vmatpush2.bf16.msra.mxu0 %v7058
    %7130 = vmatprep.subr.bf16.mxu0 %v7057
    %7131 = vmatpush2.bf16.msra.mxu0 %v7056
    %7132 = vmatprep.subr.bf16.mxu0 %v7055
    %7133 = vmatpush2.bf16.msra.mxu0 %v7054
    %7134 = vmatprep.mubr.bf16.mxu0 %v6902
    %7135 = vmatmul.mubr.bf16.gmra.mxu0 %v6901
    %v7136 = vpop.f32.mrf.mxu0
    %v7137 = vadd.f32 0.0, %v7136
    %v7138 = vpop.f32.mrf.mxu0
    %v7139 = vadd.f32 0.0, %v7138
    %v7140 = vpop.f32.mrf.mxu0
    %v7141 = vadd.f32 0.0, %v7140
    %v7142 = vpop.f32.mrf.mxu0
    %v7143 = vadd.f32 0.0, %v7142
    %7144 = vmatprep.mubr.bf16.mxu0 %v6904
    %7145 = vmatmul.mubr.bf16.gmra.mxu0 %v6903
    %v7146 = vpop.f32.mrf.mxu0
    %v7147 = vadd.f32 0.0, %v7146
    %v7148 = vpop.f32.mrf.mxu0
    %v7149 = vadd.f32 0.0, %v7148
    %v7150 = vpop.f32.mrf.mxu0
    %v7151 = vadd.f32 0.0, %v7150
    %v7152 = vpop.f32.mrf.mxu0
    %v7153 = vadd.f32 0.0, %v7152
    %7154 = vmatprep.mubr.bf16.mxu0 %v6906
    %7155 = vmatmul.mubr.bf16.gmra.mxu0 %v6905
    %v7156 = vpop.f32.mrf.mxu0
    %v7157 = vadd.f32 0.0, %v7156
    %v7158 = vpop.f32.mrf.mxu0
    %v7159 = vadd.f32 0.0, %v7158
    %v7160 = vpop.f32.mrf.mxu0
    %v7161 = vadd.f32 0.0, %v7160
    %v7162 = vpop.f32.mrf.mxu0
    %v7163 = vadd.f32 0.0, %v7162
    %7164 = vmatprep.mubr.bf16.mxu0 %v6908
    %7165 = vmatmul.mubr.bf16.gmra.mxu0 %v6907
    %v7166 = vpop.f32.mrf.mxu0
    %v7167 = vadd.f32 0.0, %v7166
    %v7168 = vpop.f32.mrf.mxu0
    %v7169 = vadd.f32 0.0, %v7168
    %v7170 = vpop.f32.mrf.mxu0
    %v7171 = vadd.f32 0.0, %v7170
    %v7172 = vpop.f32.mrf.mxu0
    %v7173 = vadd.f32 0.0, %v7172
    %7174 = vdwg.mxu0
    %v7175 = vadd.f32 %v6869, %v7137
    %v7176 = vadd.f32 %v6870, %v7139
    %v7177 = vadd.f32 %v6871, %v7141
    %v7178 = vadd.f32 %v6872, %v7143
    %v7179 = vadd.f32 %v6873, %v7147
    %v7180 = vadd.f32 %v6874, %v7149
    %v7181 = vadd.f32 %v6875, %v7151
    %v7182 = vadd.f32 %v6876, %v7153
    %v7183 = vadd.f32 %v6877, %v7157
    %v7184 = vadd.f32 %v6878, %v7159
    %v7185 = vadd.f32 %v6879, %v7161
    %v7186 = vadd.f32 %v6880, %v7163
    %v7187 = vadd.f32 %v6881, %v7167
    %v7188 = vadd.f32 %v6882, %v7169
    %v7189 = vadd.f32 %v6883, %v7171
    %v7190 = vadd.f32 %v6884, %v7173
    %v7191 = vld [vmem:[%s2992] sm:$0xfe]
    %v7192 = vld [vmem:[%s2992 + $0x8] sm:$0xfe]
    %v7193 = vld [vmem:[%s2992 + $0x10] sm:$0x1]
    %v7194 = vld [vmem:[%s2992 + $0x18] sm:$0x1]
    %v7195 = vld [vmem:[%s2992 + $0x20] sm:$0xfe]
    %v7196 = vld [vmem:[%s2992 + $0x28] sm:$0xfe]
    %v7197 = vld [vmem:[%s2992 + $0x30] sm:$0x1]
    %v7198 = vld [vmem:[%s2992 + $0x38] sm:$0x1]
    %v7199 = vld [vmem:[%s2992 + $0x40] sm:$0xfe]
    %v7200 = vld [vmem:[%s2992 + $0x48] sm:$0xfe]
    %v7201 = vld [vmem:[%s2992 + $0x50] sm:$0x1]
    %v7202 = vld [vmem:[%s2992 + $0x58] sm:$0x1]
    %v7203 = vld [vmem:[%s2992 + $0x60] sm:$0xfe]
    %v7204 = vld [vmem:[%s2992 + $0x68] sm:$0xfe]
    %v7205 = vld [vmem:[%s2992 + $0x70] sm:$0x1]
    %v7206 = vld [vmem:[%s2992 + $0x78] sm:$0x1]
    %v7207 = vld [vmem:[%s2992 + $0xc0] sm:$0xfe]
    %v7208 = vld [vmem:[%s2992 + $0xc8] sm:$0xfe]
    %v7209 = vld [vmem:[%s2992 + $0xd0] sm:$0x1]
    %v7210 = vld [vmem:[%s2992 + $0xd8] sm:$0x1]
    %v7211 = vld [vmem:[%s2992 + $0xe0] sm:$0xfe]
    %v7212 = vld [vmem:[%s2992 + $0xe8] sm:$0xfe]
    %v7213 = vld [vmem:[%s2992 + $0xf0] sm:$0x1]
    %v7214 = vld [vmem:[%s2992 + $0xf8] sm:$0x1]
    %v7215 = vld [vmem:[%s2992 + $0x100] sm:$0xfe]
    %v7216 = vld [vmem:[%s2992 + $0x108] sm:$0xfe]
    %v7217 = vld [vmem:[%s2992 + $0x110] sm:$0x1]
    %v7218 = vld [vmem:[%s2992 + $0x118] sm:$0x1]
    %v7219 = vld [vmem:[%s2992 + $0x120] sm:$0xfe]
    %v7220 = vld [vmem:[%s2992 + $0x128] sm:$0xfe]
    %v7221 = vld [vmem:[%s2992 + $0x130] sm:$0x1]
    %v7222 = vld [vmem:[%s2992 + $0x138] sm:$0x1]
    %v7255 = vrot.slane %v7191, 1
    %v7256 = vrot.slane %v7193, 1
    %v7257 = vsel %vm859, %v7255, %v7256
    %v7258 = vrot.slane %v7192, 1
    %v7259 = vrot.slane %v7194, 1
    %v7260 = vsel %vm859, %v7258, %v7259
    %v7261 = vrot.slane %v7195, 1
    %v7262 = vrot.slane %v7197, 1
    %v7263 = vsel %vm859, %v7261, %v7262
    %v7264 = vrot.slane %v7196, 1
    %v7265 = vrot.slane %v7198, 1
    %v7266 = vsel %vm859, %v7264, %v7265
    %v7267 = vrot.slane %v7199, 1
    %v7268 = vrot.slane %v7201, 1
    %v7269 = vsel %vm859, %v7267, %v7268
    %v7270 = vrot.slane %v7200, 1
    %v7271 = vrot.slane %v7202, 1
    %v7272 = vsel %vm859, %v7270, %v7271
    %v7273 = vrot.slane %v7203, 1
    %v7274 = vrot.slane %v7205, 1
    %v7275 = vsel %vm859, %v7273, %v7274
    %v7276 = vrot.slane %v7204, 1
    %v7277 = vrot.slane %v7206, 1
    %v7278 = vsel %vm859, %v7276, %v7277
    %v7279 = vrot.slane %v7207, 1
    %v7280 = vrot.slane %v7209, 1
    %v7281 = vsel %vm859, %v7279, %v7280
    %v7282 = vrot.slane %v7208, 1
    %v7283 = vrot.slane %v7210, 1
    %v7284 = vsel %vm859, %v7282, %v7283
    %v7285 = vrot.slane %v7211, 1
    %v7286 = vrot.slane %v7213, 1
    %v7287 = vsel %vm859, %v7285, %v7286
    %v7288 = vrot.slane %v7212, 1
    %v7289 = vrot.slane %v7214, 1
    %v7290 = vsel %vm859, %v7288, %v7289
    %v7291 = vrot.slane %v7215, 1
    %v7292 = vrot.slane %v7217, 1
    %v7293 = vsel %vm859, %v7291, %v7292
    %v7294 = vrot.slane %v7216, 1
    %v7295 = vrot.slane %v7218, 1
    %v7296 = vsel %vm859, %v7294, %v7295
    %v7297 = vrot.slane %v7219, 1
    %v7298 = vrot.slane %v7221, 1
    %v7299 = vsel %vm859, %v7297, %v7298
    %v7300 = vrot.slane %v7220, 1
    %v7301 = vrot.slane %v7222, 1
    %v7302 = vsel %vm859, %v7300, %v7301
    %v7319 = vpack.c.bf16 %v7263, %v7257
    %v7320 = vpack.c.bf16 %v7266, %v7260
    %v7321 = vpack.c.bf16 %v7275, %v7269
    %v7322 = vpack.c.bf16 %v7278, %v7272
    %v7323 = vpack.c.bf16 %v7287, %v7281
    %v7324 = vpack.c.bf16 %v7290, %v7284
    %v7325 = vpack.c.bf16 %v7299, %v7293
    %v7326 = vpack.c.bf16 %v7302, %v7296
    %s7327 = scalar_lea.vmem [#allocation17], 1792
    %v7328 = vld [vmem:[%s7327] sm:$0xff]
    %v7329 = vld [vmem:[%s7327 + $0x8] sm:$0xff]
    %v7330 = vld [vmem:[%s7327 + $0x10] sm:$0xff]
    %v7331 = vld [vmem:[%s7327 + $0x18] sm:$0xff]
    %v7332 = vld [vmem:[%s7327 + $0x20] sm:$0xff]
    %v7333 = vld [vmem:[%s7327 + $0x28] sm:$0xff]
    %v7334 = vld [vmem:[%s7327 + $0x30] sm:$0xff]
    %v7335 = vld [vmem:[%s7327 + $0x38] sm:$0xff]
    %v7336 = vld [vmem:[%s7327 + $0x40] sm:$0xff]
    %v7337 = vld [vmem:[%s7327 + $0x48] sm:$0xff]
    %v7338 = vld [vmem:[%s7327 + $0x50] sm:$0xff]
    %v7339 = vld [vmem:[%s7327 + $0x58] sm:$0xff]
    %v7340 = vld [vmem:[%s7327 + $0x60] sm:$0xff]
    %v7341 = vld [vmem:[%s7327 + $0x68] sm:$0xff]
    %v7342 = vld [vmem:[%s7327 + $0x70] sm:$0xff]
    %v7343 = vld [vmem:[%s7327 + $0x78] sm:$0xff]
    %v7344 = vld [vmem:[%s7327 + $0x80] sm:$0xff]
    %v7345 = vld [vmem:[%s7327 + $0x88] sm:$0xff]
    %v7346 = vld [vmem:[%s7327 + $0x90] sm:$0xff]
    %v7347 = vld [vmem:[%s7327 + $0x98] sm:$0xff]
    %v7348 = vld [vmem:[%s7327 + $0xa0] sm:$0xff]
    %v7349 = vld [vmem:[%s7327 + $0xa8] sm:$0xff]
    %v7350 = vld [vmem:[%s7327 + $0xb0] sm:$0xff]
    %v7351 = vld [vmem:[%s7327 + $0xb8] sm:$0xff]
    %v7352 = vld [vmem:[%s7327 + $0xc0] sm:$0xff]
    %v7353 = vld [vmem:[%s7327 + $0xc8] sm:$0xff]
    %v7354 = vld [vmem:[%s7327 + $0xd0] sm:$0xff]
    %v7355 = vld [vmem:[%s7327 + $0xd8] sm:$0xff]
    %v7356 = vld [vmem:[%s7327 + $0xe0] sm:$0xff]
    %v7357 = vld [vmem:[%s7327 + $0xe8] sm:$0xff]
    %v7358 = vld [vmem:[%s7327 + $0xf0] sm:$0xff]
    %v7359 = vld [vmem:[%s7327 + $0xf8] sm:$0xff]
    %v7392 = vunpack.c.l.b16 %v7328
    %v7393 = vunpack.c.h.b16 %v7328
    %v7394 = vunpack.c.l.b16 %v7329
    %v7395 = vunpack.c.h.b16 %v7329
    %v7396 = vunpack.c.l.b16 %v7330
    %v7397 = vunpack.c.h.b16 %v7330
    %v7398 = vunpack.c.l.b16 %v7331
    %v7399 = vunpack.c.h.b16 %v7331
    %v7400 = vunpack.c.l.b16 %v7332
    %v7401 = vunpack.c.h.b16 %v7332
    %v7402 = vunpack.c.l.b16 %v7333
    %v7403 = vunpack.c.h.b16 %v7333
    %v7404 = vunpack.c.l.b16 %v7334
    %v7405 = vunpack.c.h.b16 %v7334
    %v7406 = vunpack.c.l.b16 %v7335
    %v7407 = vunpack.c.h.b16 %v7335
    %v7408 = vunpack.c.l.b16 %v7336
    %v7409 = vunpack.c.h.b16 %v7336
    %v7410 = vunpack.c.l.b16 %v7337
    %v7411 = vunpack.c.h.b16 %v7337
    %v7412 = vunpack.c.l.b16 %v7338
    %v7413 = vunpack.c.h.b16 %v7338
    %v7414 = vunpack.c.l.b16 %v7339
    %v7415 = vunpack.c.h.b16 %v7339
    %v7416 = vunpack.c.l.b16 %v7340
    %v7417 = vunpack.c.h.b16 %v7340
    %v7418 = vunpack.c.l.b16 %v7341
    %v7419 = vunpack.c.h.b16 %v7341
    %v7420 = vunpack.c.l.b16 %v7342
    %v7421 = vunpack.c.h.b16 %v7342
    %v7422 = vunpack.c.l.b16 %v7343
    %v7423 = vunpack.c.h.b16 %v7343
    %v7424 = vunpack.c.l.b16 %v7344
    %v7425 = vunpack.c.h.b16 %v7344
    %v7426 = vunpack.c.l.b16 %v7345
    %v7427 = vunpack.c.h.b16 %v7345
    %v7428 = vunpack.c.l.b16 %v7346
    %v7429 = vunpack.c.h.b16 %v7346
    %v7430 = vunpack.c.l.b16 %v7347
    %v7431 = vunpack.c.h.b16 %v7347
    %v7432 = vunpack.c.l.b16 %v7348
    %v7433 = vunpack.c.h.b16 %v7348
    %v7434 = vunpack.c.l.b16 %v7349
    %v7435 = vunpack.c.h.b16 %v7349
    %v7436 = vunpack.c.l.b16 %v7350
    %v7437 = vunpack.c.h.b16 %v7350
    %v7438 = vunpack.c.l.b16 %v7351
    %v7439 = vunpack.c.h.b16 %v7351
    %v7440 = vunpack.c.l.b16 %v7352
    %v7441 = vunpack.c.h.b16 %v7352
    %v7442 = vunpack.c.l.b16 %v7353
    %v7443 = vunpack.c.h.b16 %v7353
    %v7444 = vunpack.c.l.b16 %v7354
    %v7445 = vunpack.c.h.b16 %v7354
    %v7446 = vunpack.c.l.b16 %v7355
    %v7447 = vunpack.c.h.b16 %v7355
    %v7448 = vunpack.c.l.b16 %v7356
    %v7449 = vunpack.c.h.b16 %v7356
    %v7450 = vunpack.c.l.b16 %v7357
    %v7451 = vunpack.c.h.b16 %v7357
    %v7452 = vunpack.c.l.b16 %v7358
    %v7453 = vunpack.c.h.b16 %v7358
    %v7454 = vunpack.c.l.b16 %v7359
    %v7455 = vunpack.c.h.b16 %v7359
    %v7456 = vpack.c.b16 %v7394, %v7392
    %v7457 = vpack.c.b16 %v7395, %v7393
    %v7458 = vpack.c.b16 %v7398, %v7396
    %v7459 = vpack.c.b16 %v7399, %v7397
    %v7460 = vpack.c.b16 %v7402, %v7400
    %v7461 = vpack.c.b16 %v7403, %v7401
    %v7462 = vpack.c.b16 %v7406, %v7404
    %v7463 = vpack.c.b16 %v7407, %v7405
    %v7464 = vpack.c.b16 %v7410, %v7408
    %v7465 = vpack.c.b16 %v7411, %v7409
    %v7466 = vpack.c.b16 %v7414, %v7412
    %v7467 = vpack.c.b16 %v7415, %v7413
    %v7468 = vpack.c.b16 %v7418, %v7416
    %v7469 = vpack.c.b16 %v7419, %v7417
    %v7470 = vpack.c.b16 %v7422, %v7420
    %v7471 = vpack.c.b16 %v7423, %v7421
    %v7472 = vpack.c.b16 %v7426, %v7424
    %v7473 = vpack.c.b16 %v7427, %v7425
    %v7474 = vpack.c.b16 %v7430, %v7428
    %v7475 = vpack.c.b16 %v7431, %v7429
    %v7476 = vpack.c.b16 %v7434, %v7432
    %v7477 = vpack.c.b16 %v7435, %v7433
    %v7478 = vpack.c.b16 %v7438, %v7436
    %v7479 = vpack.c.b16 %v7439, %v7437
    %v7480 = vpack.c.b16 %v7442, %v7440
    %v7481 = vpack.c.b16 %v7443, %v7441
    %v7482 = vpack.c.b16 %v7446, %v7444
    %v7483 = vpack.c.b16 %v7447, %v7445
    %v7484 = vpack.c.b16 %v7450, %v7448
    %v7485 = vpack.c.b16 %v7451, %v7449
    %v7486 = vpack.c.b16 %v7454, %v7452
    %v7487 = vpack.c.b16 %v7455, %v7453
    %7520 = vmatprep.subr.bf16.mxu0 %v7471
    %7521 = vmatpush1.bf16.msra.mxu0 %v7470
    %7522 = vmatprep.subr.bf16.mxu0 %v7469
    %7523 = vmatpush1.bf16.msra.mxu0 %v7468
    %7524 = vmatprep.subr.bf16.mxu0 %v7467
    %7525 = vmatpush1.bf16.msra.mxu0 %v7466
    %7526 = vmatprep.subr.bf16.mxu0 %v7465
    %7527 = vmatpush1.bf16.msra.mxu0 %v7464
    %7528 = vmatprep.subr.bf16.mxu0 %v7463
    %7529 = vmatpush1.bf16.msra.mxu0 %v7462
    %7530 = vmatprep.subr.bf16.mxu0 %v7461
    %7531 = vmatpush1.bf16.msra.mxu0 %v7460
    %7532 = vmatprep.subr.bf16.mxu0 %v7459
    %7533 = vmatpush1.bf16.msra.mxu0 %v7458
    %7534 = vmatprep.subr.bf16.mxu0 %v7457
    %7535 = vmatpush1.bf16.msra.mxu0 %v7456
    %7536 = vmatprep.subr.bf16.mxu0 %v7487
    %7537 = vmatpush2.bf16.msra.mxu0 %v7486
    %7538 = vmatprep.subr.bf16.mxu0 %v7485
    %7539 = vmatpush2.bf16.msra.mxu0 %v7484
    %7540 = vmatprep.subr.bf16.mxu0 %v7483
    %7541 = vmatpush2.bf16.msra.mxu0 %v7482
    %7542 = vmatprep.subr.bf16.mxu0 %v7481
    %7543 = vmatpush2.bf16.msra.mxu0 %v7480
    %7544 = vmatprep.subr.bf16.mxu0 %v7479
    %7545 = vmatpush2.bf16.msra.mxu0 %v7478
    %7546 = vmatprep.subr.bf16.mxu0 %v7477
    %7547 = vmatpush2.bf16.msra.mxu0 %v7476
    %7548 = vmatprep.subr.bf16.mxu0 %v7475
    %7549 = vmatpush2.bf16.msra.mxu0 %v7474
    %7550 = vmatprep.subr.bf16.mxu0 %v7473
    %7551 = vmatpush2.bf16.msra.mxu0 %v7472
    %7552 = vmatprep.mubr.bf16.mxu0 %v7320
    %7553 = vmatmul.mubr.bf16.gmra.mxu0 %v7319
    %v7554 = vpop.f32.mrf.mxu0
    %v7555 = vadd.f32 0.0, %v7554
    %v7556 = vpop.f32.mrf.mxu0
    %v7557 = vadd.f32 0.0, %v7556
    %v7558 = vpop.f32.mrf.mxu0
    %v7559 = vadd.f32 0.0, %v7558
    %v7560 = vpop.f32.mrf.mxu0
    %v7561 = vadd.f32 0.0, %v7560
    %7562 = vmatprep.mubr.bf16.mxu0 %v7322
    %7563 = vmatmul.mubr.bf16.gmra.mxu0 %v7321
    %v7564 = vpop.f32.mrf.mxu0
    %v7565 = vadd.f32 0.0, %v7564
    %v7566 = vpop.f32.mrf.mxu0
    %v7567 = vadd.f32 0.0, %v7566
    %v7568 = vpop.f32.mrf.mxu0
    %v7569 = vadd.f32 0.0, %v7568
    %v7570 = vpop.f32.mrf.mxu0
    %v7571 = vadd.f32 0.0, %v7570
    %7572 = vmatprep.mubr.bf16.mxu0 %v7324
    %7573 = vmatmul.mubr.bf16.gmra.mxu0 %v7323
    %v7574 = vpop.f32.mrf.mxu0
    %v7575 = vadd.f32 0.0, %v7574
    %v7576 = vpop.f32.mrf.mxu0
    %v7577 = vadd.f32 0.0, %v7576
    %v7578 = vpop.f32.mrf.mxu0
    %v7579 = vadd.f32 0.0, %v7578
    %v7580 = vpop.f32.mrf.mxu0
    %v7581 = vadd.f32 0.0, %v7580
    %7582 = vmatprep.mubr.bf16.mxu0 %v7326
    %7583 = vmatmul.mubr.bf16.gmra.mxu0 %v7325
    %v7584 = vpop.f32.mrf.mxu0
    %v7585 = vadd.f32 0.0, %v7584
    %v7586 = vpop.f32.mrf.mxu0
    %v7587 = vadd.f32 0.0, %v7586
    %v7588 = vpop.f32.mrf.mxu0
    %v7589 = vadd.f32 0.0, %v7588
    %v7590 = vpop.f32.mrf.mxu0
    %v7591 = vadd.f32 0.0, %v7590
    %7592 = vdwg.mxu0
    %v7593 = vadd.f32 %v7175, %v7555
    %v7594 = vadd.f32 %v7176, %v7557
    %v7595 = vadd.f32 %v7177, %v7559
    %v7596 = vadd.f32 %v7178, %v7561
    %v7597 = vadd.f32 %v7179, %v7565
    %v7598 = vadd.f32 %v7180, %v7567
    %v7599 = vadd.f32 %v7181, %v7569
    %v7600 = vadd.f32 %v7182, %v7571
    %v7601 = vadd.f32 %v7183, %v7575
    %v7602 = vadd.f32 %v7184, %v7577
    %v7603 = vadd.f32 %v7185, %v7579
    %v7604 = vadd.f32 %v7186, %v7581
    %v7605 = vadd.f32 %v7187, %v7585
    %v7606 = vadd.f32 %v7188, %v7587
    %v7607 = vadd.f32 %v7189, %v7589
    %v7608 = vadd.f32 %v7190, %v7591
    %v7609 = vld [vmem:[%s2992] sm:$0xfc]
    %v7610 = vld [vmem:[%s2992 + $0x8] sm:$0xfc]
    %v7611 = vld [vmem:[%s2992 + $0x10] sm:$0x3]
    %v7612 = vld [vmem:[%s2992 + $0x18] sm:$0x3]
    %v7613 = vld [vmem:[%s2992 + $0x20] sm:$0xfc]
    %v7614 = vld [vmem:[%s2992 + $0x28] sm:$0xfc]
    %v7615 = vld [vmem:[%s2992 + $0x30] sm:$0x3]
    %v7616 = vld [vmem:[%s2992 + $0x38] sm:$0x3]
    %v7617 = vld [vmem:[%s2992 + $0x40] sm:$0xfc]
    %v7618 = vld [vmem:[%s2992 + $0x48] sm:$0xfc]
    %v7619 = vld [vmem:[%s2992 + $0x50] sm:$0x3]
    %v7620 = vld [vmem:[%s2992 + $0x58] sm:$0x3]
    %v7621 = vld [vmem:[%s2992 + $0x60] sm:$0xfc]
    %v7622 = vld [vmem:[%s2992 + $0x68] sm:$0xfc]
    %v7623 = vld [vmem:[%s2992 + $0x70] sm:$0x3]
    %v7624 = vld [vmem:[%s2992 + $0x78] sm:$0x3]
    %v7625 = vld [vmem:[%s2992 + $0xc0] sm:$0xfc]
    %v7626 = vld [vmem:[%s2992 + $0xc8] sm:$0xfc]
    %v7627 = vld [vmem:[%s2992 + $0xd0] sm:$0x3]
    %v7628 = vld [vmem:[%s2992 + $0xd8] sm:$0x3]
    %v7629 = vld [vmem:[%s2992 + $0xe0] sm:$0xfc]
    %v7630 = vld [vmem:[%s2992 + $0xe8] sm:$0xfc]
    %v7631 = vld [vmem:[%s2992 + $0xf0] sm:$0x3]
    %v7632 = vld [vmem:[%s2992 + $0xf8] sm:$0x3]
    %v7633 = vld [vmem:[%s2992 + $0x100] sm:$0xfc]
    %v7634 = vld [vmem:[%s2992 + $0x108] sm:$0xfc]
    %v7635 = vld [vmem:[%s2992 + $0x110] sm:$0x3]
    %v7636 = vld [vmem:[%s2992 + $0x118] sm:$0x3]
    %v7637 = vld [vmem:[%s2992 + $0x120] sm:$0xfc]
    %v7638 = vld [vmem:[%s2992 + $0x128] sm:$0xfc]
    %v7639 = vld [vmem:[%s2992 + $0x130] sm:$0x3]
    %v7640 = vld [vmem:[%s2992 + $0x138] sm:$0x3]
    %v7673 = vrot.slane %v7609, 2
    %v7674 = vrot.slane %v7611, 2
    %v7675 = vsel %vm1495, %v7673, %v7674
    %v7676 = vrot.slane %v7610, 2
    %v7677 = vrot.slane %v7612, 2
    %v7678 = vsel %vm1495, %v7676, %v7677
    %v7679 = vrot.slane %v7613, 2
    %v7680 = vrot.slane %v7615, 2
    %v7681 = vsel %vm1495, %v7679, %v7680
    %v7682 = vrot.slane %v7614, 2
    %v7683 = vrot.slane %v7616, 2
    %v7684 = vsel %vm1495, %v7682, %v7683
    %v7685 = vrot.slane %v7617, 2
    %v7686 = vrot.slane %v7619, 2
    %v7687 = vsel %vm1495, %v7685, %v7686
    %v7688 = vrot.slane %v7618, 2
    %v7689 = vrot.slane %v7620, 2
    %v7690 = vsel %vm1495, %v7688, %v7689
    %v7691 = vrot.slane %v7621, 2
    %v7692 = vrot.slane %v7623, 2
    %v7693 = vsel %vm1495, %v7691, %v7692
    %v7694 = vrot.slane %v7622, 2
    %v7695 = vrot.slane %v7624, 2
    %v7696 = vsel %vm1495, %v7694, %v7695
    %v7697 = vrot.slane %v7625, 2
    %v7698 = vrot.slane %v7627, 2
    %v7699 = vsel %vm1495, %v7697, %v7698
    %v7700 = vrot.slane %v7626, 2
    %v7701 = vrot.slane %v7628, 2
    %v7702 = vsel %vm1495, %v7700, %v7701
    %v7703 = vrot.slane %v7629, 2
    %v7704 = vrot.slane %v7631, 2
    %v7705 = vsel %vm1495, %v7703, %v7704
    %v7706 = vrot.slane %v7630, 2
    %v7707 = vrot.slane %v7632, 2
    %v7708 = vsel %vm1495, %v7706, %v7707
    %v7709 = vrot.slane %v7633, 2
    %v7710 = vrot.slane %v7635, 2
    %v7711 = vsel %vm1495, %v7709, %v7710
    %v7712 = vrot.slane %v7634, 2
    %v7713 = vrot.slane %v7636, 2
    %v7714 = vsel %vm1495, %v7712, %v7713
    %v7715 = vrot.slane %v7637, 2
    %v7716 = vrot.slane %v7639, 2
    %v7717 = vsel %vm1495, %v7715, %v7716
    %v7718 = vrot.slane %v7638, 2
    %v7719 = vrot.slane %v7640, 2
    %v7720 = vsel %vm1495, %v7718, %v7719
    %v7737 = vpack.c.bf16 %v7681, %v7675
    %v7738 = vpack.c.bf16 %v7684, %v7678
    %v7739 = vpack.c.bf16 %v7693, %v7687
    %v7740 = vpack.c.bf16 %v7696, %v7690
    %v7741 = vpack.c.bf16 %v7705, %v7699
    %v7742 = vpack.c.bf16 %v7708, %v7702
    %v7743 = vpack.c.bf16 %v7717, %v7711
    %v7744 = vpack.c.bf16 %v7720, %v7714
    %s7745 = scalar_lea.vmem [#allocation17], 2048
    %v7746 = vld [vmem:[%s7745] sm:$0xff]
    %v7747 = vld [vmem:[%s7745 + $0x8] sm:$0xff]
    %v7748 = vld [vmem:[%s7745 + $0x10] sm:$0xff]
    %v7749 = vld [vmem:[%s7745 + $0x18] sm:$0xff]
    %v7750 = vld [vmem:[%s7745 + $0x20] sm:$0xff]
    %v7751 = vld [vmem:[%s7745 + $0x28] sm:$0xff]
    %v7752 = vld [vmem:[%s7745 + $0x30] sm:$0xff]
    %v7753 = vld [vmem:[%s7745 + $0x38] sm:$0xff]
    %v7754 = vld [vmem:[%s7745 + $0x40] sm:$0xff]
    %v7755 = vld [vmem:[%s7745 + $0x48] sm:$0xff]
    %v7756 = vld [vmem:[%s7745 + $0x50] sm:$0xff]
    %v7757 = vld [vmem:[%s7745 + $0x58] sm:$0xff]
    %v7758 = vld [vmem:[%s7745 + $0x60] sm:$0xff]
    %v7759 = vld [vmem:[%s7745 + $0x68] sm:$0xff]
    %v7760 = vld [vmem:[%s7745 + $0x70] sm:$0xff]
    %v7761 = vld [vmem:[%s7745 + $0x78] sm:$0xff]
    %v7762 = vld [vmem:[%s7745 + $0x80] sm:$0xff]
    %v7763 = vld [vmem:[%s7745 + $0x88] sm:$0xff]
    %v7764 = vld [vmem:[%s7745 + $0x90] sm:$0xff]
    %v7765 = vld [vmem:[%s7745 + $0x98] sm:$0xff]
    %v7766 = vld [vmem:[%s7745 + $0xa0] sm:$0xff]
    %v7767 = vld [vmem:[%s7745 + $0xa8] sm:$0xff]
    %v7768 = vld [vmem:[%s7745 + $0xb0] sm:$0xff]
    %v7769 = vld [vmem:[%s7745 + $0xb8] sm:$0xff]
    %v7770 = vld [vmem:[%s7745 + $0xc0] sm:$0xff]
    %v7771 = vld [vmem:[%s7745 + $0xc8] sm:$0xff]
    %v7772 = vld [vmem:[%s7745 + $0xd0] sm:$0xff]
    %v7773 = vld [vmem:[%s7745 + $0xd8] sm:$0xff]
    %v7774 = vld [vmem:[%s7745 + $0xe0] sm:$0xff]
    %v7775 = vld [vmem:[%s7745 + $0xe8] sm:$0xff]
    %v7776 = vld [vmem:[%s7745 + $0xf0] sm:$0xff]
    %v7777 = vld [vmem:[%s7745 + $0xf8] sm:$0xff]
    %v7810 = vunpack.c.l.b16 %v7746
    %v7811 = vunpack.c.h.b16 %v7746
    %v7812 = vunpack.c.l.b16 %v7747
    %v7813 = vunpack.c.h.b16 %v7747
    %v7814 = vunpack.c.l.b16 %v7748
    %v7815 = vunpack.c.h.b16 %v7748
    %v7816 = vunpack.c.l.b16 %v7749
    %v7817 = vunpack.c.h.b16 %v7749
    %v7818 = vunpack.c.l.b16 %v7750
    %v7819 = vunpack.c.h.b16 %v7750
    %v7820 = vunpack.c.l.b16 %v7751
    %v7821 = vunpack.c.h.b16 %v7751
    %v7822 = vunpack.c.l.b16 %v7752
    %v7823 = vunpack.c.h.b16 %v7752
    %v7824 = vunpack.c.l.b16 %v7753
    %v7825 = vunpack.c.h.b16 %v7753
    %v7826 = vunpack.c.l.b16 %v7754
    %v7827 = vunpack.c.h.b16 %v7754
    %v7828 = vunpack.c.l.b16 %v7755
    %v7829 = vunpack.c.h.b16 %v7755
    %v7830 = vunpack.c.l.b16 %v7756
    %v7831 = vunpack.c.h.b16 %v7756
    %v7832 = vunpack.c.l.b16 %v7757
    %v7833 = vunpack.c.h.b16 %v7757
    %v7834 = vunpack.c.l.b16 %v7758
    %v7835 = vunpack.c.h.b16 %v7758
    %v7836 = vunpack.c.l.b16 %v7759
    %v7837 = vunpack.c.h.b16 %v7759
    %v7838 = vunpack.c.l.b16 %v7760
    %v7839 = vunpack.c.h.b16 %v7760
    %v7840 = vunpack.c.l.b16 %v7761
    %v7841 = vunpack.c.h.b16 %v7761
    %v7842 = vunpack.c.l.b16 %v7762
    %v7843 = vunpack.c.h.b16 %v7762
    %v7844 = vunpack.c.l.b16 %v7763
    %v7845 = vunpack.c.h.b16 %v7763
    %v7846 = vunpack.c.l.b16 %v7764
    %v7847 = vunpack.c.h.b16 %v7764
    %v7848 = vunpack.c.l.b16 %v7765
    %v7849 = vunpack.c.h.b16 %v7765
    %v7850 = vunpack.c.l.b16 %v7766
    %v7851 = vunpack.c.h.b16 %v7766
    %v7852 = vunpack.c.l.b16 %v7767
    %v7853 = vunpack.c.h.b16 %v7767
    %v7854 = vunpack.c.l.b16 %v7768
    %v7855 = vunpack.c.h.b16 %v7768
    %v7856 = vunpack.c.l.b16 %v7769
    %v7857 = vunpack.c.h.b16 %v7769
    %v7858 = vunpack.c.l.b16 %v7770
    %v7859 = vunpack.c.h.b16 %v7770
    %v7860 = vunpack.c.l.b16 %v7771
    %v7861 = vunpack.c.h.b16 %v7771
    %v7862 = vunpack.c.l.b16 %v7772
    %v7863 = vunpack.c.h.b16 %v7772
    %v7864 = vunpack.c.l.b16 %v7773
    %v7865 = vunpack.c.h.b16 %v7773
    %v7866 = vunpack.c.l.b16 %v7774
    %v7867 = vunpack.c.h.b16 %v7774
    %v7868 = vunpack.c.l.b16 %v7775
    %v7869 = vunpack.c.h.b16 %v7775
    %v7870 = vunpack.c.l.b16 %v7776
    %v7871 = vunpack.c.h.b16 %v7776
    %v7872 = vunpack.c.l.b16 %v7777
    %v7873 = vunpack.c.h.b16 %v7777
    %v7874 = vpack.c.b16 %v7812, %v7810
    %v7875 = vpack.c.b16 %v7813, %v7811
    %v7876 = vpack.c.b16 %v7816, %v7814
    %v7877 = vpack.c.b16 %v7817, %v7815
    %v7878 = vpack.c.b16 %v7820, %v7818
    %v7879 = vpack.c.b16 %v7821, %v7819
    %v7880 = vpack.c.b16 %v7824, %v7822
    %v7881 = vpack.c.b16 %v7825, %v7823
    %v7882 = vpack.c.b16 %v7828, %v7826
    %v7883 = vpack.c.b16 %v7829, %v7827
    %v7884 = vpack.c.b16 %v7832, %v7830
    %v7885 = vpack.c.b16 %v7833, %v7831
    %v7886 = vpack.c.b16 %v7836, %v7834
    %v7887 = vpack.c.b16 %v7837, %v7835
    %v7888 = vpack.c.b16 %v7840, %v7838
    %v7889 = vpack.c.b16 %v7841, %v7839
    %v7890 = vpack.c.b16 %v7844, %v7842
    %v7891 = vpack.c.b16 %v7845, %v7843
    %v7892 = vpack.c.b16 %v7848, %v7846
    %v7893 = vpack.c.b16 %v7849, %v7847
    %v7894 = vpack.c.b16 %v7852, %v7850
    %v7895 = vpack.c.b16 %v7853, %v7851
    %v7896 = vpack.c.b16 %v7856, %v7854
    %v7897 = vpack.c.b16 %v7857, %v7855
    %v7898 = vpack.c.b16 %v7860, %v7858
    %v7899 = vpack.c.b16 %v7861, %v7859
    %v7900 = vpack.c.b16 %v7864, %v7862
    %v7901 = vpack.c.b16 %v7865, %v7863
    %v7902 = vpack.c.b16 %v7868, %v7866
    %v7903 = vpack.c.b16 %v7869, %v7867
    %v7904 = vpack.c.b16 %v7872, %v7870
    %v7905 = vpack.c.b16 %v7873, %v7871
    %7938 = vmatprep.subr.bf16.mxu0 %v7889
    %7939 = vmatpush1.bf16.msra.mxu0 %v7888
    %7940 = vmatprep.subr.bf16.mxu0 %v7887
    %7941 = vmatpush1.bf16.msra.mxu0 %v7886
    %7942 = vmatprep.subr.bf16.mxu0 %v7885
    %7943 = vmatpush1.bf16.msra.mxu0 %v7884
    %7944 = vmatprep.subr.bf16.mxu0 %v7883
    %7945 = vmatpush1.bf16.msra.mxu0 %v7882
    %7946 = vmatprep.subr.bf16.mxu0 %v7881
    %7947 = vmatpush1.bf16.msra.mxu0 %v7880
    %7948 = vmatprep.subr.bf16.mxu0 %v7879
    %7949 = vmatpush1.bf16.msra.mxu0 %v7878
    %7950 = vmatprep.subr.bf16.mxu0 %v7877
    %7951 = vmatpush1.bf16.msra.mxu0 %v7876
    %7952 = vmatprep.subr.bf16.mxu0 %v7875
    %7953 = vmatpush1.bf16.msra.mxu0 %v7874
    %7954 = vmatprep.subr.bf16.mxu0 %v7905
    %7955 = vmatpush2.bf16.msra.mxu0 %v7904
    %7956 = vmatprep.subr.bf16.mxu0 %v7903
    %7957 = vmatpush2.bf16.msra.mxu0 %v7902
    %7958 = vmatprep.subr.bf16.mxu0 %v7901
    %7959 = vmatpush2.bf16.msra.mxu0 %v7900
    %7960 = vmatprep.subr.bf16.mxu0 %v7899
    %7961 = vmatpush2.bf16.msra.mxu0 %v7898
    %7962 = vmatprep.subr.bf16.mxu0 %v7897
    %7963 = vmatpush2.bf16.msra.mxu0 %v7896
    %7964 = vmatprep.subr.bf16.mxu0 %v7895
    %7965 = vmatpush2.bf16.msra.mxu0 %v7894
    %7966 = vmatprep.subr.bf16.mxu0 %v7893
    %7967 = vmatpush2.bf16.msra.mxu0 %v7892
    %7968 = vmatprep.subr.bf16.mxu0 %v7891
    %7969 = vmatpush2.bf16.msra.mxu0 %v7890
    %7970 = vmatprep.mubr.bf16.mxu0 %v7738
    %7971 = vmatmul.mubr.bf16.gmra.mxu0 %v7737
    %v7972 = vpop.f32.mrf.mxu0
    %v7973 = vadd.f32 0.0, %v7972
    %v7974 = vpop.f32.mrf.mxu0
    %v7975 = vadd.f32 0.0, %v7974
    %v7976 = vpop.f32.mrf.mxu0
    %v7977 = vadd.f32 0.0, %v7976
    %v7978 = vpop.f32.mrf.mxu0
    %v7979 = vadd.f32 0.0, %v7978
    %7980 = vmatprep.mubr.bf16.mxu0 %v7740
    %7981 = vmatmul.mubr.bf16.gmra.mxu0 %v7739
    %v7982 = vpop.f32.mrf.mxu0
    %v7983 = vadd.f32 0.0, %v7982
    %v7984 = vpop.f32.mrf.mxu0
    %v7985 = vadd.f32 0.0, %v7984
    %v7986 = vpop.f32.mrf.mxu0
    %v7987 = vadd.f32 0.0, %v7986
    %v7988 = vpop.f32.mrf.mxu0
    %v7989 = vadd.f32 0.0, %v7988
    %7990 = vmatprep.mubr.bf16.mxu0 %v7742
    %7991 = vmatmul.mubr.bf16.gmra.mxu0 %v7741
    %v7992 = vpop.f32.mrf.mxu0
    %v7993 = vadd.f32 0.0, %v7992
    %v7994 = vpop.f32.mrf.mxu0
    %v7995 = vadd.f32 0.0, %v7994
    %v7996 = vpop.f32.mrf.mxu0
    %v7997 = vadd.f32 0.0, %v7996
    %v7998 = vpop.f32.mrf.mxu0
    %v7999 = vadd.f32 0.0, %v7998
    %8000 = vmatprep.mubr.bf16.mxu0 %v7744
    %8001 = vmatmul.mubr.bf16.gmra.mxu0 %v7743
    %v8002 = vpop.f32.mrf.mxu0
    %v8003 = vadd.f32 0.0, %v8002
    %v8004 = vpop.f32.mrf.mxu0
    %v8005 = vadd.f32 0.0, %v8004
    %v8006 = vpop.f32.mrf.mxu0
    %v8007 = vadd.f32 0.0, %v8006
    %v8008 = vpop.f32.mrf.mxu0
    %v8009 = vadd.f32 0.0, %v8008
    %8010 = vdwg.mxu0
    %v8011 = vadd.f32 %v7593, %v7973
    %v8012 = vadd.f32 %v7594, %v7975
    %v8013 = vadd.f32 %v7595, %v7977
    %v8014 = vadd.f32 %v7596, %v7979
    %v8015 = vadd.f32 %v7597, %v7983
    %v8016 = vadd.f32 %v7598, %v7985
    %v8017 = vadd.f32 %v7599, %v7987
    %v8018 = vadd.f32 %v7600, %v7989
    %v8019 = vadd.f32 %v7601, %v7993
    %v8020 = vadd.f32 %v7602, %v7995
    %v8021 = vadd.f32 %v7603, %v7997
    %v8022 = vadd.f32 %v7604, %v7999
    %v8023 = vadd.f32 %v7605, %v8003
    %v8024 = vadd.f32 %v7606, %v8005
    %v8025 = vadd.f32 %v7607, %v8007
    %v8026 = vadd.f32 %v7608, %v8009
    %v8028 = vlaneseq
    %v8029 = vshrl.u32 %v8028, 7
    %v8030 = vsub.s32 0, %v8029
    %v8031 = vrot.slane %v298, %v8030
    %v8032 = vlaneseq
    %v8033 = vshrl.u32 %v8032, 7
    %v8034 = vsub.s32 1, %v8033
    %v8035 = vrot.slane %v298, %v8034
    %v8038 = vadd.f32 %v8011, %v8031
    %v8039 = vadd.f32 %v8012, %v8035
    %v8040 = vadd.f32 %v8013, %v8031
    %v8041 = vadd.f32 %v8014, %v8035
    %v8042 = vadd.f32 %v8015, %v8031
    %v8043 = vadd.f32 %v8016, %v8035
    %v8044 = vadd.f32 %v8017, %v8031
    %v8045 = vadd.f32 %v8018, %v8035
    %v8046 = vadd.f32 %v8019, %v8031
    %v8047 = vadd.f32 %v8020, %v8035
    %v8048 = vadd.f32 %v8021, %v8031
    %v8049 = vadd.f32 %v8022, %v8035
    %v8050 = vadd.f32 %v8023, %v8031
    %v8051 = vadd.f32 %v8024, %v8035
    %v8052 = vadd.f32 %v8025, %v8031
    %v8053 = vadd.f32 %v8026, %v8035
    %v8054 = vadd.f32 %v8038, %v299
    %v8055 = vadd.f32 %v8039, %v300
    %v8056 = vadd.f32 %v8040, %v301
    %v8057 = vadd.f32 %v8041, %v302
    %v8058 = vadd.f32 %v8042, %v303
    %v8059 = vadd.f32 %v8043, %v304
    %v8060 = vadd.f32 %v8044, %v305
    %v8061 = vadd.f32 %v8045, %v306
    %v8062 = vadd.f32 %v8046, %v307
    %v8063 = vadd.f32 %v8047, %v308
    %v8064 = vadd.f32 %v8048, %v309
    %v8065 = vadd.f32 %v8049, %v310
    %v8066 = vadd.f32 %v8050, %v311
    %v8067 = vadd.f32 %v8051, %v312
    %v8068 = vadd.f32 %v8052, %v313
    %v8069 = vadd.f32 %v8053, %v314
    %8070 = vst [vmem:[#allocation20] sm:$0xff] %v8054
    %8071 = vst [vmem:[#allocation20 + $0x8] sm:$0xff] %v8055
    %8072 = vst [vmem:[#allocation20 + $0x10] sm:$0xff] %v8056
    %8073 = vst [vmem:[#allocation20 + $0x18] sm:$0xff] %v8057
    %8074 = vst [vmem:[#allocation20 + $0x20] sm:$0xff] %v8058
    %8075 = vst [vmem:[#allocation20 + $0x28] sm:$0xff] %v8059
    %8076 = vst [vmem:[#allocation20 + $0x30] sm:$0xff] %v8060
    %8077 = vst [vmem:[#allocation20 + $0x38] sm:$0xff] %v8061
    %8078 = vst [vmem:[#allocation20 + $0x40] sm:$0xff] %v8062
    %8079 = vst [vmem:[#allocation20 + $0x48] sm:$0xff] %v8063
    %8080 = vst [vmem:[#allocation20 + $0x50] sm:$0xff] %v8064
    %8081 = vst [vmem:[#allocation20 + $0x58] sm:$0xff] %v8065
    %8082 = vst [vmem:[#allocation20 + $0x60] sm:$0xff] %v8066
    %8083 = vst [vmem:[#allocation20 + $0x68] sm:$0xff] %v8067
    %8084 = vst [vmem:[#allocation20 + $0x70] sm:$0xff] %v8068
    %8085 = vst [vmem:[#allocation20 + $0x78] sm:$0xff] %v8069
    // Predicated region
    $region82: #{tpu_custom_call.1} parent=1 // pred_check
      _
    $region83: #{tpu_custom_call.1} parent=1 // pred_check_branch
      %8087 = sbr.rel (0) target = $region85
    $region84: #{tpu_custom_call.1} parent=1 // pred_region
      %s8089 = ssub.s32 2048, 2048
      %8090 = vsyncadd [#allocation5], %s8089
      %s8091 = sshll.u32 [#allocation20], 4
      %s8092 = int_to_ptr.vmem [resolvable:$true] %s8091
      %8097 = dma.vmem_to_hbm [thread:$0]  %s8092, 2048, %s10, [#allocation5], 256, 256, 16
    $region85: #{tpu_custom_call.1} parent=1 // pred_fallthru
      _
    // Predicated region
    $region86: #{tpu_custom_call.1} parent=1 // pred_check
      _
    $region87: #{tpu_custom_call.1} parent=1 // pred_check_branch
      %8099 = sbr.rel (0) target = $region89
    $region88: #{tpu_custom_call.1} parent=1 // pred_region
      %8100 = dma.done [#allocation5], 2048
    $region89: #{tpu_custom_call.1} parent=1 // pred_fallthru
      _
    %8101 = vsyncpa [#allocation4], 1
    %8102 = vsyncpa [#allocation7], 1
    %8103 = vsyncpa [#allocation10], 1
    %8104 = vsyncpa [#allocation13], 1
    %8105 = vsyncpa [#allocation16], 1
    %8106 = vsyncpa [#allocation19], 1
    %8107 = vsyncpa [#allocation5], 1

</llo_original>
